<compile_context>
chip_gen: v7x
topology: tpu7x:2x2x1
jax: 0.10.0
libtpu: 0.0.40
codegen_flags: <defaults>
</compile_context>

<pallas_src>
import functools

import jax
import jax.numpy as jnp
from jax.experimental import pallas as pl
from jax.experimental.pallas import tpu as pltpu

EPS = 1e-5          # PyTorch BatchNorm default eps
K_PAD = 256         # im2col contraction 7*7*3=147 padded to a lane multiple
HAND_PAD = 128      # hand features 42 padded to a lane multiple


def _vmem_specs(n):
    return [pl.BlockSpec(memory_space=pltpu.MemorySpace.VMEM) for _ in range(n)]


# --------------------------------------------------------------------------
# Shared in-kernel math helpers (traced inside kernel bodies)
# --------------------------------------------------------------------------
def _mlp_bn_body(x, w1, b1, g, be, w2, b2):
    """Linear -> BatchNorm1d (training-mode batch stats) -> ReLU -> Linear."""
    h = jnp.dot(x.astype(jnp.bfloat16), w1, preferred_element_type=jnp.float32) + b1
    mu = jnp.mean(h, axis=0, keepdims=True)
    var = jnp.mean((h - mu) ** 2, axis=0, keepdims=True)   # biased, like torch BN fwd
    hn = (h - mu) * jax.lax.rsqrt(var + EPS) * g + be
    hr = jnp.maximum(hn, 0.0)
    return jnp.dot(hr.astype(jnp.bfloat16), w2, preferred_element_type=jnp.float32) + b2


def _lstm_layers(x, h0s, c0s, ws, bs, hidden):
    """Two stacked PyTorch LSTM cells, seq len 1.  Gate order i, f, g, o.
    Each cell is one (B,2H)@(2H,4H) matmul on concat([x, h])."""
    x_t = x
    h_out, c_out = [], []
    for layer in range(2):
        z = jnp.concatenate([x_t, h0s[layer]], axis=1).astype(jnp.bfloat16)
        gates = jnp.dot(z, ws[layer], preferred_element_type=jnp.float32) + bs[layer]
        i = jax.nn.sigmoid(gates[:, 0 * hidden:1 * hidden])
        f = jax.nn.sigmoid(gates[:, 1 * hidden:2 * hidden])
        g = jnp.tanh(gates[:, 2 * hidden:3 * hidden])
        o = jax.nn.sigmoid(gates[:, 3 * hidden:4 * hidden])
        c_new = f * c0s[layer] + i * g
        h_new = o * jnp.tanh(c_new)
        h_out.append(h_new)
        c_out.append(c_new)
        x_t = h_new
    return h_out, c_out


# --------------------------------------------------------------------------
# Kernel bodies
# --------------------------------------------------------------------------
def _stem_kernel(p_ref, cw_ref, g_ref, be_ref, fw_ref, fb_ref, o_ref, *, batch, ohw):
    # patches (B*OHW, K_PAD) bf16 @ conv_w (K_PAD, 64) -> BN2d -> ReLU ->
    # per-image global average pool -> fc (64, H).
    conv = jnp.dot(p_ref[...], cw_ref[...], preferred_element_type=jnp.float32)
    mu = jnp.mean(conv, axis=0, keepdims=True)
    var = jnp.mean((conv - mu) ** 2, axis=0, keepdims=True)
    xn = (conv - mu) * jax.lax.rsqrt(var + EPS) * g_ref[...] + be_ref[...]
    xr = jnp.maximum(xn, 0.0)
    pooled = jnp.concatenate(
        [jnp.mean(xr[b * ohw:(b + 1) * ohw, :], axis=0, keepdims=True)
         for b in range(batch)], axis=0)                               # (B, 64)
    o_ref[...] = (
        jnp.dot(pooled.astype(jnp.bfloat16), fw_ref[...],
                preferred_element_type=jnp.float32) + fb_ref[...]
    )


def _hand_fine_kernel(rgb_ref, hand_ref,
                      hw1_ref, hb1_ref, hg_ref, hbe_ref, hw2_ref, hb2_ref,
                      fw1_ref, fb1_ref, fg_ref, fbe_ref, fw2_ref, fb2_ref,
                      o_ref):
    hand_feat = _mlp_bn_body(hand_ref[...], hw1_ref[...], hb1_ref[...],
                             hg_ref[...], hbe_ref[...], hw2_ref[...], hb2_ref[...])
    cat = jnp.concatenate([rgb_ref[...], hand_feat], axis=1)
    o_ref[...] = _mlp_bn_body(cat, fw1_ref[...], fb1_ref[...], fg_ref[...],
                              fbe_ref[...], fw2_ref[...], fb2_ref[...])


def _lstm_start_kernel(feat_ref, iw1_ref, ib1_ref, ig_ref, ibe_ref,
                       wi1_ref, wi2_ref, wc1_ref, wc2_ref,
                       bi1_ref, bi2_ref, bc1_ref, bc2_ref,
                       lw_ref, lb_ref, ho_ref, co_ref, *, hidden):
    # Fused: [initiala1|initiala2|contin1|contin2] first matmul (N-concat,
    # BN1d per-column => exact), per-branch second matmuls, then 2-layer LSTM.
    H = hidden
    feat = feat_ref[...]
    h = (jnp.dot(feat.astype(jnp.bfloat16), iw1_ref[...],
                 preferred_element_type=jnp.float32) + ib1_ref[...])       # (B, 10H)
    mu = jnp.mean(h, axis=0, keepdims=True)
    var = jnp.mean((h - mu) ** 2, axis=0, keepdims=True)
    hn = (h - mu) * jax.lax.rsqrt(var + EPS) * ig_ref[...] + ibe_ref[...]
    hr = jnp.maximum(hn, 0.0).astype(jnp.bfloat16)
    c0_0 = jnp.dot(hr[:, 0 * H:2 * H], wi1_ref[...],
                   preferred_element_type=jnp.float32) + bi1_ref[...]
    c0_1 = jnp.dot(hr[:, 2 * H:4 * H], wi2_ref[...],
                   preferred_element_type=jnp.float32) + bi2_ref[...]
    h0_0 = jnp.dot(hr[:, 4 * H:7 * H], wc1_ref[...],
                   preferred_element_type=jnp.float32) + bc1_ref[...]
    h0_1 = jnp.dot(hr[:, 7 * H:10 * H], wc2_ref[...],
                   preferred_element_type=jnp.float32) + bc2_ref[...]
    h_out, c_out = _lstm_layers(feat, (h0_0, h0_1), (c0_0, c0_1),
                                (lw_ref[0], lw_ref[1]), (lb_ref[0], lb_ref[1]), H)
    ho_ref[0] = h_out[0]
    ho_ref[1] = h_out[1]
    co_ref[0] = c_out[0]
    co_ref[1] = c_out[1]


def _lstm_cont_kernel(feat_ref, h0_ref, c0_ref, lw_ref, lb_ref,
                      ho_ref, co_ref, *, hidden):
    h_out, c_out = _lstm_layers(feat_ref[...],
                                (h0_ref[0], h0_ref[1]), (c0_ref[0], c0_ref[1]),
                                (lw_ref[0], lw_ref[1]), (lb_ref[0], lb_ref[1]),
                                hidden)
    ho_ref[0] = h_out[0]
    ho_ref[1] = h_out[1]
    co_ref[0] = c_out[0]
    co_ref[1] = c_out[1]


def _heads_kernel(x_ref, w1_ref, b1_ref, g_ref, be_ref, w2_ref, b2_ref, o_ref):
    # grid=(6,) over the regression heads; per-step refs are the head's slice.
    o_ref[...] = _mlp_bn_body(x_ref[...], w1_ref[...], b1_ref[...],
                              g_ref[...], be_ref[...], w2_ref[...], b2_ref[...])


# --------------------------------------------------------------------------
# pallas_call wrappers
# --------------------------------------------------------------------------
def stem_forward(patches_bf16, p, *, batch, ohw):
    H = p["fc_w"].shape[1]
    kern = functools.partial(_stem_kernel, batch=batch, ohw=ohw)
    return pl.pallas_call(
        kern,
        out_shape=jax.ShapeDtypeStruct((batch, H), jnp.float32),
        in_specs=_vmem_specs(6),
        out_specs=pl.BlockSpec(memory_space=pltpu.MemorySpace.VMEM),
    )(patches_bf16, p["conv1_w"], p["bn1_g"], p["bn1_b"], p["fc_w"], p["fc_b"])


def hand_fine_forward(rgb_feature, hand_padded, p):
    B = rgb_feature.shape[0]
    H = p["fine_w2"].shape[1]
    return pl.pallas_call(
        _hand_fine_kernel,
        out_shape=jax.ShapeDtypeStruct((B, H), jnp.float32),
        in_specs=_vmem_specs(14),
        out_specs=pl.BlockSpec(memory_space=pltpu.MemorySpace.VMEM),
    )(rgb_feature, hand_padded,
      p["hand_w1"], p["hand_b1"], p["hand_g"], p["hand_be"], p["hand_w2"], p["hand_b2"],
      p["fine_w1"], p["fine_b1"], p["fine_g"], p["fine_be"], p["fine_w2"], p["fine_b2"])


def lstm_start_forward(feature, p):
    B, H = feature.shape
    kern = functools.partial(_lstm_start_kernel, hidden=H)
    return pl.pallas_call(
        kern,
        out_shape=(jax.ShapeDtypeStruct((2, B, H), jnp.float32),
                   jax.ShapeDtypeStruct((2, B, H), jnp.float32)),
        in_specs=_vmem_specs(15),
        out_specs=(pl.BlockSpec(memory_space=pltpu.MemorySpace.VMEM),
                   pl.BlockSpec(memory_space=pltpu.MemorySpace.VMEM)),
    )(feature,
      p["init_w1"], p["init_b1"], p["init_g"], p["init_be"],
      p["init_w2_i1"], p["init_w2_i2"], p["init_w2_c1"], p["init_w2_c2"],
      p["init_b2_i1"], p["init_b2_i2"], p["init_b2_c1"], p["init_b2_c2"],
      p["lstm_w"], p["lstm_b"])


def lstm_cont_forward(feature, h0, c0, p):
    B, H = feature.shape
    kern = functools.partial(_lstm_cont_kernel, hidden=H)
    return pl.pallas_call(
        kern,
        out_shape=(jax.ShapeDtypeStruct((2, B, H), jnp.float32),
                   jax.ShapeDtypeStruct((2, B, H), jnp.float32)),
        in_specs=_vmem_specs(5),
        out_specs=(pl.BlockSpec(memory_space=pltpu.MemorySpace.VMEM),
                   pl.BlockSpec(memory_space=pltpu.MemorySpace.VMEM)),
    )(feature, h0, c0, p["lstm_w"], p["lstm_b"])


def _head_spec(arr):
    nd = arr.ndim
    return pl.BlockSpec((None,) + tuple(arr.shape[1:]),
                        lambda h, _nd=nd: (h,) + (0,) * (_nd - 1))


def heads_forward(x_stack, p):
    S, B, _ = x_stack.shape
    N = p["heads_w2"].shape[-1]
    args = (x_stack, p["heads_w1"], p["heads_b1"], p["heads_g"],
            p["heads_be"], p["heads_w2"], p["heads_b2"])
    return pl.pallas_call(
        _heads_kernel,
        grid=(S,),
        out_shape=jax.ShapeDtypeStruct((S, B, N), jnp.float32),
        in_specs=[_head_spec(a) for a in args],
        out_specs=pl.BlockSpec((None, B, N), lambda h: (h, 0, 0)),
        compiler_params=pltpu.CompilerParams(dimension_semantics=("parallel",)),
    )(*args)


# --------------------------------------------------------------------------
# Parameter init (deterministic, synthetic; matmul weights stored in bf16)
# --------------------------------------------------------------------------
def _dense(key, fin, fout):
    return jax.random.normal(key, (fin, fout), jnp.float32) * (1.0 / (fin ** 0.5))


def init_params(key, H):
    ks = jax.random.split(key, 32)
    it = iter(ks)
    p = {}
    # --- backbone stem: conv1(3->64, 7x7/2, pad 3, bias=False), BN2d, fc(64->H)
    K = 7 * 7 * 3
    w = _dense(next(it), K, 64)
    p["conv1_w"] = jnp.pad(w, ((0, K_PAD - K), (0, 0))).astype(jnp.bfloat16)
    p["bn1_g"] = jnp.ones((1, 64), jnp.float32)
    p["bn1_b"] = jnp.zeros((1, 64), jnp.float32)
    p["fc_w"] = _dense(next(it), 64, H).astype(jnp.bfloat16)
    p["fc_b"] = jnp.zeros((1, H), jnp.float32)
    # --- hand MLP: 42 -> 2H -> H (input lane-padded to HAND_PAD) ---
    w1 = _dense(next(it), 42, 2 * H)
    p["hand_w1"] = jnp.pad(w1, ((0, HAND_PAD - 42), (0, 0))).astype(jnp.bfloat16)
    p["hand_b1"] = jnp.zeros((1, 2 * H), jnp.float32)
    p["hand_g"] = jnp.ones((1, 2 * H), jnp.float32)
    p["hand_be"] = jnp.zeros((1, 2 * H), jnp.float32)
    p["hand_w2"] = _dense(next(it), 2 * H, H).astype(jnp.bfloat16)
    p["hand_b2"] = jnp.zeros((1, H), jnp.float32)
    # --- fine MLP: 2H -> H -> H ---
    p["fine_w1"] = _dense(next(it), 2 * H, H).astype(jnp.bfloat16)
    p["fine_b1"] = jnp.zeros((1, H), jnp.float32)
    p["fine_g"] = jnp.ones((1, H), jnp.float32)
    p["fine_be"] = jnp.zeros((1, H), jnp.float32)
    p["fine_w2"] = _dense(next(it), H, H).astype(jnp.bfloat16)
    p["fine_b2"] = jnp.zeros((1, H), jnp.float32)
    # --- start-state MLPs fused along N: [initiala1 2H | initiala2 2H | contin1 3H | contin2 3H]
    wi1 = _dense(next(it), H, 2 * H)
    wi2 = _dense(next(it), H, 2 * H)
    wc1 = _dense(next(it), H, 3 * H)
    wc2 = _dense(next(it), H, 3 * H)
    p["init_w1"] = jnp.concatenate([wi1, wi2, wc1, wc2], axis=1).astype(jnp.bfloat16)
    p["init_b1"] = jnp.zeros((1, 10 * H), jnp.float32)
    p["init_g"] = jnp.ones((1, 10 * H), jnp.float32)
    p["init_be"] = jnp.zeros((1, 10 * H), jnp.float32)
    p["init_w2_i1"] = _dense(next(it), 2 * H, H).astype(jnp.bfloat16)
    p["init_w2_i2"] = _dense(next(it), 2 * H, H).astype(jnp.bfloat16)
    p["init_w2_c1"] = _dense(next(it), 3 * H, H).astype(jnp.bfloat16)
    p["init_w2_c2"] = _dense(next(it), 3 * H, H).astype(jnp.bfloat16)
    for name in ("i1", "i2", "c1", "c2"):
        p[f"init_b2_{name}"] = jnp.zeros((1, H), jnp.float32)
    # --- 2-layer LSTM: per layer concat([Wih; Whh]) -> (2H, 4H), b = bih + bhh
    lws, lbs = [], []
    for _ in range(2):
        wih = jax.random.normal(next(it), (H, 4 * H), jnp.float32) * (1.0 / (H ** 0.5))
        whh = jax.random.normal(next(it), (H, 4 * H), jnp.float32) * (1.0 / (H ** 0.5))
        lws.append(jnp.concatenate([wih, whh], axis=0))
        lbs.append(jnp.zeros((1, 4 * H), jnp.float32))
    p["lstm_w"] = jnp.stack(lws, axis=0).astype(jnp.bfloat16)   # (2, 2H, 4H)
    p["lstm_b"] = jnp.stack(lbs, axis=0)                        # (2, 1, 4H)
    # --- 6 regression heads (x, y, z, handx, handy, time): H -> 5H -> 5H, stacked
    hw1 = [_dense(next(it), H, 5 * H) for _ in range(6)]
    hw2 = [_dense(next(it), 5 * H, 5 * H) for _ in range(6)]
    p["heads_w1"] = jnp.stack(hw1, axis=0).astype(jnp.bfloat16)  # (6, H, 5H)
    p["heads_w2"] = jnp.stack(hw2, axis=0).astype(jnp.bfloat16)  # (6, 5H, 5H)
    p["heads_b1"] = jnp.zeros((6, 1, 5 * H), jnp.float32)
    p["heads_g"] = jnp.ones((6, 1, 5 * H), jnp.float32)
    p["heads_be"] = jnp.zeros((6, 1, 5 * H), jnp.float32)
    p["heads_b2"] = jnp.zeros((6, 1, 5 * H), jnp.float32)
    return p


# --------------------------------------------------------------------------
# JAX glue
# --------------------------------------------------------------------------
def im2col(x_nhwc, kh, kw, stride, pad):
    B, Hh, Ww, C = x_nhwc.shape
    xp = jnp.pad(x_nhwc, ((0, 0), (pad, pad), (pad, pad), (0, 0)))
    OH = (Hh + 2 * pad - kh) // stride + 1
    OW = (Ww + 2 * pad - kw) // stride + 1
    cols = []
    for i in range(kh):
        for j in range(kw):
            cols.append(xp[:, i:i + stride * OH:stride, j:j + stride * OW:stride, :])
    patches = jnp.stack(cols, axis=3)                # (B, OH, OW, kh*kw, C)
    return patches.reshape(B, OH, OW, kh * kw * C), OH, OW


def forward(params, img, hand, start, hout, cout):
    B = img.shape[0]
    # ---- rgb backbone (stem + BN + ReLU + global pool + fc), one kernel ----
    x = jnp.transpose(img, (0, 2, 3, 1)).astype(jnp.float32)      # NCHW -> NHWC
    patches, OH, OW = im2col(x, 7, 7, 2, 3)
    K = patches.shape[-1]
    patches = patches.reshape(B * OH * OW, K)
    patches = jnp.pad(patches, ((0, 0), (0, K_PAD - K))).astype(jnp.bfloat16)
    rgb_feature = stem_forward(patches, params, batch=B, ohw=OH * OW)      # (B, H)

    # ---- hand branch + concat + fusion MLP, one kernel ----
    hand_p = jnp.pad(hand.astype(jnp.float32), ((0, 0), (0, HAND_PAD - hand.shape[1])))
    feature = hand_fine_forward(rgb_feature, hand_p, params)               # (B, H)

    # ---- streaming LSTM state + 2-layer LSTM (seq len 1), one kernel ----
    if start:
        hout_new, cout_new = lstm_start_forward(feature, params)
    else:
        hout_new, cout_new = lstm_cont_forward(feature, hout, cout, params)
    output_last = hout_new[1]                                              # output[-1]

    # ---- 6 regression heads, one grid=(6,) kernel ----
    head_in = jnp.stack([output_last, output_last, output_last,
                         rgb_feature, rgb_feature, output_last], axis=0)   # (6, B, H)
    res6 = heads_forward(head_in, params)                                  # (6, B, 5H)
    res = jnp.transpose(res6, (1, 0, 2))                                   # (B, 6, 5H)
    return res, hout_new, cout_new


if __name__ == "__main__":
    H = 128   # scaled-down midfc_channel (original 1024)
    B = 2
    IMG = 32

    key = jax.random.PRNGKey(0)
    kp, ki, kh = jax.random.split(key, 3)
    params = init_params(kp, H)

    img = jax.random.normal(ki, (B, 3, IMG, IMG), jnp.float32)   # NCHW like PyTorch
    hand = jax.random.normal(kh, (B, 42), jnp.float32)
    hout = jnp.zeros((2, B, H), jnp.float32)
    cout = jnp.zeros((2, B, H), jnp.float32)

    fwd = jax.jit(forward, static_argnames=("start",))

    # start=True path (LSTM state initialized from feature)
    res, hout1, cout1 = fwd(params, img, hand, start=True, hout=hout, cout=cout)
    # start=False path (streaming continuation with carried state)
    res2, hout2, cout2 = fwd(params, img, hand, start=False, hout=hout1, cout=cout1)

    jax.block_until_ready((res, hout1, cout1, res2, hout2, cout2))
    assert res.shape == (B, 6, 5 * H)
    assert res2.shape == (B, 6, 5 * H)
    assert hout1.shape == (2, B, H) and cout1.shape == (2, B, H)
    print("KERNEL_OK")
</pallas_src>

<mosaic_0001>
module attributes {stable_mosaic.version = 11 : i64} {
  func.func @_stem_kernel(%arg0: memref<512x256xbf16, #tpu.memory_space<vmem>>, %arg1: memref<256x64xbf16, #tpu.memory_space<vmem>>, %arg2: memref<1x64xf32, #tpu.memory_space<vmem>>, %arg3: memref<1x64xf32, #tpu.memory_space<vmem>>, %arg4: memref<64x128xbf16, #tpu.memory_space<vmem>>, %arg5: memref<1x128xf32, #tpu.memory_space<vmem>>, %arg6: memref<2x128xf32, #tpu.memory_space<vmem>>) attributes {dimension_semantics = [], scalar_prefetch = 0 : i64, scratch_operands = 0 : i64, tpu.core_type = #tpu.core_type<tc>} {
    %c0 = arith.constant 0 : index
    %c0_0 = arith.constant 0 : index
    %0 = vector.load %arg0[%c0, %c0_0] : memref<512x256xbf16, #tpu.memory_space<vmem>>, vector<512x256xbf16>
    %c0_1 = arith.constant 0 : index
    %c0_2 = arith.constant 0 : index
    %1 = vector.load %arg1[%c0_1, %c0_2] : memref<256x64xbf16, #tpu.memory_space<vmem>>, vector<256x64xbf16>
    %cst = arith.constant dense<0.000000e+00> : vector<512x64xf32>
    %2 = tpu.matmul %0, %1, %cst {dimension_numbers = #tpu.dot_dimension_numbers<[1], [0], [0], [1], [0, 0, 1, 1], [], []>} : vector<512x256xbf16>, vector<256x64xbf16>, vector<512x64xf32> -> vector<512x64xf32>
    %cst_3 = arith.constant dense<0.000000e+00> : vector<64xf32>
    %3 = vector.multi_reduction <add>, %2, %cst_3 [0] : vector<512x64xf32> to vector<64xf32>
    %4 = vector.shape_cast %3 : vector<64xf32> to vector<1x64xf32>
    %cst_4 = arith.constant 5.120000e+02 : f32
    %5 = vector.broadcast %cst_4 : f32 to vector<1x64xf32>
    %6 = arith.divf %4, %5 : vector<1x64xf32>
    %7 = vector.broadcast %6 : vector<1x64xf32> to vector<512x64xf32>
    %8 = arith.subf %2, %7 : vector<512x64xf32>
    %9 = arith.mulf %8, %8 : vector<512x64xf32>
    %cst_5 = arith.constant dense<0.000000e+00> : vector<64xf32>
    %10 = vector.multi_reduction <add>, %9, %cst_5 [0] : vector<512x64xf32> to vector<64xf32>
    %11 = vector.shape_cast %10 : vector<64xf32> to vector<1x64xf32>
    %cst_6 = arith.constant 5.120000e+02 : f32
    %12 = vector.broadcast %cst_6 : f32 to vector<1x64xf32>
    %13 = arith.divf %11, %12 : vector<1x64xf32>
    %14 = vector.broadcast %6 : vector<1x64xf32> to vector<512x64xf32>
    %15 = arith.subf %2, %14 : vector<512x64xf32>
    %cst_7 = arith.constant 9.99999974E-6 : f32
    %16 = vector.broadcast %cst_7 : f32 to vector<1x64xf32>
    %17 = arith.addf %13, %16 : vector<1x64xf32>
    %18 = math.rsqrt %17 : vector<1x64xf32>
    %19 = vector.broadcast %18 : vector<1x64xf32> to vector<512x64xf32>
    %20 = arith.mulf %15, %19 : vector<512x64xf32>
    %c0_8 = arith.constant 0 : index
    %c0_9 = arith.constant 0 : index
    %21 = vector.load %arg2[%c0_8, %c0_9] : memref<1x64xf32, #tpu.memory_space<vmem>>, vector<1x64xf32>
    %22 = vector.broadcast %21 : vector<1x64xf32> to vector<512x64xf32>
    %23 = arith.mulf %20, %22 : vector<512x64xf32>
    %c0_10 = arith.constant 0 : index
    %c0_11 = arith.constant 0 : index
    %24 = vector.load %arg3[%c0_10, %c0_11] : memref<1x64xf32, #tpu.memory_space<vmem>>, vector<1x64xf32>
    %25 = vector.broadcast %24 : vector<1x64xf32> to vector<512x64xf32>
    %26 = arith.addf %23, %25 : vector<512x64xf32>
    %cst_12 = arith.constant 0.000000e+00 : f32
    %27 = vector.broadcast %cst_12 : f32 to vector<512x64xf32>
    %28 = arith.maximumf %26, %27 : vector<512x64xf32>
    %29 = vector.extract_strided_slice %28 {offsets = [0, 0], sizes = [256, 64], strides = [1, 1]} : vector<512x64xf32> to vector<256x64xf32>
    %cst_13 = arith.constant dense<0.000000e+00> : vector<64xf32>
    %30 = vector.multi_reduction <add>, %29, %cst_13 [0] : vector<256x64xf32> to vector<64xf32>
    %31 = vector.shape_cast %30 : vector<64xf32> to vector<1x64xf32>
    %cst_14 = arith.constant 2.560000e+02 : f32
    %32 = vector.broadcast %cst_14 : f32 to vector<1x64xf32>
    %33 = arith.divf %31, %32 : vector<1x64xf32>
    %34 = vector.extract_strided_slice %28 {offsets = [256, 0], sizes = [256, 64], strides = [1, 1]} : vector<512x64xf32> to vector<256x64xf32>
    %cst_15 = arith.constant dense<0.000000e+00> : vector<64xf32>
    %35 = vector.multi_reduction <add>, %34, %cst_15 [0] : vector<256x64xf32> to vector<64xf32>
    %36 = vector.shape_cast %35 : vector<64xf32> to vector<1x64xf32>
    %cst_16 = arith.constant 2.560000e+02 : f32
    %37 = vector.broadcast %cst_16 : f32 to vector<1x64xf32>
    %38 = arith.divf %36, %37 : vector<1x64xf32>
    %39 = tpu.concatenate %33, %38 in 0 : vector<1x64xf32>, vector<1x64xf32> -> vector<2x64xf32>
    %40 = arith.truncf %39 : vector<2x64xf32> to vector<2x64xbf16>
    %c0_17 = arith.constant 0 : index
    %c0_18 = arith.constant 0 : index
    %41 = vector.load %arg4[%c0_17, %c0_18] : memref<64x128xbf16, #tpu.memory_space<vmem>>, vector<64x128xbf16>
    %cst_19 = arith.constant dense<0.000000e+00> : vector<2x128xf32>
    %42 = tpu.matmul %40, %41, %cst_19 {dimension_numbers = #tpu.dot_dimension_numbers<[1], [0], [0], [1], [0, 0, 1, 1], [], []>} : vector<2x64xbf16>, vector<64x128xbf16>, vector<2x128xf32> -> vector<2x128xf32>
    %c0_20 = arith.constant 0 : index
    %c0_21 = arith.constant 0 : index
    %43 = vector.load %arg5[%c0_20, %c0_21] : memref<1x128xf32, #tpu.memory_space<vmem>>, vector<1x128xf32>
    %44 = vector.broadcast %43 : vector<1x128xf32> to vector<2x128xf32>
    %45 = arith.addf %42, %44 : vector<2x128xf32>
    %c0_22 = arith.constant 0 : index
    %c0_23 = arith.constant 0 : index
    %46 = vector.load %arg6[%c0_22, %c0_23] : memref<2x128xf32, #tpu.memory_space<vmem>>, vector<2x128xf32>
    tpu.vector_store %arg6[%c0_22, %c0_23], %45 {strides = array<i32>} : memref<2x128xf32, #tpu.memory_space<vmem>>, vector<2x128xf32>,
    return
  }
}

module attributes {stable_mosaic.version = 11 : i64} {
  func.func @_hand_fine_kernel(%arg0: memref<2x128xf32, #tpu.memory_space<vmem>>, %arg1: memref<2x128xf32, #tpu.memory_space<vmem>>, %arg2: memref<128x256xbf16, #tpu.memory_space<vmem>>, %arg3: memref<1x256xf32, #tpu.memory_space<vmem>>, %arg4: memref<1x256xf32, #tpu.memory_space<vmem>>, %arg5: memref<1x256xf32, #tpu.memory_space<vmem>>, %arg6: memref<256x128xbf16, #tpu.memory_space<vmem>>, %arg7: memref<1x128xf32, #tpu.memory_space<vmem>>, %arg8: memref<256x128xbf16, #tpu.memory_space<vmem>>, %arg9: memref<1x128xf32, #tpu.memory_space<vmem>>, %arg10: memref<1x128xf32, #tpu.memory_space<vmem>>, %arg11: memref<1x128xf32, #tpu.memory_space<vmem>>, %arg12: memref<128x128xbf16, #tpu.memory_space<vmem>>, %arg13: memref<1x128xf32, #tpu.memory_space<vmem>>, %arg14: memref<2x128xf32, #tpu.memory_space<vmem>>) attributes {dimension_semantics = [], scalar_prefetch = 0 : i64, scratch_operands = 0 : i64, tpu.core_type = #tpu.core_type<tc>} {
    %c0 = arith.constant 0 : index
    %c0_0 = arith.constant 0 : index
    %0 = vector.load %arg1[%c0, %c0_0] : memref<2x128xf32, #tpu.memory_space<vmem>>, vector<2x128xf32>
    %c0_1 = arith.constant 0 : index
    %c0_2 = arith.constant 0 : index
    %1 = vector.load %arg2[%c0_1, %c0_2] : memref<128x256xbf16, #tpu.memory_space<vmem>>, vector<128x256xbf16>
    %c0_3 = arith.constant 0 : index
    %c0_4 = arith.constant 0 : index
    %2 = vector.load %arg3[%c0_3, %c0_4] : memref<1x256xf32, #tpu.memory_space<vmem>>, vector<1x256xf32>
    %c0_5 = arith.constant 0 : index
    %c0_6 = arith.constant 0 : index
    %3 = vector.load %arg4[%c0_5, %c0_6] : memref<1x256xf32, #tpu.memory_space<vmem>>, vector<1x256xf32>
    %c0_7 = arith.constant 0 : index
    %c0_8 = arith.constant 0 : index
    %4 = vector.load %arg5[%c0_7, %c0_8] : memref<1x256xf32, #tpu.memory_space<vmem>>, vector<1x256xf32>
    %c0_9 = arith.constant 0 : index
    %c0_10 = arith.constant 0 : index
    %5 = vector.load %arg6[%c0_9, %c0_10] : memref<256x128xbf16, #tpu.memory_space<vmem>>, vector<256x128xbf16>
    %c0_11 = arith.constant 0 : index
    %c0_12 = arith.constant 0 : index
    %6 = vector.load %arg7[%c0_11, %c0_12] : memref<1x128xf32, #tpu.memory_space<vmem>>, vector<1x128xf32>
    %7 = arith.truncf %0 : vector<2x128xf32> to vector<2x128xbf16>
    %cst = arith.constant dense<0.000000e+00> : vector<2x256xf32>
    %8 = tpu.matmul %7, %1, %cst {dimension_numbers = #tpu.dot_dimension_numbers<[1], [0], [0], [1], [0, 0, 1, 1], [], []>} : vector<2x128xbf16>, vector<128x256xbf16>, vector<2x256xf32> -> vector<2x256xf32>
    %9 = vector.broadcast %2 : vector<1x256xf32> to vector<2x256xf32>
    %10 = arith.addf %8, %9 : vector<2x256xf32>
    %cst_13 = arith.constant dense<0.000000e+00> : vector<256xf32>
    %11 = vector.multi_reduction <add>, %10, %cst_13 [0] : vector<2x256xf32> to vector<256xf32>
    %12 = vector.shape_cast %11 : vector<256xf32> to vector<1x256xf32>
    %cst_14 = arith.constant 2.000000e+00 : f32
    %13 = vector.broadcast %cst_14 : f32 to vector<1x256xf32>
    %14 = arith.divf %12, %13 : vector<1x256xf32>
    %15 = vector.broadcast %14 : vector<1x256xf32> to vector<2x256xf32>
    %16 = arith.subf %10, %15 : vector<2x256xf32>
    %17 = arith.mulf %16, %16 : vector<2x256xf32>
    %cst_15 = arith.constant dense<0.000000e+00> : vector<256xf32>
    %18 = vector.multi_reduction <add>, %17, %cst_15 [0] : vector<2x256xf32> to vector<256xf32>
    %19 = vector.shape_cast %18 : vector<256xf32> to vector<1x256xf32>
    %cst_16 = arith.constant 2.000000e+00 : f32
    %20 = vector.broadcast %cst_16 : f32 to vector<1x256xf32>
    %21 = arith.divf %19, %20 : vector<1x256xf32>
    %22 = vector.broadcast %14 : vector<1x256xf32> to vector<2x256xf32>
    %23 = arith.subf %10, %22 : vector<2x256xf32>
    %cst_17 = arith.constant 9.99999974E-6 : f32
    %24 = vector.broadcast %cst_17 : f32 to vector<1x256xf32>
    %25 = arith.addf %21, %24 : vector<1x256xf32>
    %26 = math.rsqrt %25 : vector<1x256xf32>
    %27 = vector.broadcast %26 : vector<1x256xf32> to vector<2x256xf32>
    %28 = arith.mulf %23, %27 : vector<2x256xf32>
    %29 = vector.broadcast %3 : vector<1x256xf32> to vector<2x256xf32>
    %30 = arith.mulf %28, %29 : vector<2x256xf32>
    %31 = vector.broadcast %4 : vector<1x256xf32> to vector<2x256xf32>
    %32 = arith.addf %30, %31 : vector<2x256xf32>
    %cst_18 = arith.constant 0.000000e+00 : f32
    %33 = vector.broadcast %cst_18 : f32 to vector<2x256xf32>
    %34 = arith.maximumf %32, %33 : vector<2x256xf32>
    %35 = arith.truncf %34 : vector<2x256xf32> to vector<2x256xbf16>
    %cst_19 = arith.constant dense<0.000000e+00> : vector<2x128xf32>
    %36 = tpu.matmul %35, %5, %cst_19 {dimension_numbers = #tpu.dot_dimension_numbers<[1], [0], [0], [1], [0, 0, 1, 1], [], []>} : vector<2x256xbf16>, vector<256x128xbf16>, vector<2x128xf32> -> vector<2x128xf32>
    %37 = vector.broadcast %6 : vector<1x128xf32> to vector<2x128xf32>
    %38 = arith.addf %36, %37 : vector<2x128xf32>
    %c0_20 = arith.constant 0 : index
    %c0_21 = arith.constant 0 : index
    %39 = vector.load %arg0[%c0_20, %c0_21] : memref<2x128xf32, #tpu.memory_space<vmem>>, vector<2x128xf32>
    %40 = tpu.concatenate %39, %38 in 1 : vector<2x128xf32>, vector<2x128xf32> -> vector<2x256xf32>
    %c0_22 = arith.constant 0 : index
    %c0_23 = arith.constant 0 : index
    %41 = vector.load %arg8[%c0_22, %c0_23] : memref<256x128xbf16, #tpu.memory_space<vmem>>, vector<256x128xbf16>
    %c0_24 = arith.constant 0 : index
    %c0_25 = arith.constant 0 : index
    %42 = vector.load %arg9[%c0_24, %c0_25] : memref<1x128xf32, #tpu.memory_space<vmem>>, vector<1x128xf32>
    %c0_26 = arith.constant 0 : index
    %c0_27 = arith.constant 0 : index
    %43 = vector.load %arg10[%c0_26, %c0_27] : memref<1x128xf32, #tpu.memory_space<vmem>>, vector<1x128xf32>
    %c0_28 = arith.constant 0 : index
    %c0_29 = arith.constant 0 : index
    %44 = vector.load %arg11[%c0_28, %c0_29] : memref<1x128xf32, #tpu.memory_space<vmem>>, vector<1x128xf32>
    %c0_30 = arith.constant 0 : index
    %c0_31 = arith.constant 0 : index
    %45 = vector.load %arg12[%c0_30, %c0_31] : memref<128x128xbf16, #tpu.memory_space<vmem>>, vector<128x128xbf16>
    %c0_32 = arith.constant 0 : index
    %c0_33 = arith.constant 0 : index
    %46 = vector.load %arg13[%c0_32, %c0_33] : memref<1x128xf32, #tpu.memory_space<vmem>>, vector<1x128xf32>
    %47 = arith.truncf %40 : vector<2x256xf32> to vector<2x256xbf16>
    %cst_34 = arith.constant dense<0.000000e+00> : vector<2x128xf32>
    %48 = tpu.matmul %47, %41, %cst_34 {dimension_numbers = #tpu.dot_dimension_numbers<[1], [0], [0], [1], [0, 0, 1, 1], [], []>} : vector<2x256xbf16>, vector<256x128xbf16>, vector<2x128xf32> -> vector<2x128xf32>
    %49 = vector.broadcast %42 : vector<1x128xf32> to vector<2x128xf32>
    %50 = arith.addf %48, %49 : vector<2x128xf32>
    %cst_35 = arith.constant dense<0.000000e+00> : vector<128xf32>
    %51 = vector.multi_reduction <add>, %50, %cst_35 [0] : vector<2x128xf32> to vector<128xf32>
    %52 = vector.shape_cast %51 : vector<128xf32> to vector<1x128xf32>
    %cst_36 = arith.constant 2.000000e+00 : f32
    %53 = vector.broadcast %cst_36 : f32 to vector<1x128xf32>
    %54 = arith.divf %52, %53 : vector<1x128xf32>
    %55 = vector.broadcast %54 : vector<1x128xf32> to vector<2x128xf32>
    %56 = arith.subf %50, %55 : vector<2x128xf32>
    %57 = arith.mulf %56, %56 : vector<2x128xf32>
    %cst_37 = arith.constant dense<0.000000e+00> : vector<128xf32>
    %58 = vector.multi_reduction <add>, %57, %cst_37 [0] : vector<2x128xf32> to vector<128xf32>
    %59 = vector.shape_cast %58 : vector<128xf32> to vector<1x128xf32>
    %cst_38 = arith.constant 2.000000e+00 : f32
    %60 = vector.broadcast %cst_38 : f32 to vector<1x128xf32>
    %61 = arith.divf %59, %60 : vector<1x128xf32>
    %62 = vector.broadcast %54 : vector<1x128xf32> to vector<2x128xf32>
    %63 = arith.subf %50, %62 : vector<2x128xf32>
    %cst_39 = arith.constant 9.99999974E-6 : f32
    %64 = vector.broadcast %cst_39 : f32 to vector<1x128xf32>
    %65 = arith.addf %61, %64 : vector<1x128xf32>
    %66 = math.rsqrt %65 : vector<1x128xf32>
    %67 = vector.broadcast %66 : vector<1x128xf32> to vector<2x128xf32>
    %68 = arith.mulf %63, %67 : vector<2x128xf32>
    %69 = vector.broadcast %43 : vector<1x128xf32> to vector<2x128xf32>
    %70 = arith.mulf %68, %69 : vector<2x128xf32>
    %71 = vector.broadcast %44 : vector<1x128xf32> to vector<2x128xf32>
    %72 = arith.addf %70, %71 : vector<2x128xf32>
    %cst_40 = arith.constant 0.000000e+00 : f32
    %73 = vector.broadcast %cst_40 : f32 to vector<2x128xf32>
    %74 = arith.maximumf %72, %73 : vector<2x128xf32>
    %75 = arith.truncf %74 : vector<2x128xf32> to vector<2x128xbf16>
    %cst_41 = arith.constant dense<0.000000e+00> : vector<2x128xf32>
    %76 = tpu.matmul %75, %45, %cst_41 {dimension_numbers = #tpu.dot_dimension_numbers<[1], [0], [0], [1], [0, 0, 1, 1], [], []>} : vector<2x128xbf16>, vector<128x128xbf16>, vector<2x128xf32> -> vector<2x128xf32>
    %77 = vector.broadcast %46 : vector<1x128xf32> to vector<2x128xf32>
    %78 = arith.addf %76, %77 : vector<2x128xf32>
    %c0_42 = arith.constant 0 : index
    %c0_43 = arith.constant 0 : index
    %79 = vector.load %arg14[%c0_42, %c0_43] : memref<2x128xf32, #tpu.memory_space<vmem>>, vector<2x128xf32>
    tpu.vector_store %arg14[%c0_42, %c0_43], %78 {strides = array<i32>} : memref<2x128xf32, #tpu.memory_space<vmem>>, vector<2x128xf32>,
    return
  }
}

module attributes {stable_mosaic.version = 11 : i64} {
  func.func @_lstm_start_kernel(%arg0: memref<2x128xf32, #tpu.memory_space<vmem>>, %arg1: memref<128x1280xbf16, #tpu.memory_space<vmem>>, %arg2: memref<1x1280xf32, #tpu.memory_space<vmem>>, %arg3: memref<1x1280xf32, #tpu.memory_space<vmem>>, %arg4: memref<1x1280xf32, #tpu.memory_space<vmem>>, %arg5: memref<256x128xbf16, #tpu.memory_space<vmem>>, %arg6: memref<256x128xbf16, #tpu.memory_space<vmem>>, %arg7: memref<384x128xbf16, #tpu.memory_space<vmem>>, %arg8: memref<384x128xbf16, #tpu.memory_space<vmem>>, %arg9: memref<1x128xf32, #tpu.memory_space<vmem>>, %arg10: memref<1x128xf32, #tpu.memory_space<vmem>>, %arg11: memref<1x128xf32, #tpu.memory_space<vmem>>, %arg12: memref<1x128xf32, #tpu.memory_space<vmem>>, %arg13: memref<2x256x512xbf16, #tpu.memory_space<vmem>>, %arg14: memref<2x1x512xf32, #tpu.memory_space<vmem>>, %arg15: memref<2x2x128xf32, #tpu.memory_space<vmem>>, %arg16: memref<2x2x128xf32, #tpu.memory_space<vmem>>) attributes {dimension_semantics = [], scalar_prefetch = 0 : i64, scratch_operands = 0 : i64, tpu.core_type = #tpu.core_type<tc>} {
    %c0 = arith.constant 0 : index
    %c0_0 = arith.constant 0 : index
    %0 = vector.load %arg0[%c0, %c0_0] : memref<2x128xf32, #tpu.memory_space<vmem>>, vector<2x128xf32>
    %1 = arith.truncf %0 : vector<2x128xf32> to vector<2x128xbf16>
    %c0_1 = arith.constant 0 : index
    %c0_2 = arith.constant 0 : index
    %2 = vector.load %arg1[%c0_1, %c0_2] : memref<128x1280xbf16, #tpu.memory_space<vmem>>, vector<128x1280xbf16>
    %cst = arith.constant dense<0.000000e+00> : vector<2x1280xf32>
    %3 = tpu.matmul %1, %2, %cst {dimension_numbers = #tpu.dot_dimension_numbers<[1], [0], [0], [1], [0, 0, 1, 1], [], []>} : vector<2x128xbf16>, vector<128x1280xbf16>, vector<2x1280xf32> -> vector<2x1280xf32>
    %c0_3 = arith.constant 0 : index
    %c0_4 = arith.constant 0 : index
    %4 = vector.load %arg2[%c0_3, %c0_4] : memref<1x1280xf32, #tpu.memory_space<vmem>>, vector<1x1280xf32>
    %5 = vector.broadcast %4 : vector<1x1280xf32> to vector<2x1280xf32>
    %6 = arith.addf %3, %5 : vector<2x1280xf32>
    %cst_5 = arith.constant dense<0.000000e+00> : vector<1280xf32>
    %7 = vector.multi_reduction <add>, %6, %cst_5 [0] : vector<2x1280xf32> to vector<1280xf32>
    %8 = vector.shape_cast %7 : vector<1280xf32> to vector<1x1280xf32>
    %cst_6 = arith.constant 2.000000e+00 : f32
    %9 = vector.broadcast %cst_6 : f32 to vector<1x1280xf32>
    %10 = arith.divf %8, %9 : vector<1x1280xf32>
    %11 = vector.broadcast %10 : vector<1x1280xf32> to vector<2x1280xf32>
    %12 = arith.subf %6, %11 : vector<2x1280xf32>
    %13 = arith.mulf %12, %12 : vector<2x1280xf32>
    %cst_7 = arith.constant dense<0.000000e+00> : vector<1280xf32>
    %14 = vector.multi_reduction <add>, %13, %cst_7 [0] : vector<2x1280xf32> to vector<1280xf32>
    %15 = vector.shape_cast %14 : vector<1280xf32> to vector<1x1280xf32>
    %cst_8 = arith.constant 2.000000e+00 : f32
    %16 = vector.broadcast %cst_8 : f32 to vector<1x1280xf32>
    %17 = arith.divf %15, %16 : vector<1x1280xf32>
    %18 = vector.broadcast %10 : vector<1x1280xf32> to vector<2x1280xf32>
    %19 = arith.subf %6, %18 : vector<2x1280xf32>
    %cst_9 = arith.constant 9.99999974E-6 : f32
    %20 = vector.broadcast %cst_9 : f32 to vector<1x1280xf32>
    %21 = arith.addf %17, %20 : vector<1x1280xf32>
    %22 = math.rsqrt %21 : vector<1x1280xf32>
    %23 = vector.broadcast %22 : vector<1x1280xf32> to vector<2x1280xf32>
    %24 = arith.mulf %19, %23 : vector<2x1280xf32>
    %c0_10 = arith.constant 0 : index
    %c0_11 = arith.constant 0 : index
    %25 = vector.load %arg3[%c0_10, %c0_11] : memref<1x1280xf32, #tpu.memory_space<vmem>>, vector<1x1280xf32>
    %26 = vector.broadcast %25 : vector<1x1280xf32> to vector<2x1280xf32>
    %27 = arith.mulf %24, %26 : vector<2x1280xf32>
    %c0_12 = arith.constant 0 : index
    %c0_13 = arith.constant 0 : index
    %28 = vector.load %arg4[%c0_12, %c0_13] : memref<1x1280xf32, #tpu.memory_space<vmem>>, vector<1x1280xf32>
    %29 = vector.broadcast %28 : vector<1x1280xf32> to vector<2x1280xf32>
    %30 = arith.addf %27, %29 : vector<2x1280xf32>
    %cst_14 = arith.constant 0.000000e+00 : f32
    %31 = vector.broadcast %cst_14 : f32 to vector<2x1280xf32>
    %32 = arith.maximumf %30, %31 : vector<2x1280xf32>
    %33 = arith.truncf %32 : vector<2x1280xf32> to vector<2x1280xbf16>
    %34 = vector.extract_strided_slice %33 {offsets = [0, 0], sizes = [2, 256], strides = [1, 1]} : vector<2x1280xbf16> to vector<2x256xbf16>
    %c0_15 = arith.constant 0 : index
    %c0_16 = arith.constant 0 : index
    %35 = vector.load %arg5[%c0_15, %c0_16] : memref<256x128xbf16, #tpu.memory_space<vmem>>, vector<256x128xbf16>
    %cst_17 = arith.constant dense<0.000000e+00> : vector<2x128xf32>
    %36 = tpu.matmul %34, %35, %cst_17 {dimension_numbers = #tpu.dot_dimension_numbers<[1], [0], [0], [1], [0, 0, 1, 1], [], []>} : vector<2x256xbf16>, vector<256x128xbf16>, vector<2x128xf32> -> vector<2x128xf32>
    %c0_18 = arith.constant 0 : index
    %c0_19 = arith.constant 0 : index
    %37 = vector.load %arg9[%c0_18, %c0_19] : memref<1x128xf32, #tpu.memory_space<vmem>>, vector<1x128xf32>
    %38 = vector.broadcast %37 : vector<1x128xf32> to vector<2x128xf32>
    %39 = arith.addf %36, %38 : vector<2x128xf32>
    %40 = vector.extract_strided_slice %33 {offsets = [0, 256], sizes = [2, 256], strides = [1, 1]} : vector<2x1280xbf16> to vector<2x256xbf16>
    %c0_20 = arith.constant 0 : index
    %c0_21 = arith.constant 0 : index
    %41 = vector.load %arg6[%c0_20, %c0_21] : memref<256x128xbf16, #tpu.memory_space<vmem>>, vector<256x128xbf16>
    %cst_22 = arith.constant dense<0.000000e+00> : vector<2x128xf32>
    %42 = tpu.matmul %40, %41, %cst_22 {dimension_numbers = #tpu.dot_dimension_numbers<[1], [0], [0], [1], [0, 0, 1, 1], [], []>} : vector<2x256xbf16>, vector<256x128xbf16>, vector<2x128xf32> -> vector<2x128xf32>
    %c0_23 = arith.constant 0 : index
    %c0_24 = arith.constant 0 : index
    %43 = vector.load %arg10[%c0_23, %c0_24] : memref<1x128xf32, #tpu.memory_space<vmem>>, vector<1x128xf32>
    %44 = vector.broadcast %43 : vector<1x128xf32> to vector<2x128xf32>
    %45 = arith.addf %42, %44 : vector<2x128xf32>
    %46 = vector.extract_strided_slice %33 {offsets = [0, 512], sizes = [2, 384], strides = [1, 1]} : vector<2x1280xbf16> to vector<2x384xbf16>
    %c0_25 = arith.constant 0 : index
    %c0_26 = arith.constant 0 : index
    %47 = vector.load %arg7[%c0_25, %c0_26] : memref<384x128xbf16, #tpu.memory_space<vmem>>, vector<384x128xbf16>
    %cst_27 = arith.constant dense<0.000000e+00> : vector<2x128xf32>
    %48 = tpu.matmul %46, %47, %cst_27 {dimension_numbers = #tpu.dot_dimension_numbers<[1], [0], [0], [1], [0, 0, 1, 1], [], []>} : vector<2x384xbf16>, vector<384x128xbf16>, vector<2x128xf32> -> vector<2x128xf32>
    %c0_28 = arith.constant 0 : index
    %c0_29 = arith.constant 0 : index
    %49 = vector.load %arg11[%c0_28, %c0_29] : memref<1x128xf32, #tpu.memory_space<vmem>>, vector<1x128xf32>
    %50 = vector.broadcast %49 : vector<1x128xf32> to vector<2x128xf32>
    %51 = arith.addf %48, %50 : vector<2x128xf32>
    %52 = vector.extract_strided_slice %33 {offsets = [0, 896], sizes = [2, 384], strides = [1, 1]} : vector<2x1280xbf16> to vector<2x384xbf16>
    %c0_30 = arith.constant 0 : index
    %c0_31 = arith.constant 0 : index
    %53 = vector.load %arg8[%c0_30, %c0_31] : memref<384x128xbf16, #tpu.memory_space<vmem>>, vector<384x128xbf16>
    %cst_32 = arith.constant dense<0.000000e+00> : vector<2x128xf32>
    %54 = tpu.matmul %52, %53, %cst_32 {dimension_numbers = #tpu.dot_dimension_numbers<[1], [0], [0], [1], [0, 0, 1, 1], [], []>} : vector<2x384xbf16>, vector<384x128xbf16>, vector<2x128xf32> -> vector<2x128xf32>
    %c0_33 = arith.constant 0 : index
    %c0_34 = arith.constant 0 : index
    %55 = vector.load %arg12[%c0_33, %c0_34] : memref<1x128xf32, #tpu.memory_space<vmem>>, vector<1x128xf32>
    %56 = vector.broadcast %55 : vector<1x128xf32> to vector<2x128xf32>
    %57 = arith.addf %54, %56 : vector<2x128xf32>
    %c0_35 = arith.constant 0 : index
    %c0_36 = arith.constant 0 : index
    %c0_37 = arith.constant 0 : index
    %58 = vector.load %arg13[%c0_35, %c0_36, %c0_37] : memref<2x256x512xbf16, #tpu.memory_space<vmem>>, vector<1x256x512xbf16>
    %59 = vector.shape_cast %58 : vector<1x256x512xbf16> to vector<256x512xbf16>
    %c1 = arith.constant 1 : index
    %c0_38 = arith.constant 0 : index
    %c0_39 = arith.constant 0 : index
    %60 = vector.load %arg13[%c1, %c0_38, %c0_39] : memref<2x256x512xbf16, #tpu.memory_space<vmem>>, vector<1x256x512xbf16>
    %61 = vector.shape_cast %60 : vector<1x256x512xbf16> to vector<256x512xbf16>
    %c0_40 = arith.constant 0 : index
    %c0_41 = arith.constant 0 : index
    %c0_42 = arith.constant 0 : index
    %62 = vector.load %arg14[%c0_40, %c0_41, %c0_42] : memref<2x1x512xf32, #tpu.memory_space<vmem>>, vector<1x1x512xf32>
    %63 = vector.shape_cast %62 : vector<1x1x512xf32> to vector<1x512xf32>
    %c1_43 = arith.constant 1 : index
    %c0_44 = arith.constant 0 : index
    %c0_45 = arith.constant 0 : index
    %64 = vector.load %arg14[%c1_43, %c0_44, %c0_45] : memref<2x1x512xf32, #tpu.memory_space<vmem>>, vector<1x1x512xf32>
    %65 = vector.shape_cast %64 : vector<1x1x512xf32> to vector<1x512xf32>
    %66 = tpu.concatenate %0, %51 in 1 : vector<2x128xf32>, vector<2x128xf32> -> vector<2x256xf32>
    %67 = arith.truncf %66 : vector<2x256xf32> to vector<2x256xbf16>
    %cst_46 = arith.constant dense<0.000000e+00> : vector<2x512xf32>
    %68 = tpu.matmul %67, %59, %cst_46 {dimension_numbers = #tpu.dot_dimension_numbers<[1], [0], [0], [1], [0, 0, 1, 1], [], []>} : vector<2x256xbf16>, vector<256x512xbf16>, vector<2x512xf32> -> vector<2x512xf32>
    %69 = vector.broadcast %63 : vector<1x512xf32> to vector<2x512xf32>
    %70 = arith.addf %68, %69 : vector<2x512xf32>
    %71 = vector.extract_strided_slice %70 {offsets = [0, 0], sizes = [2, 128], strides = [1, 1]} : vector<2x512xf32> to vector<2x128xf32>
    %72 = arith.negf %71 : vector<2x128xf32>
    %73 = math.exp %72 : vector<2x128xf32>
    %cst_47 = arith.constant 1.000000e+00 : f32
    %74 = vector.broadcast %cst_47 : f32 to vector<2x128xf32>
    %75 = arith.addf %74, %73 : vector<2x128xf32>
    %76 = arith.divf %74, %75 : vector<2x128xf32>
    %77 = vector.extract_strided_slice %70 {offsets = [0, 128], sizes = [2, 128], strides = [1, 1]} : vector<2x512xf32> to vector<2x128xf32>
    %78 = arith.negf %77 : vector<2x128xf32>
    %79 = math.exp %78 : vector<2x128xf32>
    %cst_48 = arith.constant 1.000000e+00 : f32
    %80 = vector.broadcast %cst_48 : f32 to vector<2x128xf32>
    %81 = arith.addf %80, %79 : vector<2x128xf32>
    %82 = arith.divf %80, %81 : vector<2x128xf32>
    %83 = vector.extract_strided_slice %70 {offsets = [0, 256], sizes = [2, 128], strides = [1, 1]} : vector<2x512xf32> to vector<2x128xf32>
    %84 = math.tanh %83 : vector<2x128xf32>
    %85 = vector.extract_strided_slice %70 {offsets = [0, 384], sizes = [2, 128], strides = [1, 1]} : vector<2x512xf32> to vector<2x128xf32>
    %86 = arith.negf %85 : vector<2x128xf32>
    %87 = math.exp %86 : vector<2x128xf32>
    %cst_49 = arith.constant 1.000000e+00 : f32
    %88 = vector.broadcast %cst_49 : f32 to vector<2x128xf32>
    %89 = arith.addf %88, %87 : vector<2x128xf32>
    %90 = arith.divf %88, %89 : vector<2x128xf32>
    %91 = arith.mulf %82, %39 : vector<2x128xf32>
    %92 = arith.mulf %76, %84 : vector<2x128xf32>
    %93 = arith.addf %91, %92 : vector<2x128xf32>
    %94 = math.tanh %93 : vector<2x128xf32>
    %95 = arith.mulf %90, %94 : vector<2x128xf32>
    %96 = tpu.concatenate %95, %57 in 1 : vector<2x128xf32>, vector<2x128xf32> -> vector<2x256xf32>
    %97 = arith.truncf %96 : vector<2x256xf32> to vector<2x256xbf16>
    %cst_50 = arith.constant dense<0.000000e+00> : vector<2x512xf32>
    %98 = tpu.matmul %97, %61, %cst_50 {dimension_numbers = #tpu.dot_dimension_numbers<[1], [0], [0], [1], [0, 0, 1, 1], [], []>} : vector<2x256xbf16>, vector<256x512xbf16>, vector<2x512xf32> -> vector<2x512xf32>
    %99 = vector.broadcast %65 : vector<1x512xf32> to vector<2x512xf32>
    %100 = arith.addf %98, %99 : vector<2x512xf32>
    %101 = vector.extract_strided_slice %100 {offsets = [0, 0], sizes = [2, 128], strides = [1, 1]} : vector<2x512xf32> to vector<2x128xf32>
    %102 = arith.negf %101 : vector<2x128xf32>
    %103 = math.exp %102 : vector<2x128xf32>
    %cst_51 = arith.constant 1.000000e+00 : f32
    %104 = vector.broadcast %cst_51 : f32 to vector<2x128xf32>
    %105 = arith.addf %104, %103 : vector<2x128xf32>
    %106 = arith.divf %104, %105 : vector<2x128xf32>
    %107 = vector.extract_strided_slice %100 {offsets = [0, 128], sizes = [2, 128], strides = [1, 1]} : vector<2x512xf32> to vector<2x128xf32>
    %108 = arith.negf %107 : vector<2x128xf32>
    %109 = math.exp %108 : vector<2x128xf32>
    %cst_52 = arith.constant 1.000000e+00 : f32
    %110 = vector.broadcast %cst_52 : f32 to vector<2x128xf32>
    %111 = arith.addf %110, %109 : vector<2x128xf32>
    %112 = arith.divf %110, %111 : vector<2x128xf32>
    %113 = vector.extract_strided_slice %100 {offsets = [0, 256], sizes = [2, 128], strides = [1, 1]} : vector<2x512xf32> to vector<2x128xf32>
    %114 = math.tanh %113 : vector<2x128xf32>
    %115 = vector.extract_strided_slice %100 {offsets = [0, 384], sizes = [2, 128], strides = [1, 1]} : vector<2x512xf32> to vector<2x128xf32>
    %116 = arith.negf %115 : vector<2x128xf32>
    %117 = math.exp %116 : vector<2x128xf32>
    %cst_53 = arith.constant 1.000000e+00 : f32
    %118 = vector.broadcast %cst_53 : f32 to vector<2x128xf32>
    %119 = arith.addf %118, %117 : vector<2x128xf32>
    %120 = arith.divf %118, %119 : vector<2x128xf32>
    %121 = arith.mulf %112, %45 : vector<2x128xf32>
    %122 = arith.mulf %106, %114 : vector<2x128xf32>
    %123 = arith.addf %121, %122 : vector<2x128xf32>
    %124 = math.tanh %123 : vector<2x128xf32>
    %125 = arith.mulf %120, %124 : vector<2x128xf32>
    %c0_54 = arith.constant 0 : index
    %c0_55 = arith.constant 0 : index
    %c0_56 = arith.constant 0 : index
    %126 = vector.load %arg15[%c0_54, %c0_55, %c0_56] : memref<2x2x128xf32, #tpu.memory_space<vmem>>, vector<1x2x128xf32>
    %127 = vector.shape_cast %126 : vector<1x2x128xf32> to vector<2x128xf32>
    %128 = vector.shape_cast %95 : vector<2x128xf32> to vector<1x2x128xf32>
    tpu.vector_store %arg15[%c0_54, %c0_55, %c0_56], %128 {strides = array<i32>} : memref<2x2x128xf32, #tpu.memory_space<vmem>>, vector<1x2x128xf32>,
    %c1_57 = arith.constant 1 : index
    %c0_58 = arith.constant 0 : index
    %c0_59 = arith.constant 0 : index
    %129 = vector.load %arg15[%c1_57, %c0_58, %c0_59] : memref<2x2x128xf32, #tpu.memory_space<vmem>>, vector<1x2x128xf32>
    %130 = vector.shape_cast %129 : vector<1x2x128xf32> to vector<2x128xf32>
    %131 = vector.shape_cast %125 : vector<2x128xf32> to vector<1x2x128xf32>
    tpu.vector_store %arg15[%c1_57, %c0_58, %c0_59], %131 {strides = array<i32>} : memref<2x2x128xf32, #tpu.memory_space<vmem>>, vector<1x2x128xf32>,
    %c0_60 = arith.constant 0 : index
    %c0_61 = arith.constant 0 : index
    %c0_62 = arith.constant 0 : index
    %132 = vector.load %arg16[%c0_60, %c0_61, %c0_62] : memref<2x2x128xf32, #tpu.memory_space<vmem>>, vector<1x2x128xf32>
    %133 = vector.shape_cast %132 : vector<1x2x128xf32> to vector<2x128xf32>
    %134 = vector.shape_cast %93 : vector<2x128xf32> to vector<1x2x128xf32>
    tpu.vector_store %arg16[%c0_60, %c0_61, %c0_62], %134 {strides = array<i32>} : memref<2x2x128xf32, #tpu.memory_space<vmem>>, vector<1x2x128xf32>,
    %c1_63 = arith.constant 1 : index
    %c0_64 = arith.constant 0 : index
    %c0_65 = arith.constant 0 : index
    %135 = vector.load %arg16[%c1_63, %c0_64, %c0_65] : memref<2x2x128xf32, #tpu.memory_space<vmem>>, vector<1x2x128xf32>
    %136 = vector.shape_cast %135 : vector<1x2x128xf32> to vector<2x128xf32>
    %137 = vector.shape_cast %123 : vector<2x128xf32> to vector<1x2x128xf32>
    tpu.vector_store %arg16[%c1_63, %c0_64, %c0_65], %137 {strides = array<i32>} : memref<2x2x128xf32, #tpu.memory_space<vmem>>, vector<1x2x128xf32>,
    return
  }
}

module attributes {stable_mosaic.version = 11 : i64} {
  func.func @_heads_kernel(%arg0: i32, %arg1: memref<1x2x128xf32, #tpu.memory_space<vmem>>, %arg2: memref<1x128x640xbf16, #tpu.memory_space<vmem>>, %arg3: memref<1x1x640xf32, #tpu.memory_space<vmem>>, %arg4: memref<1x1x640xf32, #tpu.memory_space<vmem>>, %arg5: memref<1x1x640xf32, #tpu.memory_space<vmem>>, %arg6: memref<1x640x640xbf16, #tpu.memory_space<vmem>>, %arg7: memref<1x1x640xf32, #tpu.memory_space<vmem>>, %arg8: memref<1x2x640xf32, #tpu.memory_space<vmem>>) attributes {dimension_semantics = [#tpu.dimension_semantics<parallel>], iteration_bounds = array<i64: 6>, scalar_prefetch = 0 : i64, scratch_operands = 0 : i64, tpu.core_type = #tpu.core_type<tc>, window_params = [{transform_indices = @transform_0, window_bounds = array<i64: 1, 2, 128>}, {transform_indices = @transform_1, window_bounds = array<i64: 1, 128, 640>}, {transform_indices = @transform_2, window_bounds = array<i64: 1, 1, 640>}, {transform_indices = @transform_3, window_bounds = array<i64: 1, 1, 640>}, {transform_indices = @transform_4, window_bounds = array<i64: 1, 1, 640>}, {transform_indices = @transform_5, window_bounds = array<i64: 1, 640, 640>}, {transform_indices = @transform_6, window_bounds = array<i64: 1, 1, 640>}, {transform_indices = @transform_7, window_bounds = array<i64: 1, 2, 640>}]} {
    %c0 = arith.constant 0 : index
    %c0_0 = arith.constant 0 : index
    %c0_1 = arith.constant 0 : index
    %0 = vector.load %arg1[%c0, %c0_0, %c0_1] : memref<1x2x128xf32, #tpu.memory_space<vmem>>, vector<1x2x128xf32>
    %1 = vector.shape_cast %0 : vector<1x2x128xf32> to vector<2x128xf32>
    %c0_2 = arith.constant 0 : index
    %c0_3 = arith.constant 0 : index
    %c0_4 = arith.constant 0 : index
    %2 = vector.load %arg2[%c0_2, %c0_3, %c0_4] : memref<1x128x640xbf16, #tpu.memory_space<vmem>>, vector<1x128x640xbf16>
    %3 = vector.shape_cast %2 : vector<1x128x640xbf16> to vector<128x640xbf16>
    %c0_5 = arith.constant 0 : index
    %c0_6 = arith.constant 0 : index
    %c0_7 = arith.constant 0 : index
    %4 = vector.load %arg3[%c0_5, %c0_6, %c0_7] : memref<1x1x640xf32, #tpu.memory_space<vmem>>, vector<1x1x640xf32>
    %5 = vector.shape_cast %4 : vector<1x1x640xf32> to vector<1x640xf32>
    %c0_8 = arith.constant 0 : index
    %c0_9 = arith.constant 0 : index
    %c0_10 = arith.constant 0 : index
    %6 = vector.load %arg4[%c0_8, %c0_9, %c0_10] : memref<1x1x640xf32, #tpu.memory_space<vmem>>, vector<1x1x640xf32>
    %7 = vector.shape_cast %6 : vector<1x1x640xf32> to vector<1x640xf32>
    %c0_11 = arith.constant 0 : index
    %c0_12 = arith.constant 0 : index
    %c0_13 = arith.constant 0 : index
    %8 = vector.load %arg5[%c0_11, %c0_12, %c0_13] : memref<1x1x640xf32, #tpu.memory_space<vmem>>, vector<1x1x640xf32>
    %9 = vector.shape_cast %8 : vector<1x1x640xf32> to vector<1x640xf32>
    %c0_14 = arith.constant 0 : index
    %c0_15 = arith.constant 0 : index
    %c0_16 = arith.constant 0 : index
    %10 = vector.load %arg6[%c0_14, %c0_15, %c0_16] : memref<1x640x640xbf16, #tpu.memory_space<vmem>>, vector<1x640x640xbf16>
    %11 = vector.shape_cast %10 : vector<1x640x640xbf16> to vector<640x640xbf16>
    %c0_17 = arith.constant 0 : index
    %c0_18 = arith.constant 0 : index
    %c0_19 = arith.constant 0 : index
    %12 = vector.load %arg7[%c0_17, %c0_18, %c0_19] : memref<1x1x640xf32, #tpu.memory_space<vmem>>, vector<1x1x640xf32>
    %13 = vector.shape_cast %12 : vector<1x1x640xf32> to vector<1x640xf32>
    %14 = arith.truncf %1 : vector<2x128xf32> to vector<2x128xbf16>
    %cst = arith.constant dense<0.000000e+00> : vector<2x640xf32>
    %15 = tpu.matmul %14, %3, %cst {dimension_numbers = #tpu.dot_dimension_numbers<[1], [0], [0], [1], [0, 0, 1, 1], [], []>} : vector<2x128xbf16>, vector<128x640xbf16>, vector<2x640xf32> -> vector<2x640xf32>
    %16 = vector.broadcast %5 : vector<1x640xf32> to vector<2x640xf32>
    %17 = arith.addf %15, %16 : vector<2x640xf32>
    %cst_20 = arith.constant dense<0.000000e+00> : vector<640xf32>
    %18 = vector.multi_reduction <add>, %17, %cst_20 [0] : vector<2x640xf32> to vector<640xf32>
    %19 = vector.shape_cast %18 : vector<640xf32> to vector<1x640xf32>
    %cst_21 = arith.constant 2.000000e+00 : f32
    %20 = vector.broadcast %cst_21 : f32 to vector<1x640xf32>
    %21 = arith.divf %19, %20 : vector<1x640xf32>
    %22 = vector.broadcast %21 : vector<1x640xf32> to vector<2x640xf32>
    %23 = arith.subf %17, %22 : vector<2x640xf32>
    %24 = arith.mulf %23, %23 : vector<2x640xf32>
    %cst_22 = arith.constant dense<0.000000e+00> : vector<640xf32>
    %25 = vector.multi_reduction <add>, %24, %cst_22 [0] : vector<2x640xf32> to vector<640xf32>
    %26 = vector.shape_cast %25 : vector<640xf32> to vector<1x640xf32>
    %cst_23 = arith.constant 2.000000e+00 : f32
    %27 = vector.broadcast %cst_23 : f32 to vector<1x640xf32>
    %28 = arith.divf %26, %27 : vector<1x640xf32>
    %29 = vector.broadcast %21 : vector<1x640xf32> to vector<2x640xf32>
    %30 = arith.subf %17, %29 : vector<2x640xf32>
    %cst_24 = arith.constant 9.99999974E-6 : f32
    %31 = vector.broadcast %cst_24 : f32 to vector<1x640xf32>
    %32 = arith.addf %28, %31 : vector<1x640xf32>
    %33 = math.rsqrt %32 : vector<1x640xf32>
    %34 = vector.broadcast %33 : vector<1x640xf32> to vector<2x640xf32>
    %35 = arith.mulf %30, %34 : vector<2x640xf32>
    %36 = vector.broadcast %7 : vector<1x640xf32> to vector<2x640xf32>
    %37 = arith.mulf %35, %36 : vector<2x640xf32>
    %38 = vector.broadcast %9 : vector<1x640xf32> to vector<2x640xf32>
    %39 = arith.addf %37, %38 : vector<2x640xf32>
    %cst_25 = arith.constant 0.000000e+00 : f32
    %40 = vector.broadcast %cst_25 : f32 to vector<2x640xf32>
    %41 = arith.maximumf %39, %40 : vector<2x640xf32>
    %42 = arith.truncf %41 : vector<2x640xf32> to vector<2x640xbf16>
    %cst_26 = arith.constant dense<0.000000e+00> : vector<2x640xf32>
    %43 = tpu.matmul %42, %11, %cst_26 {dimension_numbers = #tpu.dot_dimension_numbers<[1], [0], [0], [1], [0, 0, 1, 1], [], []>} : vector<2x640xbf16>, vector<640x640xbf16>, vector<2x640xf32> -> vector<2x640xf32>
    %44 = vector.broadcast %13 : vector<1x640xf32> to vector<2x640xf32>
    %45 = arith.addf %43, %44 : vector<2x640xf32>
    %c0_27 = arith.constant 0 : index
    %c0_28 = arith.constant 0 : index
    %c0_29 = arith.constant 0 : index
    %46 = vector.load %arg8[%c0_27, %c0_28, %c0_29] : memref<1x2x640xf32, #tpu.memory_space<vmem>>, vector<1x2x640xf32>
    %47 = vector.shape_cast %46 : vector<1x2x640xf32> to vector<2x640xf32>
    %48 = vector.shape_cast %45 : vector<2x640xf32> to vector<1x2x640xf32>
    tpu.vector_store %arg8[%c0_27, %c0_28, %c0_29], %48 {strides = array<i32>} : memref<1x2x640xf32, #tpu.memory_space<vmem>>, vector<1x2x640xf32>,
    return
  }
  func.func @transform_0(%arg0: i32) -> (i32, i32, i32) {
    %c0_i32 = arith.constant 0 : i32
    %c0_i32_0 = arith.constant 0 : i32
    %c0_i32_1 = arith.constant 0 : i32
    return %arg0, %c0_i32, %c0_i32_0 : i32, i32, i32
  }
  func.func @transform_1(%arg0: i32) -> (i32, i32, i32) {
    %c0_i32 = arith.constant 0 : i32
    %c0_i32_0 = arith.constant 0 : i32
    %c0_i32_1 = arith.constant 0 : i32
    return %arg0, %c0_i32, %c0_i32_0 : i32, i32, i32
  }
  func.func @transform_2(%arg0: i32) -> (i32, i32, i32) {
    %c0_i32 = arith.constant 0 : i32
    %c0_i32_0 = arith.constant 0 : i32
    %c0_i32_1 = arith.constant 0 : i32
    return %arg0, %c0_i32, %c0_i32_0 : i32, i32, i32
  }
  func.func @transform_3(%arg0: i32) -> (i32, i32, i32) {
    %c0_i32 = arith.constant 0 : i32
    %c0_i32_0 = arith.constant 0 : i32
    %c0_i32_1 = arith.constant 0 : i32
    return %arg0, %c0_i32, %c0_i32_0 : i32, i32, i32
  }
  func.func @transform_4(%arg0: i32) -> (i32, i32, i32) {
    %c0_i32 = arith.constant 0 : i32
    %c0_i32_0 = arith.constant 0 : i32
    %c0_i32_1 = arith.constant 0 : i32
    return %arg0, %c0_i32, %c0_i32_0 : i32, i32, i32
  }
  func.func @transform_5(%arg0: i32) -> (i32, i32, i32) {
    %c0_i32 = arith.constant 0 : i32
    %c0_i32_0 = arith.constant 0 : i32
    %c0_i32_1 = arith.constant 0 : i32
    return %arg0, %c0_i32, %c0_i32_0 : i32, i32, i32
  }
  func.func @transform_6(%arg0: i32) -> (i32, i32, i32) {
    %c0_i32 = arith.constant 0 : i32
    %c0_i32_0 = arith.constant 0 : i32
    %c0_i32_1 = arith.constant 0 : i32
    return %arg0, %c0_i32, %c0_i32_0 : i32, i32, i32
  }
  func.func @transform_7(%arg0: i32) -> (i32, i32, i32) {
    %c0_i32 = arith.constant 0 : i32
    %c0_i32_0 = arith.constant 0 : i32
    %c0_i32_1 = arith.constant 0 : i32
    return %arg0, %c0_i32, %c0_i32_0 : i32, i32, i32
  }
}

</mosaic_0001>

<llo_original>
// kernel: forward.5
$region0: #{forward.5}
  #allocation0 [shape = 'u32[]', space=smem, size = 0x4, offset = 0x4, fixed_abs, tag = 'smem constant byte address 0x4 - core index']
  #allocation1 [shape = 'u32[144,128]{1,0:T(1,128)}', space=vmem, size = 0x12000, scoped, tag = 'internal scratch']
  %s0 = inlined_call_operand.vmem [shape: f32[2,128], index: 0, kind: input, shape index: {}]
  %s1 = inlined_call_operand.vmem [shape: f32[2,128], index: 1, kind: input, shape index: {}]
  %s2 = inlined_call_operand.vmem [shape: bf16[128,256], index: 2, kind: input, shape index: {}]
  %s3 = inlined_call_operand.vmem [shape: f32[1,256], index: 3, kind: input, shape index: {}]
  %s4 = inlined_call_operand.vmem [shape: f32[1,256], index: 4, kind: input, shape index: {}]
  %s5 = inlined_call_operand.vmem [shape: f32[1,256], index: 5, kind: input, shape index: {}]
  %s6 = inlined_call_operand.vmem [shape: bf16[256,128], index: 6, kind: input, shape index: {}]
  %s7 = inlined_call_operand.vmem [shape: f32[1,128], index: 7, kind: input, shape index: {}]
  %s8 = inlined_call_operand.vmem [shape: bf16[256,128], index: 8, kind: input, shape index: {}]
  %s9 = inlined_call_operand.vmem [shape: f32[1,128], index: 9, kind: input, shape index: {}]
  %s10 = inlined_call_operand.vmem [shape: f32[1,128], index: 10, kind: input, shape index: {}]
  %s11 = inlined_call_operand.vmem [shape: f32[1,128], index: 11, kind: input, shape index: {}]
  %s12 = inlined_call_operand.vmem [shape: bf16[128,128], index: 12, kind: input, shape index: {}]
  %s13 = inlined_call_operand.vmem [shape: f32[1,128], index: 13, kind: input, shape index: {}]
  %s14 = inlined_call_operand.vmem [shape: f32[2,128], index: 14, kind: output, shape index: {}]
  %s15 = sld [smem:[#allocation0]]
  $region66: #{forward.5} parent=0
    _
  %s17 = ssub.s32 1, %s15
  %s18 = scalar_select 0, %s17, %s15
  // Predicated region
  $region2: #{forward.5} parent=0 // pred_check
    _
  $region3: #{forward.5} parent=0 // pred_check_branch
    %20 = sbr.rel (0) target = $region5
  $region4: #{forward.5} parent=0 // pred_region
    _
  $region5: #{forward.5} parent=0 // pred_fallthru
    _
  // Predicated region
  $region6: #{forward.5} parent=0 // pred_check
    _
  $region7: #{forward.5} parent=0 // pred_check_branch
    %22 = sbr.rel (0) target = $region9
  $region8: #{forward.5} parent=0 // pred_region
    _
  $region9: #{forward.5} parent=0 // pred_fallthru
    _
  // Predicated region
  $region10: #{forward.5} parent=0 // pred_check
    _
  $region11: #{forward.5} parent=0 // pred_check_branch
    %24 = sbr.rel (0) target = $region13
  $region12: #{forward.5} parent=0 // pred_region
    _
  $region13: #{forward.5} parent=0 // pred_fallthru
    _
  // Predicated region
  $region14: #{forward.5} parent=0 // pred_check
    _
  $region15: #{forward.5} parent=0 // pred_check_branch
    %26 = sbr.rel (0) target = $region17
  $region16: #{forward.5} parent=0 // pred_region
    _
  $region17: #{forward.5} parent=0 // pred_fallthru
    _
  // Predicated region
  $region18: #{forward.5} parent=0 // pred_check
    _
  $region19: #{forward.5} parent=0 // pred_check_branch
    %28 = sbr.rel (0) target = $region21
  $region20: #{forward.5} parent=0 // pred_region
    _
  $region21: #{forward.5} parent=0 // pred_fallthru
    _
  // Predicated region
  $region22: #{forward.5} parent=0 // pred_check
    _
  $region23: #{forward.5} parent=0 // pred_check_branch
    %30 = sbr.rel (0) target = $region25
  $region24: #{forward.5} parent=0 // pred_region
    _
  $region25: #{forward.5} parent=0 // pred_fallthru
    _
  // Predicated region
  $region26: #{forward.5} parent=0 // pred_check
    _
  $region27: #{forward.5} parent=0 // pred_check_branch
    %32 = sbr.rel (0) target = $region29
  $region28: #{forward.5} parent=0 // pred_region
    _
  $region29: #{forward.5} parent=0 // pred_fallthru
    _
  // Predicated region
  $region30: #{forward.5} parent=0 // pred_check
    _
  $region31: #{forward.5} parent=0 // pred_check_branch
    %34 = sbr.rel (0) target = $region33
  $region32: #{forward.5} parent=0 // pred_region
    _
  $region33: #{forward.5} parent=0 // pred_fallthru
    _
  // Predicated region
  $region34: #{forward.5} parent=0 // pred_check
    _
  $region35: #{forward.5} parent=0 // pred_check_branch
    %36 = sbr.rel (0) target = $region37
  $region36: #{forward.5} parent=0 // pred_region
    _
  $region37: #{forward.5} parent=0 // pred_fallthru
    _
  // Predicated region
  $region38: #{forward.5} parent=0 // pred_check
    _
  $region39: #{forward.5} parent=0 // pred_check_branch
    %38 = sbr.rel (0) target = $region41
  $region40: #{forward.5} parent=0 // pred_region
    _
  $region41: #{forward.5} parent=0 // pred_fallthru
    _
  // Predicated region
  $region42: #{forward.5} parent=0 // pred_check
    _
  $region43: #{forward.5} parent=0 // pred_check_branch
    %40 = sbr.rel (0) target = $region45
  $region44: #{forward.5} parent=0 // pred_region
    _
  $region45: #{forward.5} parent=0 // pred_fallthru
    _
  // Predicated region
  $region46: #{forward.5} parent=0 // pred_check
    _
  $region47: #{forward.5} parent=0 // pred_check_branch
    %42 = sbr.rel (0) target = $region49
  $region48: #{forward.5} parent=0 // pred_region
    _
  $region49: #{forward.5} parent=0 // pred_fallthru
    _
  // Predicated region
  $region50: #{forward.5} parent=0 // pred_check
    _
  $region51: #{forward.5} parent=0 // pred_check_branch
    %44 = sbr.rel (0) target = $region53
  $region52: #{forward.5} parent=0 // pred_region
    _
  $region53: #{forward.5} parent=0 // pred_fallthru
    _
  // Predicated region
  $region54: #{forward.5} parent=0 // pred_check
    _
  $region55: #{forward.5} parent=0 // pred_check_branch
    %46 = sbr.rel (0) target = $region57
  $region56: #{forward.5} parent=0 // pred_region
    _
  $region57: #{forward.5} parent=0 // pred_fallthru
    _
  %v48 = vld [vmem:[%s1] sm:$0x3]
  %v49 = vld [vmem:[%s2] sm:$0xff]
  %v50 = vld [vmem:[%s2 + $0x8] sm:$0xff]
  %v51 = vld [vmem:[%s2 + $0x10] sm:$0xff]
  %v52 = vld [vmem:[%s2 + $0x18] sm:$0xff]
  %v53 = vld [vmem:[%s2 + $0x20] sm:$0xff]
  %v54 = vld [vmem:[%s2 + $0x28] sm:$0xff]
  %v55 = vld [vmem:[%s2 + $0x30] sm:$0xff]
  %v56 = vld [vmem:[%s2 + $0x38] sm:$0xff]
  %v57 = vld [vmem:[%s2 + $0x40] sm:$0xff]
  %v58 = vld [vmem:[%s2 + $0x48] sm:$0xff]
  %v59 = vld [vmem:[%s2 + $0x50] sm:$0xff]
  %v60 = vld [vmem:[%s2 + $0x58] sm:$0xff]
  %v61 = vld [vmem:[%s2 + $0x60] sm:$0xff]
  %v62 = vld [vmem:[%s2 + $0x68] sm:$0xff]
  %v63 = vld [vmem:[%s2 + $0x70] sm:$0xff]
  %v64 = vld [vmem:[%s2 + $0x78] sm:$0xff]
  %v65 = vld [vmem:[%s3] sm:$0x3]
  %v66 = vld [vmem:[%s4] sm:$0x3]
  %v67 = vld [vmem:[%s5] sm:$0x3]
  %v68 = vld [vmem:[%s6] sm:$0xf]
  %v69 = vld [vmem:[%s6 + $0x4] sm:$0xf]
  %v70 = vld [vmem:[%s6 + $0x8] sm:$0xf]
  %v71 = vld [vmem:[%s6 + $0xc] sm:$0xf]
  %v72 = vld [vmem:[%s6 + $0x10] sm:$0xf]
  %v73 = vld [vmem:[%s6 + $0x14] sm:$0xf]
  %v74 = vld [vmem:[%s6 + $0x18] sm:$0xf]
  %v75 = vld [vmem:[%s6 + $0x1c] sm:$0xf]
  %v76 = vld [vmem:[%s6 + $0x20] sm:$0xf]
  %v77 = vld [vmem:[%s6 + $0x24] sm:$0xf]
  %v78 = vld [vmem:[%s6 + $0x28] sm:$0xf]
  %v79 = vld [vmem:[%s6 + $0x2c] sm:$0xf]
  %v80 = vld [vmem:[%s6 + $0x30] sm:$0xf]
  %v81 = vld [vmem:[%s6 + $0x34] sm:$0xf]
  %v82 = vld [vmem:[%s6 + $0x38] sm:$0xf]
  %v83 = vld [vmem:[%s6 + $0x3c] sm:$0xf]
  %v84 = vld [vmem:[%s6 + $0x40] sm:$0xf]
  %v85 = vld [vmem:[%s6 + $0x44] sm:$0xf]
  %v86 = vld [vmem:[%s6 + $0x48] sm:$0xf]
  %v87 = vld [vmem:[%s6 + $0x4c] sm:$0xf]
  %v88 = vld [vmem:[%s6 + $0x50] sm:$0xf]
  %v89 = vld [vmem:[%s6 + $0x54] sm:$0xf]
  %v90 = vld [vmem:[%s6 + $0x58] sm:$0xf]
  %v91 = vld [vmem:[%s6 + $0x5c] sm:$0xf]
  %v92 = vld [vmem:[%s6 + $0x60] sm:$0xf]
  %v93 = vld [vmem:[%s6 + $0x64] sm:$0xf]
  %v94 = vld [vmem:[%s6 + $0x68] sm:$0xf]
  %v95 = vld [vmem:[%s6 + $0x6c] sm:$0xf]
  %v96 = vld [vmem:[%s6 + $0x70] sm:$0xf]
  %v97 = vld [vmem:[%s6 + $0x74] sm:$0xf]
  %v98 = vld [vmem:[%s6 + $0x78] sm:$0xf]
  %v99 = vld [vmem:[%s6 + $0x7c] sm:$0xf]
  %v100 = vld [vmem:[%s7] sm:$0x1]
  %v101 = vpack.c.bf16 %v48, %v48
  %v103 = vlaneseq
  %v104 = vshrl.u32 %v103, 7
  %v105 = vsub.s32 0, %v104
  %v106 = vrot.slane %v65, %v105
  %v107 = vlaneseq
  %v108 = vshrl.u32 %v107, 7
  %v109 = vsub.s32 1, %v108
  %v110 = vrot.slane %v65, %v109
  %v129 = vunpack.c.l.b16 %v49
  %v130 = vunpack.c.h.b16 %v49
  %v131 = vunpack.c.l.b16 %v50
  %v132 = vunpack.c.h.b16 %v50
  %v133 = vunpack.c.l.b16 %v51
  %v134 = vunpack.c.h.b16 %v51
  %v135 = vunpack.c.l.b16 %v52
  %v136 = vunpack.c.h.b16 %v52
  %v137 = vunpack.c.l.b16 %v53
  %v138 = vunpack.c.h.b16 %v53
  %v139 = vunpack.c.l.b16 %v54
  %v140 = vunpack.c.h.b16 %v54
  %v141 = vunpack.c.l.b16 %v55
  %v142 = vunpack.c.h.b16 %v55
  %v143 = vunpack.c.l.b16 %v56
  %v144 = vunpack.c.h.b16 %v56
  %v145 = vunpack.c.l.b16 %v57
  %v146 = vunpack.c.h.b16 %v57
  %v147 = vunpack.c.l.b16 %v58
  %v148 = vunpack.c.h.b16 %v58
  %v149 = vunpack.c.l.b16 %v59
  %v150 = vunpack.c.h.b16 %v59
  %v151 = vunpack.c.l.b16 %v60
  %v152 = vunpack.c.h.b16 %v60
  %v153 = vunpack.c.l.b16 %v61
  %v154 = vunpack.c.h.b16 %v61
  %v155 = vunpack.c.l.b16 %v62
  %v156 = vunpack.c.h.b16 %v62
  %v157 = vunpack.c.l.b16 %v63
  %v158 = vunpack.c.h.b16 %v63
  %v159 = vunpack.c.l.b16 %v64
  %v160 = vunpack.c.h.b16 %v64
  %v161 = vpack.c.b16 %v131, %v129
  %v162 = vpack.c.b16 %v132, %v130
  %v163 = vpack.c.b16 %v135, %v133
  %v164 = vpack.c.b16 %v136, %v134
  %v165 = vpack.c.b16 %v139, %v137
  %v166 = vpack.c.b16 %v140, %v138
  %v167 = vpack.c.b16 %v143, %v141
  %v168 = vpack.c.b16 %v144, %v142
  %v169 = vpack.c.b16 %v147, %v145
  %v170 = vpack.c.b16 %v148, %v146
  %v171 = vpack.c.b16 %v151, %v149
  %v172 = vpack.c.b16 %v152, %v150
  %v173 = vpack.c.b16 %v155, %v153
  %v174 = vpack.c.b16 %v156, %v154
  %v175 = vpack.c.b16 %v159, %v157
  %v176 = vpack.c.b16 %v160, %v158
  %193 = vmatprep.subr.bf16.mxu0 %v162
  %194 = vmatpush1.bf16.msra.mxu0 %v161
  %195 = vmatprep.subr.bf16.mxu0 %v164
  %196 = vmatpush1.bf16.msra.mxu0 %v163
  %197 = vmatprep.subr.bf16.mxu0 %v166
  %198 = vmatpush1.bf16.msra.mxu0 %v165
  %199 = vmatprep.subr.bf16.mxu0 %v168
  %200 = vmatpush1.bf16.msra.mxu0 %v167
  %201 = vmatprep.subr.bf16.mxu0 %v170
  %202 = vmatpush1.bf16.msra.mxu0 %v169
  %203 = vmatprep.subr.bf16.mxu0 %v172
  %204 = vmatpush1.bf16.msra.mxu0 %v171
  %205 = vmatprep.subr.bf16.mxu0 %v174
  %206 = vmatpush1.bf16.msra.mxu0 %v173
  %207 = vmatprep.subr.bf16.mxu0 %v176
  %208 = vmatpush1.bf16.msra.mxu0 %v175
  %209 = vmatprep.subr.bf16.mxu0 0
  %210 = vmatpush1.bf16.msra.mxu0 0
  %211 = vmatprep.subr.bf16.mxu0 0
  %212 = vmatpush1.bf16.msra.mxu0 0
  %213 = vmatprep.subr.bf16.mxu0 0
  %214 = vmatpush1.bf16.msra.mxu0 0
  %215 = vmatprep.subr.bf16.mxu0 0
  %216 = vmatpush1.bf16.msra.mxu0 0
  %217 = vmatprep.subr.bf16.mxu0 0
  %218 = vmatpush1.bf16.msra.mxu0 0
  %219 = vmatprep.subr.bf16.mxu0 0
  %220 = vmatpush1.bf16.msra.mxu0 0
  %221 = vmatprep.subr.bf16.mxu0 0
  %222 = vmatpush1.bf16.msra.mxu0 0
  %223 = vmatprep.subr.bf16.mxu0 0
  %224 = vmatpush1.bf16.msra.mxu0 0
  %225 = vmatprep.mubr.bf16.mxu0 0
  %226 = vmatmul.mubr.bf16.gmra.mrb[0].mxu0 %v101
  %v227 = vpop.f32.mrb[0].mxu0
  %v228 = vadd.f32 %v106, %v227
  %v229 = vpop.f32.mrb[0].mxu0
  %v230 = vadd.f32 %v110, %v229
  %v231 = vpop.f32.mrb[0].mxu0
  %v232 = vpop.f32.mrb[0].mxu0
  %233 = vdwg.mxu0
  %vm234 = vcmask 1041408
  %v235 = vsel %vm234, %v228, 0.0
  %v236 = vrot.slane %v235, 4
  %v237 = vadd.f32 %v235, %v236
  %v238 = vrot.slane %v237, 2
  %v239 = vadd.f32 %v237, %v238
  %v240 = vrot.slane %v239, 1
  %v241 = vadd.f32 %v239, %v240
  %v242 = vsel %vm234, %v230, 0.0
  %v243 = vrot.slane %v242, 4
  %v244 = vadd.f32 %v242, %v243
  %v245 = vrot.slane %v244, 2
  %v246 = vadd.f32 %v244, %v245
  %v247 = vrot.slane %v246, 1
  %v248 = vadd.f32 %v246, %v247
  %v249 = vrcp.pop 2.0
  %v250 = vmul.f32 %v241, %v249
  %v251 = vmul.f32 %v248, %v249
  %v252 = vsub.f32 %v228, %v250
  %v253 = vsub.f32 %v230, %v251
  %v254 = vmul.f32 %v252, %v252
  %v255 = vmul.f32 %v253, %v253
  %v256 = vsel %vm234, %v254, 0.0
  %v257 = vrot.slane %v256, 4
  %v258 = vadd.f32 %v256, %v257
  %v259 = vrot.slane %v258, 2
  %v260 = vadd.f32 %v258, %v259
  %v261 = vrot.slane %v260, 1
  %v262 = vadd.f32 %v260, %v261
  %v263 = vsel %vm234, %v255, 0.0
  %v264 = vrot.slane %v263, 4
  %v265 = vadd.f32 %v263, %v264
  %v266 = vrot.slane %v265, 2
  %v267 = vadd.f32 %v265, %v266
  %v268 = vrot.slane %v267, 1
  %v269 = vadd.f32 %v267, %v268
  %v270 = vmul.f32 %v262, %v249
  %v271 = vmul.f32 %v269, %v249
  %v272 = vadd.f32 %v270, 1e-05
  %v273 = vadd.f32 %v271, 1e-05
  %v274 = vrsqrt.pop %v272
  %v275 = vrsqrt.pop %v273
  %v276 = vmul.f32 %v252, %v274
  %v277 = vmul.f32 %v253, %v275
  %v279 = vlaneseq
  %v280 = vshrl.u32 %v279, 7
  %v281 = vsub.s32 0, %v280
  %v282 = vrot.slane %v66, %v281
  %v283 = vlaneseq
  %v284 = vshrl.u32 %v283, 7
  %v285 = vsub.s32 1, %v284
  %v286 = vrot.slane %v66, %v285
  %v289 = vmul.f32 %v276, %v282
  %v290 = vmul.f32 %v277, %v286
  %v292 = vlaneseq
  %v293 = vshrl.u32 %v292, 7
  %v294 = vsub.s32 0, %v293
  %v295 = vrot.slane %v67, %v294
  %v296 = vlaneseq
  %v297 = vshrl.u32 %v296, 7
  %v298 = vsub.s32 1, %v297
  %v299 = vrot.slane %v67, %v298
  %v302 = vadd.f32 %v289, %v295
  %v303 = vadd.f32 %v290, %v299
  %v304 = vmax.f32 %v302, 0.0
  %v305 = vmax.f32 %v303, 0.0
  %v306 = vpack.c.bf16 %v304, %v304
  %v307 = vpack.c.bf16 %v305, %v305
  %v309 = vlaneseq
  %v310 = vshrl.u32 %v309, 7
  %v311 = vsub.s32 0, %v310
  %v312 = vrot.slane %v100, %v311
  %v346 = vunpack.c.l.b16 %v68
  %v347 = vunpack.c.l.b16 %v69
  %v348 = vunpack.c.l.b16 %v70
  %v349 = vunpack.c.l.b16 %v71
  %v350 = vunpack.c.l.b16 %v72
  %v351 = vunpack.c.l.b16 %v73
  %v352 = vunpack.c.l.b16 %v74
  %v353 = vunpack.c.l.b16 %v75
  %v354 = vunpack.c.l.b16 %v76
  %v355 = vunpack.c.l.b16 %v77
  %v356 = vunpack.c.l.b16 %v78
  %v357 = vunpack.c.l.b16 %v79
  %v358 = vunpack.c.l.b16 %v80
  %v359 = vunpack.c.l.b16 %v81
  %v360 = vunpack.c.l.b16 %v82
  %v361 = vunpack.c.l.b16 %v83
  %v362 = vunpack.c.l.b16 %v84
  %v363 = vunpack.c.l.b16 %v85
  %v364 = vunpack.c.l.b16 %v86
  %v365 = vunpack.c.l.b16 %v87
  %v366 = vunpack.c.l.b16 %v88
  %v367 = vunpack.c.l.b16 %v89
  %v368 = vunpack.c.l.b16 %v90
  %v369 = vunpack.c.l.b16 %v91
  %v370 = vunpack.c.l.b16 %v92
  %v371 = vunpack.c.l.b16 %v93
  %v372 = vunpack.c.l.b16 %v94
  %v373 = vunpack.c.l.b16 %v95
  %v374 = vunpack.c.l.b16 %v96
  %v375 = vunpack.c.l.b16 %v97
  %v376 = vunpack.c.l.b16 %v98
  %v377 = vunpack.c.l.b16 %v99
  %v378 = vpack.c.b16 %v347, %v346
  %v379 = vpack.c.b16 %v349, %v348
  %v380 = vpack.c.b16 %v351, %v350
  %v381 = vpack.c.b16 %v353, %v352
  %v382 = vpack.c.b16 %v355, %v354
  %v383 = vpack.c.b16 %v357, %v356
  %v384 = vpack.c.b16 %v359, %v358
  %v385 = vpack.c.b16 %v361, %v360
  %v386 = vpack.c.b16 %v363, %v362
  %v387 = vpack.c.b16 %v365, %v364
  %v388 = vpack.c.b16 %v367, %v366
  %v389 = vpack.c.b16 %v369, %v368
  %v390 = vpack.c.b16 %v371, %v370
  %v391 = vpack.c.b16 %v373, %v372
  %v392 = vpack.c.b16 %v375, %v374
  %v393 = vpack.c.b16 %v377, %v376
  %410 = vmatprep.subr.bf16.mxu0 0
  %411 = vmatpush1.bf16.msra.mxu0 %v378
  %412 = vmatprep.subr.bf16.mxu0 0
  %413 = vmatpush1.bf16.msra.mxu0 %v379
  %414 = vmatprep.subr.bf16.mxu0 0
  %415 = vmatpush1.bf16.msra.mxu0 %v380
  %416 = vmatprep.subr.bf16.mxu0 0
  %417 = vmatpush1.bf16.msra.mxu0 %v381
  %418 = vmatprep.subr.bf16.mxu0 0
  %419 = vmatpush1.bf16.msra.mxu0 %v382
  %420 = vmatprep.subr.bf16.mxu0 0
  %421 = vmatpush1.bf16.msra.mxu0 %v383
  %422 = vmatprep.subr.bf16.mxu0 0
  %423 = vmatpush1.bf16.msra.mxu0 %v384
  %424 = vmatprep.subr.bf16.mxu0 0
  %425 = vmatpush1.bf16.msra.mxu0 %v385
  %426 = vmatprep.subr.bf16.mxu0 0
  %427 = vmatpush1.bf16.msra.mxu0 %v386
  %428 = vmatprep.subr.bf16.mxu0 0
  %429 = vmatpush1.bf16.msra.mxu0 %v387
  %430 = vmatprep.subr.bf16.mxu0 0
  %431 = vmatpush1.bf16.msra.mxu0 %v388
  %432 = vmatprep.subr.bf16.mxu0 0
  %433 = vmatpush1.bf16.msra.mxu0 %v389
  %434 = vmatprep.subr.bf16.mxu0 0
  %435 = vmatpush1.bf16.msra.mxu0 %v390
  %436 = vmatprep.subr.bf16.mxu0 0
  %437 = vmatpush1.bf16.msra.mxu0 %v391
  %438 = vmatprep.subr.bf16.mxu0 0
  %439 = vmatpush1.bf16.msra.mxu0 %v392
  %440 = vmatprep.subr.bf16.mxu0 0
  %441 = vmatpush1.bf16.msra.mxu0 %v393
  %442 = vmatprep.mubr.bf16.mxu0 %v307
  %443 = vmatmul.mubr.bf16.gmra.mrb[0].mxu0 %v306
  %v444 = vpop.f32.mrb[0].mxu0
  %v445 = vadd.f32 %v312, %v444
  %v446 = vpop.f32.mrb[0].mxu0
  %v447 = vpop.f32.mrb[0].mxu0
  %v448 = vpop.f32.mrb[0].mxu0
  %449 = vdwg.mxu0
  %v450 = vld [vmem:[%s0] sm:$0x3]
  %v451 = vld [vmem:[%s8] sm:$0xf]
  %v452 = vld [vmem:[%s8 + $0x4] sm:$0xf]
  %v453 = vld [vmem:[%s8 + $0x8] sm:$0xf]
  %v454 = vld [vmem:[%s8 + $0xc] sm:$0xf]
  %v455 = vld [vmem:[%s8 + $0x10] sm:$0xf]
  %v456 = vld [vmem:[%s8 + $0x14] sm:$0xf]
  %v457 = vld [vmem:[%s8 + $0x18] sm:$0xf]
  %v458 = vld [vmem:[%s8 + $0x1c] sm:$0xf]
  %v459 = vld [vmem:[%s8 + $0x20] sm:$0xf]
  %v460 = vld [vmem:[%s8 + $0x24] sm:$0xf]
  %v461 = vld [vmem:[%s8 + $0x28] sm:$0xf]
  %v462 = vld [vmem:[%s8 + $0x2c] sm:$0xf]
  %v463 = vld [vmem:[%s8 + $0x30] sm:$0xf]
  %v464 = vld [vmem:[%s8 + $0x34] sm:$0xf]
  %v465 = vld [vmem:[%s8 + $0x38] sm:$0xf]
  %v466 = vld [vmem:[%s8 + $0x3c] sm:$0xf]
  %v467 = vld [vmem:[%s8 + $0x40] sm:$0xf]
  %v468 = vld [vmem:[%s8 + $0x44] sm:$0xf]
  %v469 = vld [vmem:[%s8 + $0x48] sm:$0xf]
  %v470 = vld [vmem:[%s8 + $0x4c] sm:$0xf]
  %v471 = vld [vmem:[%s8 + $0x50] sm:$0xf]
  %v472 = vld [vmem:[%s8 + $0x54] sm:$0xf]
  %v473 = vld [vmem:[%s8 + $0x58] sm:$0xf]
  %v474 = vld [vmem:[%s8 + $0x5c] sm:$0xf]
  %v475 = vld [vmem:[%s8 + $0x60] sm:$0xf]
  %v476 = vld [vmem:[%s8 + $0x64] sm:$0xf]
  %v477 = vld [vmem:[%s8 + $0x68] sm:$0xf]
  %v478 = vld [vmem:[%s8 + $0x6c] sm:$0xf]
  %v479 = vld [vmem:[%s8 + $0x70] sm:$0xf]
  %v480 = vld [vmem:[%s8 + $0x74] sm:$0xf]
  %v481 = vld [vmem:[%s8 + $0x78] sm:$0xf]
  %v482 = vld [vmem:[%s8 + $0x7c] sm:$0xf]
  %v483 = vld [vmem:[%s9] sm:$0x1]
  %v484 = vld [vmem:[%s10] sm:$0x1]
  %v485 = vld [vmem:[%s11] sm:$0x1]
  %v486 = vld [vmem:[%s12] sm:$0xf]
  %v487 = vld [vmem:[%s12 + $0x4] sm:$0xf]
  %v488 = vld [vmem:[%s12 + $0x8] sm:$0xf]
  %v489 = vld [vmem:[%s12 + $0xc] sm:$0xf]
  %v490 = vld [vmem:[%s12 + $0x10] sm:$0xf]
  %v491 = vld [vmem:[%s12 + $0x14] sm:$0xf]
  %v492 = vld [vmem:[%s12 + $0x18] sm:$0xf]
  %v493 = vld [vmem:[%s12 + $0x1c] sm:$0xf]
  %v494 = vld [vmem:[%s12 + $0x20] sm:$0xf]
  %v495 = vld [vmem:[%s12 + $0x24] sm:$0xf]
  %v496 = vld [vmem:[%s12 + $0x28] sm:$0xf]
  %v497 = vld [vmem:[%s12 + $0x2c] sm:$0xf]
  %v498 = vld [vmem:[%s12 + $0x30] sm:$0xf]
  %v499 = vld [vmem:[%s12 + $0x34] sm:$0xf]
  %v500 = vld [vmem:[%s12 + $0x38] sm:$0xf]
  %v501 = vld [vmem:[%s12 + $0x3c] sm:$0xf]
  %v502 = vld [vmem:[%s13] sm:$0x1]
  %v503 = vpack.c.bf16 %v450, %v450
  %v504 = vpack.c.bf16 %v445, %v445
  %v506 = vlaneseq
  %v507 = vshrl.u32 %v506, 7
  %v508 = vsub.s32 0, %v507
  %v509 = vrot.slane %v483, %v508
  %v543 = vunpack.c.l.b16 %v451
  %v544 = vunpack.c.l.b16 %v452
  %v545 = vunpack.c.l.b16 %v453
  %v546 = vunpack.c.l.b16 %v454
  %v547 = vunpack.c.l.b16 %v455
  %v548 = vunpack.c.l.b16 %v456
  %v549 = vunpack.c.l.b16 %v457
  %v550 = vunpack.c.l.b16 %v458
  %v551 = vunpack.c.l.b16 %v459
  %v552 = vunpack.c.l.b16 %v460
  %v553 = vunpack.c.l.b16 %v461
  %v554 = vunpack.c.l.b16 %v462
  %v555 = vunpack.c.l.b16 %v463
  %v556 = vunpack.c.l.b16 %v464
  %v557 = vunpack.c.l.b16 %v465
  %v558 = vunpack.c.l.b16 %v466
  %v559 = vunpack.c.l.b16 %v467
  %v560 = vunpack.c.l.b16 %v468
  %v561 = vunpack.c.l.b16 %v469
  %v562 = vunpack.c.l.b16 %v470
  %v563 = vunpack.c.l.b16 %v471
  %v564 = vunpack.c.l.b16 %v472
  %v565 = vunpack.c.l.b16 %v473
  %v566 = vunpack.c.l.b16 %v474
  %v567 = vunpack.c.l.b16 %v475
  %v568 = vunpack.c.l.b16 %v476
  %v569 = vunpack.c.l.b16 %v477
  %v570 = vunpack.c.l.b16 %v478
  %v571 = vunpack.c.l.b16 %v479
  %v572 = vunpack.c.l.b16 %v480
  %v573 = vunpack.c.l.b16 %v481
  %v574 = vunpack.c.l.b16 %v482
  %v575 = vpack.c.b16 %v544, %v543
  %v576 = vpack.c.b16 %v546, %v545
  %v577 = vpack.c.b16 %v548, %v547
  %v578 = vpack.c.b16 %v550, %v549
  %v579 = vpack.c.b16 %v552, %v551
  %v580 = vpack.c.b16 %v554, %v553
  %v581 = vpack.c.b16 %v556, %v555
  %v582 = vpack.c.b16 %v558, %v557
  %v583 = vpack.c.b16 %v560, %v559
  %v584 = vpack.c.b16 %v562, %v561
  %v585 = vpack.c.b16 %v564, %v563
  %v586 = vpack.c.b16 %v566, %v565
  %v587 = vpack.c.b16 %v568, %v567
  %v588 = vpack.c.b16 %v570, %v569
  %v589 = vpack.c.b16 %v572, %v571
  %v590 = vpack.c.b16 %v574, %v573
  %607 = vmatprep.subr.bf16.mxu0 0
  %608 = vmatpush1.bf16.msra.mxu0 %v575
  %609 = vmatprep.subr.bf16.mxu0 0
  %610 = vmatpush1.bf16.msra.mxu0 %v576
  %611 = vmatprep.subr.bf16.mxu0 0
  %612 = vmatpush1.bf16.msra.mxu0 %v577
  %613 = vmatprep.subr.bf16.mxu0 0
  %614 = vmatpush1.bf16.msra.mxu0 %v578
  %615 = vmatprep.subr.bf16.mxu0 0
  %616 = vmatpush1.bf16.msra.mxu0 %v579
  %617 = vmatprep.subr.bf16.mxu0 0
  %618 = vmatpush1.bf16.msra.mxu0 %v580
  %619 = vmatprep.subr.bf16.mxu0 0
  %620 = vmatpush1.bf16.msra.mxu0 %v581
  %621 = vmatprep.subr.bf16.mxu0 0
  %622 = vmatpush1.bf16.msra.mxu0 %v582
  %623 = vmatprep.subr.bf16.mxu0 0
  %624 = vmatpush1.bf16.msra.mxu0 %v583
  %625 = vmatprep.subr.bf16.mxu0 0
  %626 = vmatpush1.bf16.msra.mxu0 %v584
  %627 = vmatprep.subr.bf16.mxu0 0
  %628 = vmatpush1.bf16.msra.mxu0 %v585
  %629 = vmatprep.subr.bf16.mxu0 0
  %630 = vmatpush1.bf16.msra.mxu0 %v586
  %631 = vmatprep.subr.bf16.mxu0 0
  %632 = vmatpush1.bf16.msra.mxu0 %v587
  %633 = vmatprep.subr.bf16.mxu0 0
  %634 = vmatpush1.bf16.msra.mxu0 %v588
  %635 = vmatprep.subr.bf16.mxu0 0
  %636 = vmatpush1.bf16.msra.mxu0 %v589
  %637 = vmatprep.subr.bf16.mxu0 0
  %638 = vmatpush1.bf16.msra.mxu0 %v590
  %639 = vmatprep.mubr.bf16.mxu0 %v504
  %640 = vmatmul.mubr.bf16.gmra.mrb[0].mxu0 %v503
  %v641 = vpop.f32.mrb[0].mxu0
  %v642 = vadd.f32 %v509, %v641
  %v643 = vpop.f32.mrb[0].mxu0
  %v644 = vpop.f32.mrb[0].mxu0
  %v645 = vpop.f32.mrb[0].mxu0
  %646 = vdwg.mxu0
  %v647 = vsel %vm234, %v642, 0.0
  %v648 = vrot.slane %v647, 4
  %v649 = vadd.f32 %v647, %v648
  %v650 = vrot.slane %v649, 2
  %v651 = vadd.f32 %v649, %v650
  %v652 = vrot.slane %v651, 1
  %v653 = vadd.f32 %v651, %v652
  %v654 = vmul.f32 %v653, %v249
  %v655 = vsub.f32 %v642, %v654
  %v656 = vmul.f32 %v655, %v655
  %v657 = vsel %vm234, %v656, 0.0
  %v658 = vrot.slane %v657, 4
  %v659 = vadd.f32 %v657, %v658
  %v660 = vrot.slane %v659, 2
  %v661 = vadd.f32 %v659, %v660
  %v662 = vrot.slane %v661, 1
  %v663 = vadd.f32 %v661, %v662
  %v664 = vmul.f32 %v663, %v249
  %v665 = vadd.f32 %v664, 1e-05
  %v666 = vrsqrt.pop %v665
  %v667 = vmul.f32 %v655, %v666
  %v669 = vlaneseq
  %v670 = vshrl.u32 %v669, 7
  %v671 = vsub.s32 0, %v670
  %v672 = vrot.slane %v484, %v671
  %v674 = vmul.f32 %v667, %v672
  %v676 = vlaneseq
  %v677 = vshrl.u32 %v676, 7
  %v678 = vsub.s32 0, %v677
  %v679 = vrot.slane %v485, %v678
  %v681 = vadd.f32 %v674, %v679
  %v682 = vmax.f32 %v681, 0.0
  %v683 = vpack.c.bf16 %v682, %v682
  %v685 = vlaneseq
  %v686 = vshrl.u32 %v685, 7
  %v687 = vsub.s32 0, %v686
  %v688 = vrot.slane %v502, %v687
  %v706 = vunpack.c.l.b16 %v486
  %v707 = vunpack.c.l.b16 %v487
  %v708 = vunpack.c.l.b16 %v488
  %v709 = vunpack.c.l.b16 %v489
  %v710 = vunpack.c.l.b16 %v490
  %v711 = vunpack.c.l.b16 %v491
  %v712 = vunpack.c.l.b16 %v492
  %v713 = vunpack.c.l.b16 %v493
  %v714 = vunpack.c.l.b16 %v494
  %v715 = vunpack.c.l.b16 %v495
  %v716 = vunpack.c.l.b16 %v496
  %v717 = vunpack.c.l.b16 %v497
  %v718 = vunpack.c.l.b16 %v498
  %v719 = vunpack.c.l.b16 %v499
  %v720 = vunpack.c.l.b16 %v500
  %v721 = vunpack.c.l.b16 %v501
  %v722 = vpack.c.b16 %v707, %v706
  %v723 = vpack.c.b16 %v709, %v708
  %v724 = vpack.c.b16 %v711, %v710
  %v725 = vpack.c.b16 %v713, %v712
  %v726 = vpack.c.b16 %v715, %v714
  %v727 = vpack.c.b16 %v717, %v716
  %v728 = vpack.c.b16 %v719, %v718
  %v729 = vpack.c.b16 %v721, %v720
  %738 = vmatprep.subr.bf16.mxu0 0
  %739 = vmatpush1.bf16.msra.mxu0 %v722
  %740 = vmatprep.subr.bf16.mxu0 0
  %741 = vmatpush1.bf16.msra.mxu0 %v723
  %742 = vmatprep.subr.bf16.mxu0 0
  %743 = vmatpush1.bf16.msra.mxu0 %v724
  %744 = vmatprep.subr.bf16.mxu0 0
  %745 = vmatpush1.bf16.msra.mxu0 %v725
  %746 = vmatprep.subr.bf16.mxu0 0
  %747 = vmatpush1.bf16.msra.mxu0 %v726
  %748 = vmatprep.subr.bf16.mxu0 0
  %749 = vmatpush1.bf16.msra.mxu0 %v727
  %750 = vmatprep.subr.bf16.mxu0 0
  %751 = vmatpush1.bf16.msra.mxu0 %v728
  %752 = vmatprep.subr.bf16.mxu0 0
  %753 = vmatpush1.bf16.msra.mxu0 %v729
  %754 = vmatprep.subr.bf16.mxu0 0
  %755 = vmatpush1.bf16.msra.mxu0 0
  %756 = vmatprep.subr.bf16.mxu0 0
  %757 = vmatpush1.bf16.msra.mxu0 0
  %758 = vmatprep.subr.bf16.mxu0 0
  %759 = vmatpush1.bf16.msra.mxu0 0
  %760 = vmatprep.subr.bf16.mxu0 0
  %761 = vmatpush1.bf16.msra.mxu0 0
  %762 = vmatprep.subr.bf16.mxu0 0
  %763 = vmatpush1.bf16.msra.mxu0 0
  %764 = vmatprep.subr.bf16.mxu0 0
  %765 = vmatpush1.bf16.msra.mxu0 0
  %766 = vmatprep.subr.bf16.mxu0 0
  %767 = vmatpush1.bf16.msra.mxu0 0
  %768 = vmatprep.subr.bf16.mxu0 0
  %769 = vmatpush1.bf16.msra.mxu0 0
  %770 = vmatprep.mubr.bf16.mxu0 0
  %771 = vmatmul.mubr.bf16.gmra.mrb[0].mxu0 %v683
  %v772 = vpop.f32.mrb[0].mxu0
  %v773 = vadd.f32 %v688, %v772
  %v774 = vpop.f32.mrb[0].mxu0
  %v775 = vpop.f32.mrb[0].mxu0
  %v776 = vpop.f32.mrb[0].mxu0
  %777 = vdwg.mxu0
  %778 = vst [vmem:[%s14] sm:$0x3] %v773
  // Predicated region
  $region58: #{forward.5} parent=0 // pred_check
    _
  $region59: #{forward.5} parent=0 // pred_check_branch
    %780 = sbr.rel (0) target = $region61
  $region60: #{forward.5} parent=0 // pred_region
    _
  $region61: #{forward.5} parent=0 // pred_fallthru
    _
  // Predicated region
  $region62: #{forward.5} parent=0 // pred_check
    _
  $region63: #{forward.5} parent=0 // pred_check_branch
    %782 = sbr.rel (0) target = $region65
  $region64: #{forward.5} parent=0 // pred_region
    _
  $region65: #{forward.5} parent=0 // pred_fallthru
    _

// kernel: forward.4
$region0: #{forward.4}
  #allocation0 [shape = 'u32[]', space=smem, size = 0x4, offset = 0x4, fixed_abs, tag = 'smem constant byte address 0x4 - core index']
  #allocation1 [shape = 'u32[144,128]{1,0:T(1,128)}', space=vmem, size = 0x12000, scoped, tag = 'internal scratch']
  %s0 = inlined_call_operand.vmem [shape: bf16[512,256], index: 0, kind: input, shape index: {}]
  %s1 = inlined_call_operand.vmem [shape: bf16[256,64], index: 1, kind: input, shape index: {}]
  %s2 = inlined_call_operand.vmem [shape: f32[1,64], index: 2, kind: input, shape index: {}]
  %s3 = inlined_call_operand.vmem [shape: f32[1,64], index: 3, kind: input, shape index: {}]
  %s4 = inlined_call_operand.vmem [shape: bf16[64,128], index: 4, kind: input, shape index: {}]
  %s5 = inlined_call_operand.vmem [shape: f32[1,128], index: 5, kind: input, shape index: {}]
  %s6 = inlined_call_operand.vmem [shape: f32[2,128], index: 6, kind: output, shape index: {}]
  %s7 = sld [smem:[#allocation0]]
  $region34: #{forward.4} parent=0
    _
  %s9 = ssub.s32 1, %s7
  %s10 = scalar_select 0, %s9, %s7
  // Predicated region
  $region2: #{forward.4} parent=0 // pred_check
    _
  $region3: #{forward.4} parent=0 // pred_check_branch
    %12 = sbr.rel (0) target = $region5
  $region4: #{forward.4} parent=0 // pred_region
    _
  $region5: #{forward.4} parent=0 // pred_fallthru
    _
  // Predicated region
  $region6: #{forward.4} parent=0 // pred_check
    _
  $region7: #{forward.4} parent=0 // pred_check_branch
    %14 = sbr.rel (0) target = $region9
  $region8: #{forward.4} parent=0 // pred_region
    _
  $region9: #{forward.4} parent=0 // pred_fallthru
    _
  // Predicated region
  $region10: #{forward.4} parent=0 // pred_check
    _
  $region11: #{forward.4} parent=0 // pred_check_branch
    %16 = sbr.rel (0) target = $region13
  $region12: #{forward.4} parent=0 // pred_region
    _
  $region13: #{forward.4} parent=0 // pred_fallthru
    _
  // Predicated region
  $region14: #{forward.4} parent=0 // pred_check
    _
  $region15: #{forward.4} parent=0 // pred_check_branch
    %18 = sbr.rel (0) target = $region17
  $region16: #{forward.4} parent=0 // pred_region
    _
  $region17: #{forward.4} parent=0 // pred_fallthru
    _
  // Predicated region
  $region18: #{forward.4} parent=0 // pred_check
    _
  $region19: #{forward.4} parent=0 // pred_check_branch
    %20 = sbr.rel (0) target = $region21
  $region20: #{forward.4} parent=0 // pred_region
    _
  $region21: #{forward.4} parent=0 // pred_fallthru
    _
  // Predicated region
  $region22: #{forward.4} parent=0 // pred_check
    _
  $region23: #{forward.4} parent=0 // pred_check_branch
    %22 = sbr.rel (0) target = $region25
  $region24: #{forward.4} parent=0 // pred_region
    _
  $region25: #{forward.4} parent=0 // pred_fallthru
    _
  %v24 = vld [vmem:[%s0] sm:$0xff]
  %v25 = vld [vmem:[%s0 + $0x8] sm:$0xff]
  %v26 = vld [vmem:[%s0 + $0x10] sm:$0xff]
  %v27 = vld [vmem:[%s0 + $0x18] sm:$0xff]
  %v28 = vld [vmem:[%s0 + $0x20] sm:$0xff]
  %v29 = vld [vmem:[%s0 + $0x28] sm:$0xff]
  %v30 = vld [vmem:[%s0 + $0x30] sm:$0xff]
  %v31 = vld [vmem:[%s0 + $0x38] sm:$0xff]
  %v32 = vld [vmem:[%s0 + $0x40] sm:$0xff]
  %v33 = vld [vmem:[%s0 + $0x48] sm:$0xff]
  %v34 = vld [vmem:[%s0 + $0x50] sm:$0xff]
  %v35 = vld [vmem:[%s0 + $0x58] sm:$0xff]
  %v36 = vld [vmem:[%s0 + $0x60] sm:$0xff]
  %v37 = vld [vmem:[%s0 + $0x68] sm:$0xff]
  %v38 = vld [vmem:[%s0 + $0x70] sm:$0xff]
  %v39 = vld [vmem:[%s0 + $0x78] sm:$0xff]
  %v40 = vld [vmem:[%s0 + $0x80] sm:$0xff]
  %v41 = vld [vmem:[%s0 + $0x88] sm:$0xff]
  %v42 = vld [vmem:[%s0 + $0x90] sm:$0xff]
  %v43 = vld [vmem:[%s0 + $0x98] sm:$0xff]
  %v44 = vld [vmem:[%s0 + $0xa0] sm:$0xff]
  %v45 = vld [vmem:[%s0 + $0xa8] sm:$0xff]
  %v46 = vld [vmem:[%s0 + $0xb0] sm:$0xff]
  %v47 = vld [vmem:[%s0 + $0xb8] sm:$0xff]
  %v48 = vld [vmem:[%s0 + $0xc0] sm:$0xff]
  %v49 = vld [vmem:[%s0 + $0xc8] sm:$0xff]
  %v50 = vld [vmem:[%s0 + $0xd0] sm:$0xff]
  %v51 = vld [vmem:[%s0 + $0xd8] sm:$0xff]
  %v52 = vld [vmem:[%s0 + $0xe0] sm:$0xff]
  %v53 = vld [vmem:[%s0 + $0xe8] sm:$0xff]
  %v54 = vld [vmem:[%s0 + $0xf0] sm:$0xff]
  %v55 = vld [vmem:[%s0 + $0xf8] sm:$0xff]
  %v56 = vld [vmem:[%s0 + $0x100] sm:$0xff]
  %v57 = vld [vmem:[%s0 + $0x108] sm:$0xff]
  %v58 = vld [vmem:[%s0 + $0x110] sm:$0xff]
  %v59 = vld [vmem:[%s0 + $0x118] sm:$0xff]
  %v60 = vld [vmem:[%s0 + $0x120] sm:$0xff]
  %v61 = vld [vmem:[%s0 + $0x128] sm:$0xff]
  %v62 = vld [vmem:[%s0 + $0x130] sm:$0xff]
  %v63 = vld [vmem:[%s0 + $0x138] sm:$0xff]
  %v64 = vld [vmem:[%s0 + $0x140] sm:$0xff]
  %v65 = vld [vmem:[%s0 + $0x148] sm:$0xff]
  %v66 = vld [vmem:[%s0 + $0x150] sm:$0xff]
  %v67 = vld [vmem:[%s0 + $0x158] sm:$0xff]
  %v68 = vld [vmem:[%s0 + $0x160] sm:$0xff]
  %v69 = vld [vmem:[%s0 + $0x168] sm:$0xff]
  %v70 = vld [vmem:[%s0 + $0x170] sm:$0xff]
  %v71 = vld [vmem:[%s0 + $0x178] sm:$0xff]
  %v72 = vld [vmem:[%s0 + $0x180] sm:$0xff]
  %v73 = vld [vmem:[%s0 + $0x188] sm:$0xff]
  %v74 = vld [vmem:[%s0 + $0x190] sm:$0xff]
  %v75 = vld [vmem:[%s0 + $0x198] sm:$0xff]
  %v76 = vld [vmem:[%s0 + $0x1a0] sm:$0xff]
  %v77 = vld [vmem:[%s0 + $0x1a8] sm:$0xff]
  %v78 = vld [vmem:[%s0 + $0x1b0] sm:$0xff]
  %v79 = vld [vmem:[%s0 + $0x1b8] sm:$0xff]
  %v80 = vld [vmem:[%s0 + $0x1c0] sm:$0xff]
  %v81 = vld [vmem:[%s0 + $0x1c8] sm:$0xff]
  %v82 = vld [vmem:[%s0 + $0x1d0] sm:$0xff]
  %v83 = vld [vmem:[%s0 + $0x1d8] sm:$0xff]
  %v84 = vld [vmem:[%s0 + $0x1e0] sm:$0xff]
  %v85 = vld [vmem:[%s0 + $0x1e8] sm:$0xff]
  %v86 = vld [vmem:[%s0 + $0x1f0] sm:$0xff]
  %v87 = vld [vmem:[%s0 + $0x1f8] sm:$0xff]
  %v88 = vld [vmem:[%s1] sm:$0xf]
  %v89 = vld [vmem:[%s1 + $0x4] sm:$0xf]
  %v90 = vld [vmem:[%s1 + $0x8] sm:$0xf]
  %v91 = vld [vmem:[%s1 + $0xc] sm:$0xf]
  %v92 = vld [vmem:[%s1 + $0x10] sm:$0xf]
  %v93 = vld [vmem:[%s1 + $0x14] sm:$0xf]
  %v94 = vld [vmem:[%s1 + $0x18] sm:$0xf]
  %v95 = vld [vmem:[%s1 + $0x1c] sm:$0xf]
  %v96 = vld [vmem:[%s1 + $0x20] sm:$0xf]
  %v97 = vld [vmem:[%s1 + $0x24] sm:$0xf]
  %v98 = vld [vmem:[%s1 + $0x28] sm:$0xf]
  %v99 = vld [vmem:[%s1 + $0x2c] sm:$0xf]
  %v100 = vld [vmem:[%s1 + $0x30] sm:$0xf]
  %v101 = vld [vmem:[%s1 + $0x34] sm:$0xf]
  %v102 = vld [vmem:[%s1 + $0x38] sm:$0xf]
  %v103 = vld [vmem:[%s1 + $0x3c] sm:$0xf]
  %v104 = vld [vmem:[%s1 + $0x40] sm:$0xf]
  %v105 = vld [vmem:[%s1 + $0x44] sm:$0xf]
  %v106 = vld [vmem:[%s1 + $0x48] sm:$0xf]
  %v107 = vld [vmem:[%s1 + $0x4c] sm:$0xf]
  %v108 = vld [vmem:[%s1 + $0x50] sm:$0xf]
  %v109 = vld [vmem:[%s1 + $0x54] sm:$0xf]
  %v110 = vld [vmem:[%s1 + $0x58] sm:$0xf]
  %v111 = vld [vmem:[%s1 + $0x5c] sm:$0xf]
  %v112 = vld [vmem:[%s1 + $0x60] sm:$0xf]
  %v113 = vld [vmem:[%s1 + $0x64] sm:$0xf]
  %v114 = vld [vmem:[%s1 + $0x68] sm:$0xf]
  %v115 = vld [vmem:[%s1 + $0x6c] sm:$0xf]
  %v116 = vld [vmem:[%s1 + $0x70] sm:$0xf]
  %v117 = vld [vmem:[%s1 + $0x74] sm:$0xf]
  %v118 = vld [vmem:[%s1 + $0x78] sm:$0xf]
  %v119 = vld [vmem:[%s1 + $0x7c] sm:$0xf]
  %v184 = vunpack.c.l.b16 %v24
  %v185 = vunpack.c.h.b16 %v24
  %v186 = vunpack.c.l.b16 %v25
  %v187 = vunpack.c.h.b16 %v25
  %v188 = vunpack.c.l.b16 %v26
  %v189 = vunpack.c.h.b16 %v26
  %v190 = vunpack.c.l.b16 %v27
  %v191 = vunpack.c.h.b16 %v27
  %v192 = vunpack.c.l.b16 %v28
  %v193 = vunpack.c.h.b16 %v28
  %v194 = vunpack.c.l.b16 %v29
  %v195 = vunpack.c.h.b16 %v29
  %v196 = vunpack.c.l.b16 %v30
  %v197 = vunpack.c.h.b16 %v30
  %v198 = vunpack.c.l.b16 %v31
  %v199 = vunpack.c.h.b16 %v31
  %v200 = vunpack.c.l.b16 %v32
  %v201 = vunpack.c.h.b16 %v32
  %v202 = vunpack.c.l.b16 %v33
  %v203 = vunpack.c.h.b16 %v33
  %v204 = vunpack.c.l.b16 %v34
  %v205 = vunpack.c.h.b16 %v34
  %v206 = vunpack.c.l.b16 %v35
  %v207 = vunpack.c.h.b16 %v35
  %v208 = vunpack.c.l.b16 %v36
  %v209 = vunpack.c.h.b16 %v36
  %v210 = vunpack.c.l.b16 %v37
  %v211 = vunpack.c.h.b16 %v37
  %v212 = vunpack.c.l.b16 %v38
  %v213 = vunpack.c.h.b16 %v38
  %v214 = vunpack.c.l.b16 %v39
  %v215 = vunpack.c.h.b16 %v39
  %v216 = vunpack.c.l.b16 %v40
  %v217 = vunpack.c.h.b16 %v40
  %v218 = vunpack.c.l.b16 %v41
  %v219 = vunpack.c.h.b16 %v41
  %v220 = vunpack.c.l.b16 %v42
  %v221 = vunpack.c.h.b16 %v42
  %v222 = vunpack.c.l.b16 %v43
  %v223 = vunpack.c.h.b16 %v43
  %v224 = vunpack.c.l.b16 %v44
  %v225 = vunpack.c.h.b16 %v44
  %v226 = vunpack.c.l.b16 %v45
  %v227 = vunpack.c.h.b16 %v45
  %v228 = vunpack.c.l.b16 %v46
  %v229 = vunpack.c.h.b16 %v46
  %v230 = vunpack.c.l.b16 %v47
  %v231 = vunpack.c.h.b16 %v47
  %v232 = vunpack.c.l.b16 %v48
  %v233 = vunpack.c.h.b16 %v48
  %v234 = vunpack.c.l.b16 %v49
  %v235 = vunpack.c.h.b16 %v49
  %v236 = vunpack.c.l.b16 %v50
  %v237 = vunpack.c.h.b16 %v50
  %v238 = vunpack.c.l.b16 %v51
  %v239 = vunpack.c.h.b16 %v51
  %v240 = vunpack.c.l.b16 %v52
  %v241 = vunpack.c.h.b16 %v52
  %v242 = vunpack.c.l.b16 %v53
  %v243 = vunpack.c.h.b16 %v53
  %v244 = vunpack.c.l.b16 %v54
  %v245 = vunpack.c.h.b16 %v54
  %v246 = vunpack.c.l.b16 %v55
  %v247 = vunpack.c.h.b16 %v55
  %v248 = vunpack.c.l.b16 %v56
  %v249 = vunpack.c.h.b16 %v56
  %v250 = vunpack.c.l.b16 %v57
  %v251 = vunpack.c.h.b16 %v57
  %v252 = vunpack.c.l.b16 %v58
  %v253 = vunpack.c.h.b16 %v58
  %v254 = vunpack.c.l.b16 %v59
  %v255 = vunpack.c.h.b16 %v59
  %v256 = vunpack.c.l.b16 %v60
  %v257 = vunpack.c.h.b16 %v60
  %v258 = vunpack.c.l.b16 %v61
  %v259 = vunpack.c.h.b16 %v61
  %v260 = vunpack.c.l.b16 %v62
  %v261 = vunpack.c.h.b16 %v62
  %v262 = vunpack.c.l.b16 %v63
  %v263 = vunpack.c.h.b16 %v63
  %v264 = vunpack.c.l.b16 %v64
  %v265 = vunpack.c.h.b16 %v64
  %v266 = vunpack.c.l.b16 %v65
  %v267 = vunpack.c.h.b16 %v65
  %v268 = vunpack.c.l.b16 %v66
  %v269 = vunpack.c.h.b16 %v66
  %v270 = vunpack.c.l.b16 %v67
  %v271 = vunpack.c.h.b16 %v67
  %v272 = vunpack.c.l.b16 %v68
  %v273 = vunpack.c.h.b16 %v68
  %v274 = vunpack.c.l.b16 %v69
  %v275 = vunpack.c.h.b16 %v69
  %v276 = vunpack.c.l.b16 %v70
  %v277 = vunpack.c.h.b16 %v70
  %v278 = vunpack.c.l.b16 %v71
  %v279 = vunpack.c.h.b16 %v71
  %v280 = vunpack.c.l.b16 %v72
  %v281 = vunpack.c.h.b16 %v72
  %v282 = vunpack.c.l.b16 %v73
  %v283 = vunpack.c.h.b16 %v73
  %v284 = vunpack.c.l.b16 %v74
  %v285 = vunpack.c.h.b16 %v74
  %v286 = vunpack.c.l.b16 %v75
  %v287 = vunpack.c.h.b16 %v75
  %v288 = vunpack.c.l.b16 %v76
  %v289 = vunpack.c.h.b16 %v76
  %v290 = vunpack.c.l.b16 %v77
  %v291 = vunpack.c.h.b16 %v77
  %v292 = vunpack.c.l.b16 %v78
  %v293 = vunpack.c.h.b16 %v78
  %v294 = vunpack.c.l.b16 %v79
  %v295 = vunpack.c.h.b16 %v79
  %v296 = vunpack.c.l.b16 %v80
  %v297 = vunpack.c.h.b16 %v80
  %v298 = vunpack.c.l.b16 %v81
  %v299 = vunpack.c.h.b16 %v81
  %v300 = vunpack.c.l.b16 %v82
  %v301 = vunpack.c.h.b16 %v82
  %v302 = vunpack.c.l.b16 %v83
  %v303 = vunpack.c.h.b16 %v83
  %v304 = vunpack.c.l.b16 %v84
  %v305 = vunpack.c.h.b16 %v84
  %v306 = vunpack.c.l.b16 %v85
  %v307 = vunpack.c.h.b16 %v85
  %v308 = vunpack.c.l.b16 %v86
  %v309 = vunpack.c.h.b16 %v86
  %v310 = vunpack.c.l.b16 %v87
  %v311 = vunpack.c.h.b16 %v87
  %v312 = vpack.c.b16 %v186, %v184
  %v313 = vpack.c.b16 %v187, %v185
  %v314 = vpack.c.b16 %v190, %v188
  %v315 = vpack.c.b16 %v191, %v189
  %v316 = vpack.c.b16 %v194, %v192
  %v317 = vpack.c.b16 %v195, %v193
  %v318 = vpack.c.b16 %v198, %v196
  %v319 = vpack.c.b16 %v199, %v197
  %v320 = vpack.c.b16 %v202, %v200
  %v321 = vpack.c.b16 %v203, %v201
  %v322 = vpack.c.b16 %v206, %v204
  %v323 = vpack.c.b16 %v207, %v205
  %v324 = vpack.c.b16 %v210, %v208
  %v325 = vpack.c.b16 %v211, %v209
  %v326 = vpack.c.b16 %v214, %v212
  %v327 = vpack.c.b16 %v215, %v213
  %v328 = vpack.c.b16 %v218, %v216
  %v329 = vpack.c.b16 %v219, %v217
  %v330 = vpack.c.b16 %v222, %v220
  %v331 = vpack.c.b16 %v223, %v221
  %v332 = vpack.c.b16 %v226, %v224
  %v333 = vpack.c.b16 %v227, %v225
  %v334 = vpack.c.b16 %v230, %v228
  %v335 = vpack.c.b16 %v231, %v229
  %v336 = vpack.c.b16 %v234, %v232
  %v337 = vpack.c.b16 %v235, %v233
  %v338 = vpack.c.b16 %v238, %v236
  %v339 = vpack.c.b16 %v239, %v237
  %v340 = vpack.c.b16 %v242, %v240
  %v341 = vpack.c.b16 %v243, %v241
  %v342 = vpack.c.b16 %v246, %v244
  %v343 = vpack.c.b16 %v247, %v245
  %v344 = vpack.c.b16 %v250, %v248
  %v345 = vpack.c.b16 %v251, %v249
  %v346 = vpack.c.b16 %v254, %v252
  %v347 = vpack.c.b16 %v255, %v253
  %v348 = vpack.c.b16 %v258, %v256
  %v349 = vpack.c.b16 %v259, %v257
  %v350 = vpack.c.b16 %v262, %v260
  %v351 = vpack.c.b16 %v263, %v261
  %v352 = vpack.c.b16 %v266, %v264
  %v353 = vpack.c.b16 %v267, %v265
  %v354 = vpack.c.b16 %v270, %v268
  %v355 = vpack.c.b16 %v271, %v269
  %v356 = vpack.c.b16 %v274, %v272
  %v357 = vpack.c.b16 %v275, %v273
  %v358 = vpack.c.b16 %v278, %v276
  %v359 = vpack.c.b16 %v279, %v277
  %v360 = vpack.c.b16 %v282, %v280
  %v361 = vpack.c.b16 %v283, %v281
  %v362 = vpack.c.b16 %v286, %v284
  %v363 = vpack.c.b16 %v287, %v285
  %v364 = vpack.c.b16 %v290, %v288
  %v365 = vpack.c.b16 %v291, %v289
  %v366 = vpack.c.b16 %v294, %v292
  %v367 = vpack.c.b16 %v295, %v293
  %v368 = vpack.c.b16 %v298, %v296
  %v369 = vpack.c.b16 %v299, %v297
  %v370 = vpack.c.b16 %v302, %v300
  %v371 = vpack.c.b16 %v303, %v301
  %v372 = vpack.c.b16 %v306, %v304
  %v373 = vpack.c.b16 %v307, %v305
  %v374 = vpack.c.b16 %v310, %v308
  %v375 = vpack.c.b16 %v311, %v309
  %v472 = vunpack.c.l.b16 %v88
  %v473 = vunpack.c.l.b16 %v89
  %v474 = vunpack.c.l.b16 %v90
  %v475 = vunpack.c.l.b16 %v91
  %v476 = vunpack.c.l.b16 %v92
  %v477 = vunpack.c.l.b16 %v93
  %v478 = vunpack.c.l.b16 %v94
  %v479 = vunpack.c.l.b16 %v95
  %v480 = vunpack.c.l.b16 %v96
  %v481 = vunpack.c.l.b16 %v97
  %v482 = vunpack.c.l.b16 %v98
  %v483 = vunpack.c.l.b16 %v99
  %v484 = vunpack.c.l.b16 %v100
  %v485 = vunpack.c.l.b16 %v101
  %v486 = vunpack.c.l.b16 %v102
  %v487 = vunpack.c.l.b16 %v103
  %v488 = vunpack.c.l.b16 %v104
  %v489 = vunpack.c.l.b16 %v105
  %v490 = vunpack.c.l.b16 %v106
  %v491 = vunpack.c.l.b16 %v107
  %v492 = vunpack.c.l.b16 %v108
  %v493 = vunpack.c.l.b16 %v109
  %v494 = vunpack.c.l.b16 %v110
  %v495 = vunpack.c.l.b16 %v111
  %v496 = vunpack.c.l.b16 %v112
  %v497 = vunpack.c.l.b16 %v113
  %v498 = vunpack.c.l.b16 %v114
  %v499 = vunpack.c.l.b16 %v115
  %v500 = vunpack.c.l.b16 %v116
  %v501 = vunpack.c.l.b16 %v117
  %v502 = vunpack.c.l.b16 %v118
  %v503 = vunpack.c.l.b16 %v119
  %v504 = vpack.c.b16 %v473, %v472
  %v505 = vpack.c.b16 %v475, %v474
  %v506 = vpack.c.b16 %v477, %v476
  %v507 = vpack.c.b16 %v479, %v478
  %v508 = vpack.c.b16 %v481, %v480
  %v509 = vpack.c.b16 %v483, %v482
  %v510 = vpack.c.b16 %v485, %v484
  %v511 = vpack.c.b16 %v487, %v486
  %v512 = vpack.c.b16 %v489, %v488
  %v513 = vpack.c.b16 %v491, %v490
  %v514 = vpack.c.b16 %v493, %v492
  %v515 = vpack.c.b16 %v495, %v494
  %v516 = vpack.c.b16 %v497, %v496
  %v517 = vpack.c.b16 %v499, %v498
  %v518 = vpack.c.b16 %v501, %v500
  %v519 = vpack.c.b16 %v503, %v502
  %536 = vmatprep.subr.bf16.mxu0 0
  %537 = vmatpush1.bf16.msra.mxu0 %v504
  %538 = vmatprep.subr.bf16.mxu0 0
  %539 = vmatpush1.bf16.msra.mxu0 %v505
  %540 = vmatprep.subr.bf16.mxu0 0
  %541 = vmatpush1.bf16.msra.mxu0 %v506
  %542 = vmatprep.subr.bf16.mxu0 0
  %543 = vmatpush1.bf16.msra.mxu0 %v507
  %544 = vmatprep.subr.bf16.mxu0 0
  %545 = vmatpush1.bf16.msra.mxu0 %v508
  %546 = vmatprep.subr.bf16.mxu0 0
  %547 = vmatpush1.bf16.msra.mxu0 %v509
  %548 = vmatprep.subr.bf16.mxu0 0
  %549 = vmatpush1.bf16.msra.mxu0 %v510
  %550 = vmatprep.subr.bf16.mxu0 0
  %551 = vmatpush1.bf16.msra.mxu0 %v511
  %552 = vmatprep.subr.bf16.mxu0 0
  %553 = vmatpush1.bf16.msra.mxu0 %v512
  %554 = vmatprep.subr.bf16.mxu0 0
  %555 = vmatpush1.bf16.msra.mxu0 %v513
  %556 = vmatprep.subr.bf16.mxu0 0
  %557 = vmatpush1.bf16.msra.mxu0 %v514
  %558 = vmatprep.subr.bf16.mxu0 0
  %559 = vmatpush1.bf16.msra.mxu0 %v515
  %560 = vmatprep.subr.bf16.mxu0 0
  %561 = vmatpush1.bf16.msra.mxu0 %v516
  %562 = vmatprep.subr.bf16.mxu0 0
  %563 = vmatpush1.bf16.msra.mxu0 %v517
  %564 = vmatprep.subr.bf16.mxu0 0
  %565 = vmatpush1.bf16.msra.mxu0 %v518
  %566 = vmatprep.subr.bf16.mxu0 0
  %567 = vmatpush1.bf16.msra.mxu0 %v519
  %568 = vmatprep.mubr.bf16.mxu0 %v313
  %569 = vmatmul.mubr.bf16.gmra.mrb[0].mxu0 %v312
  %v570 = vpop.f32.mrb[0].mxu0
  %v571 = vadd.f32 0.0, %v570
  %v572 = vpop.f32.mrb[0].mxu0
  %v573 = vpop.f32.mrb[0].mxu0
  %v574 = vadd.f32 0.0, %v573
  %v575 = vpop.f32.mrb[0].mxu0
  %576 = vmatprep.mubr.bf16.mxu0 %v315
  %577 = vmatmul.mubr.bf16.gmra.mrb[0].mxu0 %v314
  %v578 = vpop.f32.mrb[0].mxu0
  %v579 = vadd.f32 0.0, %v578
  %v580 = vpop.f32.mrb[0].mxu0
  %v581 = vpop.f32.mrb[0].mxu0
  %v582 = vadd.f32 0.0, %v581
  %v583 = vpop.f32.mrb[0].mxu0
  %584 = vmatprep.mubr.bf16.mxu0 %v317
  %585 = vmatmul.mubr.bf16.gmra.mrb[0].mxu0 %v316
  %v586 = vpop.f32.mrb[0].mxu0
  %v587 = vadd.f32 0.0, %v586
  %v588 = vpop.f32.mrb[0].mxu0
  %v589 = vpop.f32.mrb[0].mxu0
  %v590 = vadd.f32 0.0, %v589
  %v591 = vpop.f32.mrb[0].mxu0
  %592 = vmatprep.mubr.bf16.mxu0 %v319
  %593 = vmatmul.mubr.bf16.gmra.mrb[0].mxu0 %v318
  %v594 = vpop.f32.mrb[0].mxu0
  %v595 = vadd.f32 0.0, %v594
  %v596 = vpop.f32.mrb[0].mxu0
  %v597 = vpop.f32.mrb[0].mxu0
  %v598 = vadd.f32 0.0, %v597
  %v599 = vpop.f32.mrb[0].mxu0
  %600 = vmatprep.mubr.bf16.mxu0 %v321
  %601 = vmatmul.mubr.bf16.gmra.mrb[0].mxu0 %v320
  %v602 = vpop.f32.mrb[0].mxu0
  %v603 = vadd.f32 0.0, %v602
  %v604 = vpop.f32.mrb[0].mxu0
  %v605 = vpop.f32.mrb[0].mxu0
  %v606 = vadd.f32 0.0, %v605
  %v607 = vpop.f32.mrb[0].mxu0
  %608 = vmatprep.mubr.bf16.mxu0 %v323
  %609 = vmatmul.mubr.bf16.gmra.mrb[0].mxu0 %v322
  %v610 = vpop.f32.mrb[0].mxu0
  %v611 = vadd.f32 0.0, %v610
  %v612 = vpop.f32.mrb[0].mxu0
  %v613 = vpop.f32.mrb[0].mxu0
  %v614 = vadd.f32 0.0, %v613
  %v615 = vpop.f32.mrb[0].mxu0
  %616 = vmatprep.mubr.bf16.mxu0 %v325
  %617 = vmatmul.mubr.bf16.gmra.mrb[0].mxu0 %v324
  %v618 = vpop.f32.mrb[0].mxu0
  %v619 = vadd.f32 0.0, %v618
  %v620 = vpop.f32.mrb[0].mxu0
  %v621 = vpop.f32.mrb[0].mxu0
  %v622 = vadd.f32 0.0, %v621
  %v623 = vpop.f32.mrb[0].mxu0
  %624 = vmatprep.mubr.bf16.mxu0 %v327
  %625 = vmatmul.mubr.bf16.gmra.mrb[0].mxu0 %v326
  %v626 = vpop.f32.mrb[0].mxu0
  %v627 = vadd.f32 0.0, %v626
  %v628 = vpop.f32.mrb[0].mxu0
  %v629 = vpop.f32.mrb[0].mxu0
  %v630 = vadd.f32 0.0, %v629
  %v631 = vpop.f32.mrb[0].mxu0
  %632 = vmatprep.mubr.bf16.mxu0 %v329
  %633 = vmatmul.mubr.bf16.gmra.mrb[0].mxu0 %v328
  %v634 = vpop.f32.mrb[0].mxu0
  %v635 = vadd.f32 0.0, %v634
  %v636 = vpop.f32.mrb[0].mxu0
  %v637 = vpop.f32.mrb[0].mxu0
  %v638 = vadd.f32 0.0, %v637
  %v639 = vpop.f32.mrb[0].mxu0
  %640 = vmatprep.mubr.bf16.mxu0 %v331
  %641 = vmatmul.mubr.bf16.gmra.mrb[0].mxu0 %v330
  %v642 = vpop.f32.mrb[0].mxu0
  %v643 = vadd.f32 0.0, %v642
  %v644 = vpop.f32.mrb[0].mxu0
  %v645 = vpop.f32.mrb[0].mxu0
  %v646 = vadd.f32 0.0, %v645
  %v647 = vpop.f32.mrb[0].mxu0
  %648 = vmatprep.mubr.bf16.mxu0 %v333
  %649 = vmatmul.mubr.bf16.gmra.mrb[0].mxu0 %v332
  %v650 = vpop.f32.mrb[0].mxu0
  %v651 = vadd.f32 0.0, %v650
  %v652 = vpop.f32.mrb[0].mxu0
  %v653 = vpop.f32.mrb[0].mxu0
  %v654 = vadd.f32 0.0, %v653
  %v655 = vpop.f32.mrb[0].mxu0
  %656 = vmatprep.mubr.bf16.mxu0 %v335
  %657 = vmatmul.mubr.bf16.gmra.mrb[0].mxu0 %v334
  %v658 = vpop.f32.mrb[0].mxu0
  %v659 = vadd.f32 0.0, %v658
  %v660 = vpop.f32.mrb[0].mxu0
  %v661 = vpop.f32.mrb[0].mxu0
  %v662 = vadd.f32 0.0, %v661
  %v663 = vpop.f32.mrb[0].mxu0
  %664 = vmatprep.mubr.bf16.mxu0 %v337
  %665 = vmatmul.mubr.bf16.gmra.mrb[0].mxu0 %v336
  %v666 = vpop.f32.mrb[0].mxu0
  %v667 = vadd.f32 0.0, %v666
  %v668 = vpop.f32.mrb[0].mxu0
  %v669 = vpop.f32.mrb[0].mxu0
  %v670 = vadd.f32 0.0, %v669
  %v671 = vpop.f32.mrb[0].mxu0
  %672 = vmatprep.mubr.bf16.mxu0 %v339
  %673 = vmatmul.mubr.bf16.gmra.mrb[0].mxu0 %v338
  %v674 = vpop.f32.mrb[0].mxu0
  %v675 = vadd.f32 0.0, %v674
  %v676 = vpop.f32.mrb[0].mxu0
  %v677 = vpop.f32.mrb[0].mxu0
  %v678 = vadd.f32 0.0, %v677
  %v679 = vpop.f32.mrb[0].mxu0
  %680 = vmatprep.mubr.bf16.mxu0 %v341
  %681 = vmatmul.mubr.bf16.gmra.mrb[0].mxu0 %v340
  %v682 = vpop.f32.mrb[0].mxu0
  %v683 = vadd.f32 0.0, %v682
  %v684 = vpop.f32.mrb[0].mxu0
  %v685 = vpop.f32.mrb[0].mxu0
  %v686 = vadd.f32 0.0, %v685
  %v687 = vpop.f32.mrb[0].mxu0
  %688 = vmatprep.mubr.bf16.mxu0 %v343
  %689 = vmatmul.mubr.bf16.gmra.mrb[0].mxu0 %v342
  %v690 = vpop.f32.mrb[0].mxu0
  %v691 = vadd.f32 0.0, %v690
  %v692 = vpop.f32.mrb[0].mxu0
  %v693 = vpop.f32.mrb[0].mxu0
  %v694 = vadd.f32 0.0, %v693
  %v695 = vpop.f32.mrb[0].mxu0
  %696 = vmatprep.mubr.bf16.mxu0 %v345
  %697 = vmatmul.mubr.bf16.gmra.mrb[0].mxu0 %v344
  %v698 = vpop.f32.mrb[0].mxu0
  %v699 = vadd.f32 0.0, %v698
  %v700 = vpop.f32.mrb[0].mxu0
  %v701 = vpop.f32.mrb[0].mxu0
  %v702 = vadd.f32 0.0, %v701
  %v703 = vpop.f32.mrb[0].mxu0
  %704 = vmatprep.mubr.bf16.mxu0 %v347
  %705 = vmatmul.mubr.bf16.gmra.mrb[0].mxu0 %v346
  %v706 = vpop.f32.mrb[0].mxu0
  %v707 = vadd.f32 0.0, %v706
  %v708 = vpop.f32.mrb[0].mxu0
  %v709 = vpop.f32.mrb[0].mxu0
  %v710 = vadd.f32 0.0, %v709
  %v711 = vpop.f32.mrb[0].mxu0
  %712 = vmatprep.mubr.bf16.mxu0 %v349
  %713 = vmatmul.mubr.bf16.gmra.mrb[0].mxu0 %v348
  %v714 = vpop.f32.mrb[0].mxu0
  %v715 = vadd.f32 0.0, %v714
  %v716 = vpop.f32.mrb[0].mxu0
  %v717 = vpop.f32.mrb[0].mxu0
  %v718 = vadd.f32 0.0, %v717
  %v719 = vpop.f32.mrb[0].mxu0
  %720 = vmatprep.mubr.bf16.mxu0 %v351
  %721 = vmatmul.mubr.bf16.gmra.mrb[0].mxu0 %v350
  %v722 = vpop.f32.mrb[0].mxu0
  %v723 = vadd.f32 0.0, %v722
  %v724 = vpop.f32.mrb[0].mxu0
  %v725 = vpop.f32.mrb[0].mxu0
  %v726 = vadd.f32 0.0, %v725
  %v727 = vpop.f32.mrb[0].mxu0
  %728 = vmatprep.mubr.bf16.mxu0 %v353
  %729 = vmatmul.mubr.bf16.gmra.mrb[0].mxu0 %v352
  %v730 = vpop.f32.mrb[0].mxu0
  %v731 = vadd.f32 0.0, %v730
  %v732 = vpop.f32.mrb[0].mxu0
  %v733 = vpop.f32.mrb[0].mxu0
  %v734 = vadd.f32 0.0, %v733
  %v735 = vpop.f32.mrb[0].mxu0
  %736 = vmatprep.mubr.bf16.mxu0 %v355
  %737 = vmatmul.mubr.bf16.gmra.mrb[0].mxu0 %v354
  %v738 = vpop.f32.mrb[0].mxu0
  %v739 = vadd.f32 0.0, %v738
  %v740 = vpop.f32.mrb[0].mxu0
  %v741 = vpop.f32.mrb[0].mxu0
  %v742 = vadd.f32 0.0, %v741
  %v743 = vpop.f32.mrb[0].mxu0
  %744 = vmatprep.mubr.bf16.mxu0 %v357
  %745 = vmatmul.mubr.bf16.gmra.mrb[0].mxu0 %v356
  %v746 = vpop.f32.mrb[0].mxu0
  %v747 = vadd.f32 0.0, %v746
  %v748 = vpop.f32.mrb[0].mxu0
  %v749 = vpop.f32.mrb[0].mxu0
  %v750 = vadd.f32 0.0, %v749
  %v751 = vpop.f32.mrb[0].mxu0
  %752 = vmatprep.mubr.bf16.mxu0 %v359
  %753 = vmatmul.mubr.bf16.gmra.mrb[0].mxu0 %v358
  %v754 = vpop.f32.mrb[0].mxu0
  %v755 = vadd.f32 0.0, %v754
  %v756 = vpop.f32.mrb[0].mxu0
  %v757 = vpop.f32.mrb[0].mxu0
  %v758 = vadd.f32 0.0, %v757
  %v759 = vpop.f32.mrb[0].mxu0
  %760 = vmatprep.mubr.bf16.mxu0 %v361
  %761 = vmatmul.mubr.bf16.gmra.mrb[0].mxu0 %v360
  %v762 = vpop.f32.mrb[0].mxu0
  %v763 = vadd.f32 0.0, %v762
  %v764 = vpop.f32.mrb[0].mxu0
  %v765 = vpop.f32.mrb[0].mxu0
  %v766 = vadd.f32 0.0, %v765
  %v767 = vpop.f32.mrb[0].mxu0
  %768 = vmatprep.mubr.bf16.mxu0 %v363
  %769 = vmatmul.mubr.bf16.gmra.mrb[0].mxu0 %v362
  %v770 = vpop.f32.mrb[0].mxu0
  %v771 = vadd.f32 0.0, %v770
  %v772 = vpop.f32.mrb[0].mxu0
  %v773 = vpop.f32.mrb[0].mxu0
  %v774 = vadd.f32 0.0, %v773
  %v775 = vpop.f32.mrb[0].mxu0
  %776 = vmatprep.mubr.bf16.mxu0 %v365
  %777 = vmatmul.mubr.bf16.gmra.mrb[0].mxu0 %v364
  %v778 = vpop.f32.mrb[0].mxu0
  %v779 = vadd.f32 0.0, %v778
  %v780 = vpop.f32.mrb[0].mxu0
  %v781 = vpop.f32.mrb[0].mxu0
  %v782 = vadd.f32 0.0, %v781
  %v783 = vpop.f32.mrb[0].mxu0
  %784 = vmatprep.mubr.bf16.mxu0 %v367
  %785 = vmatmul.mubr.bf16.gmra.mrb[0].mxu0 %v366
  %v786 = vpop.f32.mrb[0].mxu0
  %v787 = vadd.f32 0.0, %v786
  %v788 = vpop.f32.mrb[0].mxu0
  %v789 = vpop.f32.mrb[0].mxu0
  %v790 = vadd.f32 0.0, %v789
  %v791 = vpop.f32.mrb[0].mxu0
  %792 = vmatprep.mubr.bf16.mxu0 %v369
  %793 = vmatmul.mubr.bf16.gmra.mrb[0].mxu0 %v368
  %v794 = vpop.f32.mrb[0].mxu0
  %v795 = vadd.f32 0.0, %v794
  %v796 = vpop.f32.mrb[0].mxu0
  %v797 = vpop.f32.mrb[0].mxu0
  %v798 = vadd.f32 0.0, %v797
  %v799 = vpop.f32.mrb[0].mxu0
  %800 = vmatprep.mubr.bf16.mxu0 %v371
  %801 = vmatmul.mubr.bf16.gmra.mrb[0].mxu0 %v370
  %v802 = vpop.f32.mrb[0].mxu0
  %v803 = vadd.f32 0.0, %v802
  %v804 = vpop.f32.mrb[0].mxu0
  %v805 = vpop.f32.mrb[0].mxu0
  %v806 = vadd.f32 0.0, %v805
  %v807 = vpop.f32.mrb[0].mxu0
  %808 = vmatprep.mubr.bf16.mxu0 %v373
  %809 = vmatmul.mubr.bf16.gmra.mrb[0].mxu0 %v372
  %v810 = vpop.f32.mrb[0].mxu0
  %v811 = vadd.f32 0.0, %v810
  %v812 = vpop.f32.mrb[0].mxu0
  %v813 = vpop.f32.mrb[0].mxu0
  %v814 = vadd.f32 0.0, %v813
  %v815 = vpop.f32.mrb[0].mxu0
  %816 = vmatprep.mubr.bf16.mxu0 %v375
  %817 = vmatmul.mubr.bf16.gmra.mrb[0].mxu0 %v374
  %v818 = vpop.f32.mrb[0].mxu0
  %v819 = vadd.f32 0.0, %v818
  %v820 = vpop.f32.mrb[0].mxu0
  %v821 = vpop.f32.mrb[0].mxu0
  %v822 = vadd.f32 0.0, %v821
  %v823 = vpop.f32.mrb[0].mxu0
  %824 = vdwg.mxu0
  %vm825 = vcmask 523264
  %v826 = vsel %vm825, %v571, 0.0
  %v827 = vsel %vm825, %v574, 0.0
  %v828 = vadd.f32 %v826, %v827
  %v829 = vsel %vm825, %v579, 0.0
  %v830 = vadd.f32 %v828, %v829
  %v831 = vsel %vm825, %v582, 0.0
  %v832 = vadd.f32 %v830, %v831
  %v833 = vsel %vm825, %v587, 0.0
  %v834 = vadd.f32 %v832, %v833
  %v835 = vsel %vm825, %v590, 0.0
  %v836 = vadd.f32 %v834, %v835
  %v837 = vsel %vm825, %v595, 0.0
  %v838 = vadd.f32 %v836, %v837
  %v839 = vsel %vm825, %v598, 0.0
  %v840 = vadd.f32 %v838, %v839
  %v841 = vsel %vm825, %v603, 0.0
  %v842 = vadd.f32 %v840, %v841
  %v843 = vsel %vm825, %v606, 0.0
  %v844 = vadd.f32 %v842, %v843
  %v845 = vsel %vm825, %v611, 0.0
  %v846 = vadd.f32 %v844, %v845
  %v847 = vsel %vm825, %v614, 0.0
  %v848 = vadd.f32 %v846, %v847
  %v849 = vsel %vm825, %v619, 0.0
  %v850 = vadd.f32 %v848, %v849
  %v851 = vsel %vm825, %v622, 0.0
  %v852 = vadd.f32 %v850, %v851
  %v853 = vsel %vm825, %v627, 0.0
  %v854 = vadd.f32 %v852, %v853
  %v855 = vsel %vm825, %v630, 0.0
  %v856 = vadd.f32 %v854, %v855
  %v857 = vsel %vm825, %v635, 0.0
  %v858 = vadd.f32 %v856, %v857
  %v859 = vsel %vm825, %v638, 0.0
  %v860 = vadd.f32 %v858, %v859
  %v861 = vsel %vm825, %v643, 0.0
  %v862 = vadd.f32 %v860, %v861
  %v863 = vsel %vm825, %v646, 0.0
  %v864 = vadd.f32 %v862, %v863
  %v865 = vsel %vm825, %v651, 0.0
  %v866 = vadd.f32 %v864, %v865
  %v867 = vsel %vm825, %v654, 0.0
  %v868 = vadd.f32 %v866, %v867
  %v869 = vsel %vm825, %v659, 0.0
  %v870 = vadd.f32 %v868, %v869
  %v871 = vsel %vm825, %v662, 0.0
  %v872 = vadd.f32 %v870, %v871
  %v873 = vsel %vm825, %v667, 0.0
  %v874 = vadd.f32 %v872, %v873
  %v875 = vsel %vm825, %v670, 0.0
  %v876 = vadd.f32 %v874, %v875
  %v877 = vsel %vm825, %v675, 0.0
  %v878 = vadd.f32 %v876, %v877
  %v879 = vsel %vm825, %v678, 0.0
  %v880 = vadd.f32 %v878, %v879
  %v881 = vsel %vm825, %v683, 0.0
  %v882 = vadd.f32 %v880, %v881
  %v883 = vsel %vm825, %v686, 0.0
  %v884 = vadd.f32 %v882, %v883
  %v885 = vsel %vm825, %v691, 0.0
  %v886 = vadd.f32 %v884, %v885
  %v887 = vsel %vm825, %v694, 0.0
  %v888 = vadd.f32 %v886, %v887
  %v889 = vsel %vm825, %v699, 0.0
  %v890 = vadd.f32 %v888, %v889
  %v891 = vsel %vm825, %v702, 0.0
  %v892 = vadd.f32 %v890, %v891
  %v893 = vsel %vm825, %v707, 0.0
  %v894 = vadd.f32 %v892, %v893
  %v895 = vsel %vm825, %v710, 0.0
  %v896 = vadd.f32 %v894, %v895
  %v897 = vsel %vm825, %v715, 0.0
  %v898 = vadd.f32 %v896, %v897
  %v899 = vsel %vm825, %v718, 0.0
  %v900 = vadd.f32 %v898, %v899
  %v901 = vsel %vm825, %v723, 0.0
  %v902 = vadd.f32 %v900, %v901
  %v903 = vsel %vm825, %v726, 0.0
  %v904 = vadd.f32 %v902, %v903
  %v905 = vsel %vm825, %v731, 0.0
  %v906 = vadd.f32 %v904, %v905
  %v907 = vsel %vm825, %v734, 0.0
  %v908 = vadd.f32 %v906, %v907
  %v909 = vsel %vm825, %v739, 0.0
  %v910 = vadd.f32 %v908, %v909
  %v911 = vsel %vm825, %v742, 0.0
  %v912 = vadd.f32 %v910, %v911
  %v913 = vsel %vm825, %v747, 0.0
  %v914 = vadd.f32 %v912, %v913
  %v915 = vsel %vm825, %v750, 0.0
  %v916 = vadd.f32 %v914, %v915
  %v917 = vsel %vm825, %v755, 0.0
  %v918 = vadd.f32 %v916, %v917
  %v919 = vsel %vm825, %v758, 0.0
  %v920 = vadd.f32 %v918, %v919
  %v921 = vsel %vm825, %v763, 0.0
  %v922 = vadd.f32 %v920, %v921
  %v923 = vsel %vm825, %v766, 0.0
  %v924 = vadd.f32 %v922, %v923
  %v925 = vsel %vm825, %v771, 0.0
  %v926 = vadd.f32 %v924, %v925
  %v927 = vsel %vm825, %v774, 0.0
  %v928 = vadd.f32 %v926, %v927
  %v929 = vsel %vm825, %v779, 0.0
  %v930 = vadd.f32 %v928, %v929
  %v931 = vsel %vm825, %v782, 0.0
  %v932 = vadd.f32 %v930, %v931
  %v933 = vsel %vm825, %v787, 0.0
  %v934 = vadd.f32 %v932, %v933
  %v935 = vsel %vm825, %v790, 0.0
  %v936 = vadd.f32 %v934, %v935
  %v937 = vsel %vm825, %v795, 0.0
  %v938 = vadd.f32 %v936, %v937
  %v939 = vsel %vm825, %v798, 0.0
  %v940 = vadd.f32 %v938, %v939
  %v941 = vsel %vm825, %v803, 0.0
  %v942 = vadd.f32 %v940, %v941
  %v943 = vsel %vm825, %v806, 0.0
  %v944 = vadd.f32 %v942, %v943
  %v945 = vsel %vm825, %v811, 0.0
  %v946 = vadd.f32 %v944, %v945
  %v947 = vsel %vm825, %v814, 0.0
  %v948 = vadd.f32 %v946, %v947
  %v949 = vsel %vm825, %v819, 0.0
  %v950 = vadd.f32 %v948, %v949
  %v951 = vsel %vm825, %v822, 0.0
  %v952 = vadd.f32 %v950, %v951
  %v953 = vrot.slane %v952, 4
  %v954 = vadd.f32 %v952, %v953
  %v955 = vrot.slane %v954, 2
  %v956 = vadd.f32 %v954, %v955
  %v957 = vrot.slane %v956, 1
  %v958 = vadd.f32 %v956, %v957
  %v959 = vrcp.pop 512.0
  %v960 = vmul.f32 %v958, %v959
  %v961 = vsub.f32 %v571, %v960
  %v962 = vsub.f32 %v574, %v960
  %v963 = vsub.f32 %v579, %v960
  %v964 = vsub.f32 %v582, %v960
  %v965 = vsub.f32 %v587, %v960
  %v966 = vsub.f32 %v590, %v960
  %v967 = vsub.f32 %v595, %v960
  %v968 = vsub.f32 %v598, %v960
  %v969 = vsub.f32 %v603, %v960
  %v970 = vsub.f32 %v606, %v960
  %v971 = vsub.f32 %v611, %v960
  %v972 = vsub.f32 %v614, %v960
  %v973 = vsub.f32 %v619, %v960
  %v974 = vsub.f32 %v622, %v960
  %v975 = vsub.f32 %v627, %v960
  %v976 = vsub.f32 %v630, %v960
  %v977 = vsub.f32 %v635, %v960
  %v978 = vsub.f32 %v638, %v960
  %v979 = vsub.f32 %v643, %v960
  %v980 = vsub.f32 %v646, %v960
  %v981 = vsub.f32 %v651, %v960
  %v982 = vsub.f32 %v654, %v960
  %v983 = vsub.f32 %v659, %v960
  %v984 = vsub.f32 %v662, %v960
  %v985 = vsub.f32 %v667, %v960
  %v986 = vsub.f32 %v670, %v960
  %v987 = vsub.f32 %v675, %v960
  %v988 = vsub.f32 %v678, %v960
  %v989 = vsub.f32 %v683, %v960
  %v990 = vsub.f32 %v686, %v960
  %v991 = vsub.f32 %v691, %v960
  %v992 = vsub.f32 %v694, %v960
  %v993 = vsub.f32 %v699, %v960
  %v994 = vsub.f32 %v702, %v960
  %v995 = vsub.f32 %v707, %v960
  %v996 = vsub.f32 %v710, %v960
  %v997 = vsub.f32 %v715, %v960
  %v998 = vsub.f32 %v718, %v960
  %v999 = vsub.f32 %v723, %v960
  %v1000 = vsub.f32 %v726, %v960
  %v1001 = vsub.f32 %v731, %v960
  %v1002 = vsub.f32 %v734, %v960
  %v1003 = vsub.f32 %v739, %v960
  %v1004 = vsub.f32 %v742, %v960
  %v1005 = vsub.f32 %v747, %v960
  %v1006 = vsub.f32 %v750, %v960
  %v1007 = vsub.f32 %v755, %v960
  %v1008 = vsub.f32 %v758, %v960
  %v1009 = vsub.f32 %v763, %v960
  %v1010 = vsub.f32 %v766, %v960
  %v1011 = vsub.f32 %v771, %v960
  %v1012 = vsub.f32 %v774, %v960
  %v1013 = vsub.f32 %v779, %v960
  %v1014 = vsub.f32 %v782, %v960
  %v1015 = vsub.f32 %v787, %v960
  %v1016 = vsub.f32 %v790, %v960
  %v1017 = vsub.f32 %v795, %v960
  %v1018 = vsub.f32 %v798, %v960
  %v1019 = vsub.f32 %v803, %v960
  %v1020 = vsub.f32 %v806, %v960
  %v1021 = vsub.f32 %v811, %v960
  %v1022 = vsub.f32 %v814, %v960
  %v1023 = vsub.f32 %v819, %v960
  %v1024 = vsub.f32 %v822, %v960
  %v1025 = vmul.f32 %v961, %v961
  %v1026 = vmul.f32 %v962, %v962
  %v1027 = vmul.f32 %v963, %v963
  %v1028 = vmul.f32 %v964, %v964
  %v1029 = vmul.f32 %v965, %v965
  %v1030 = vmul.f32 %v966, %v966
  %v1031 = vmul.f32 %v967, %v967
  %v1032 = vmul.f32 %v968, %v968
  %v1033 = vmul.f32 %v969, %v969
  %v1034 = vmul.f32 %v970, %v970
  %v1035 = vmul.f32 %v971, %v971
  %v1036 = vmul.f32 %v972, %v972
  %v1037 = vmul.f32 %v973, %v973
  %v1038 = vmul.f32 %v974, %v974
  %v1039 = vmul.f32 %v975, %v975
  %v1040 = vmul.f32 %v976, %v976
  %v1041 = vmul.f32 %v977, %v977
  %v1042 = vmul.f32 %v978, %v978
  %v1043 = vmul.f32 %v979, %v979
  %v1044 = vmul.f32 %v980, %v980
  %v1045 = vmul.f32 %v981, %v981
  %v1046 = vmul.f32 %v982, %v982
  %v1047 = vmul.f32 %v983, %v983
  %v1048 = vmul.f32 %v984, %v984
  %v1049 = vmul.f32 %v985, %v985
  %v1050 = vmul.f32 %v986, %v986
  %v1051 = vmul.f32 %v987, %v987
  %v1052 = vmul.f32 %v988, %v988
  %v1053 = vmul.f32 %v989, %v989
  %v1054 = vmul.f32 %v990, %v990
  %v1055 = vmul.f32 %v991, %v991
  %v1056 = vmul.f32 %v992, %v992
  %v1057 = vmul.f32 %v993, %v993
  %v1058 = vmul.f32 %v994, %v994
  %v1059 = vmul.f32 %v995, %v995
  %v1060 = vmul.f32 %v996, %v996
  %v1061 = vmul.f32 %v997, %v997
  %v1062 = vmul.f32 %v998, %v998
  %v1063 = vmul.f32 %v999, %v999
  %v1064 = vmul.f32 %v1000, %v1000
  %v1065 = vmul.f32 %v1001, %v1001
  %v1066 = vmul.f32 %v1002, %v1002
  %v1067 = vmul.f32 %v1003, %v1003
  %v1068 = vmul.f32 %v1004, %v1004
  %v1069 = vmul.f32 %v1005, %v1005
  %v1070 = vmul.f32 %v1006, %v1006
  %v1071 = vmul.f32 %v1007, %v1007
  %v1072 = vmul.f32 %v1008, %v1008
  %v1073 = vmul.f32 %v1009, %v1009
  %v1074 = vmul.f32 %v1010, %v1010
  %v1075 = vmul.f32 %v1011, %v1011
  %v1076 = vmul.f32 %v1012, %v1012
  %v1077 = vmul.f32 %v1013, %v1013
  %v1078 = vmul.f32 %v1014, %v1014
  %v1079 = vmul.f32 %v1015, %v1015
  %v1080 = vmul.f32 %v1016, %v1016
  %v1081 = vmul.f32 %v1017, %v1017
  %v1082 = vmul.f32 %v1018, %v1018
  %v1083 = vmul.f32 %v1019, %v1019
  %v1084 = vmul.f32 %v1020, %v1020
  %v1085 = vmul.f32 %v1021, %v1021
  %v1086 = vmul.f32 %v1022, %v1022
  %v1087 = vmul.f32 %v1023, %v1023
  %v1088 = vmul.f32 %v1024, %v1024
  %v1089 = vsel %vm825, %v1025, 0.0
  %v1090 = vsel %vm825, %v1026, 0.0
  %v1091 = vadd.f32 %v1089, %v1090
  %v1092 = vsel %vm825, %v1027, 0.0
  %v1093 = vadd.f32 %v1091, %v1092
  %v1094 = vsel %vm825, %v1028, 0.0
  %v1095 = vadd.f32 %v1093, %v1094
  %v1096 = vsel %vm825, %v1029, 0.0
  %v1097 = vadd.f32 %v1095, %v1096
  %v1098 = vsel %vm825, %v1030, 0.0
  %v1099 = vadd.f32 %v1097, %v1098
  %v1100 = vsel %vm825, %v1031, 0.0
  %v1101 = vadd.f32 %v1099, %v1100
  %v1102 = vsel %vm825, %v1032, 0.0
  %v1103 = vadd.f32 %v1101, %v1102
  %v1104 = vsel %vm825, %v1033, 0.0
  %v1105 = vadd.f32 %v1103, %v1104
  %v1106 = vsel %vm825, %v1034, 0.0
  %v1107 = vadd.f32 %v1105, %v1106
  %v1108 = vsel %vm825, %v1035, 0.0
  %v1109 = vadd.f32 %v1107, %v1108
  %v1110 = vsel %vm825, %v1036, 0.0
  %v1111 = vadd.f32 %v1109, %v1110
  %v1112 = vsel %vm825, %v1037, 0.0
  %v1113 = vadd.f32 %v1111, %v1112
  %v1114 = vsel %vm825, %v1038, 0.0
  %v1115 = vadd.f32 %v1113, %v1114
  %v1116 = vsel %vm825, %v1039, 0.0
  %v1117 = vadd.f32 %v1115, %v1116
  %v1118 = vsel %vm825, %v1040, 0.0
  %v1119 = vadd.f32 %v1117, %v1118
  %v1120 = vsel %vm825, %v1041, 0.0
  %v1121 = vadd.f32 %v1119, %v1120
  %v1122 = vsel %vm825, %v1042, 0.0
  %v1123 = vadd.f32 %v1121, %v1122
  %v1124 = vsel %vm825, %v1043, 0.0
  %v1125 = vadd.f32 %v1123, %v1124
  %v1126 = vsel %vm825, %v1044, 0.0
  %v1127 = vadd.f32 %v1125, %v1126
  %v1128 = vsel %vm825, %v1045, 0.0
  %v1129 = vadd.f32 %v1127, %v1128
  %v1130 = vsel %vm825, %v1046, 0.0
  %v1131 = vadd.f32 %v1129, %v1130
  %v1132 = vsel %vm825, %v1047, 0.0
  %v1133 = vadd.f32 %v1131, %v1132
  %v1134 = vsel %vm825, %v1048, 0.0
  %v1135 = vadd.f32 %v1133, %v1134
  %v1136 = vsel %vm825, %v1049, 0.0
  %v1137 = vadd.f32 %v1135, %v1136
  %v1138 = vsel %vm825, %v1050, 0.0
  %v1139 = vadd.f32 %v1137, %v1138
  %v1140 = vsel %vm825, %v1051, 0.0
  %v1141 = vadd.f32 %v1139, %v1140
  %v1142 = vsel %vm825, %v1052, 0.0
  %v1143 = vadd.f32 %v1141, %v1142
  %v1144 = vsel %vm825, %v1053, 0.0
  %v1145 = vadd.f32 %v1143, %v1144
  %v1146 = vsel %vm825, %v1054, 0.0
  %v1147 = vadd.f32 %v1145, %v1146
  %v1148 = vsel %vm825, %v1055, 0.0
  %v1149 = vadd.f32 %v1147, %v1148
  %v1150 = vsel %vm825, %v1056, 0.0
  %v1151 = vadd.f32 %v1149, %v1150
  %v1152 = vsel %vm825, %v1057, 0.0
  %v1153 = vadd.f32 %v1151, %v1152
  %v1154 = vsel %vm825, %v1058, 0.0
  %v1155 = vadd.f32 %v1153, %v1154
  %v1156 = vsel %vm825, %v1059, 0.0
  %v1157 = vadd.f32 %v1155, %v1156
  %v1158 = vsel %vm825, %v1060, 0.0
  %v1159 = vadd.f32 %v1157, %v1158
  %v1160 = vsel %vm825, %v1061, 0.0
  %v1161 = vadd.f32 %v1159, %v1160
  %v1162 = vsel %vm825, %v1062, 0.0
  %v1163 = vadd.f32 %v1161, %v1162
  %v1164 = vsel %vm825, %v1063, 0.0
  %v1165 = vadd.f32 %v1163, %v1164
  %v1166 = vsel %vm825, %v1064, 0.0
  %v1167 = vadd.f32 %v1165, %v1166
  %v1168 = vsel %vm825, %v1065, 0.0
  %v1169 = vadd.f32 %v1167, %v1168
  %v1170 = vsel %vm825, %v1066, 0.0
  %v1171 = vadd.f32 %v1169, %v1170
  %v1172 = vsel %vm825, %v1067, 0.0
  %v1173 = vadd.f32 %v1171, %v1172
  %v1174 = vsel %vm825, %v1068, 0.0
  %v1175 = vadd.f32 %v1173, %v1174
  %v1176 = vsel %vm825, %v1069, 0.0
  %v1177 = vadd.f32 %v1175, %v1176
  %v1178 = vsel %vm825, %v1070, 0.0
  %v1179 = vadd.f32 %v1177, %v1178
  %v1180 = vsel %vm825, %v1071, 0.0
  %v1181 = vadd.f32 %v1179, %v1180
  %v1182 = vsel %vm825, %v1072, 0.0
  %v1183 = vadd.f32 %v1181, %v1182
  %v1184 = vsel %vm825, %v1073, 0.0
  %v1185 = vadd.f32 %v1183, %v1184
  %v1186 = vsel %vm825, %v1074, 0.0
  %v1187 = vadd.f32 %v1185, %v1186
  %v1188 = vsel %vm825, %v1075, 0.0
  %v1189 = vadd.f32 %v1187, %v1188
  %v1190 = vsel %vm825, %v1076, 0.0
  %v1191 = vadd.f32 %v1189, %v1190
  %v1192 = vsel %vm825, %v1077, 0.0
  %v1193 = vadd.f32 %v1191, %v1192
  %v1194 = vsel %vm825, %v1078, 0.0
  %v1195 = vadd.f32 %v1193, %v1194
  %v1196 = vsel %vm825, %v1079, 0.0
  %v1197 = vadd.f32 %v1195, %v1196
  %v1198 = vsel %vm825, %v1080, 0.0
  %v1199 = vadd.f32 %v1197, %v1198
  %v1200 = vsel %vm825, %v1081, 0.0
  %v1201 = vadd.f32 %v1199, %v1200
  %v1202 = vsel %vm825, %v1082, 0.0
  %v1203 = vadd.f32 %v1201, %v1202
  %v1204 = vsel %vm825, %v1083, 0.0
  %v1205 = vadd.f32 %v1203, %v1204
  %v1206 = vsel %vm825, %v1084, 0.0
  %v1207 = vadd.f32 %v1205, %v1206
  %v1208 = vsel %vm825, %v1085, 0.0
  %v1209 = vadd.f32 %v1207, %v1208
  %v1210 = vsel %vm825, %v1086, 0.0
  %v1211 = vadd.f32 %v1209, %v1210
  %v1212 = vsel %vm825, %v1087, 0.0
  %v1213 = vadd.f32 %v1211, %v1212
  %v1214 = vsel %vm825, %v1088, 0.0
  %v1215 = vadd.f32 %v1213, %v1214
  %v1216 = vrot.slane %v1215, 4
  %v1217 = vadd.f32 %v1215, %v1216
  %v1218 = vrot.slane %v1217, 2
  %v1219 = vadd.f32 %v1217, %v1218
  %v1220 = vrot.slane %v1219, 1
  %v1221 = vadd.f32 %v1219, %v1220
  %v1222 = vmul.f32 %v1221, %v959
  %v1223 = vadd.f32 %v1222, 1e-05
  %v1224 = vrsqrt.pop %v1223
  %v1225 = vmul.f32 %v961, %v1224
  %v1226 = vmul.f32 %v962, %v1224
  %v1227 = vmul.f32 %v963, %v1224
  %v1228 = vmul.f32 %v964, %v1224
  %v1229 = vmul.f32 %v965, %v1224
  %v1230 = vmul.f32 %v966, %v1224
  %v1231 = vmul.f32 %v967, %v1224
  %v1232 = vmul.f32 %v968, %v1224
  %v1233 = vmul.f32 %v969, %v1224
  %v1234 = vmul.f32 %v970, %v1224
  %v1235 = vmul.f32 %v971, %v1224
  %v1236 = vmul.f32 %v972, %v1224
  %v1237 = vmul.f32 %v973, %v1224
  %v1238 = vmul.f32 %v974, %v1224
  %v1239 = vmul.f32 %v975, %v1224
  %v1240 = vmul.f32 %v976, %v1224
  %v1241 = vmul.f32 %v977, %v1224
  %v1242 = vmul.f32 %v978, %v1224
  %v1243 = vmul.f32 %v979, %v1224
  %v1244 = vmul.f32 %v980, %v1224
  %v1245 = vmul.f32 %v981, %v1224
  %v1246 = vmul.f32 %v982, %v1224
  %v1247 = vmul.f32 %v983, %v1224
  %v1248 = vmul.f32 %v984, %v1224
  %v1249 = vmul.f32 %v985, %v1224
  %v1250 = vmul.f32 %v986, %v1224
  %v1251 = vmul.f32 %v987, %v1224
  %v1252 = vmul.f32 %v988, %v1224
  %v1253 = vmul.f32 %v989, %v1224
  %v1254 = vmul.f32 %v990, %v1224
  %v1255 = vmul.f32 %v991, %v1224
  %v1256 = vmul.f32 %v992, %v1224
  %v1257 = vmul.f32 %v993, %v1224
  %v1258 = vmul.f32 %v994, %v1224
  %v1259 = vmul.f32 %v995, %v1224
  %v1260 = vmul.f32 %v996, %v1224
  %v1261 = vmul.f32 %v997, %v1224
  %v1262 = vmul.f32 %v998, %v1224
  %v1263 = vmul.f32 %v999, %v1224
  %v1264 = vmul.f32 %v1000, %v1224
  %v1265 = vmul.f32 %v1001, %v1224
  %v1266 = vmul.f32 %v1002, %v1224
  %v1267 = vmul.f32 %v1003, %v1224
  %v1268 = vmul.f32 %v1004, %v1224
  %v1269 = vmul.f32 %v1005, %v1224
  %v1270 = vmul.f32 %v1006, %v1224
  %v1271 = vmul.f32 %v1007, %v1224
  %v1272 = vmul.f32 %v1008, %v1224
  %v1273 = vmul.f32 %v1009, %v1224
  %v1274 = vmul.f32 %v1010, %v1224
  %v1275 = vmul.f32 %v1011, %v1224
  %v1276 = vmul.f32 %v1012, %v1224
  %v1277 = vmul.f32 %v1013, %v1224
  %v1278 = vmul.f32 %v1014, %v1224
  %v1279 = vmul.f32 %v1015, %v1224
  %v1280 = vmul.f32 %v1016, %v1224
  %v1281 = vmul.f32 %v1017, %v1224
  %v1282 = vmul.f32 %v1018, %v1224
  %v1283 = vmul.f32 %v1019, %v1224
  %v1284 = vmul.f32 %v1020, %v1224
  %v1285 = vmul.f32 %v1021, %v1224
  %v1286 = vmul.f32 %v1022, %v1224
  %v1287 = vmul.f32 %v1023, %v1224
  %v1288 = vmul.f32 %v1024, %v1224
  %v1289 = vld [vmem:[%s2] sm:$0x1]
  %v1291 = vlaneseq
  %v1292 = vshrl.u32 %v1291, 7
  %v1293 = vsub.s32 0, %v1292
  %v1294 = vrot.slane %v1289, %v1293
  %v1296 = vmul.f32 %v1225, %v1294
  %v1297 = vmul.f32 %v1226, %v1294
  %v1298 = vmul.f32 %v1227, %v1294
  %v1299 = vmul.f32 %v1228, %v1294
  %v1300 = vmul.f32 %v1229, %v1294
  %v1301 = vmul.f32 %v1230, %v1294
  %v1302 = vmul.f32 %v1231, %v1294
  %v1303 = vmul.f32 %v1232, %v1294
  %v1304 = vmul.f32 %v1233, %v1294
  %v1305 = vmul.f32 %v1234, %v1294
  %v1306 = vmul.f32 %v1235, %v1294
  %v1307 = vmul.f32 %v1236, %v1294
  %v1308 = vmul.f32 %v1237, %v1294
  %v1309 = vmul.f32 %v1238, %v1294
  %v1310 = vmul.f32 %v1239, %v1294
  %v1311 = vmul.f32 %v1240, %v1294
  %v1312 = vmul.f32 %v1241, %v1294
  %v1313 = vmul.f32 %v1242, %v1294
  %v1314 = vmul.f32 %v1243, %v1294
  %v1315 = vmul.f32 %v1244, %v1294
  %v1316 = vmul.f32 %v1245, %v1294
  %v1317 = vmul.f32 %v1246, %v1294
  %v1318 = vmul.f32 %v1247, %v1294
  %v1319 = vmul.f32 %v1248, %v1294
  %v1320 = vmul.f32 %v1249, %v1294
  %v1321 = vmul.f32 %v1250, %v1294
  %v1322 = vmul.f32 %v1251, %v1294
  %v1323 = vmul.f32 %v1252, %v1294
  %v1324 = vmul.f32 %v1253, %v1294
  %v1325 = vmul.f32 %v1254, %v1294
  %v1326 = vmul.f32 %v1255, %v1294
  %v1327 = vmul.f32 %v1256, %v1294
  %v1328 = vmul.f32 %v1257, %v1294
  %v1329 = vmul.f32 %v1258, %v1294
  %v1330 = vmul.f32 %v1259, %v1294
  %v1331 = vmul.f32 %v1260, %v1294
  %v1332 = vmul.f32 %v1261, %v1294
  %v1333 = vmul.f32 %v1262, %v1294
  %v1334 = vmul.f32 %v1263, %v1294
  %v1335 = vmul.f32 %v1264, %v1294
  %v1336 = vmul.f32 %v1265, %v1294
  %v1337 = vmul.f32 %v1266, %v1294
  %v1338 = vmul.f32 %v1267, %v1294
  %v1339 = vmul.f32 %v1268, %v1294
  %v1340 = vmul.f32 %v1269, %v1294
  %v1341 = vmul.f32 %v1270, %v1294
  %v1342 = vmul.f32 %v1271, %v1294
  %v1343 = vmul.f32 %v1272, %v1294
  %v1344 = vmul.f32 %v1273, %v1294
  %v1345 = vmul.f32 %v1274, %v1294
  %v1346 = vmul.f32 %v1275, %v1294
  %v1347 = vmul.f32 %v1276, %v1294
  %v1348 = vmul.f32 %v1277, %v1294
  %v1349 = vmul.f32 %v1278, %v1294
  %v1350 = vmul.f32 %v1279, %v1294
  %v1351 = vmul.f32 %v1280, %v1294
  %v1352 = vmul.f32 %v1281, %v1294
  %v1353 = vmul.f32 %v1282, %v1294
  %v1354 = vmul.f32 %v1283, %v1294
  %v1355 = vmul.f32 %v1284, %v1294
  %v1356 = vmul.f32 %v1285, %v1294
  %v1357 = vmul.f32 %v1286, %v1294
  %v1358 = vmul.f32 %v1287, %v1294
  %v1359 = vmul.f32 %v1288, %v1294
  %v1360 = vld [vmem:[%s3] sm:$0x1]
  %v1362 = vlaneseq
  %v1363 = vshrl.u32 %v1362, 7
  %v1364 = vsub.s32 0, %v1363
  %v1365 = vrot.slane %v1360, %v1364
  %v1367 = vadd.f32 %v1296, %v1365
  %v1368 = vadd.f32 %v1297, %v1365
  %v1369 = vadd.f32 %v1298, %v1365
  %v1370 = vadd.f32 %v1299, %v1365
  %v1371 = vadd.f32 %v1300, %v1365
  %v1372 = vadd.f32 %v1301, %v1365
  %v1373 = vadd.f32 %v1302, %v1365
  %v1374 = vadd.f32 %v1303, %v1365
  %v1375 = vadd.f32 %v1304, %v1365
  %v1376 = vadd.f32 %v1305, %v1365
  %v1377 = vadd.f32 %v1306, %v1365
  %v1378 = vadd.f32 %v1307, %v1365
  %v1379 = vadd.f32 %v1308, %v1365
  %v1380 = vadd.f32 %v1309, %v1365
  %v1381 = vadd.f32 %v1310, %v1365
  %v1382 = vadd.f32 %v1311, %v1365
  %v1383 = vadd.f32 %v1312, %v1365
  %v1384 = vadd.f32 %v1313, %v1365
  %v1385 = vadd.f32 %v1314, %v1365
  %v1386 = vadd.f32 %v1315, %v1365
  %v1387 = vadd.f32 %v1316, %v1365
  %v1388 = vadd.f32 %v1317, %v1365
  %v1389 = vadd.f32 %v1318, %v1365
  %v1390 = vadd.f32 %v1319, %v1365
  %v1391 = vadd.f32 %v1320, %v1365
  %v1392 = vadd.f32 %v1321, %v1365
  %v1393 = vadd.f32 %v1322, %v1365
  %v1394 = vadd.f32 %v1323, %v1365
  %v1395 = vadd.f32 %v1324, %v1365
  %v1396 = vadd.f32 %v1325, %v1365
  %v1397 = vadd.f32 %v1326, %v1365
  %v1398 = vadd.f32 %v1327, %v1365
  %v1399 = vadd.f32 %v1328, %v1365
  %v1400 = vadd.f32 %v1329, %v1365
  %v1401 = vadd.f32 %v1330, %v1365
  %v1402 = vadd.f32 %v1331, %v1365
  %v1403 = vadd.f32 %v1332, %v1365
  %v1404 = vadd.f32 %v1333, %v1365
  %v1405 = vadd.f32 %v1334, %v1365
  %v1406 = vadd.f32 %v1335, %v1365
  %v1407 = vadd.f32 %v1336, %v1365
  %v1408 = vadd.f32 %v1337, %v1365
  %v1409 = vadd.f32 %v1338, %v1365
  %v1410 = vadd.f32 %v1339, %v1365
  %v1411 = vadd.f32 %v1340, %v1365
  %v1412 = vadd.f32 %v1341, %v1365
  %v1413 = vadd.f32 %v1342, %v1365
  %v1414 = vadd.f32 %v1343, %v1365
  %v1415 = vadd.f32 %v1344, %v1365
  %v1416 = vadd.f32 %v1345, %v1365
  %v1417 = vadd.f32 %v1346, %v1365
  %v1418 = vadd.f32 %v1347, %v1365
  %v1419 = vadd.f32 %v1348, %v1365
  %v1420 = vadd.f32 %v1349, %v1365
  %v1421 = vadd.f32 %v1350, %v1365
  %v1422 = vadd.f32 %v1351, %v1365
  %v1423 = vadd.f32 %v1352, %v1365
  %v1424 = vadd.f32 %v1353, %v1365
  %v1425 = vadd.f32 %v1354, %v1365
  %v1426 = vadd.f32 %v1355, %v1365
  %v1427 = vadd.f32 %v1356, %v1365
  %v1428 = vadd.f32 %v1357, %v1365
  %v1429 = vadd.f32 %v1358, %v1365
  %v1430 = vadd.f32 %v1359, %v1365
  %v1431 = vmax.f32 %v1367, 0.0
  %v1432 = vmax.f32 %v1368, 0.0
  %v1433 = vmax.f32 %v1369, 0.0
  %v1434 = vmax.f32 %v1370, 0.0
  %v1435 = vmax.f32 %v1371, 0.0
  %v1436 = vmax.f32 %v1372, 0.0
  %v1437 = vmax.f32 %v1373, 0.0
  %v1438 = vmax.f32 %v1374, 0.0
  %v1439 = vmax.f32 %v1375, 0.0
  %v1440 = vmax.f32 %v1376, 0.0
  %v1441 = vmax.f32 %v1377, 0.0
  %v1442 = vmax.f32 %v1378, 0.0
  %v1443 = vmax.f32 %v1379, 0.0
  %v1444 = vmax.f32 %v1380, 0.0
  %v1445 = vmax.f32 %v1381, 0.0
  %v1446 = vmax.f32 %v1382, 0.0
  %v1447 = vmax.f32 %v1383, 0.0
  %v1448 = vmax.f32 %v1384, 0.0
  %v1449 = vmax.f32 %v1385, 0.0
  %v1450 = vmax.f32 %v1386, 0.0
  %v1451 = vmax.f32 %v1387, 0.0
  %v1452 = vmax.f32 %v1388, 0.0
  %v1453 = vmax.f32 %v1389, 0.0
  %v1454 = vmax.f32 %v1390, 0.0
  %v1455 = vmax.f32 %v1391, 0.0
  %v1456 = vmax.f32 %v1392, 0.0
  %v1457 = vmax.f32 %v1393, 0.0
  %v1458 = vmax.f32 %v1394, 0.0
  %v1459 = vmax.f32 %v1395, 0.0
  %v1460 = vmax.f32 %v1396, 0.0
  %v1461 = vmax.f32 %v1397, 0.0
  %v1462 = vmax.f32 %v1398, 0.0
  %v1463 = vmax.f32 %v1399, 0.0
  %v1464 = vmax.f32 %v1400, 0.0
  %v1465 = vmax.f32 %v1401, 0.0
  %v1466 = vmax.f32 %v1402, 0.0
  %v1467 = vmax.f32 %v1403, 0.0
  %v1468 = vmax.f32 %v1404, 0.0
  %v1469 = vmax.f32 %v1405, 0.0
  %v1470 = vmax.f32 %v1406, 0.0
  %v1471 = vmax.f32 %v1407, 0.0
  %v1472 = vmax.f32 %v1408, 0.0
  %v1473 = vmax.f32 %v1409, 0.0
  %v1474 = vmax.f32 %v1410, 0.0
  %v1475 = vmax.f32 %v1411, 0.0
  %v1476 = vmax.f32 %v1412, 0.0
  %v1477 = vmax.f32 %v1413, 0.0
  %v1478 = vmax.f32 %v1414, 0.0
  %v1479 = vmax.f32 %v1415, 0.0
  %v1480 = vmax.f32 %v1416, 0.0
  %v1481 = vmax.f32 %v1417, 0.0
  %v1482 = vmax.f32 %v1418, 0.0
  %v1483 = vmax.f32 %v1419, 0.0
  %v1484 = vmax.f32 %v1420, 0.0
  %v1485 = vmax.f32 %v1421, 0.0
  %v1486 = vmax.f32 %v1422, 0.0
  %v1487 = vmax.f32 %v1423, 0.0
  %v1488 = vmax.f32 %v1424, 0.0
  %v1489 = vmax.f32 %v1425, 0.0
  %v1490 = vmax.f32 %v1426, 0.0
  %v1491 = vmax.f32 %v1427, 0.0
  %v1492 = vmax.f32 %v1428, 0.0
  %v1493 = vmax.f32 %v1429, 0.0
  %v1494 = vmax.f32 %v1430, 0.0
  %v1495 = vsel %vm825, %v1431, 0.0
  %v1496 = vsel %vm825, %v1432, 0.0
  %v1497 = vadd.f32 %v1495, %v1496
  %v1498 = vsel %vm825, %v1433, 0.0
  %v1499 = vadd.f32 %v1497, %v1498
  %v1500 = vsel %vm825, %v1434, 0.0
  %v1501 = vadd.f32 %v1499, %v1500
  %v1502 = vsel %vm825, %v1435, 0.0
  %v1503 = vadd.f32 %v1501, %v1502
  %v1504 = vsel %vm825, %v1436, 0.0
  %v1505 = vadd.f32 %v1503, %v1504
  %v1506 = vsel %vm825, %v1437, 0.0
  %v1507 = vadd.f32 %v1505, %v1506
  %v1508 = vsel %vm825, %v1438, 0.0
  %v1509 = vadd.f32 %v1507, %v1508
  %v1510 = vsel %vm825, %v1439, 0.0
  %v1511 = vadd.f32 %v1509, %v1510
  %v1512 = vsel %vm825, %v1440, 0.0
  %v1513 = vadd.f32 %v1511, %v1512
  %v1514 = vsel %vm825, %v1441, 0.0
  %v1515 = vadd.f32 %v1513, %v1514
  %v1516 = vsel %vm825, %v1442, 0.0
  %v1517 = vadd.f32 %v1515, %v1516
  %v1518 = vsel %vm825, %v1443, 0.0
  %v1519 = vadd.f32 %v1517, %v1518
  %v1520 = vsel %vm825, %v1444, 0.0
  %v1521 = vadd.f32 %v1519, %v1520
  %v1522 = vsel %vm825, %v1445, 0.0
  %v1523 = vadd.f32 %v1521, %v1522
  %v1524 = vsel %vm825, %v1446, 0.0
  %v1525 = vadd.f32 %v1523, %v1524
  %v1526 = vsel %vm825, %v1447, 0.0
  %v1527 = vadd.f32 %v1525, %v1526
  %v1528 = vsel %vm825, %v1448, 0.0
  %v1529 = vadd.f32 %v1527, %v1528
  %v1530 = vsel %vm825, %v1449, 0.0
  %v1531 = vadd.f32 %v1529, %v1530
  %v1532 = vsel %vm825, %v1450, 0.0
  %v1533 = vadd.f32 %v1531, %v1532
  %v1534 = vsel %vm825, %v1451, 0.0
  %v1535 = vadd.f32 %v1533, %v1534
  %v1536 = vsel %vm825, %v1452, 0.0
  %v1537 = vadd.f32 %v1535, %v1536
  %v1538 = vsel %vm825, %v1453, 0.0
  %v1539 = vadd.f32 %v1537, %v1538
  %v1540 = vsel %vm825, %v1454, 0.0
  %v1541 = vadd.f32 %v1539, %v1540
  %v1542 = vsel %vm825, %v1455, 0.0
  %v1543 = vadd.f32 %v1541, %v1542
  %v1544 = vsel %vm825, %v1456, 0.0
  %v1545 = vadd.f32 %v1543, %v1544
  %v1546 = vsel %vm825, %v1457, 0.0
  %v1547 = vadd.f32 %v1545, %v1546
  %v1548 = vsel %vm825, %v1458, 0.0
  %v1549 = vadd.f32 %v1547, %v1548
  %v1550 = vsel %vm825, %v1459, 0.0
  %v1551 = vadd.f32 %v1549, %v1550
  %v1552 = vsel %vm825, %v1460, 0.0
  %v1553 = vadd.f32 %v1551, %v1552
  %v1554 = vsel %vm825, %v1461, 0.0
  %v1555 = vadd.f32 %v1553, %v1554
  %v1556 = vsel %vm825, %v1462, 0.0
  %v1557 = vadd.f32 %v1555, %v1556
  %v1558 = vrot.slane %v1557, 4
  %v1559 = vadd.f32 %v1557, %v1558
  %v1560 = vrot.slane %v1559, 2
  %v1561 = vadd.f32 %v1559, %v1560
  %v1562 = vrot.slane %v1561, 1
  %v1563 = vadd.f32 %v1561, %v1562
  %v1564 = vrcp.pop 256.0
  %v1565 = vmul.f32 %v1563, %v1564
  %v1566 = vsel %vm825, %v1463, 0.0
  %v1567 = vsel %vm825, %v1464, 0.0
  %v1568 = vadd.f32 %v1566, %v1567
  %v1569 = vsel %vm825, %v1465, 0.0
  %v1570 = vadd.f32 %v1568, %v1569
  %v1571 = vsel %vm825, %v1466, 0.0
  %v1572 = vadd.f32 %v1570, %v1571
  %v1573 = vsel %vm825, %v1467, 0.0
  %v1574 = vadd.f32 %v1572, %v1573
  %v1575 = vsel %vm825, %v1468, 0.0
  %v1576 = vadd.f32 %v1574, %v1575
  %v1577 = vsel %vm825, %v1469, 0.0
  %v1578 = vadd.f32 %v1576, %v1577
  %v1579 = vsel %vm825, %v1470, 0.0
  %v1580 = vadd.f32 %v1578, %v1579
  %v1581 = vsel %vm825, %v1471, 0.0
  %v1582 = vadd.f32 %v1580, %v1581
  %v1583 = vsel %vm825, %v1472, 0.0
  %v1584 = vadd.f32 %v1582, %v1583
  %v1585 = vsel %vm825, %v1473, 0.0
  %v1586 = vadd.f32 %v1584, %v1585
  %v1587 = vsel %vm825, %v1474, 0.0
  %v1588 = vadd.f32 %v1586, %v1587
  %v1589 = vsel %vm825, %v1475, 0.0
  %v1590 = vadd.f32 %v1588, %v1589
  %v1591 = vsel %vm825, %v1476, 0.0
  %v1592 = vadd.f32 %v1590, %v1591
  %v1593 = vsel %vm825, %v1477, 0.0
  %v1594 = vadd.f32 %v1592, %v1593
  %v1595 = vsel %vm825, %v1478, 0.0
  %v1596 = vadd.f32 %v1594, %v1595
  %v1597 = vsel %vm825, %v1479, 0.0
  %v1598 = vadd.f32 %v1596, %v1597
  %v1599 = vsel %vm825, %v1480, 0.0
  %v1600 = vadd.f32 %v1598, %v1599
  %v1601 = vsel %vm825, %v1481, 0.0
  %v1602 = vadd.f32 %v1600, %v1601
  %v1603 = vsel %vm825, %v1482, 0.0
  %v1604 = vadd.f32 %v1602, %v1603
  %v1605 = vsel %vm825, %v1483, 0.0
  %v1606 = vadd.f32 %v1604, %v1605
  %v1607 = vsel %vm825, %v1484, 0.0
  %v1608 = vadd.f32 %v1606, %v1607
  %v1609 = vsel %vm825, %v1485, 0.0
  %v1610 = vadd.f32 %v1608, %v1609
  %v1611 = vsel %vm825, %v1486, 0.0
  %v1612 = vadd.f32 %v1610, %v1611
  %v1613 = vsel %vm825, %v1487, 0.0
  %v1614 = vadd.f32 %v1612, %v1613
  %v1615 = vsel %vm825, %v1488, 0.0
  %v1616 = vadd.f32 %v1614, %v1615
  %v1617 = vsel %vm825, %v1489, 0.0
  %v1618 = vadd.f32 %v1616, %v1617
  %v1619 = vsel %vm825, %v1490, 0.0
  %v1620 = vadd.f32 %v1618, %v1619
  %v1621 = vsel %vm825, %v1491, 0.0
  %v1622 = vadd.f32 %v1620, %v1621
  %v1623 = vsel %vm825, %v1492, 0.0
  %v1624 = vadd.f32 %v1622, %v1623
  %v1625 = vsel %vm825, %v1493, 0.0
  %v1626 = vadd.f32 %v1624, %v1625
  %v1627 = vsel %vm825, %v1494, 0.0
  %v1628 = vadd.f32 %v1626, %v1627
  %v1629 = vrot.slane %v1628, 4
  %v1630 = vadd.f32 %v1628, %v1629
  %v1631 = vrot.slane %v1630, 2
  %v1632 = vadd.f32 %v1630, %v1631
  %v1633 = vrot.slane %v1632, 1
  %v1634 = vadd.f32 %v1632, %v1633
  %v1635 = vmul.f32 %v1634, %v1564
  %vm1636 = vcmask 1040384
  %v1637 = vsel %vm1636, %v1565, %v1635
  %v1638 = vpack.c.bf16 %v1637, %v1637
  %v1639 = vld [vmem:[%s4] sm:$0xf]
  %v1640 = vld [vmem:[%s4 + $0x4] sm:$0xf]
  %v1641 = vld [vmem:[%s4 + $0x8] sm:$0xf]
  %v1642 = vld [vmem:[%s4 + $0xc] sm:$0xf]
  %v1643 = vld [vmem:[%s4 + $0x10] sm:$0xf]
  %v1644 = vld [vmem:[%s4 + $0x14] sm:$0xf]
  %v1645 = vld [vmem:[%s4 + $0x18] sm:$0xf]
  %v1646 = vld [vmem:[%s4 + $0x1c] sm:$0xf]
  %v1647 = vld [vmem:[%s5] sm:$0x1]
  %v1649 = vlaneseq
  %v1650 = vshrl.u32 %v1649, 7
  %v1651 = vsub.s32 0, %v1650
  %v1652 = vrot.slane %v1647, %v1651
  %v1662 = vunpack.c.l.b16 %v1639
  %v1663 = vunpack.c.l.b16 %v1640
  %v1664 = vunpack.c.l.b16 %v1641
  %v1665 = vunpack.c.l.b16 %v1642
  %v1666 = vunpack.c.l.b16 %v1643
  %v1667 = vunpack.c.l.b16 %v1644
  %v1668 = vunpack.c.l.b16 %v1645
  %v1669 = vunpack.c.l.b16 %v1646
  %v1670 = vpack.c.b16 %v1663, %v1662
  %v1671 = vpack.c.b16 %v1665, %v1664
  %v1672 = vpack.c.b16 %v1667, %v1666
  %v1673 = vpack.c.b16 %v1669, %v1668
  %v1679 = vsel %vm825, %v1638, 0
  %1681 = vmatprep.subr.bf16.mxu0 0
  %1682 = vmatpush1.bf16.msra.mxu0 %v1670
  %1683 = vmatprep.subr.bf16.mxu0 0
  %1684 = vmatpush1.bf16.msra.mxu0 %v1671
  %1685 = vmatprep.subr.bf16.mxu0 0
  %1686 = vmatpush1.bf16.msra.mxu0 %v1672
  %1687 = vmatprep.subr.bf16.mxu0 0
  %1688 = vmatpush1.bf16.msra.mxu0 %v1673
  %1689 = vmatprep.subr.bf16.mxu0 0
  %1690 = vmatpush1.bf16.msra.mxu0 0
  %1691 = vmatprep.subr.bf16.mxu0 0
  %1692 = vmatpush1.bf16.msra.mxu0 0
  %1693 = vmatprep.subr.bf16.mxu0 0
  %1694 = vmatpush1.bf16.msra.mxu0 0
  %1695 = vmatprep.subr.bf16.mxu0 0
  %1696 = vmatpush1.bf16.msra.mxu0 0
  %1697 = vmatprep.subr.bf16.mxu0 0
  %1698 = vmatpush1.bf16.msra.mxu0 0
  %1699 = vmatprep.subr.bf16.mxu0 0
  %1700 = vmatpush1.bf16.msra.mxu0 0
  %1701 = vmatprep.subr.bf16.mxu0 0
  %1702 = vmatpush1.bf16.msra.mxu0 0
  %1703 = vmatprep.subr.bf16.mxu0 0
  %1704 = vmatpush1.bf16.msra.mxu0 0
  %1705 = vmatprep.subr.bf16.mxu0 0
  %1706 = vmatpush1.bf16.msra.mxu0 0
  %1707 = vmatprep.subr.bf16.mxu0 0
  %1708 = vmatpush1.bf16.msra.mxu0 0
  %1709 = vmatprep.subr.bf16.mxu0 0
  %1710 = vmatpush1.bf16.msra.mxu0 0
  %1711 = vmatprep.subr.bf16.mxu0 0
  %1712 = vmatpush1.bf16.msra.mxu0 0
  %1713 = vmatprep.mubr.bf16.mxu0 0
  %1714 = vmatmul.mubr.bf16.gmra.mrb[0].mxu0 %v1679
  %v1715 = vpop.f32.mrb[0].mxu0
  %v1716 = vadd.f32 %v1652, %v1715
  %v1717 = vpop.f32.mrb[0].mxu0
  %v1718 = vpop.f32.mrb[0].mxu0
  %v1719 = vpop.f32.mrb[0].mxu0
  %1720 = vdwg.mxu0
  %1721 = vst [vmem:[%s6] sm:$0x3] %v1716
  // Predicated region
  $region26: #{forward.4} parent=0 // pred_check
    _
  $region27: #{forward.4} parent=0 // pred_check_branch
    %1723 = sbr.rel (0) target = $region29
  $region28: #{forward.4} parent=0 // pred_region
    _
  $region29: #{forward.4} parent=0 // pred_fallthru
    _
  // Predicated region
  $region30: #{forward.4} parent=0 // pred_check
    _
  $region31: #{forward.4} parent=0 // pred_check_branch
    %1725 = sbr.rel (0) target = $region33
  $region32: #{forward.4} parent=0 // pred_region
    _
  $region33: #{forward.4} parent=0 // pred_fallthru
    _

// kernel: forward.6
$region0: #{forward.6}
  #allocation0 [shape = 'u32[]', space=smem, size = 0x4, offset = 0x4, fixed_abs, tag = 'smem constant byte address 0x4 - core index']
  #allocation1 [shape = 'u32[144,128]{1,0:T(1,128)}', space=vmem, size = 0x12000, scoped, tag = 'internal scratch']
  %s0 = inlined_call_operand.vmem [shape: f32[2,128], index: 0, kind: input, shape index: {}]
  %s1 = inlined_call_operand.vmem [shape: bf16[128,1280], index: 1, kind: input, shape index: {}]
  %s2 = inlined_call_operand.vmem [shape: f32[1,1280], index: 2, kind: input, shape index: {}]
  %s3 = inlined_call_operand.vmem [shape: f32[1,1280], index: 3, kind: input, shape index: {}]
  %s4 = inlined_call_operand.vmem [shape: f32[1,1280], index: 4, kind: input, shape index: {}]
  %s5 = inlined_call_operand.vmem [shape: bf16[256,128], index: 5, kind: input, shape index: {}]
  %s6 = inlined_call_operand.vmem [shape: bf16[256,128], index: 6, kind: input, shape index: {}]
  %s7 = inlined_call_operand.vmem [shape: bf16[384,128], index: 7, kind: input, shape index: {}]
  %s8 = inlined_call_operand.vmem [shape: bf16[384,128], index: 8, kind: input, shape index: {}]
  %s9 = inlined_call_operand.vmem [shape: f32[1,128], index: 9, kind: input, shape index: {}]
  %s10 = inlined_call_operand.vmem [shape: f32[1,128], index: 10, kind: input, shape index: {}]
  %s11 = inlined_call_operand.vmem [shape: f32[1,128], index: 11, kind: input, shape index: {}]
  %s12 = inlined_call_operand.vmem [shape: f32[1,128], index: 12, kind: input, shape index: {}]
  %s13 = inlined_call_operand.vmem [shape: bf16[2,256,512], index: 13, kind: input, shape index: {}]
  %s14 = inlined_call_operand.vmem [shape: f32[2,1,512], index: 14, kind: input, shape index: {}]
  %s15 = inlined_call_operand.vmem [shape: f32[2,2,128], index: 15, kind: output, shape index: {0}]
  %s16 = inlined_call_operand.hbm [shape: f32[2,2,128], index: 16, kind: output, shape index: {1}]
  %17 = xla_tuple %s15, %s16
  %s18 = sld [smem:[#allocation0]]
  $region78: #{forward.6} parent=0
    _
  %s20 = ssub.s32 1, %s18
  %s21 = scalar_select 0, %s20, %s18
  $region1: #{forward.6} parent=0
    #allocation2 [shape = 'u8[2048]{0}', space=vmem, size = 0x800, scoped, tag = 'output window, operand 1, single buffered']
    #allocation3 [shape = 's32[1]{0}', space=sflag, size = 0x4, scoped, tag = 'scoped memory for forward.6']
    %22 = vsyncpa [#allocation3], 0
    // Predicated region
    $region2: #{forward.6} parent=1 // pred_check
      _
    $region3: #{forward.6} parent=1 // pred_check_branch
      %24 = sbr.rel (0) target = $region5
    $region4: #{forward.6} parent=1 // pred_region
      _
    $region5: #{forward.6} parent=1 // pred_fallthru
      _
    // Predicated region
    $region6: #{forward.6} parent=1 // pred_check
      _
    $region7: #{forward.6} parent=1 // pred_check_branch
      %26 = sbr.rel (0) target = $region9
    $region8: #{forward.6} parent=1 // pred_region
      _
    $region9: #{forward.6} parent=1 // pred_fallthru
      _
    // Predicated region
    $region10: #{forward.6} parent=1 // pred_check
      _
    $region11: #{forward.6} parent=1 // pred_check_branch
      %28 = sbr.rel (0) target = $region13
    $region12: #{forward.6} parent=1 // pred_region
      _
    $region13: #{forward.6} parent=1 // pred_fallthru
      _
    // Predicated region
    $region14: #{forward.6} parent=1 // pred_check
      _
    $region15: #{forward.6} parent=1 // pred_check_branch
      %30 = sbr.rel (0) target = $region17
    $region16: #{forward.6} parent=1 // pred_region
      _
    $region17: #{forward.6} parent=1 // pred_fallthru
      _
    // Predicated region
    $region18: #{forward.6} parent=1 // pred_check
      _
    $region19: #{forward.6} parent=1 // pred_check_branch
      %32 = sbr.rel (0) target = $region21
    $region20: #{forward.6} parent=1 // pred_region
      _
    $region21: #{forward.6} parent=1 // pred_fallthru
      _
    // Predicated region
    $region22: #{forward.6} parent=1 // pred_check
      _
    $region23: #{forward.6} parent=1 // pred_check_branch
      %34 = sbr.rel (0) target = $region25
    $region24: #{forward.6} parent=1 // pred_region
      _
    $region25: #{forward.6} parent=1 // pred_fallthru
      _
    // Predicated region
    $region26: #{forward.6} parent=1 // pred_check
      _
    $region27: #{forward.6} parent=1 // pred_check_branch
      %36 = sbr.rel (0) target = $region29
    $region28: #{forward.6} parent=1 // pred_region
      _
    $region29: #{forward.6} parent=1 // pred_fallthru
      _
    // Predicated region
    $region30: #{forward.6} parent=1 // pred_check
      _
    $region31: #{forward.6} parent=1 // pred_check_branch
      %38 = sbr.rel (0) target = $region33
    $region32: #{forward.6} parent=1 // pred_region
      _
    $region33: #{forward.6} parent=1 // pred_fallthru
      _
    // Predicated region
    $region34: #{forward.6} parent=1 // pred_check
      _
    $region35: #{forward.6} parent=1 // pred_check_branch
      %40 = sbr.rel (0) target = $region37
    $region36: #{forward.6} parent=1 // pred_region
      _
    $region37: #{forward.6} parent=1 // pred_fallthru
      _
    // Predicated region
    $region38: #{forward.6} parent=1 // pred_check
      _
    $region39: #{forward.6} parent=1 // pred_check_branch
      %42 = sbr.rel (0) target = $region41
    $region40: #{forward.6} parent=1 // pred_region
      _
    $region41: #{forward.6} parent=1 // pred_fallthru
      _
    // Predicated region
    $region42: #{forward.6} parent=1 // pred_check
      _
    $region43: #{forward.6} parent=1 // pred_check_branch
      %44 = sbr.rel (0) target = $region45
    $region44: #{forward.6} parent=1 // pred_region
      _
    $region45: #{forward.6} parent=1 // pred_fallthru
      _
    // Predicated region
    $region46: #{forward.6} parent=1 // pred_check
      _
    $region47: #{forward.6} parent=1 // pred_check_branch
      %46 = sbr.rel (0) target = $region49
    $region48: #{forward.6} parent=1 // pred_region
      _
    $region49: #{forward.6} parent=1 // pred_fallthru
      _
    // Predicated region
    $region50: #{forward.6} parent=1 // pred_check
      _
    $region51: #{forward.6} parent=1 // pred_check_branch
      %48 = sbr.rel (0) target = $region53
    $region52: #{forward.6} parent=1 // pred_region
      _
    $region53: #{forward.6} parent=1 // pred_fallthru
      _
    // Predicated region
    $region54: #{forward.6} parent=1 // pred_check
      _
    $region55: #{forward.6} parent=1 // pred_check_branch
      %50 = sbr.rel (0) target = $region57
    $region56: #{forward.6} parent=1 // pred_region
      _
    $region57: #{forward.6} parent=1 // pred_fallthru
      _
    // Predicated region
    $region58: #{forward.6} parent=1 // pred_check
      _
    $region59: #{forward.6} parent=1 // pred_check_branch
      %52 = sbr.rel (0) target = $region61
    $region60: #{forward.6} parent=1 // pred_region
      _
    $region61: #{forward.6} parent=1 // pred_fallthru
      _
    %v54 = vld [vmem:[%s0] sm:$0x3]
    %v55 = vpack.c.bf16 %v54, %v54
    %v56 = vld [vmem:[%s1] sm:$0xff]
    %v57 = vld [vmem:[%s1 + $0x8] sm:$0xff]
    %v58 = vld [vmem:[%s1 + $0x10] sm:$0xff]
    %v59 = vld [vmem:[%s1 + $0x18] sm:$0xff]
    %v60 = vld [vmem:[%s1 + $0x20] sm:$0xff]
    %v61 = vld [vmem:[%s1 + $0x28] sm:$0xff]
    %v62 = vld [vmem:[%s1 + $0x30] sm:$0xff]
    %v63 = vld [vmem:[%s1 + $0x38] sm:$0xff]
    %v64 = vld [vmem:[%s1 + $0x40] sm:$0xff]
    %v65 = vld [vmem:[%s1 + $0x48] sm:$0xff]
    %v66 = vld [vmem:[%s1 + $0x50] sm:$0xff]
    %v67 = vld [vmem:[%s1 + $0x58] sm:$0xff]
    %v68 = vld [vmem:[%s1 + $0x60] sm:$0xff]
    %v69 = vld [vmem:[%s1 + $0x68] sm:$0xff]
    %v70 = vld [vmem:[%s1 + $0x70] sm:$0xff]
    %v71 = vld [vmem:[%s1 + $0x78] sm:$0xff]
    %v72 = vld [vmem:[%s1 + $0x80] sm:$0xff]
    %v73 = vld [vmem:[%s1 + $0x88] sm:$0xff]
    %v74 = vld [vmem:[%s1 + $0x90] sm:$0xff]
    %v75 = vld [vmem:[%s1 + $0x98] sm:$0xff]
    %v76 = vld [vmem:[%s1 + $0xa0] sm:$0xff]
    %v77 = vld [vmem:[%s1 + $0xa8] sm:$0xff]
    %v78 = vld [vmem:[%s1 + $0xb0] sm:$0xff]
    %v79 = vld [vmem:[%s1 + $0xb8] sm:$0xff]
    %v80 = vld [vmem:[%s1 + $0xc0] sm:$0xff]
    %v81 = vld [vmem:[%s1 + $0xc8] sm:$0xff]
    %v82 = vld [vmem:[%s1 + $0xd0] sm:$0xff]
    %v83 = vld [vmem:[%s1 + $0xd8] sm:$0xff]
    %v84 = vld [vmem:[%s1 + $0xe0] sm:$0xff]
    %v85 = vld [vmem:[%s1 + $0xe8] sm:$0xff]
    %v86 = vld [vmem:[%s1 + $0xf0] sm:$0xff]
    %v87 = vld [vmem:[%s1 + $0xf8] sm:$0xff]
    %v88 = vld [vmem:[%s1 + $0x100] sm:$0xff]
    %v89 = vld [vmem:[%s1 + $0x108] sm:$0xff]
    %v90 = vld [vmem:[%s1 + $0x110] sm:$0xff]
    %v91 = vld [vmem:[%s1 + $0x118] sm:$0xff]
    %v92 = vld [vmem:[%s1 + $0x120] sm:$0xff]
    %v93 = vld [vmem:[%s1 + $0x128] sm:$0xff]
    %v94 = vld [vmem:[%s1 + $0x130] sm:$0xff]
    %v95 = vld [vmem:[%s1 + $0x138] sm:$0xff]
    %v96 = vld [vmem:[%s1 + $0x140] sm:$0xff]
    %v97 = vld [vmem:[%s1 + $0x148] sm:$0xff]
    %v98 = vld [vmem:[%s1 + $0x150] sm:$0xff]
    %v99 = vld [vmem:[%s1 + $0x158] sm:$0xff]
    %v100 = vld [vmem:[%s1 + $0x160] sm:$0xff]
    %v101 = vld [vmem:[%s1 + $0x168] sm:$0xff]
    %v102 = vld [vmem:[%s1 + $0x170] sm:$0xff]
    %v103 = vld [vmem:[%s1 + $0x178] sm:$0xff]
    %v104 = vld [vmem:[%s1 + $0x180] sm:$0xff]
    %v105 = vld [vmem:[%s1 + $0x188] sm:$0xff]
    %v106 = vld [vmem:[%s1 + $0x190] sm:$0xff]
    %v107 = vld [vmem:[%s1 + $0x198] sm:$0xff]
    %v108 = vld [vmem:[%s1 + $0x1a0] sm:$0xff]
    %v109 = vld [vmem:[%s1 + $0x1a8] sm:$0xff]
    %v110 = vld [vmem:[%s1 + $0x1b0] sm:$0xff]
    %v111 = vld [vmem:[%s1 + $0x1b8] sm:$0xff]
    %v112 = vld [vmem:[%s1 + $0x1c0] sm:$0xff]
    %v113 = vld [vmem:[%s1 + $0x1c8] sm:$0xff]
    %v114 = vld [vmem:[%s1 + $0x1d0] sm:$0xff]
    %v115 = vld [vmem:[%s1 + $0x1d8] sm:$0xff]
    %v116 = vld [vmem:[%s1 + $0x1e0] sm:$0xff]
    %v117 = vld [vmem:[%s1 + $0x1e8] sm:$0xff]
    %v118 = vld [vmem:[%s1 + $0x1f0] sm:$0xff]
    %v119 = vld [vmem:[%s1 + $0x1f8] sm:$0xff]
    %v120 = vld [vmem:[%s1 + $0x200] sm:$0xff]
    %v121 = vld [vmem:[%s1 + $0x208] sm:$0xff]
    %v122 = vld [vmem:[%s1 + $0x210] sm:$0xff]
    %v123 = vld [vmem:[%s1 + $0x218] sm:$0xff]
    %v124 = vld [vmem:[%s1 + $0x220] sm:$0xff]
    %v125 = vld [vmem:[%s1 + $0x228] sm:$0xff]
    %v126 = vld [vmem:[%s1 + $0x230] sm:$0xff]
    %v127 = vld [vmem:[%s1 + $0x238] sm:$0xff]
    %v128 = vld [vmem:[%s1 + $0x240] sm:$0xff]
    %v129 = vld [vmem:[%s1 + $0x248] sm:$0xff]
    %v130 = vld [vmem:[%s1 + $0x250] sm:$0xff]
    %v131 = vld [vmem:[%s1 + $0x258] sm:$0xff]
    %v132 = vld [vmem:[%s1 + $0x260] sm:$0xff]
    %v133 = vld [vmem:[%s1 + $0x268] sm:$0xff]
    %v134 = vld [vmem:[%s1 + $0x270] sm:$0xff]
    %v135 = vld [vmem:[%s1 + $0x278] sm:$0xff]
    %v136 = vld [vmem:[%s2] sm:$0xff]
    %v137 = vld [vmem:[%s2 + $0x8] sm:$0x3]
    %v140 = vlaneseq
    %v141 = vshrl.u32 %v140, 7
    %v142 = vsub.s32 0, %v141
    %v143 = vrot.slane %v136, %v142
    %v144 = vlaneseq
    %v145 = vshrl.u32 %v144, 7
    %v146 = vsub.s32 1, %v145
    %v147 = vrot.slane %v136, %v146
    %v148 = vlaneseq
    %v149 = vshrl.u32 %v148, 7
    %v150 = vsub.s32 2, %v149
    %v151 = vrot.slane %v136, %v150
    %v152 = vlaneseq
    %v153 = vshrl.u32 %v152, 7
    %v154 = vsub.s32 3, %v153
    %v155 = vrot.slane %v136, %v154
    %v156 = vlaneseq
    %v157 = vshrl.u32 %v156, 7
    %v158 = vsub.s32 4, %v157
    %v159 = vrot.slane %v136, %v158
    %v160 = vlaneseq
    %v161 = vshrl.u32 %v160, 7
    %v162 = vsub.s32 5, %v161
    %v163 = vrot.slane %v136, %v162
    %v164 = vlaneseq
    %v165 = vshrl.u32 %v164, 7
    %v166 = vsub.s32 6, %v165
    %v167 = vrot.slane %v136, %v166
    %v168 = vlaneseq
    %v169 = vshrl.u32 %v168, 7
    %v170 = vsub.s32 7, %v169
    %v171 = vrot.slane %v136, %v170
    %v172 = vlaneseq
    %v173 = vshrl.u32 %v172, 7
    %v174 = vsub.s32 0, %v173
    %v175 = vrot.slane %v137, %v174
    %v176 = vlaneseq
    %v177 = vshrl.u32 %v176, 7
    %v178 = vsub.s32 1, %v177
    %v179 = vrot.slane %v137, %v178
    %v270 = vunpack.c.l.b16 %v56
    %v271 = vunpack.c.h.b16 %v56
    %v272 = vunpack.c.l.b16 %v57
    %v273 = vunpack.c.h.b16 %v57
    %v274 = vunpack.c.l.b16 %v58
    %v275 = vunpack.c.h.b16 %v58
    %v276 = vunpack.c.l.b16 %v59
    %v277 = vunpack.c.h.b16 %v59
    %v278 = vunpack.c.l.b16 %v60
    %v279 = vunpack.c.h.b16 %v60
    %v280 = vunpack.c.l.b16 %v61
    %v281 = vunpack.c.h.b16 %v61
    %v282 = vunpack.c.l.b16 %v62
    %v283 = vunpack.c.h.b16 %v62
    %v284 = vunpack.c.l.b16 %v63
    %v285 = vunpack.c.h.b16 %v63
    %v286 = vunpack.c.l.b16 %v64
    %v287 = vunpack.c.h.b16 %v64
    %v288 = vunpack.c.l.b16 %v65
    %v289 = vunpack.c.h.b16 %v65
    %v290 = vunpack.c.l.b16 %v66
    %v291 = vunpack.c.h.b16 %v66
    %v292 = vunpack.c.l.b16 %v67
    %v293 = vunpack.c.h.b16 %v67
    %v294 = vunpack.c.l.b16 %v68
    %v295 = vunpack.c.h.b16 %v68
    %v296 = vunpack.c.l.b16 %v69
    %v297 = vunpack.c.h.b16 %v69
    %v298 = vunpack.c.l.b16 %v70
    %v299 = vunpack.c.h.b16 %v70
    %v300 = vunpack.c.l.b16 %v71
    %v301 = vunpack.c.h.b16 %v71
    %v302 = vunpack.c.l.b16 %v72
    %v303 = vunpack.c.h.b16 %v72
    %v304 = vunpack.c.l.b16 %v73
    %v305 = vunpack.c.h.b16 %v73
    %v306 = vunpack.c.l.b16 %v74
    %v307 = vunpack.c.h.b16 %v74
    %v308 = vunpack.c.l.b16 %v75
    %v309 = vunpack.c.h.b16 %v75
    %v310 = vunpack.c.l.b16 %v76
    %v311 = vunpack.c.h.b16 %v76
    %v312 = vunpack.c.l.b16 %v77
    %v313 = vunpack.c.h.b16 %v77
    %v314 = vunpack.c.l.b16 %v78
    %v315 = vunpack.c.h.b16 %v78
    %v316 = vunpack.c.l.b16 %v79
    %v317 = vunpack.c.h.b16 %v79
    %v318 = vunpack.c.l.b16 %v80
    %v319 = vunpack.c.h.b16 %v80
    %v320 = vunpack.c.l.b16 %v81
    %v321 = vunpack.c.h.b16 %v81
    %v322 = vunpack.c.l.b16 %v82
    %v323 = vunpack.c.h.b16 %v82
    %v324 = vunpack.c.l.b16 %v83
    %v325 = vunpack.c.h.b16 %v83
    %v326 = vunpack.c.l.b16 %v84
    %v327 = vunpack.c.h.b16 %v84
    %v328 = vunpack.c.l.b16 %v85
    %v329 = vunpack.c.h.b16 %v85
    %v330 = vunpack.c.l.b16 %v86
    %v331 = vunpack.c.h.b16 %v86
    %v332 = vunpack.c.l.b16 %v87
    %v333 = vunpack.c.h.b16 %v87
    %v334 = vunpack.c.l.b16 %v88
    %v335 = vunpack.c.h.b16 %v88
    %v336 = vunpack.c.l.b16 %v89
    %v337 = vunpack.c.h.b16 %v89
    %v338 = vunpack.c.l.b16 %v90
    %v339 = vunpack.c.h.b16 %v90
    %v340 = vunpack.c.l.b16 %v91
    %v341 = vunpack.c.h.b16 %v91
    %v342 = vunpack.c.l.b16 %v92
    %v343 = vunpack.c.h.b16 %v92
    %v344 = vunpack.c.l.b16 %v93
    %v345 = vunpack.c.h.b16 %v93
    %v346 = vunpack.c.l.b16 %v94
    %v347 = vunpack.c.h.b16 %v94
    %v348 = vunpack.c.l.b16 %v95
    %v349 = vunpack.c.h.b16 %v95
    %v350 = vunpack.c.l.b16 %v96
    %v351 = vunpack.c.h.b16 %v96
    %v352 = vunpack.c.l.b16 %v97
    %v353 = vunpack.c.h.b16 %v97
    %v354 = vunpack.c.l.b16 %v98
    %v355 = vunpack.c.h.b16 %v98
    %v356 = vunpack.c.l.b16 %v99
    %v357 = vunpack.c.h.b16 %v99
    %v358 = vunpack.c.l.b16 %v100
    %v359 = vunpack.c.h.b16 %v100
    %v360 = vunpack.c.l.b16 %v101
    %v361 = vunpack.c.h.b16 %v101
    %v362 = vunpack.c.l.b16 %v102
    %v363 = vunpack.c.h.b16 %v102
    %v364 = vunpack.c.l.b16 %v103
    %v365 = vunpack.c.h.b16 %v103
    %v366 = vunpack.c.l.b16 %v104
    %v367 = vunpack.c.h.b16 %v104
    %v368 = vunpack.c.l.b16 %v105
    %v369 = vunpack.c.h.b16 %v105
    %v370 = vunpack.c.l.b16 %v106
    %v371 = vunpack.c.h.b16 %v106
    %v372 = vunpack.c.l.b16 %v107
    %v373 = vunpack.c.h.b16 %v107
    %v374 = vunpack.c.l.b16 %v108
    %v375 = vunpack.c.h.b16 %v108
    %v376 = vunpack.c.l.b16 %v109
    %v377 = vunpack.c.h.b16 %v109
    %v378 = vunpack.c.l.b16 %v110
    %v379 = vunpack.c.h.b16 %v110
    %v380 = vunpack.c.l.b16 %v111
    %v381 = vunpack.c.h.b16 %v111
    %v382 = vunpack.c.l.b16 %v112
    %v383 = vunpack.c.h.b16 %v112
    %v384 = vunpack.c.l.b16 %v113
    %v385 = vunpack.c.h.b16 %v113
    %v386 = vunpack.c.l.b16 %v114
    %v387 = vunpack.c.h.b16 %v114
    %v388 = vunpack.c.l.b16 %v115
    %v389 = vunpack.c.h.b16 %v115
    %v390 = vunpack.c.l.b16 %v116
    %v391 = vunpack.c.h.b16 %v116
    %v392 = vunpack.c.l.b16 %v117
    %v393 = vunpack.c.h.b16 %v117
    %v394 = vunpack.c.l.b16 %v118
    %v395 = vunpack.c.h.b16 %v118
    %v396 = vunpack.c.l.b16 %v119
    %v397 = vunpack.c.h.b16 %v119
    %v398 = vunpack.c.l.b16 %v120
    %v399 = vunpack.c.h.b16 %v120
    %v400 = vunpack.c.l.b16 %v121
    %v401 = vunpack.c.h.b16 %v121
    %v402 = vunpack.c.l.b16 %v122
    %v403 = vunpack.c.h.b16 %v122
    %v404 = vunpack.c.l.b16 %v123
    %v405 = vunpack.c.h.b16 %v123
    %v406 = vunpack.c.l.b16 %v124
    %v407 = vunpack.c.h.b16 %v124
    %v408 = vunpack.c.l.b16 %v125
    %v409 = vunpack.c.h.b16 %v125
    %v410 = vunpack.c.l.b16 %v126
    %v411 = vunpack.c.h.b16 %v126
    %v412 = vunpack.c.l.b16 %v127
    %v413 = vunpack.c.h.b16 %v127
    %v414 = vunpack.c.l.b16 %v128
    %v415 = vunpack.c.h.b16 %v128
    %v416 = vunpack.c.l.b16 %v129
    %v417 = vunpack.c.h.b16 %v129
    %v418 = vunpack.c.l.b16 %v130
    %v419 = vunpack.c.h.b16 %v130
    %v420 = vunpack.c.l.b16 %v131
    %v421 = vunpack.c.h.b16 %v131
    %v422 = vunpack.c.l.b16 %v132
    %v423 = vunpack.c.h.b16 %v132
    %v424 = vunpack.c.l.b16 %v133
    %v425 = vunpack.c.h.b16 %v133
    %v426 = vunpack.c.l.b16 %v134
    %v427 = vunpack.c.h.b16 %v134
    %v428 = vunpack.c.l.b16 %v135
    %v429 = vunpack.c.h.b16 %v135
    %v430 = vpack.c.b16 %v280, %v270
    %v431 = vpack.c.b16 %v281, %v271
    %v432 = vpack.c.b16 %v282, %v272
    %v433 = vpack.c.b16 %v283, %v273
    %v434 = vpack.c.b16 %v284, %v274
    %v435 = vpack.c.b16 %v285, %v275
    %v436 = vpack.c.b16 %v286, %v276
    %v437 = vpack.c.b16 %v287, %v277
    %v438 = vpack.c.b16 %v288, %v278
    %v439 = vpack.c.b16 %v289, %v279
    %v440 = vpack.c.b16 %v300, %v290
    %v441 = vpack.c.b16 %v301, %v291
    %v442 = vpack.c.b16 %v302, %v292
    %v443 = vpack.c.b16 %v303, %v293
    %v444 = vpack.c.b16 %v304, %v294
    %v445 = vpack.c.b16 %v305, %v295
    %v446 = vpack.c.b16 %v306, %v296
    %v447 = vpack.c.b16 %v307, %v297
    %v448 = vpack.c.b16 %v308, %v298
    %v449 = vpack.c.b16 %v309, %v299
    %v450 = vpack.c.b16 %v320, %v310
    %v451 = vpack.c.b16 %v321, %v311
    %v452 = vpack.c.b16 %v322, %v312
    %v453 = vpack.c.b16 %v323, %v313
    %v454 = vpack.c.b16 %v324, %v314
    %v455 = vpack.c.b16 %v325, %v315
    %v456 = vpack.c.b16 %v326, %v316
    %v457 = vpack.c.b16 %v327, %v317
    %v458 = vpack.c.b16 %v328, %v318
    %v459 = vpack.c.b16 %v329, %v319
    %v460 = vpack.c.b16 %v340, %v330
    %v461 = vpack.c.b16 %v341, %v331
    %v462 = vpack.c.b16 %v342, %v332
    %v463 = vpack.c.b16 %v343, %v333
    %v464 = vpack.c.b16 %v344, %v334
    %v465 = vpack.c.b16 %v345, %v335
    %v466 = vpack.c.b16 %v346, %v336
    %v467 = vpack.c.b16 %v347, %v337
    %v468 = vpack.c.b16 %v348, %v338
    %v469 = vpack.c.b16 %v349, %v339
    %v470 = vpack.c.b16 %v360, %v350
    %v471 = vpack.c.b16 %v361, %v351
    %v472 = vpack.c.b16 %v362, %v352
    %v473 = vpack.c.b16 %v363, %v353
    %v474 = vpack.c.b16 %v364, %v354
    %v475 = vpack.c.b16 %v365, %v355
    %v476 = vpack.c.b16 %v366, %v356
    %v477 = vpack.c.b16 %v367, %v357
    %v478 = vpack.c.b16 %v368, %v358
    %v479 = vpack.c.b16 %v369, %v359
    %v480 = vpack.c.b16 %v380, %v370
    %v481 = vpack.c.b16 %v381, %v371
    %v482 = vpack.c.b16 %v382, %v372
    %v483 = vpack.c.b16 %v383, %v373
    %v484 = vpack.c.b16 %v384, %v374
    %v485 = vpack.c.b16 %v385, %v375
    %v486 = vpack.c.b16 %v386, %v376
    %v487 = vpack.c.b16 %v387, %v377
    %v488 = vpack.c.b16 %v388, %v378
    %v489 = vpack.c.b16 %v389, %v379
    %v490 = vpack.c.b16 %v400, %v390
    %v491 = vpack.c.b16 %v401, %v391
    %v492 = vpack.c.b16 %v402, %v392
    %v493 = vpack.c.b16 %v403, %v393
    %v494 = vpack.c.b16 %v404, %v394
    %v495 = vpack.c.b16 %v405, %v395
    %v496 = vpack.c.b16 %v406, %v396
    %v497 = vpack.c.b16 %v407, %v397
    %v498 = vpack.c.b16 %v408, %v398
    %v499 = vpack.c.b16 %v409, %v399
    %v500 = vpack.c.b16 %v420, %v410
    %v501 = vpack.c.b16 %v421, %v411
    %v502 = vpack.c.b16 %v422, %v412
    %v503 = vpack.c.b16 %v423, %v413
    %v504 = vpack.c.b16 %v424, %v414
    %v505 = vpack.c.b16 %v425, %v415
    %v506 = vpack.c.b16 %v426, %v416
    %v507 = vpack.c.b16 %v427, %v417
    %v508 = vpack.c.b16 %v428, %v418
    %v509 = vpack.c.b16 %v429, %v419
    %590 = vmatprep.subr.bf16.mxu0 %v431
    %591 = vmatpush1.bf16.msra.mxu0 %v430
    %592 = vmatprep.subr.bf16.mxu0 %v441
    %593 = vmatpush1.bf16.msra.mxu0 %v440
    %594 = vmatprep.subr.bf16.mxu0 %v451
    %595 = vmatpush1.bf16.msra.mxu0 %v450
    %596 = vmatprep.subr.bf16.mxu0 %v461
    %597 = vmatpush1.bf16.msra.mxu0 %v460
    %598 = vmatprep.subr.bf16.mxu0 %v471
    %599 = vmatpush1.bf16.msra.mxu0 %v470
    %600 = vmatprep.subr.bf16.mxu0 %v481
    %601 = vmatpush1.bf16.msra.mxu0 %v480
    %602 = vmatprep.subr.bf16.mxu0 %v491
    %603 = vmatpush1.bf16.msra.mxu0 %v490
    %604 = vmatprep.subr.bf16.mxu0 %v501
    %605 = vmatpush1.bf16.msra.mxu0 %v500
    %606 = vmatprep.subr.bf16.mxu0 0
    %607 = vmatpush1.bf16.msra.mxu0 0
    %608 = vmatprep.subr.bf16.mxu0 0
    %609 = vmatpush1.bf16.msra.mxu0 0
    %610 = vmatprep.subr.bf16.mxu0 0
    %611 = vmatpush1.bf16.msra.mxu0 0
    %612 = vmatprep.subr.bf16.mxu0 0
    %613 = vmatpush1.bf16.msra.mxu0 0
    %614 = vmatprep.subr.bf16.mxu0 0
    %615 = vmatpush1.bf16.msra.mxu0 0
    %616 = vmatprep.subr.bf16.mxu0 0
    %617 = vmatpush1.bf16.msra.mxu0 0
    %618 = vmatprep.subr.bf16.mxu0 0
    %619 = vmatpush1.bf16.msra.mxu0 0
    %620 = vmatprep.subr.bf16.mxu0 0
    %621 = vmatpush1.bf16.msra.mxu0 0
    %622 = vmatprep.mubr.bf16.mxu0 0
    %623 = vmatmul.mubr.bf16.gmra.mrb[0].mxu0 %v55
    %v624 = vpop.f32.mrb[0].mxu0
    %v625 = vadd.f32 %v143, %v624
    %v626 = vpop.f32.mrb[0].mxu0
    %v627 = vadd.f32 %v147, %v626
    %v628 = vpop.f32.mrb[0].mxu0
    %v629 = vpop.f32.mrb[0].mxu0
    %630 = vdwg.mxu0
    %631 = vmatprep.subr.bf16.mxu0 %v433
    %632 = vmatpush1.bf16.msra.mxu0 %v432
    %633 = vmatprep.subr.bf16.mxu0 %v443
    %634 = vmatpush1.bf16.msra.mxu0 %v442
    %635 = vmatprep.subr.bf16.mxu0 %v453
    %636 = vmatpush1.bf16.msra.mxu0 %v452
    %637 = vmatprep.subr.bf16.mxu0 %v463
    %638 = vmatpush1.bf16.msra.mxu0 %v462
    %639 = vmatprep.subr.bf16.mxu0 %v473
    %640 = vmatpush1.bf16.msra.mxu0 %v472
    %641 = vmatprep.subr.bf16.mxu0 %v483
    %642 = vmatpush1.bf16.msra.mxu0 %v482
    %643 = vmatprep.subr.bf16.mxu0 %v493
    %644 = vmatpush1.bf16.msra.mxu0 %v492
    %645 = vmatprep.subr.bf16.mxu0 %v503
    %646 = vmatpush1.bf16.msra.mxu0 %v502
    %647 = vmatprep.subr.bf16.mxu0 0
    %648 = vmatpush1.bf16.msra.mxu0 0
    %649 = vmatprep.subr.bf16.mxu0 0
    %650 = vmatpush1.bf16.msra.mxu0 0
    %651 = vmatprep.subr.bf16.mxu0 0
    %652 = vmatpush1.bf16.msra.mxu0 0
    %653 = vmatprep.subr.bf16.mxu0 0
    %654 = vmatpush1.bf16.msra.mxu0 0
    %655 = vmatprep.subr.bf16.mxu0 0
    %656 = vmatpush1.bf16.msra.mxu0 0
    %657 = vmatprep.subr.bf16.mxu0 0
    %658 = vmatpush1.bf16.msra.mxu0 0
    %659 = vmatprep.subr.bf16.mxu0 0
    %660 = vmatpush1.bf16.msra.mxu0 0
    %661 = vmatprep.subr.bf16.mxu0 0
    %662 = vmatpush1.bf16.msra.mxu0 0
    %663 = vmatprep.mubr.bf16.mxu0 0
    %664 = vmatmul.mubr.bf16.gmra.mrb[0].mxu0 %v55
    %v665 = vpop.f32.mrb[0].mxu0
    %v666 = vadd.f32 %v151, %v665
    %v667 = vpop.f32.mrb[0].mxu0
    %v668 = vadd.f32 %v155, %v667
    %v669 = vpop.f32.mrb[0].mxu0
    %v670 = vpop.f32.mrb[0].mxu0
    %671 = vdwg.mxu0
    %672 = vmatprep.subr.bf16.mxu0 %v435
    %673 = vmatpush1.bf16.msra.mxu0 %v434
    %674 = vmatprep.subr.bf16.mxu0 %v445
    %675 = vmatpush1.bf16.msra.mxu0 %v444
    %676 = vmatprep.subr.bf16.mxu0 %v455
    %677 = vmatpush1.bf16.msra.mxu0 %v454
    %678 = vmatprep.subr.bf16.mxu0 %v465
    %679 = vmatpush1.bf16.msra.mxu0 %v464
    %680 = vmatprep.subr.bf16.mxu0 %v475
    %681 = vmatpush1.bf16.msra.mxu0 %v474
    %682 = vmatprep.subr.bf16.mxu0 %v485
    %683 = vmatpush1.bf16.msra.mxu0 %v484
    %684 = vmatprep.subr.bf16.mxu0 %v495
    %685 = vmatpush1.bf16.msra.mxu0 %v494
    %686 = vmatprep.subr.bf16.mxu0 %v505
    %687 = vmatpush1.bf16.msra.mxu0 %v504
    %688 = vmatprep.subr.bf16.mxu0 0
    %689 = vmatpush1.bf16.msra.mxu0 0
    %690 = vmatprep.subr.bf16.mxu0 0
    %691 = vmatpush1.bf16.msra.mxu0 0
    %692 = vmatprep.subr.bf16.mxu0 0
    %693 = vmatpush1.bf16.msra.mxu0 0
    %694 = vmatprep.subr.bf16.mxu0 0
    %695 = vmatpush1.bf16.msra.mxu0 0
    %696 = vmatprep.subr.bf16.mxu0 0
    %697 = vmatpush1.bf16.msra.mxu0 0
    %698 = vmatprep.subr.bf16.mxu0 0
    %699 = vmatpush1.bf16.msra.mxu0 0
    %700 = vmatprep.subr.bf16.mxu0 0
    %701 = vmatpush1.bf16.msra.mxu0 0
    %702 = vmatprep.subr.bf16.mxu0 0
    %703 = vmatpush1.bf16.msra.mxu0 0
    %704 = vmatprep.mubr.bf16.mxu0 0
    %705 = vmatmul.mubr.bf16.gmra.mrb[0].mxu0 %v55
    %v706 = vpop.f32.mrb[0].mxu0
    %v707 = vadd.f32 %v159, %v706
    %v708 = vpop.f32.mrb[0].mxu0
    %v709 = vadd.f32 %v163, %v708
    %v710 = vpop.f32.mrb[0].mxu0
    %v711 = vpop.f32.mrb[0].mxu0
    %712 = vdwg.mxu0
    %713 = vmatprep.subr.bf16.mxu0 %v437
    %714 = vmatpush1.bf16.msra.mxu0 %v436
    %715 = vmatprep.subr.bf16.mxu0 %v447
    %716 = vmatpush1.bf16.msra.mxu0 %v446
    %717 = vmatprep.subr.bf16.mxu0 %v457
    %718 = vmatpush1.bf16.msra.mxu0 %v456
    %719 = vmatprep.subr.bf16.mxu0 %v467
    %720 = vmatpush1.bf16.msra.mxu0 %v466
    %721 = vmatprep.subr.bf16.mxu0 %v477
    %722 = vmatpush1.bf16.msra.mxu0 %v476
    %723 = vmatprep.subr.bf16.mxu0 %v487
    %724 = vmatpush1.bf16.msra.mxu0 %v486
    %725 = vmatprep.subr.bf16.mxu0 %v497
    %726 = vmatpush1.bf16.msra.mxu0 %v496
    %727 = vmatprep.subr.bf16.mxu0 %v507
    %728 = vmatpush1.bf16.msra.mxu0 %v506
    %729 = vmatprep.subr.bf16.mxu0 0
    %730 = vmatpush1.bf16.msra.mxu0 0
    %731 = vmatprep.subr.bf16.mxu0 0
    %732 = vmatpush1.bf16.msra.mxu0 0
    %733 = vmatprep.subr.bf16.mxu0 0
    %734 = vmatpush1.bf16.msra.mxu0 0
    %735 = vmatprep.subr.bf16.mxu0 0
    %736 = vmatpush1.bf16.msra.mxu0 0
    %737 = vmatprep.subr.bf16.mxu0 0
    %738 = vmatpush1.bf16.msra.mxu0 0
    %739 = vmatprep.subr.bf16.mxu0 0
    %740 = vmatpush1.bf16.msra.mxu0 0
    %741 = vmatprep.subr.bf16.mxu0 0
    %742 = vmatpush1.bf16.msra.mxu0 0
    %743 = vmatprep.subr.bf16.mxu0 0
    %744 = vmatpush1.bf16.msra.mxu0 0
    %745 = vmatprep.mubr.bf16.mxu0 0
    %746 = vmatmul.mubr.bf16.gmra.mrb[0].mxu0 %v55
    %v747 = vpop.f32.mrb[0].mxu0
    %v748 = vadd.f32 %v167, %v747
    %v749 = vpop.f32.mrb[0].mxu0
    %v750 = vadd.f32 %v171, %v749
    %v751 = vpop.f32.mrb[0].mxu0
    %v752 = vpop.f32.mrb[0].mxu0
    %753 = vdwg.mxu0
    %754 = vmatprep.subr.bf16.mxu0 %v439
    %755 = vmatpush1.bf16.msra.mxu0 %v438
    %756 = vmatprep.subr.bf16.mxu0 %v449
    %757 = vmatpush1.bf16.msra.mxu0 %v448
    %758 = vmatprep.subr.bf16.mxu0 %v459
    %759 = vmatpush1.bf16.msra.mxu0 %v458
    %760 = vmatprep.subr.bf16.mxu0 %v469
    %761 = vmatpush1.bf16.msra.mxu0 %v468
    %762 = vmatprep.subr.bf16.mxu0 %v479
    %763 = vmatpush1.bf16.msra.mxu0 %v478
    %764 = vmatprep.subr.bf16.mxu0 %v489
    %765 = vmatpush1.bf16.msra.mxu0 %v488
    %766 = vmatprep.subr.bf16.mxu0 %v499
    %767 = vmatpush1.bf16.msra.mxu0 %v498
    %768 = vmatprep.subr.bf16.mxu0 %v509
    %769 = vmatpush1.bf16.msra.mxu0 %v508
    %770 = vmatprep.subr.bf16.mxu0 0
    %771 = vmatpush1.bf16.msra.mxu0 0
    %772 = vmatprep.subr.bf16.mxu0 0
    %773 = vmatpush1.bf16.msra.mxu0 0
    %774 = vmatprep.subr.bf16.mxu0 0
    %775 = vmatpush1.bf16.msra.mxu0 0
    %776 = vmatprep.subr.bf16.mxu0 0
    %777 = vmatpush1.bf16.msra.mxu0 0
    %778 = vmatprep.subr.bf16.mxu0 0
    %779 = vmatpush1.bf16.msra.mxu0 0
    %780 = vmatprep.subr.bf16.mxu0 0
    %781 = vmatpush1.bf16.msra.mxu0 0
    %782 = vmatprep.subr.bf16.mxu0 0
    %783 = vmatpush1.bf16.msra.mxu0 0
    %784 = vmatprep.subr.bf16.mxu0 0
    %785 = vmatpush1.bf16.msra.mxu0 0
    %786 = vmatprep.mubr.bf16.mxu0 0
    %787 = vmatmul.mubr.bf16.gmra.mrb[0].mxu0 %v55
    %v788 = vpop.f32.mrb[0].mxu0
    %v789 = vadd.f32 %v175, %v788
    %v790 = vpop.f32.mrb[0].mxu0
    %v791 = vadd.f32 %v179, %v790
    %v792 = vpop.f32.mrb[0].mxu0
    %v793 = vpop.f32.mrb[0].mxu0
    %794 = vdwg.mxu0
    %vm795 = vcmask 1041408
    %v796 = vsel %vm795, %v625, 0.0
    %v797 = vrot.slane %v796, 4
    %v798 = vadd.f32 %v796, %v797
    %v799 = vrot.slane %v798, 2
    %v800 = vadd.f32 %v798, %v799
    %v801 = vrot.slane %v800, 1
    %v802 = vadd.f32 %v800, %v801
    %v803 = vsel %vm795, %v627, 0.0
    %v804 = vrot.slane %v803, 4
    %v805 = vadd.f32 %v803, %v804
    %v806 = vrot.slane %v805, 2
    %v807 = vadd.f32 %v805, %v806
    %v808 = vrot.slane %v807, 1
    %v809 = vadd.f32 %v807, %v808
    %v810 = vsel %vm795, %v666, 0.0
    %v811 = vrot.slane %v810, 4
    %v812 = vadd.f32 %v810, %v811
    %v813 = vrot.slane %v812, 2
    %v814 = vadd.f32 %v812, %v813
    %v815 = vrot.slane %v814, 1
    %v816 = vadd.f32 %v814, %v815
    %v817 = vsel %vm795, %v668, 0.0
    %v818 = vrot.slane %v817, 4
    %v819 = vadd.f32 %v817, %v818
    %v820 = vrot.slane %v819, 2
    %v821 = vadd.f32 %v819, %v820
    %v822 = vrot.slane %v821, 1
    %v823 = vadd.f32 %v821, %v822
    %v824 = vsel %vm795, %v707, 0.0
    %v825 = vrot.slane %v824, 4
    %v826 = vadd.f32 %v824, %v825
    %v827 = vrot.slane %v826, 2
    %v828 = vadd.f32 %v826, %v827
    %v829 = vrot.slane %v828, 1
    %v830 = vadd.f32 %v828, %v829
    %v831 = vsel %vm795, %v709, 0.0
    %v832 = vrot.slane %v831, 4
    %v833 = vadd.f32 %v831, %v832
    %v834 = vrot.slane %v833, 2
    %v835 = vadd.f32 %v833, %v834
    %v836 = vrot.slane %v835, 1
    %v837 = vadd.f32 %v835, %v836
    %v838 = vsel %vm795, %v748, 0.0
    %v839 = vrot.slane %v838, 4
    %v840 = vadd.f32 %v838, %v839
    %v841 = vrot.slane %v840, 2
    %v842 = vadd.f32 %v840, %v841
    %v843 = vrot.slane %v842, 1
    %v844 = vadd.f32 %v842, %v843
    %v845 = vsel %vm795, %v750, 0.0
    %v846 = vrot.slane %v845, 4
    %v847 = vadd.f32 %v845, %v846
    %v848 = vrot.slane %v847, 2
    %v849 = vadd.f32 %v847, %v848
    %v850 = vrot.slane %v849, 1
    %v851 = vadd.f32 %v849, %v850
    %v852 = vsel %vm795, %v789, 0.0
    %v853 = vrot.slane %v852, 4
    %v854 = vadd.f32 %v852, %v853
    %v855 = vrot.slane %v854, 2
    %v856 = vadd.f32 %v854, %v855
    %v857 = vrot.slane %v856, 1
    %v858 = vadd.f32 %v856, %v857
    %v859 = vsel %vm795, %v791, 0.0
    %v860 = vrot.slane %v859, 4
    %v861 = vadd.f32 %v859, %v860
    %v862 = vrot.slane %v861, 2
    %v863 = vadd.f32 %v861, %v862
    %v864 = vrot.slane %v863, 1
    %v865 = vadd.f32 %v863, %v864
    %v866 = vrcp.pop 2.0
    %v867 = vmul.f32 %v802, %v866
    %v868 = vmul.f32 %v809, %v866
    %v869 = vmul.f32 %v816, %v866
    %v870 = vmul.f32 %v823, %v866
    %v871 = vmul.f32 %v830, %v866
    %v872 = vmul.f32 %v837, %v866
    %v873 = vmul.f32 %v844, %v866
    %v874 = vmul.f32 %v851, %v866
    %v875 = vmul.f32 %v858, %v866
    %v876 = vmul.f32 %v865, %v866
    %v877 = vsub.f32 %v625, %v867
    %v878 = vsub.f32 %v627, %v868
    %v879 = vsub.f32 %v666, %v869
    %v880 = vsub.f32 %v668, %v870
    %v881 = vsub.f32 %v707, %v871
    %v882 = vsub.f32 %v709, %v872
    %v883 = vsub.f32 %v748, %v873
    %v884 = vsub.f32 %v750, %v874
    %v885 = vsub.f32 %v789, %v875
    %v886 = vsub.f32 %v791, %v876
    %v887 = vmul.f32 %v877, %v877
    %v888 = vmul.f32 %v878, %v878
    %v889 = vmul.f32 %v879, %v879
    %v890 = vmul.f32 %v880, %v880
    %v891 = vmul.f32 %v881, %v881
    %v892 = vmul.f32 %v882, %v882
    %v893 = vmul.f32 %v883, %v883
    %v894 = vmul.f32 %v884, %v884
    %v895 = vmul.f32 %v885, %v885
    %v896 = vmul.f32 %v886, %v886
    %v897 = vsel %vm795, %v887, 0.0
    %v898 = vrot.slane %v897, 4
    %v899 = vadd.f32 %v897, %v898
    %v900 = vrot.slane %v899, 2
    %v901 = vadd.f32 %v899, %v900
    %v902 = vrot.slane %v901, 1
    %v903 = vadd.f32 %v901, %v902
    %v904 = vsel %vm795, %v888, 0.0
    %v905 = vrot.slane %v904, 4
    %v906 = vadd.f32 %v904, %v905
    %v907 = vrot.slane %v906, 2
    %v908 = vadd.f32 %v906, %v907
    %v909 = vrot.slane %v908, 1
    %v910 = vadd.f32 %v908, %v909
    %v911 = vsel %vm795, %v889, 0.0
    %v912 = vrot.slane %v911, 4
    %v913 = vadd.f32 %v911, %v912
    %v914 = vrot.slane %v913, 2
    %v915 = vadd.f32 %v913, %v914
    %v916 = vrot.slane %v915, 1
    %v917 = vadd.f32 %v915, %v916
    %v918 = vsel %vm795, %v890, 0.0
    %v919 = vrot.slane %v918, 4
    %v920 = vadd.f32 %v918, %v919
    %v921 = vrot.slane %v920, 2
    %v922 = vadd.f32 %v920, %v921
    %v923 = vrot.slane %v922, 1
    %v924 = vadd.f32 %v922, %v923
    %v925 = vsel %vm795, %v891, 0.0
    %v926 = vrot.slane %v925, 4
    %v927 = vadd.f32 %v925, %v926
    %v928 = vrot.slane %v927, 2
    %v929 = vadd.f32 %v927, %v928
    %v930 = vrot.slane %v929, 1
    %v931 = vadd.f32 %v929, %v930
    %v932 = vsel %vm795, %v892, 0.0
    %v933 = vrot.slane %v932, 4
    %v934 = vadd.f32 %v932, %v933
    %v935 = vrot.slane %v934, 2
    %v936 = vadd.f32 %v934, %v935
    %v937 = vrot.slane %v936, 1
    %v938 = vadd.f32 %v936, %v937
    %v939 = vsel %vm795, %v893, 0.0
    %v940 = vrot.slane %v939, 4
    %v941 = vadd.f32 %v939, %v940
    %v942 = vrot.slane %v941, 2
    %v943 = vadd.f32 %v941, %v942
    %v944 = vrot.slane %v943, 1
    %v945 = vadd.f32 %v943, %v944
    %v946 = vsel %vm795, %v894, 0.0
    %v947 = vrot.slane %v946, 4
    %v948 = vadd.f32 %v946, %v947
    %v949 = vrot.slane %v948, 2
    %v950 = vadd.f32 %v948, %v949
    %v951 = vrot.slane %v950, 1
    %v952 = vadd.f32 %v950, %v951
    %v953 = vsel %vm795, %v895, 0.0
    %v954 = vrot.slane %v953, 4
    %v955 = vadd.f32 %v953, %v954
    %v956 = vrot.slane %v955, 2
    %v957 = vadd.f32 %v955, %v956
    %v958 = vrot.slane %v957, 1
    %v959 = vadd.f32 %v957, %v958
    %v960 = vsel %vm795, %v896, 0.0
    %v961 = vrot.slane %v960, 4
    %v962 = vadd.f32 %v960, %v961
    %v963 = vrot.slane %v962, 2
    %v964 = vadd.f32 %v962, %v963
    %v965 = vrot.slane %v964, 1
    %v966 = vadd.f32 %v964, %v965
    %v967 = vmul.f32 %v903, %v866
    %v968 = vmul.f32 %v910, %v866
    %v969 = vmul.f32 %v917, %v866
    %v970 = vmul.f32 %v924, %v866
    %v971 = vmul.f32 %v931, %v866
    %v972 = vmul.f32 %v938, %v866
    %v973 = vmul.f32 %v945, %v866
    %v974 = vmul.f32 %v952, %v866
    %v975 = vmul.f32 %v959, %v866
    %v976 = vmul.f32 %v966, %v866
    %v977 = vadd.f32 %v967, 1e-05
    %v978 = vadd.f32 %v968, 1e-05
    %v979 = vadd.f32 %v969, 1e-05
    %v980 = vadd.f32 %v970, 1e-05
    %v981 = vadd.f32 %v971, 1e-05
    %v982 = vadd.f32 %v972, 1e-05
    %v983 = vadd.f32 %v973, 1e-05
    %v984 = vadd.f32 %v974, 1e-05
    %v985 = vadd.f32 %v975, 1e-05
    %v986 = vadd.f32 %v976, 1e-05
    %v987 = vrsqrt.pop %v977
    %v988 = vrsqrt.pop %v978
    %v989 = vrsqrt.pop %v979
    %v990 = vrsqrt.pop %v980
    %v991 = vrsqrt.pop %v981
    %v992 = vrsqrt.pop %v982
    %v993 = vrsqrt.pop %v983
    %v994 = vrsqrt.pop %v984
    %v995 = vrsqrt.pop %v985
    %v996 = vrsqrt.pop %v986
    %v997 = vmul.f32 %v877, %v987
    %v998 = vmul.f32 %v878, %v988
    %v999 = vmul.f32 %v879, %v989
    %v1000 = vmul.f32 %v880, %v990
    %v1001 = vmul.f32 %v881, %v991
    %v1002 = vmul.f32 %v882, %v992
    %v1003 = vmul.f32 %v883, %v993
    %v1004 = vmul.f32 %v884, %v994
    %v1005 = vmul.f32 %v885, %v995
    %v1006 = vmul.f32 %v886, %v996
    %v1007 = vld [vmem:[%s3] sm:$0xff]
    %v1008 = vld [vmem:[%s3 + $0x8] sm:$0x3]
    %v1011 = vlaneseq
    %v1012 = vshrl.u32 %v1011, 7
    %v1013 = vsub.s32 0, %v1012
    %v1014 = vrot.slane %v1007, %v1013
    %v1015 = vlaneseq
    %v1016 = vshrl.u32 %v1015, 7
    %v1017 = vsub.s32 1, %v1016
    %v1018 = vrot.slane %v1007, %v1017
    %v1019 = vlaneseq
    %v1020 = vshrl.u32 %v1019, 7
    %v1021 = vsub.s32 2, %v1020
    %v1022 = vrot.slane %v1007, %v1021
    %v1023 = vlaneseq
    %v1024 = vshrl.u32 %v1023, 7
    %v1025 = vsub.s32 3, %v1024
    %v1026 = vrot.slane %v1007, %v1025
    %v1027 = vlaneseq
    %v1028 = vshrl.u32 %v1027, 7
    %v1029 = vsub.s32 4, %v1028
    %v1030 = vrot.slane %v1007, %v1029
    %v1031 = vlaneseq
    %v1032 = vshrl.u32 %v1031, 7
    %v1033 = vsub.s32 5, %v1032
    %v1034 = vrot.slane %v1007, %v1033
    %v1035 = vlaneseq
    %v1036 = vshrl.u32 %v1035, 7
    %v1037 = vsub.s32 6, %v1036
    %v1038 = vrot.slane %v1007, %v1037
    %v1039 = vlaneseq
    %v1040 = vshrl.u32 %v1039, 7
    %v1041 = vsub.s32 7, %v1040
    %v1042 = vrot.slane %v1007, %v1041
    %v1043 = vlaneseq
    %v1044 = vshrl.u32 %v1043, 7
    %v1045 = vsub.s32 0, %v1044
    %v1046 = vrot.slane %v1008, %v1045
    %v1047 = vlaneseq
    %v1048 = vshrl.u32 %v1047, 7
    %v1049 = vsub.s32 1, %v1048
    %v1050 = vrot.slane %v1008, %v1049
    %v1061 = vmul.f32 %v997, %v1014
    %v1062 = vmul.f32 %v998, %v1018
    %v1063 = vmul.f32 %v999, %v1022
    %v1064 = vmul.f32 %v1000, %v1026
    %v1065 = vmul.f32 %v1001, %v1030
    %v1066 = vmul.f32 %v1002, %v1034
    %v1067 = vmul.f32 %v1003, %v1038
    %v1068 = vmul.f32 %v1004, %v1042
    %v1069 = vmul.f32 %v1005, %v1046
    %v1070 = vmul.f32 %v1006, %v1050
    %v1071 = vld [vmem:[%s4] sm:$0xff]
    %v1072 = vld [vmem:[%s4 + $0x8] sm:$0x3]
    %v1075 = vlaneseq
    %v1076 = vshrl.u32 %v1075, 7
    %v1077 = vsub.s32 0, %v1076
    %v1078 = vrot.slane %v1071, %v1077
    %v1079 = vlaneseq
    %v1080 = vshrl.u32 %v1079, 7
    %v1081 = vsub.s32 1, %v1080
    %v1082 = vrot.slane %v1071, %v1081
    %v1083 = vlaneseq
    %v1084 = vshrl.u32 %v1083, 7
    %v1085 = vsub.s32 2, %v1084
    %v1086 = vrot.slane %v1071, %v1085
    %v1087 = vlaneseq
    %v1088 = vshrl.u32 %v1087, 7
    %v1089 = vsub.s32 3, %v1088
    %v1090 = vrot.slane %v1071, %v1089
    %v1091 = vlaneseq
    %v1092 = vshrl.u32 %v1091, 7
    %v1093 = vsub.s32 4, %v1092
    %v1094 = vrot.slane %v1071, %v1093
    %v1095 = vlaneseq
    %v1096 = vshrl.u32 %v1095, 7
    %v1097 = vsub.s32 5, %v1096
    %v1098 = vrot.slane %v1071, %v1097
    %v1099 = vlaneseq
    %v1100 = vshrl.u32 %v1099, 7
    %v1101 = vsub.s32 6, %v1100
    %v1102 = vrot.slane %v1071, %v1101
    %v1103 = vlaneseq
    %v1104 = vshrl.u32 %v1103, 7
    %v1105 = vsub.s32 7, %v1104
    %v1106 = vrot.slane %v1071, %v1105
    %v1107 = vlaneseq
    %v1108 = vshrl.u32 %v1107, 7
    %v1109 = vsub.s32 0, %v1108
    %v1110 = vrot.slane %v1072, %v1109
    %v1111 = vlaneseq
    %v1112 = vshrl.u32 %v1111, 7
    %v1113 = vsub.s32 1, %v1112
    %v1114 = vrot.slane %v1072, %v1113
    %v1125 = vadd.f32 %v1061, %v1078
    %v1126 = vadd.f32 %v1062, %v1082
    %v1127 = vadd.f32 %v1063, %v1086
    %v1128 = vadd.f32 %v1064, %v1090
    %v1129 = vadd.f32 %v1065, %v1094
    %v1130 = vadd.f32 %v1066, %v1098
    %v1131 = vadd.f32 %v1067, %v1102
    %v1132 = vadd.f32 %v1068, %v1106
    %v1133 = vadd.f32 %v1069, %v1110
    %v1134 = vadd.f32 %v1070, %v1114
    %v1135 = vmax.f32 %v1125, 0.0
    %v1136 = vmax.f32 %v1126, 0.0
    %v1137 = vmax.f32 %v1127, 0.0
    %v1138 = vmax.f32 %v1128, 0.0
    %v1139 = vmax.f32 %v1129, 0.0
    %v1140 = vmax.f32 %v1130, 0.0
    %v1141 = vmax.f32 %v1131, 0.0
    %v1142 = vmax.f32 %v1132, 0.0
    %v1143 = vmax.f32 %v1133, 0.0
    %v1144 = vmax.f32 %v1134, 0.0
    %v1145 = vpack.c.bf16 %v1135, %v1135
    %v1146 = vpack.c.bf16 %v1136, %v1136
    %v1147 = vpack.c.bf16 %v1137, %v1137
    %v1148 = vpack.c.bf16 %v1138, %v1138
    %v1149 = vpack.c.bf16 %v1139, %v1139
    %v1150 = vpack.c.bf16 %v1140, %v1140
    %v1151 = vpack.c.bf16 %v1141, %v1141
    %v1152 = vpack.c.bf16 %v1142, %v1142
    %v1153 = vpack.c.bf16 %v1143, %v1143
    %v1154 = vpack.c.bf16 %v1144, %v1144
    %v1155 = vld [vmem:[%s5] sm:$0xf]
    %v1156 = vld [vmem:[%s5 + $0x4] sm:$0xf]
    %v1157 = vld [vmem:[%s5 + $0x8] sm:$0xf]
    %v1158 = vld [vmem:[%s5 + $0xc] sm:$0xf]
    %v1159 = vld [vmem:[%s5 + $0x10] sm:$0xf]
    %v1160 = vld [vmem:[%s5 + $0x14] sm:$0xf]
    %v1161 = vld [vmem:[%s5 + $0x18] sm:$0xf]
    %v1162 = vld [vmem:[%s5 + $0x1c] sm:$0xf]
    %v1163 = vld [vmem:[%s5 + $0x20] sm:$0xf]
    %v1164 = vld [vmem:[%s5 + $0x24] sm:$0xf]
    %v1165 = vld [vmem:[%s5 + $0x28] sm:$0xf]
    %v1166 = vld [vmem:[%s5 + $0x2c] sm:$0xf]
    %v1167 = vld [vmem:[%s5 + $0x30] sm:$0xf]
    %v1168 = vld [vmem:[%s5 + $0x34] sm:$0xf]
    %v1169 = vld [vmem:[%s5 + $0x38] sm:$0xf]
    %v1170 = vld [vmem:[%s5 + $0x3c] sm:$0xf]
    %v1171 = vld [vmem:[%s5 + $0x40] sm:$0xf]
    %v1172 = vld [vmem:[%s5 + $0x44] sm:$0xf]
    %v1173 = vld [vmem:[%s5 + $0x48] sm:$0xf]
    %v1174 = vld [vmem:[%s5 + $0x4c] sm:$0xf]
    %v1175 = vld [vmem:[%s5 + $0x50] sm:$0xf]
    %v1176 = vld [vmem:[%s5 + $0x54] sm:$0xf]
    %v1177 = vld [vmem:[%s5 + $0x58] sm:$0xf]
    %v1178 = vld [vmem:[%s5 + $0x5c] sm:$0xf]
    %v1179 = vld [vmem:[%s5 + $0x60] sm:$0xf]
    %v1180 = vld [vmem:[%s5 + $0x64] sm:$0xf]
    %v1181 = vld [vmem:[%s5 + $0x68] sm:$0xf]
    %v1182 = vld [vmem:[%s5 + $0x6c] sm:$0xf]
    %v1183 = vld [vmem:[%s5 + $0x70] sm:$0xf]
    %v1184 = vld [vmem:[%s5 + $0x74] sm:$0xf]
    %v1185 = vld [vmem:[%s5 + $0x78] sm:$0xf]
    %v1186 = vld [vmem:[%s5 + $0x7c] sm:$0xf]
    %v1187 = vld [vmem:[%s9] sm:$0x1]
    %v1189 = vlaneseq
    %v1190 = vshrl.u32 %v1189, 7
    %v1191 = vsub.s32 0, %v1190
    %v1192 = vrot.slane %v1187, %v1191
    %v1226 = vunpack.c.l.b16 %v1155
    %v1227 = vunpack.c.l.b16 %v1156
    %v1228 = vunpack.c.l.b16 %v1157
    %v1229 = vunpack.c.l.b16 %v1158
    %v1230 = vunpack.c.l.b16 %v1159
    %v1231 = vunpack.c.l.b16 %v1160
    %v1232 = vunpack.c.l.b16 %v1161
    %v1233 = vunpack.c.l.b16 %v1162
    %v1234 = vunpack.c.l.b16 %v1163
    %v1235 = vunpack.c.l.b16 %v1164
    %v1236 = vunpack.c.l.b16 %v1165
    %v1237 = vunpack.c.l.b16 %v1166
    %v1238 = vunpack.c.l.b16 %v1167
    %v1239 = vunpack.c.l.b16 %v1168
    %v1240 = vunpack.c.l.b16 %v1169
    %v1241 = vunpack.c.l.b16 %v1170
    %v1242 = vunpack.c.l.b16 %v1171
    %v1243 = vunpack.c.l.b16 %v1172
    %v1244 = vunpack.c.l.b16 %v1173
    %v1245 = vunpack.c.l.b16 %v1174
    %v1246 = vunpack.c.l.b16 %v1175
    %v1247 = vunpack.c.l.b16 %v1176
    %v1248 = vunpack.c.l.b16 %v1177
    %v1249 = vunpack.c.l.b16 %v1178
    %v1250 = vunpack.c.l.b16 %v1179
    %v1251 = vunpack.c.l.b16 %v1180
    %v1252 = vunpack.c.l.b16 %v1181
    %v1253 = vunpack.c.l.b16 %v1182
    %v1254 = vunpack.c.l.b16 %v1183
    %v1255 = vunpack.c.l.b16 %v1184
    %v1256 = vunpack.c.l.b16 %v1185
    %v1257 = vunpack.c.l.b16 %v1186
    %v1258 = vpack.c.b16 %v1227, %v1226
    %v1259 = vpack.c.b16 %v1229, %v1228
    %v1260 = vpack.c.b16 %v1231, %v1230
    %v1261 = vpack.c.b16 %v1233, %v1232
    %v1262 = vpack.c.b16 %v1235, %v1234
    %v1263 = vpack.c.b16 %v1237, %v1236
    %v1264 = vpack.c.b16 %v1239, %v1238
    %v1265 = vpack.c.b16 %v1241, %v1240
    %v1266 = vpack.c.b16 %v1243, %v1242
    %v1267 = vpack.c.b16 %v1245, %v1244
    %v1268 = vpack.c.b16 %v1247, %v1246
    %v1269 = vpack.c.b16 %v1249, %v1248
    %v1270 = vpack.c.b16 %v1251, %v1250
    %v1271 = vpack.c.b16 %v1253, %v1252
    %v1272 = vpack.c.b16 %v1255, %v1254
    %v1273 = vpack.c.b16 %v1257, %v1256
    %1290 = vmatprep.subr.bf16.mxu0 0
    %1291 = vmatpush1.bf16.msra.mxu0 %v1258
    %1292 = vmatprep.subr.bf16.mxu0 0
    %1293 = vmatpush1.bf16.msra.mxu0 %v1259
    %1294 = vmatprep.subr.bf16.mxu0 0
    %1295 = vmatpush1.bf16.msra.mxu0 %v1260
    %1296 = vmatprep.subr.bf16.mxu0 0
    %1297 = vmatpush1.bf16.msra.mxu0 %v1261
    %1298 = vmatprep.subr.bf16.mxu0 0
    %1299 = vmatpush1.bf16.msra.mxu0 %v1262
    %1300 = vmatprep.subr.bf16.mxu0 0
    %1301 = vmatpush1.bf16.msra.mxu0 %v1263
    %1302 = vmatprep.subr.bf16.mxu0 0
    %1303 = vmatpush1.bf16.msra.mxu0 %v1264
    %1304 = vmatprep.subr.bf16.mxu0 0
    %1305 = vmatpush1.bf16.msra.mxu0 %v1265
    %1306 = vmatprep.subr.bf16.mxu0 0
    %1307 = vmatpush1.bf16.msra.mxu0 %v1266
    %1308 = vmatprep.subr.bf16.mxu0 0
    %1309 = vmatpush1.bf16.msra.mxu0 %v1267
    %1310 = vmatprep.subr.bf16.mxu0 0
    %1311 = vmatpush1.bf16.msra.mxu0 %v1268
    %1312 = vmatprep.subr.bf16.mxu0 0
    %1313 = vmatpush1.bf16.msra.mxu0 %v1269
    %1314 = vmatprep.subr.bf16.mxu0 0
    %1315 = vmatpush1.bf16.msra.mxu0 %v1270
    %1316 = vmatprep.subr.bf16.mxu0 0
    %1317 = vmatpush1.bf16.msra.mxu0 %v1271
    %1318 = vmatprep.subr.bf16.mxu0 0
    %1319 = vmatpush1.bf16.msra.mxu0 %v1272
    %1320 = vmatprep.subr.bf16.mxu0 0
    %1321 = vmatpush1.bf16.msra.mxu0 %v1273
    %1322 = vmatprep.mubr.bf16.mxu0 %v1146
    %1323 = vmatmul.mubr.bf16.gmra.mrb[0].mxu0 %v1145
    %v1324 = vpop.f32.mrb[0].mxu0
    %v1325 = vadd.f32 %v1192, %v1324
    %v1326 = vpop.f32.mrb[0].mxu0
    %v1327 = vpop.f32.mrb[0].mxu0
    %v1328 = vpop.f32.mrb[0].mxu0
    %1329 = vdwg.mxu0
    %v1330 = vld [vmem:[%s6] sm:$0xf]
    %v1331 = vld [vmem:[%s6 + $0x4] sm:$0xf]
    %v1332 = vld [vmem:[%s6 + $0x8] sm:$0xf]
    %v1333 = vld [vmem:[%s6 + $0xc] sm:$0xf]
    %v1334 = vld [vmem:[%s6 + $0x10] sm:$0xf]
    %v1335 = vld [vmem:[%s6 + $0x14] sm:$0xf]
    %v1336 = vld [vmem:[%s6 + $0x18] sm:$0xf]
    %v1337 = vld [vmem:[%s6 + $0x1c] sm:$0xf]
    %v1338 = vld [vmem:[%s6 + $0x20] sm:$0xf]
    %v1339 = vld [vmem:[%s6 + $0x24] sm:$0xf]
    %v1340 = vld [vmem:[%s6 + $0x28] sm:$0xf]
    %v1341 = vld [vmem:[%s6 + $0x2c] sm:$0xf]
    %v1342 = vld [vmem:[%s6 + $0x30] sm:$0xf]
    %v1343 = vld [vmem:[%s6 + $0x34] sm:$0xf]
    %v1344 = vld [vmem:[%s6 + $0x38] sm:$0xf]
    %v1345 = vld [vmem:[%s6 + $0x3c] sm:$0xf]
    %v1346 = vld [vmem:[%s6 + $0x40] sm:$0xf]
    %v1347 = vld [vmem:[%s6 + $0x44] sm:$0xf]
    %v1348 = vld [vmem:[%s6 + $0x48] sm:$0xf]
    %v1349 = vld [vmem:[%s6 + $0x4c] sm:$0xf]
    %v1350 = vld [vmem:[%s6 + $0x50] sm:$0xf]
    %v1351 = vld [vmem:[%s6 + $0x54] sm:$0xf]
    %v1352 = vld [vmem:[%s6 + $0x58] sm:$0xf]
    %v1353 = vld [vmem:[%s6 + $0x5c] sm:$0xf]
    %v1354 = vld [vmem:[%s6 + $0x60] sm:$0xf]
    %v1355 = vld [vmem:[%s6 + $0x64] sm:$0xf]
    %v1356 = vld [vmem:[%s6 + $0x68] sm:$0xf]
    %v1357 = vld [vmem:[%s6 + $0x6c] sm:$0xf]
    %v1358 = vld [vmem:[%s6 + $0x70] sm:$0xf]
    %v1359 = vld [vmem:[%s6 + $0x74] sm:$0xf]
    %v1360 = vld [vmem:[%s6 + $0x78] sm:$0xf]
    %v1361 = vld [vmem:[%s6 + $0x7c] sm:$0xf]
    %v1362 = vld [vmem:[%s10] sm:$0x1]
    %v1364 = vlaneseq
    %v1365 = vshrl.u32 %v1364, 7
    %v1366 = vsub.s32 0, %v1365
    %v1367 = vrot.slane %v1362, %v1366
    %v1401 = vunpack.c.l.b16 %v1330
    %v1402 = vunpack.c.l.b16 %v1331
    %v1403 = vunpack.c.l.b16 %v1332
    %v1404 = vunpack.c.l.b16 %v1333
    %v1405 = vunpack.c.l.b16 %v1334
    %v1406 = vunpack.c.l.b16 %v1335
    %v1407 = vunpack.c.l.b16 %v1336
    %v1408 = vunpack.c.l.b16 %v1337
    %v1409 = vunpack.c.l.b16 %v1338
    %v1410 = vunpack.c.l.b16 %v1339
    %v1411 = vunpack.c.l.b16 %v1340
    %v1412 = vunpack.c.l.b16 %v1341
    %v1413 = vunpack.c.l.b16 %v1342
    %v1414 = vunpack.c.l.b16 %v1343
    %v1415 = vunpack.c.l.b16 %v1344
    %v1416 = vunpack.c.l.b16 %v1345
    %v1417 = vunpack.c.l.b16 %v1346
    %v1418 = vunpack.c.l.b16 %v1347
    %v1419 = vunpack.c.l.b16 %v1348
    %v1420 = vunpack.c.l.b16 %v1349
    %v1421 = vunpack.c.l.b16 %v1350
    %v1422 = vunpack.c.l.b16 %v1351
    %v1423 = vunpack.c.l.b16 %v1352
    %v1424 = vunpack.c.l.b16 %v1353
    %v1425 = vunpack.c.l.b16 %v1354
    %v1426 = vunpack.c.l.b16 %v1355
    %v1427 = vunpack.c.l.b16 %v1356
    %v1428 = vunpack.c.l.b16 %v1357
    %v1429 = vunpack.c.l.b16 %v1358
    %v1430 = vunpack.c.l.b16 %v1359
    %v1431 = vunpack.c.l.b16 %v1360
    %v1432 = vunpack.c.l.b16 %v1361
    %v1433 = vpack.c.b16 %v1402, %v1401
    %v1434 = vpack.c.b16 %v1404, %v1403
    %v1435 = vpack.c.b16 %v1406, %v1405
    %v1436 = vpack.c.b16 %v1408, %v1407
    %v1437 = vpack.c.b16 %v1410, %v1409
    %v1438 = vpack.c.b16 %v1412, %v1411
    %v1439 = vpack.c.b16 %v1414, %v1413
    %v1440 = vpack.c.b16 %v1416, %v1415
    %v1441 = vpack.c.b16 %v1418, %v1417
    %v1442 = vpack.c.b16 %v1420, %v1419
    %v1443 = vpack.c.b16 %v1422, %v1421
    %v1444 = vpack.c.b16 %v1424, %v1423
    %v1445 = vpack.c.b16 %v1426, %v1425
    %v1446 = vpack.c.b16 %v1428, %v1427
    %v1447 = vpack.c.b16 %v1430, %v1429
    %v1448 = vpack.c.b16 %v1432, %v1431
    %1465 = vmatprep.subr.bf16.mxu0 0
    %1466 = vmatpush1.bf16.msra.mxu0 %v1433
    %1467 = vmatprep.subr.bf16.mxu0 0
    %1468 = vmatpush1.bf16.msra.mxu0 %v1434
    %1469 = vmatprep.subr.bf16.mxu0 0
    %1470 = vmatpush1.bf16.msra.mxu0 %v1435
    %1471 = vmatprep.subr.bf16.mxu0 0
    %1472 = vmatpush1.bf16.msra.mxu0 %v1436
    %1473 = vmatprep.subr.bf16.mxu0 0
    %1474 = vmatpush1.bf16.msra.mxu0 %v1437
    %1475 = vmatprep.subr.bf16.mxu0 0
    %1476 = vmatpush1.bf16.msra.mxu0 %v1438
    %1477 = vmatprep.subr.bf16.mxu0 0
    %1478 = vmatpush1.bf16.msra.mxu0 %v1439
    %1479 = vmatprep.subr.bf16.mxu0 0
    %1480 = vmatpush1.bf16.msra.mxu0 %v1440
    %1481 = vmatprep.subr.bf16.mxu0 0
    %1482 = vmatpush1.bf16.msra.mxu0 %v1441
    %1483 = vmatprep.subr.bf16.mxu0 0
    %1484 = vmatpush1.bf16.msra.mxu0 %v1442
    %1485 = vmatprep.subr.bf16.mxu0 0
    %1486 = vmatpush1.bf16.msra.mxu0 %v1443
    %1487 = vmatprep.subr.bf16.mxu0 0
    %1488 = vmatpush1.bf16.msra.mxu0 %v1444
    %1489 = vmatprep.subr.bf16.mxu0 0
    %1490 = vmatpush1.bf16.msra.mxu0 %v1445
    %1491 = vmatprep.subr.bf16.mxu0 0
    %1492 = vmatpush1.bf16.msra.mxu0 %v1446
    %1493 = vmatprep.subr.bf16.mxu0 0
    %1494 = vmatpush1.bf16.msra.mxu0 %v1447
    %1495 = vmatprep.subr.bf16.mxu0 0
    %1496 = vmatpush1.bf16.msra.mxu0 %v1448
    %1497 = vmatprep.mubr.bf16.mxu0 %v1148
    %1498 = vmatmul.mubr.bf16.gmra.mrb[0].mxu0 %v1147
    %v1499 = vpop.f32.mrb[0].mxu0
    %v1500 = vadd.f32 %v1367, %v1499
    %v1501 = vpop.f32.mrb[0].mxu0
    %v1502 = vpop.f32.mrb[0].mxu0
    %v1503 = vpop.f32.mrb[0].mxu0
    %1504 = vdwg.mxu0
    %v1505 = vld [vmem:[%s7] sm:$0xf]
    %v1506 = vld [vmem:[%s7 + $0x4] sm:$0xf]
    %v1507 = vld [vmem:[%s7 + $0x8] sm:$0xf]
    %v1508 = vld [vmem:[%s7 + $0xc] sm:$0xf]
    %v1509 = vld [vmem:[%s7 + $0x10] sm:$0xf]
    %v1510 = vld [vmem:[%s7 + $0x14] sm:$0xf]
    %v1511 = vld [vmem:[%s7 + $0x18] sm:$0xf]
    %v1512 = vld [vmem:[%s7 + $0x1c] sm:$0xf]
    %v1513 = vld [vmem:[%s7 + $0x20] sm:$0xf]
    %v1514 = vld [vmem:[%s7 + $0x24] sm:$0xf]
    %v1515 = vld [vmem:[%s7 + $0x28] sm:$0xf]
    %v1516 = vld [vmem:[%s7 + $0x2c] sm:$0xf]
    %v1517 = vld [vmem:[%s7 + $0x30] sm:$0xf]
    %v1518 = vld [vmem:[%s7 + $0x34] sm:$0xf]
    %v1519 = vld [vmem:[%s7 + $0x38] sm:$0xf]
    %v1520 = vld [vmem:[%s7 + $0x3c] sm:$0xf]
    %v1521 = vld [vmem:[%s7 + $0x40] sm:$0xf]
    %v1522 = vld [vmem:[%s7 + $0x44] sm:$0xf]
    %v1523 = vld [vmem:[%s7 + $0x48] sm:$0xf]
    %v1524 = vld [vmem:[%s7 + $0x4c] sm:$0xf]
    %v1525 = vld [vmem:[%s7 + $0x50] sm:$0xf]
    %v1526 = vld [vmem:[%s7 + $0x54] sm:$0xf]
    %v1527 = vld [vmem:[%s7 + $0x58] sm:$0xf]
    %v1528 = vld [vmem:[%s7 + $0x5c] sm:$0xf]
    %v1529 = vld [vmem:[%s7 + $0x60] sm:$0xf]
    %v1530 = vld [vmem:[%s7 + $0x64] sm:$0xf]
    %v1531 = vld [vmem:[%s7 + $0x68] sm:$0xf]
    %v1532 = vld [vmem:[%s7 + $0x6c] sm:$0xf]
    %v1533 = vld [vmem:[%s7 + $0x70] sm:$0xf]
    %v1534 = vld [vmem:[%s7 + $0x74] sm:$0xf]
    %v1535 = vld [vmem:[%s7 + $0x78] sm:$0xf]
    %v1536 = vld [vmem:[%s7 + $0x7c] sm:$0xf]
    %v1537 = vld [vmem:[%s7 + $0x80] sm:$0xf]
    %v1538 = vld [vmem:[%s7 + $0x84] sm:$0xf]
    %v1539 = vld [vmem:[%s7 + $0x88] sm:$0xf]
    %v1540 = vld [vmem:[%s7 + $0x8c] sm:$0xf]
    %v1541 = vld [vmem:[%s7 + $0x90] sm:$0xf]
    %v1542 = vld [vmem:[%s7 + $0x94] sm:$0xf]
    %v1543 = vld [vmem:[%s7 + $0x98] sm:$0xf]
    %v1544 = vld [vmem:[%s7 + $0x9c] sm:$0xf]
    %v1545 = vld [vmem:[%s7 + $0xa0] sm:$0xf]
    %v1546 = vld [vmem:[%s7 + $0xa4] sm:$0xf]
    %v1547 = vld [vmem:[%s7 + $0xa8] sm:$0xf]
    %v1548 = vld [vmem:[%s7 + $0xac] sm:$0xf]
    %v1549 = vld [vmem:[%s7 + $0xb0] sm:$0xf]
    %v1550 = vld [vmem:[%s7 + $0xb4] sm:$0xf]
    %v1551 = vld [vmem:[%s7 + $0xb8] sm:$0xf]
    %v1552 = vld [vmem:[%s7 + $0xbc] sm:$0xf]
    %v1553 = vld [vmem:[%s11] sm:$0x1]
    %v1555 = vlaneseq
    %v1556 = vshrl.u32 %v1555, 7
    %v1557 = vsub.s32 0, %v1556
    %v1558 = vrot.slane %v1553, %v1557
    %v1608 = vunpack.c.l.b16 %v1505
    %v1609 = vunpack.c.l.b16 %v1506
    %v1610 = vunpack.c.l.b16 %v1507
    %v1611 = vunpack.c.l.b16 %v1508
    %v1612 = vunpack.c.l.b16 %v1509
    %v1613 = vunpack.c.l.b16 %v1510
    %v1614 = vunpack.c.l.b16 %v1511
    %v1615 = vunpack.c.l.b16 %v1512
    %v1616 = vunpack.c.l.b16 %v1513
    %v1617 = vunpack.c.l.b16 %v1514
    %v1618 = vunpack.c.l.b16 %v1515
    %v1619 = vunpack.c.l.b16 %v1516
    %v1620 = vunpack.c.l.b16 %v1517
    %v1621 = vunpack.c.l.b16 %v1518
    %v1622 = vunpack.c.l.b16 %v1519
    %v1623 = vunpack.c.l.b16 %v1520
    %v1624 = vunpack.c.l.b16 %v1521
    %v1625 = vunpack.c.l.b16 %v1522
    %v1626 = vunpack.c.l.b16 %v1523
    %v1627 = vunpack.c.l.b16 %v1524
    %v1628 = vunpack.c.l.b16 %v1525
    %v1629 = vunpack.c.l.b16 %v1526
    %v1630 = vunpack.c.l.b16 %v1527
    %v1631 = vunpack.c.l.b16 %v1528
    %v1632 = vunpack.c.l.b16 %v1529
    %v1633 = vunpack.c.l.b16 %v1530
    %v1634 = vunpack.c.l.b16 %v1531
    %v1635 = vunpack.c.l.b16 %v1532
    %v1636 = vunpack.c.l.b16 %v1533
    %v1637 = vunpack.c.l.b16 %v1534
    %v1638 = vunpack.c.l.b16 %v1535
    %v1639 = vunpack.c.l.b16 %v1536
    %v1640 = vunpack.c.l.b16 %v1537
    %v1641 = vunpack.c.l.b16 %v1538
    %v1642 = vunpack.c.l.b16 %v1539
    %v1643 = vunpack.c.l.b16 %v1540
    %v1644 = vunpack.c.l.b16 %v1541
    %v1645 = vunpack.c.l.b16 %v1542
    %v1646 = vunpack.c.l.b16 %v1543
    %v1647 = vunpack.c.l.b16 %v1544
    %v1648 = vunpack.c.l.b16 %v1545
    %v1649 = vunpack.c.l.b16 %v1546
    %v1650 = vunpack.c.l.b16 %v1547
    %v1651 = vunpack.c.l.b16 %v1548
    %v1652 = vunpack.c.l.b16 %v1549
    %v1653 = vunpack.c.l.b16 %v1550
    %v1654 = vunpack.c.l.b16 %v1551
    %v1655 = vunpack.c.l.b16 %v1552
    %v1656 = vpack.c.b16 %v1609, %v1608
    %v1657 = vpack.c.b16 %v1611, %v1610
    %v1658 = vpack.c.b16 %v1613, %v1612
    %v1659 = vpack.c.b16 %v1615, %v1614
    %v1660 = vpack.c.b16 %v1617, %v1616
    %v1661 = vpack.c.b16 %v1619, %v1618
    %v1662 = vpack.c.b16 %v1621, %v1620
    %v1663 = vpack.c.b16 %v1623, %v1622
    %v1664 = vpack.c.b16 %v1625, %v1624
    %v1665 = vpack.c.b16 %v1627, %v1626
    %v1666 = vpack.c.b16 %v1629, %v1628
    %v1667 = vpack.c.b16 %v1631, %v1630
    %v1668 = vpack.c.b16 %v1633, %v1632
    %v1669 = vpack.c.b16 %v1635, %v1634
    %v1670 = vpack.c.b16 %v1637, %v1636
    %v1671 = vpack.c.b16 %v1639, %v1638
    %v1672 = vpack.c.b16 %v1641, %v1640
    %v1673 = vpack.c.b16 %v1643, %v1642
    %v1674 = vpack.c.b16 %v1645, %v1644
    %v1675 = vpack.c.b16 %v1647, %v1646
    %v1676 = vpack.c.b16 %v1649, %v1648
    %v1677 = vpack.c.b16 %v1651, %v1650
    %v1678 = vpack.c.b16 %v1653, %v1652
    %v1679 = vpack.c.b16 %v1655, %v1654
    %1704 = vmatprep.subr.bf16.mxu0 0
    %1705 = vmatpush1.bf16.msra.mxu0 %v1656
    %1706 = vmatprep.subr.bf16.mxu0 0
    %1707 = vmatpush1.bf16.msra.mxu0 %v1657
    %1708 = vmatprep.subr.bf16.mxu0 0
    %1709 = vmatpush1.bf16.msra.mxu0 %v1658
    %1710 = vmatprep.subr.bf16.mxu0 0
    %1711 = vmatpush1.bf16.msra.mxu0 %v1659
    %1712 = vmatprep.subr.bf16.mxu0 0
    %1713 = vmatpush1.bf16.msra.mxu0 %v1660
    %1714 = vmatprep.subr.bf16.mxu0 0
    %1715 = vmatpush1.bf16.msra.mxu0 %v1661
    %1716 = vmatprep.subr.bf16.mxu0 0
    %1717 = vmatpush1.bf16.msra.mxu0 %v1662
    %1718 = vmatprep.subr.bf16.mxu0 0
    %1719 = vmatpush1.bf16.msra.mxu0 %v1663
    %1720 = vmatprep.subr.bf16.mxu0 0
    %1721 = vmatpush1.bf16.msra.mxu0 %v1664
    %1722 = vmatprep.subr.bf16.mxu0 0
    %1723 = vmatpush1.bf16.msra.mxu0 %v1665
    %1724 = vmatprep.subr.bf16.mxu0 0
    %1725 = vmatpush1.bf16.msra.mxu0 %v1666
    %1726 = vmatprep.subr.bf16.mxu0 0
    %1727 = vmatpush1.bf16.msra.mxu0 %v1667
    %1728 = vmatprep.subr.bf16.mxu0 0
    %1729 = vmatpush1.bf16.msra.mxu0 %v1668
    %1730 = vmatprep.subr.bf16.mxu0 0
    %1731 = vmatpush1.bf16.msra.mxu0 %v1669
    %1732 = vmatprep.subr.bf16.mxu0 0
    %1733 = vmatpush1.bf16.msra.mxu0 %v1670
    %1734 = vmatprep.subr.bf16.mxu0 0
    %1735 = vmatpush1.bf16.msra.mxu0 %v1671
    %1736 = vmatprep.mubr.bf16.mxu0 %v1150
    %1737 = vmatmul.mubr.bf16.gmra.mrb[0].mxu0 %v1149
    %v1738 = vpop.f32.mrb[0].mxu0
    %v1739 = vadd.f32 %v1558, %v1738
    %v1740 = vpop.f32.mrb[0].mxu0
    %v1741 = vpop.f32.mrb[0].mxu0
    %v1742 = vpop.f32.mrb[0].mxu0
    %1743 = vdwg.mxu0
    %1744 = vmatprep.subr.bf16.mxu0 0
    %1745 = vmatpush1.bf16.msra.mxu0 %v1672
    %1746 = vmatprep.subr.bf16.mxu0 0
    %1747 = vmatpush1.bf16.msra.mxu0 %v1673
    %1748 = vmatprep.subr.bf16.mxu0 0
    %1749 = vmatpush1.bf16.msra.mxu0 %v1674
    %1750 = vmatprep.subr.bf16.mxu0 0
    %1751 = vmatpush1.bf16.msra.mxu0 %v1675
    %1752 = vmatprep.subr.bf16.mxu0 0
    %1753 = vmatpush1.bf16.msra.mxu0 %v1676
    %1754 = vmatprep.subr.bf16.mxu0 0
    %1755 = vmatpush1.bf16.msra.mxu0 %v1677
    %1756 = vmatprep.subr.bf16.mxu0 0
    %1757 = vmatpush1.bf16.msra.mxu0 %v1678
    %1758 = vmatprep.subr.bf16.mxu0 0
    %1759 = vmatpush1.bf16.msra.mxu0 %v1679
    %1760 = vmatprep.subr.bf16.mxu0 0
    %1761 = vmatpush1.bf16.msra.mxu0 0
    %1762 = vmatprep.subr.bf16.mxu0 0
    %1763 = vmatpush1.bf16.msra.mxu0 0
    %1764 = vmatprep.subr.bf16.mxu0 0
    %1765 = vmatpush1.bf16.msra.mxu0 0
    %1766 = vmatprep.subr.bf16.mxu0 0
    %1767 = vmatpush1.bf16.msra.mxu0 0
    %1768 = vmatprep.subr.bf16.mxu0 0
    %1769 = vmatpush1.bf16.msra.mxu0 0
    %1770 = vmatprep.subr.bf16.mxu0 0
    %1771 = vmatpush1.bf16.msra.mxu0 0
    %1772 = vmatprep.subr.bf16.mxu0 0
    %1773 = vmatpush1.bf16.msra.mxu0 0
    %1774 = vmatprep.subr.bf16.mxu0 0
    %1775 = vmatpush1.bf16.msra.mxu0 0
    %1776 = vmatprep.mubr.bf16.mxu0 0
    %1777 = vmatmul.mubr.bf16.gmra.mrb[0].mxu0 %v1151
    %v1778 = vpop.f32.mrb[0].mxu0
    %v1779 = vadd.f32 %v1739, %v1778
    %v1780 = vpop.f32.mrb[0].mxu0
    %v1781 = vpop.f32.mrb[0].mxu0
    %v1782 = vpop.f32.mrb[0].mxu0
    %1783 = vdwg.mxu0
    %v1784 = vld [vmem:[%s8] sm:$0xf]
    %v1785 = vld [vmem:[%s8 + $0x4] sm:$0xf]
    %v1786 = vld [vmem:[%s8 + $0x8] sm:$0xf]
    %v1787 = vld [vmem:[%s8 + $0xc] sm:$0xf]
    %v1788 = vld [vmem:[%s8 + $0x10] sm:$0xf]
    %v1789 = vld [vmem:[%s8 + $0x14] sm:$0xf]
    %v1790 = vld [vmem:[%s8 + $0x18] sm:$0xf]
    %v1791 = vld [vmem:[%s8 + $0x1c] sm:$0xf]
    %v1792 = vld [vmem:[%s8 + $0x20] sm:$0xf]
    %v1793 = vld [vmem:[%s8 + $0x24] sm:$0xf]
    %v1794 = vld [vmem:[%s8 + $0x28] sm:$0xf]
    %v1795 = vld [vmem:[%s8 + $0x2c] sm:$0xf]
    %v1796 = vld [vmem:[%s8 + $0x30] sm:$0xf]
    %v1797 = vld [vmem:[%s8 + $0x34] sm:$0xf]
    %v1798 = vld [vmem:[%s8 + $0x38] sm:$0xf]
    %v1799 = vld [vmem:[%s8 + $0x3c] sm:$0xf]
    %v1800 = vld [vmem:[%s8 + $0x40] sm:$0xf]
    %v1801 = vld [vmem:[%s8 + $0x44] sm:$0xf]
    %v1802 = vld [vmem:[%s8 + $0x48] sm:$0xf]
    %v1803 = vld [vmem:[%s8 + $0x4c] sm:$0xf]
    %v1804 = vld [vmem:[%s8 + $0x50] sm:$0xf]
    %v1805 = vld [vmem:[%s8 + $0x54] sm:$0xf]
    %v1806 = vld [vmem:[%s8 + $0x58] sm:$0xf]
    %v1807 = vld [vmem:[%s8 + $0x5c] sm:$0xf]
    %v1808 = vld [vmem:[%s8 + $0x60] sm:$0xf]
    %v1809 = vld [vmem:[%s8 + $0x64] sm:$0xf]
    %v1810 = vld [vmem:[%s8 + $0x68] sm:$0xf]
    %v1811 = vld [vmem:[%s8 + $0x6c] sm:$0xf]
    %v1812 = vld [vmem:[%s8 + $0x70] sm:$0xf]
    %v1813 = vld [vmem:[%s8 + $0x74] sm:$0xf]
    %v1814 = vld [vmem:[%s8 + $0x78] sm:$0xf]
    %v1815 = vld [vmem:[%s8 + $0x7c] sm:$0xf]
    %v1816 = vld [vmem:[%s8 + $0x80] sm:$0xf]
    %v1817 = vld [vmem:[%s8 + $0x84] sm:$0xf]
    %v1818 = vld [vmem:[%s8 + $0x88] sm:$0xf]
    %v1819 = vld [vmem:[%s8 + $0x8c] sm:$0xf]
    %v1820 = vld [vmem:[%s8 + $0x90] sm:$0xf]
    %v1821 = vld [vmem:[%s8 + $0x94] sm:$0xf]
    %v1822 = vld [vmem:[%s8 + $0x98] sm:$0xf]
    %v1823 = vld [vmem:[%s8 + $0x9c] sm:$0xf]
    %v1824 = vld [vmem:[%s8 + $0xa0] sm:$0xf]
    %v1825 = vld [vmem:[%s8 + $0xa4] sm:$0xf]
    %v1826 = vld [vmem:[%s8 + $0xa8] sm:$0xf]
    %v1827 = vld [vmem:[%s8 + $0xac] sm:$0xf]
    %v1828 = vld [vmem:[%s8 + $0xb0] sm:$0xf]
    %v1829 = vld [vmem:[%s8 + $0xb4] sm:$0xf]
    %v1830 = vld [vmem:[%s8 + $0xb8] sm:$0xf]
    %v1831 = vld [vmem:[%s8 + $0xbc] sm:$0xf]
    %v1832 = vld [vmem:[%s12] sm:$0x1]
    %v1834 = vlaneseq
    %v1835 = vshrl.u32 %v1834, 7
    %v1836 = vsub.s32 0, %v1835
    %v1837 = vrot.slane %v1832, %v1836
    %v1887 = vunpack.c.l.b16 %v1784
    %v1888 = vunpack.c.l.b16 %v1785
    %v1889 = vunpack.c.l.b16 %v1786
    %v1890 = vunpack.c.l.b16 %v1787
    %v1891 = vunpack.c.l.b16 %v1788
    %v1892 = vunpack.c.l.b16 %v1789
    %v1893 = vunpack.c.l.b16 %v1790
    %v1894 = vunpack.c.l.b16 %v1791
    %v1895 = vunpack.c.l.b16 %v1792
    %v1896 = vunpack.c.l.b16 %v1793
    %v1897 = vunpack.c.l.b16 %v1794
    %v1898 = vunpack.c.l.b16 %v1795
    %v1899 = vunpack.c.l.b16 %v1796
    %v1900 = vunpack.c.l.b16 %v1797
    %v1901 = vunpack.c.l.b16 %v1798
    %v1902 = vunpack.c.l.b16 %v1799
    %v1903 = vunpack.c.l.b16 %v1800
    %v1904 = vunpack.c.l.b16 %v1801
    %v1905 = vunpack.c.l.b16 %v1802
    %v1906 = vunpack.c.l.b16 %v1803
    %v1907 = vunpack.c.l.b16 %v1804
    %v1908 = vunpack.c.l.b16 %v1805
    %v1909 = vunpack.c.l.b16 %v1806
    %v1910 = vunpack.c.l.b16 %v1807
    %v1911 = vunpack.c.l.b16 %v1808
    %v1912 = vunpack.c.l.b16 %v1809
    %v1913 = vunpack.c.l.b16 %v1810
    %v1914 = vunpack.c.l.b16 %v1811
    %v1915 = vunpack.c.l.b16 %v1812
    %v1916 = vunpack.c.l.b16 %v1813
    %v1917 = vunpack.c.l.b16 %v1814
    %v1918 = vunpack.c.l.b16 %v1815
    %v1919 = vunpack.c.l.b16 %v1816
    %v1920 = vunpack.c.l.b16 %v1817
    %v1921 = vunpack.c.l.b16 %v1818
    %v1922 = vunpack.c.l.b16 %v1819
    %v1923 = vunpack.c.l.b16 %v1820
    %v1924 = vunpack.c.l.b16 %v1821
    %v1925 = vunpack.c.l.b16 %v1822
    %v1926 = vunpack.c.l.b16 %v1823
    %v1927 = vunpack.c.l.b16 %v1824
    %v1928 = vunpack.c.l.b16 %v1825
    %v1929 = vunpack.c.l.b16 %v1826
    %v1930 = vunpack.c.l.b16 %v1827
    %v1931 = vunpack.c.l.b16 %v1828
    %v1932 = vunpack.c.l.b16 %v1829
    %v1933 = vunpack.c.l.b16 %v1830
    %v1934 = vunpack.c.l.b16 %v1831
    %v1935 = vpack.c.b16 %v1888, %v1887
    %v1936 = vpack.c.b16 %v1890, %v1889
    %v1937 = vpack.c.b16 %v1892, %v1891
    %v1938 = vpack.c.b16 %v1894, %v1893
    %v1939 = vpack.c.b16 %v1896, %v1895
    %v1940 = vpack.c.b16 %v1898, %v1897
    %v1941 = vpack.c.b16 %v1900, %v1899
    %v1942 = vpack.c.b16 %v1902, %v1901
    %v1943 = vpack.c.b16 %v1904, %v1903
    %v1944 = vpack.c.b16 %v1906, %v1905
    %v1945 = vpack.c.b16 %v1908, %v1907
    %v1946 = vpack.c.b16 %v1910, %v1909
    %v1947 = vpack.c.b16 %v1912, %v1911
    %v1948 = vpack.c.b16 %v1914, %v1913
    %v1949 = vpack.c.b16 %v1916, %v1915
    %v1950 = vpack.c.b16 %v1918, %v1917
    %v1951 = vpack.c.b16 %v1920, %v1919
    %v1952 = vpack.c.b16 %v1922, %v1921
    %v1953 = vpack.c.b16 %v1924, %v1923
    %v1954 = vpack.c.b16 %v1926, %v1925
    %v1955 = vpack.c.b16 %v1928, %v1927
    %v1956 = vpack.c.b16 %v1930, %v1929
    %v1957 = vpack.c.b16 %v1932, %v1931
    %v1958 = vpack.c.b16 %v1934, %v1933
    %1983 = vmatprep.subr.bf16.mxu0 0
    %1984 = vmatpush1.bf16.msra.mxu0 %v1935
    %1985 = vmatprep.subr.bf16.mxu0 0
    %1986 = vmatpush1.bf16.msra.mxu0 %v1936
    %1987 = vmatprep.subr.bf16.mxu0 0
    %1988 = vmatpush1.bf16.msra.mxu0 %v1937
    %1989 = vmatprep.subr.bf16.mxu0 0
    %1990 = vmatpush1.bf16.msra.mxu0 %v1938
    %1991 = vmatprep.subr.bf16.mxu0 0
    %1992 = vmatpush1.bf16.msra.mxu0 %v1939
    %1993 = vmatprep.subr.bf16.mxu0 0
    %1994 = vmatpush1.bf16.msra.mxu0 %v1940
    %1995 = vmatprep.subr.bf16.mxu0 0
    %1996 = vmatpush1.bf16.msra.mxu0 %v1941
    %1997 = vmatprep.subr.bf16.mxu0 0
    %1998 = vmatpush1.bf16.msra.mxu0 %v1942
    %1999 = vmatprep.subr.bf16.mxu0 0
    %2000 = vmatpush1.bf16.msra.mxu0 %v1943
    %2001 = vmatprep.subr.bf16.mxu0 0
    %2002 = vmatpush1.bf16.msra.mxu0 %v1944
    %2003 = vmatprep.subr.bf16.mxu0 0
    %2004 = vmatpush1.bf16.msra.mxu0 %v1945
    %2005 = vmatprep.subr.bf16.mxu0 0
    %2006 = vmatpush1.bf16.msra.mxu0 %v1946
    %2007 = vmatprep.subr.bf16.mxu0 0
    %2008 = vmatpush1.bf16.msra.mxu0 %v1947
    %2009 = vmatprep.subr.bf16.mxu0 0
    %2010 = vmatpush1.bf16.msra.mxu0 %v1948
    %2011 = vmatprep.subr.bf16.mxu0 0
    %2012 = vmatpush1.bf16.msra.mxu0 %v1949
    %2013 = vmatprep.subr.bf16.mxu0 0
    %2014 = vmatpush1.bf16.msra.mxu0 %v1950
    %2015 = vmatprep.mubr.bf16.mxu0 %v1153
    %2016 = vmatmul.mubr.bf16.gmra.mrb[0].mxu0 %v1152
    %v2017 = vpop.f32.mrb[0].mxu0
    %v2018 = vadd.f32 %v1837, %v2017
    %v2019 = vpop.f32.mrb[0].mxu0
    %v2020 = vpop.f32.mrb[0].mxu0
    %v2021 = vpop.f32.mrb[0].mxu0
    %2022 = vdwg.mxu0
    %2023 = vmatprep.subr.bf16.mxu0 0
    %2024 = vmatpush1.bf16.msra.mxu0 %v1951
    %2025 = vmatprep.subr.bf16.mxu0 0
    %2026 = vmatpush1.bf16.msra.mxu0 %v1952
    %2027 = vmatprep.subr.bf16.mxu0 0
    %2028 = vmatpush1.bf16.msra.mxu0 %v1953
    %2029 = vmatprep.subr.bf16.mxu0 0
    %2030 = vmatpush1.bf16.msra.mxu0 %v1954
    %2031 = vmatprep.subr.bf16.mxu0 0
    %2032 = vmatpush1.bf16.msra.mxu0 %v1955
    %2033 = vmatprep.subr.bf16.mxu0 0
    %2034 = vmatpush1.bf16.msra.mxu0 %v1956
    %2035 = vmatprep.subr.bf16.mxu0 0
    %2036 = vmatpush1.bf16.msra.mxu0 %v1957
    %2037 = vmatprep.subr.bf16.mxu0 0
    %2038 = vmatpush1.bf16.msra.mxu0 %v1958
    %2039 = vmatprep.subr.bf16.mxu0 0
    %2040 = vmatpush1.bf16.msra.mxu0 0
    %2041 = vmatprep.subr.bf16.mxu0 0
    %2042 = vmatpush1.bf16.msra.mxu0 0
    %2043 = vmatprep.subr.bf16.mxu0 0
    %2044 = vmatpush1.bf16.msra.mxu0 0
    %2045 = vmatprep.subr.bf16.mxu0 0
    %2046 = vmatpush1.bf16.msra.mxu0 0
    %2047 = vmatprep.subr.bf16.mxu0 0
    %2048 = vmatpush1.bf16.msra.mxu0 0
    %2049 = vmatprep.subr.bf16.mxu0 0
    %2050 = vmatpush1.bf16.msra.mxu0 0
    %2051 = vmatprep.subr.bf16.mxu0 0
    %2052 = vmatpush1.bf16.msra.mxu0 0
    %2053 = vmatprep.subr.bf16.mxu0 0
    %2054 = vmatpush1.bf16.msra.mxu0 0
    %2055 = vmatprep.mubr.bf16.mxu0 0
    %2056 = vmatmul.mubr.bf16.gmra.mrb[0].mxu0 %v1154
    %v2057 = vpop.f32.mrb[0].mxu0
    %v2058 = vadd.f32 %v2018, %v2057
    %v2059 = vpop.f32.mrb[0].mxu0
    %v2060 = vpop.f32.mrb[0].mxu0
    %v2061 = vpop.f32.mrb[0].mxu0
    %2062 = vdwg.mxu0
    %v2063 = vld [vmem:[%s13] sm:$0xff]
    %v2064 = vld [vmem:[%s13 + $0x8] sm:$0xff]
    %v2065 = vld [vmem:[%s13 + $0x10] sm:$0xff]
    %v2066 = vld [vmem:[%s13 + $0x18] sm:$0xff]
    %v2067 = vld [vmem:[%s13 + $0x20] sm:$0xff]
    %v2068 = vld [vmem:[%s13 + $0x28] sm:$0xff]
    %v2069 = vld [vmem:[%s13 + $0x30] sm:$0xff]
    %v2070 = vld [vmem:[%s13 + $0x38] sm:$0xff]
    %v2071 = vld [vmem:[%s13 + $0x40] sm:$0xff]
    %v2072 = vld [vmem:[%s13 + $0x48] sm:$0xff]
    %v2073 = vld [vmem:[%s13 + $0x50] sm:$0xff]
    %v2074 = vld [vmem:[%s13 + $0x58] sm:$0xff]
    %v2075 = vld [vmem:[%s13 + $0x60] sm:$0xff]
    %v2076 = vld [vmem:[%s13 + $0x68] sm:$0xff]
    %v2077 = vld [vmem:[%s13 + $0x70] sm:$0xff]
    %v2078 = vld [vmem:[%s13 + $0x78] sm:$0xff]
    %v2079 = vld [vmem:[%s13 + $0x80] sm:$0xff]
    %v2080 = vld [vmem:[%s13 + $0x88] sm:$0xff]
    %v2081 = vld [vmem:[%s13 + $0x90] sm:$0xff]
    %v2082 = vld [vmem:[%s13 + $0x98] sm:$0xff]
    %v2083 = vld [vmem:[%s13 + $0xa0] sm:$0xff]
    %v2084 = vld [vmem:[%s13 + $0xa8] sm:$0xff]
    %v2085 = vld [vmem:[%s13 + $0xb0] sm:$0xff]
    %v2086 = vld [vmem:[%s13 + $0xb8] sm:$0xff]
    %v2087 = vld [vmem:[%s13 + $0xc0] sm:$0xff]
    %v2088 = vld [vmem:[%s13 + $0xc8] sm:$0xff]
    %v2089 = vld [vmem:[%s13 + $0xd0] sm:$0xff]
    %v2090 = vld [vmem:[%s13 + $0xd8] sm:$0xff]
    %v2091 = vld [vmem:[%s13 + $0xe0] sm:$0xff]
    %v2092 = vld [vmem:[%s13 + $0xe8] sm:$0xff]
    %v2093 = vld [vmem:[%s13 + $0xf0] sm:$0xff]
    %v2094 = vld [vmem:[%s13 + $0xf8] sm:$0xff]
    %v2095 = vld [vmem:[%s13 + $0x100] sm:$0xff]
    %v2096 = vld [vmem:[%s13 + $0x108] sm:$0xff]
    %v2097 = vld [vmem:[%s13 + $0x110] sm:$0xff]
    %v2098 = vld [vmem:[%s13 + $0x118] sm:$0xff]
    %v2099 = vld [vmem:[%s13 + $0x120] sm:$0xff]
    %v2100 = vld [vmem:[%s13 + $0x128] sm:$0xff]
    %v2101 = vld [vmem:[%s13 + $0x130] sm:$0xff]
    %v2102 = vld [vmem:[%s13 + $0x138] sm:$0xff]
    %v2103 = vld [vmem:[%s13 + $0x140] sm:$0xff]
    %v2104 = vld [vmem:[%s13 + $0x148] sm:$0xff]
    %v2105 = vld [vmem:[%s13 + $0x150] sm:$0xff]
    %v2106 = vld [vmem:[%s13 + $0x158] sm:$0xff]
    %v2107 = vld [vmem:[%s13 + $0x160] sm:$0xff]
    %v2108 = vld [vmem:[%s13 + $0x168] sm:$0xff]
    %v2109 = vld [vmem:[%s13 + $0x170] sm:$0xff]
    %v2110 = vld [vmem:[%s13 + $0x178] sm:$0xff]
    %v2111 = vld [vmem:[%s13 + $0x180] sm:$0xff]
    %v2112 = vld [vmem:[%s13 + $0x188] sm:$0xff]
    %v2113 = vld [vmem:[%s13 + $0x190] sm:$0xff]
    %v2114 = vld [vmem:[%s13 + $0x198] sm:$0xff]
    %v2115 = vld [vmem:[%s13 + $0x1a0] sm:$0xff]
    %v2116 = vld [vmem:[%s13 + $0x1a8] sm:$0xff]
    %v2117 = vld [vmem:[%s13 + $0x1b0] sm:$0xff]
    %v2118 = vld [vmem:[%s13 + $0x1b8] sm:$0xff]
    %v2119 = vld [vmem:[%s13 + $0x1c0] sm:$0xff]
    %v2120 = vld [vmem:[%s13 + $0x1c8] sm:$0xff]
    %v2121 = vld [vmem:[%s13 + $0x1d0] sm:$0xff]
    %v2122 = vld [vmem:[%s13 + $0x1d8] sm:$0xff]
    %v2123 = vld [vmem:[%s13 + $0x1e0] sm:$0xff]
    %v2124 = vld [vmem:[%s13 + $0x1e8] sm:$0xff]
    %v2125 = vld [vmem:[%s13 + $0x1f0] sm:$0xff]
    %v2126 = vld [vmem:[%s13 + $0x1f8] sm:$0xff]
    %s2127 = scalar_lea.vmem %s13, 512
    %v2128 = vld [vmem:[%s2127] sm:$0xff]
    %v2129 = vld [vmem:[%s2127 + $0x8] sm:$0xff]
    %v2130 = vld [vmem:[%s2127 + $0x10] sm:$0xff]
    %v2131 = vld [vmem:[%s2127 + $0x18] sm:$0xff]
    %v2132 = vld [vmem:[%s2127 + $0x20] sm:$0xff]
    %v2133 = vld [vmem:[%s2127 + $0x28] sm:$0xff]
    %v2134 = vld [vmem:[%s2127 + $0x30] sm:$0xff]
    %v2135 = vld [vmem:[%s2127 + $0x38] sm:$0xff]
    %v2136 = vld [vmem:[%s2127 + $0x40] sm:$0xff]
    %v2137 = vld [vmem:[%s2127 + $0x48] sm:$0xff]
    %v2138 = vld [vmem:[%s2127 + $0x50] sm:$0xff]
    %v2139 = vld [vmem:[%s2127 + $0x58] sm:$0xff]
    %v2140 = vld [vmem:[%s2127 + $0x60] sm:$0xff]
    %v2141 = vld [vmem:[%s2127 + $0x68] sm:$0xff]
    %v2142 = vld [vmem:[%s2127 + $0x70] sm:$0xff]
    %v2143 = vld [vmem:[%s2127 + $0x78] sm:$0xff]
    %v2144 = vld [vmem:[%s2127 + $0x80] sm:$0xff]
    %v2145 = vld [vmem:[%s2127 + $0x88] sm:$0xff]
    %v2146 = vld [vmem:[%s2127 + $0x90] sm:$0xff]
    %v2147 = vld [vmem:[%s2127 + $0x98] sm:$0xff]
    %v2148 = vld [vmem:[%s2127 + $0xa0] sm:$0xff]
    %v2149 = vld [vmem:[%s2127 + $0xa8] sm:$0xff]
    %v2150 = vld [vmem:[%s2127 + $0xb0] sm:$0xff]
    %v2151 = vld [vmem:[%s2127 + $0xb8] sm:$0xff]
    %v2152 = vld [vmem:[%s2127 + $0xc0] sm:$0xff]
    %v2153 = vld [vmem:[%s2127 + $0xc8] sm:$0xff]
    %v2154 = vld [vmem:[%s2127 + $0xd0] sm:$0xff]
    %v2155 = vld [vmem:[%s2127 + $0xd8] sm:$0xff]
    %v2156 = vld [vmem:[%s2127 + $0xe0] sm:$0xff]
    %v2157 = vld [vmem:[%s2127 + $0xe8] sm:$0xff]
    %v2158 = vld [vmem:[%s2127 + $0xf0] sm:$0xff]
    %v2159 = vld [vmem:[%s2127 + $0xf8] sm:$0xff]
    %v2160 = vld [vmem:[%s2127 + $0x100] sm:$0xff]
    %v2161 = vld [vmem:[%s2127 + $0x108] sm:$0xff]
    %v2162 = vld [vmem:[%s2127 + $0x110] sm:$0xff]
    %v2163 = vld [vmem:[%s2127 + $0x118] sm:$0xff]
    %v2164 = vld [vmem:[%s2127 + $0x120] sm:$0xff]
    %v2165 = vld [vmem:[%s2127 + $0x128] sm:$0xff]
    %v2166 = vld [vmem:[%s2127 + $0x130] sm:$0xff]
    %v2167 = vld [vmem:[%s2127 + $0x138] sm:$0xff]
    %v2168 = vld [vmem:[%s2127 + $0x140] sm:$0xff]
    %v2169 = vld [vmem:[%s2127 + $0x148] sm:$0xff]
    %v2170 = vld [vmem:[%s2127 + $0x150] sm:$0xff]
    %v2171 = vld [vmem:[%s2127 + $0x158] sm:$0xff]
    %v2172 = vld [vmem:[%s2127 + $0x160] sm:$0xff]
    %v2173 = vld [vmem:[%s2127 + $0x168] sm:$0xff]
    %v2174 = vld [vmem:[%s2127 + $0x170] sm:$0xff]
    %v2175 = vld [vmem:[%s2127 + $0x178] sm:$0xff]
    %v2176 = vld [vmem:[%s2127 + $0x180] sm:$0xff]
    %v2177 = vld [vmem:[%s2127 + $0x188] sm:$0xff]
    %v2178 = vld [vmem:[%s2127 + $0x190] sm:$0xff]
    %v2179 = vld [vmem:[%s2127 + $0x198] sm:$0xff]
    %v2180 = vld [vmem:[%s2127 + $0x1a0] sm:$0xff]
    %v2181 = vld [vmem:[%s2127 + $0x1a8] sm:$0xff]
    %v2182 = vld [vmem:[%s2127 + $0x1b0] sm:$0xff]
    %v2183 = vld [vmem:[%s2127 + $0x1b8] sm:$0xff]
    %v2184 = vld [vmem:[%s2127 + $0x1c0] sm:$0xff]
    %v2185 = vld [vmem:[%s2127 + $0x1c8] sm:$0xff]
    %v2186 = vld [vmem:[%s2127 + $0x1d0] sm:$0xff]
    %v2187 = vld [vmem:[%s2127 + $0x1d8] sm:$0xff]
    %v2188 = vld [vmem:[%s2127 + $0x1e0] sm:$0xff]
    %v2189 = vld [vmem:[%s2127 + $0x1e8] sm:$0xff]
    %v2190 = vld [vmem:[%s2127 + $0x1f0] sm:$0xff]
    %v2191 = vld [vmem:[%s2127 + $0x1f8] sm:$0xff]
    %v2192 = vld [vmem:[%s14] sm:$0xf]
    %s2193 = scalar_lea.vmem %s14, 4
    %v2194 = vld [vmem:[%s2193] sm:$0xf]
    %v2195 = vpack.c.bf16 %v1779, %v1779
    %v2197 = vlaneseq
    %v2198 = vshrl.u32 %v2197, 7
    %v2199 = vsub.s32 0, %v2198
    %v2200 = vrot.slane %v2192, %v2199
    %v2201 = vlaneseq
    %v2202 = vshrl.u32 %v2201, 7
    %v2203 = vsub.s32 1, %v2202
    %v2204 = vrot.slane %v2192, %v2203
    %v2205 = vlaneseq
    %v2206 = vshrl.u32 %v2205, 7
    %v2207 = vsub.s32 2, %v2206
    %v2208 = vrot.slane %v2192, %v2207
    %v2209 = vlaneseq
    %v2210 = vshrl.u32 %v2209, 7
    %v2211 = vsub.s32 3, %v2210
    %v2212 = vrot.slane %v2192, %v2211
    %v2281 = vunpack.c.l.b16 %v2063
    %v2282 = vunpack.c.h.b16 %v2063
    %v2283 = vunpack.c.l.b16 %v2064
    %v2284 = vunpack.c.h.b16 %v2064
    %v2285 = vunpack.c.l.b16 %v2065
    %v2286 = vunpack.c.h.b16 %v2065
    %v2287 = vunpack.c.l.b16 %v2066
    %v2288 = vunpack.c.h.b16 %v2066
    %v2289 = vunpack.c.l.b16 %v2067
    %v2290 = vunpack.c.h.b16 %v2067
    %v2291 = vunpack.c.l.b16 %v2068
    %v2292 = vunpack.c.h.b16 %v2068
    %v2293 = vunpack.c.l.b16 %v2069
    %v2294 = vunpack.c.h.b16 %v2069
    %v2295 = vunpack.c.l.b16 %v2070
    %v2296 = vunpack.c.h.b16 %v2070
    %v2297 = vunpack.c.l.b16 %v2071
    %v2298 = vunpack.c.h.b16 %v2071
    %v2299 = vunpack.c.l.b16 %v2072
    %v2300 = vunpack.c.h.b16 %v2072
    %v2301 = vunpack.c.l.b16 %v2073
    %v2302 = vunpack.c.h.b16 %v2073
    %v2303 = vunpack.c.l.b16 %v2074
    %v2304 = vunpack.c.h.b16 %v2074
    %v2305 = vunpack.c.l.b16 %v2075
    %v2306 = vunpack.c.h.b16 %v2075
    %v2307 = vunpack.c.l.b16 %v2076
    %v2308 = vunpack.c.h.b16 %v2076
    %v2309 = vunpack.c.l.b16 %v2077
    %v2310 = vunpack.c.h.b16 %v2077
    %v2311 = vunpack.c.l.b16 %v2078
    %v2312 = vunpack.c.h.b16 %v2078
    %v2313 = vunpack.c.l.b16 %v2079
    %v2314 = vunpack.c.h.b16 %v2079
    %v2315 = vunpack.c.l.b16 %v2080
    %v2316 = vunpack.c.h.b16 %v2080
    %v2317 = vunpack.c.l.b16 %v2081
    %v2318 = vunpack.c.h.b16 %v2081
    %v2319 = vunpack.c.l.b16 %v2082
    %v2320 = vunpack.c.h.b16 %v2082
    %v2321 = vunpack.c.l.b16 %v2083
    %v2322 = vunpack.c.h.b16 %v2083
    %v2323 = vunpack.c.l.b16 %v2084
    %v2324 = vunpack.c.h.b16 %v2084
    %v2325 = vunpack.c.l.b16 %v2085
    %v2326 = vunpack.c.h.b16 %v2085
    %v2327 = vunpack.c.l.b16 %v2086
    %v2328 = vunpack.c.h.b16 %v2086
    %v2329 = vunpack.c.l.b16 %v2087
    %v2330 = vunpack.c.h.b16 %v2087
    %v2331 = vunpack.c.l.b16 %v2088
    %v2332 = vunpack.c.h.b16 %v2088
    %v2333 = vunpack.c.l.b16 %v2089
    %v2334 = vunpack.c.h.b16 %v2089
    %v2335 = vunpack.c.l.b16 %v2090
    %v2336 = vunpack.c.h.b16 %v2090
    %v2337 = vunpack.c.l.b16 %v2091
    %v2338 = vunpack.c.h.b16 %v2091
    %v2339 = vunpack.c.l.b16 %v2092
    %v2340 = vunpack.c.h.b16 %v2092
    %v2341 = vunpack.c.l.b16 %v2093
    %v2342 = vunpack.c.h.b16 %v2093
    %v2343 = vunpack.c.l.b16 %v2094
    %v2344 = vunpack.c.h.b16 %v2094
    %v2345 = vunpack.c.l.b16 %v2095
    %v2346 = vunpack.c.h.b16 %v2095
    %v2347 = vunpack.c.l.b16 %v2096
    %v2348 = vunpack.c.h.b16 %v2096
    %v2349 = vunpack.c.l.b16 %v2097
    %v2350 = vunpack.c.h.b16 %v2097
    %v2351 = vunpack.c.l.b16 %v2098
    %v2352 = vunpack.c.h.b16 %v2098
    %v2353 = vunpack.c.l.b16 %v2099
    %v2354 = vunpack.c.h.b16 %v2099
    %v2355 = vunpack.c.l.b16 %v2100
    %v2356 = vunpack.c.h.b16 %v2100
    %v2357 = vunpack.c.l.b16 %v2101
    %v2358 = vunpack.c.h.b16 %v2101
    %v2359 = vunpack.c.l.b16 %v2102
    %v2360 = vunpack.c.h.b16 %v2102
    %v2361 = vunpack.c.l.b16 %v2103
    %v2362 = vunpack.c.h.b16 %v2103
    %v2363 = vunpack.c.l.b16 %v2104
    %v2364 = vunpack.c.h.b16 %v2104
    %v2365 = vunpack.c.l.b16 %v2105
    %v2366 = vunpack.c.h.b16 %v2105
    %v2367 = vunpack.c.l.b16 %v2106
    %v2368 = vunpack.c.h.b16 %v2106
    %v2369 = vunpack.c.l.b16 %v2107
    %v2370 = vunpack.c.h.b16 %v2107
    %v2371 = vunpack.c.l.b16 %v2108
    %v2372 = vunpack.c.h.b16 %v2108
    %v2373 = vunpack.c.l.b16 %v2109
    %v2374 = vunpack.c.h.b16 %v2109
    %v2375 = vunpack.c.l.b16 %v2110
    %v2376 = vunpack.c.h.b16 %v2110
    %v2377 = vunpack.c.l.b16 %v2111
    %v2378 = vunpack.c.h.b16 %v2111
    %v2379 = vunpack.c.l.b16 %v2112
    %v2380 = vunpack.c.h.b16 %v2112
    %v2381 = vunpack.c.l.b16 %v2113
    %v2382 = vunpack.c.h.b16 %v2113
    %v2383 = vunpack.c.l.b16 %v2114
    %v2384 = vunpack.c.h.b16 %v2114
    %v2385 = vunpack.c.l.b16 %v2115
    %v2386 = vunpack.c.h.b16 %v2115
    %v2387 = vunpack.c.l.b16 %v2116
    %v2388 = vunpack.c.h.b16 %v2116
    %v2389 = vunpack.c.l.b16 %v2117
    %v2390 = vunpack.c.h.b16 %v2117
    %v2391 = vunpack.c.l.b16 %v2118
    %v2392 = vunpack.c.h.b16 %v2118
    %v2393 = vunpack.c.l.b16 %v2119
    %v2394 = vunpack.c.h.b16 %v2119
    %v2395 = vunpack.c.l.b16 %v2120
    %v2396 = vunpack.c.h.b16 %v2120
    %v2397 = vunpack.c.l.b16 %v2121
    %v2398 = vunpack.c.h.b16 %v2121
    %v2399 = vunpack.c.l.b16 %v2122
    %v2400 = vunpack.c.h.b16 %v2122
    %v2401 = vunpack.c.l.b16 %v2123
    %v2402 = vunpack.c.h.b16 %v2123
    %v2403 = vunpack.c.l.b16 %v2124
    %v2404 = vunpack.c.h.b16 %v2124
    %v2405 = vunpack.c.l.b16 %v2125
    %v2406 = vunpack.c.h.b16 %v2125
    %v2407 = vunpack.c.l.b16 %v2126
    %v2408 = vunpack.c.h.b16 %v2126
    %v2409 = vpack.c.b16 %v2285, %v2281
    %v2410 = vpack.c.b16 %v2286, %v2282
    %v2411 = vpack.c.b16 %v2287, %v2283
    %v2412 = vpack.c.b16 %v2288, %v2284
    %v2413 = vpack.c.b16 %v2293, %v2289
    %v2414 = vpack.c.b16 %v2294, %v2290
    %v2415 = vpack.c.b16 %v2295, %v2291
    %v2416 = vpack.c.b16 %v2296, %v2292
    %v2417 = vpack.c.b16 %v2301, %v2297
    %v2418 = vpack.c.b16 %v2302, %v2298
    %v2419 = vpack.c.b16 %v2303, %v2299
    %v2420 = vpack.c.b16 %v2304, %v2300
    %v2421 = vpack.c.b16 %v2309, %v2305
    %v2422 = vpack.c.b16 %v2310, %v2306
    %v2423 = vpack.c.b16 %v2311, %v2307
    %v2424 = vpack.c.b16 %v2312, %v2308
    %v2425 = vpack.c.b16 %v2317, %v2313
    %v2426 = vpack.c.b16 %v2318, %v2314
    %v2427 = vpack.c.b16 %v2319, %v2315
    %v2428 = vpack.c.b16 %v2320, %v2316
    %v2429 = vpack.c.b16 %v2325, %v2321
    %v2430 = vpack.c.b16 %v2326, %v2322
    %v2431 = vpack.c.b16 %v2327, %v2323
    %v2432 = vpack.c.b16 %v2328, %v2324
    %v2433 = vpack.c.b16 %v2333, %v2329
    %v2434 = vpack.c.b16 %v2334, %v2330
    %v2435 = vpack.c.b16 %v2335, %v2331
    %v2436 = vpack.c.b16 %v2336, %v2332
    %v2437 = vpack.c.b16 %v2341, %v2337
    %v2438 = vpack.c.b16 %v2342, %v2338
    %v2439 = vpack.c.b16 %v2343, %v2339
    %v2440 = vpack.c.b16 %v2344, %v2340
    %v2441 = vpack.c.b16 %v2349, %v2345
    %v2442 = vpack.c.b16 %v2350, %v2346
    %v2443 = vpack.c.b16 %v2351, %v2347
    %v2444 = vpack.c.b16 %v2352, %v2348
    %v2445 = vpack.c.b16 %v2357, %v2353
    %v2446 = vpack.c.b16 %v2358, %v2354
    %v2447 = vpack.c.b16 %v2359, %v2355
    %v2448 = vpack.c.b16 %v2360, %v2356
    %v2449 = vpack.c.b16 %v2365, %v2361
    %v2450 = vpack.c.b16 %v2366, %v2362
    %v2451 = vpack.c.b16 %v2367, %v2363
    %v2452 = vpack.c.b16 %v2368, %v2364
    %v2453 = vpack.c.b16 %v2373, %v2369
    %v2454 = vpack.c.b16 %v2374, %v2370
    %v2455 = vpack.c.b16 %v2375, %v2371
    %v2456 = vpack.c.b16 %v2376, %v2372
    %v2457 = vpack.c.b16 %v2381, %v2377
    %v2458 = vpack.c.b16 %v2382, %v2378
    %v2459 = vpack.c.b16 %v2383, %v2379
    %v2460 = vpack.c.b16 %v2384, %v2380
    %v2461 = vpack.c.b16 %v2389, %v2385
    %v2462 = vpack.c.b16 %v2390, %v2386
    %v2463 = vpack.c.b16 %v2391, %v2387
    %v2464 = vpack.c.b16 %v2392, %v2388
    %v2465 = vpack.c.b16 %v2397, %v2393
    %v2466 = vpack.c.b16 %v2398, %v2394
    %v2467 = vpack.c.b16 %v2399, %v2395
    %v2468 = vpack.c.b16 %v2400, %v2396
    %v2469 = vpack.c.b16 %v2405, %v2401
    %v2470 = vpack.c.b16 %v2406, %v2402
    %v2471 = vpack.c.b16 %v2407, %v2403
    %v2472 = vpack.c.b16 %v2408, %v2404
    %2537 = vmatprep.subr.bf16.mxu0 %v2410
    %2538 = vmatpush1.bf16.msra.mxu0 %v2409
    %2539 = vmatprep.subr.bf16.mxu0 %v2414
    %2540 = vmatpush1.bf16.msra.mxu0 %v2413
    %2541 = vmatprep.subr.bf16.mxu0 %v2418
    %2542 = vmatpush1.bf16.msra.mxu0 %v2417
    %2543 = vmatprep.subr.bf16.mxu0 %v2422
    %2544 = vmatpush1.bf16.msra.mxu0 %v2421
    %2545 = vmatprep.subr.bf16.mxu0 %v2426
    %2546 = vmatpush1.bf16.msra.mxu0 %v2425
    %2547 = vmatprep.subr.bf16.mxu0 %v2430
    %2548 = vmatpush1.bf16.msra.mxu0 %v2429
    %2549 = vmatprep.subr.bf16.mxu0 %v2434
    %2550 = vmatpush1.bf16.msra.mxu0 %v2433
    %2551 = vmatprep.subr.bf16.mxu0 %v2438
    %2552 = vmatpush1.bf16.msra.mxu0 %v2437
    %2553 = vmatprep.subr.bf16.mxu0 %v2442
    %2554 = vmatpush1.bf16.msra.mxu0 %v2441
    %2555 = vmatprep.subr.bf16.mxu0 %v2446
    %2556 = vmatpush1.bf16.msra.mxu0 %v2445
    %2557 = vmatprep.subr.bf16.mxu0 %v2450
    %2558 = vmatpush1.bf16.msra.mxu0 %v2449
    %2559 = vmatprep.subr.bf16.mxu0 %v2454
    %2560 = vmatpush1.bf16.msra.mxu0 %v2453
    %2561 = vmatprep.subr.bf16.mxu0 %v2458
    %2562 = vmatpush1.bf16.msra.mxu0 %v2457
    %2563 = vmatprep.subr.bf16.mxu0 %v2462
    %2564 = vmatpush1.bf16.msra.mxu0 %v2461
    %2565 = vmatprep.subr.bf16.mxu0 %v2466
    %2566 = vmatpush1.bf16.msra.mxu0 %v2465
    %2567 = vmatprep.subr.bf16.mxu0 %v2470
    %2568 = vmatpush1.bf16.msra.mxu0 %v2469
    %2569 = vmatprep.mubr.bf16.mxu0 %v2195
    %2570 = vmatmul.mubr.bf16.gmra.mrb[0].mxu0 %v55
    %v2571 = vpop.f32.mrb[0].mxu0
    %v2572 = vadd.f32 %v2200, %v2571
    %v2573 = vpop.f32.mrb[0].mxu0
    %v2574 = vadd.f32 %v2204, %v2573
    %v2575 = vpop.f32.mrb[0].mxu0
    %v2576 = vpop.f32.mrb[0].mxu0
    %2577 = vdwg.mxu0
    %2578 = vmatprep.subr.bf16.mxu0 %v2412
    %2579 = vmatpush1.bf16.msra.mxu0 %v2411
    %2580 = vmatprep.subr.bf16.mxu0 %v2416
    %2581 = vmatpush1.bf16.msra.mxu0 %v2415
    %2582 = vmatprep.subr.bf16.mxu0 %v2420
    %2583 = vmatpush1.bf16.msra.mxu0 %v2419
    %2584 = vmatprep.subr.bf16.mxu0 %v2424
    %2585 = vmatpush1.bf16.msra.mxu0 %v2423
    %2586 = vmatprep.subr.bf16.mxu0 %v2428
    %2587 = vmatpush1.bf16.msra.mxu0 %v2427
    %2588 = vmatprep.subr.bf16.mxu0 %v2432
    %2589 = vmatpush1.bf16.msra.mxu0 %v2431
    %2590 = vmatprep.subr.bf16.mxu0 %v2436
    %2591 = vmatpush1.bf16.msra.mxu0 %v2435
    %2592 = vmatprep.subr.bf16.mxu0 %v2440
    %2593 = vmatpush1.bf16.msra.mxu0 %v2439
    %2594 = vmatprep.subr.bf16.mxu0 %v2444
    %2595 = vmatpush1.bf16.msra.mxu0 %v2443
    %2596 = vmatprep.subr.bf16.mxu0 %v2448
    %2597 = vmatpush1.bf16.msra.mxu0 %v2447
    %2598 = vmatprep.subr.bf16.mxu0 %v2452
    %2599 = vmatpush1.bf16.msra.mxu0 %v2451
    %2600 = vmatprep.subr.bf16.mxu0 %v2456
    %2601 = vmatpush1.bf16.msra.mxu0 %v2455
    %2602 = vmatprep.subr.bf16.mxu0 %v2460
    %2603 = vmatpush1.bf16.msra.mxu0 %v2459
    %2604 = vmatprep.subr.bf16.mxu0 %v2464
    %2605 = vmatpush1.bf16.msra.mxu0 %v2463
    %2606 = vmatprep.subr.bf16.mxu0 %v2468
    %2607 = vmatpush1.bf16.msra.mxu0 %v2467
    %2608 = vmatprep.subr.bf16.mxu0 %v2472
    %2609 = vmatpush1.bf16.msra.mxu0 %v2471
    %2610 = vmatprep.mubr.bf16.mxu0 %v2195
    %2611 = vmatmul.mubr.bf16.gmra.mrb[0].mxu0 %v55
    %v2612 = vpop.f32.mrb[0].mxu0
    %v2613 = vadd.f32 %v2208, %v2612
    %v2614 = vpop.f32.mrb[0].mxu0
    %v2615 = vadd.f32 %v2212, %v2614
    %v2616 = vpop.f32.mrb[0].mxu0
    %v2617 = vpop.f32.mrb[0].mxu0
    %2618 = vdwg.mxu0
    %v2619 = vxor.u32 %v2572, 2147483648
    %v2620 = vmul.f32 %v2619, 1.442695
    %v2621 = vpow.pop %v2620
    %v2622 = vadd.f32 %v2621, 1.0
    %v2623 = vrcp.pop %v2622
    %v2624 = vmul.f32 1.0, %v2623
    %v2625 = vxor.u32 %v2574, 2147483648
    %v2626 = vmul.f32 %v2625, 1.442695
    %v2627 = vpow.pop %v2626
    %v2628 = vadd.f32 %v2627, 1.0
    %v2629 = vrcp.pop %v2628
    %v2630 = vmul.f32 1.0, %v2629
    %v2631 = vtanh.pop %v2613
    %v2632 = vxor.u32 %v2615, 2147483648
    %v2633 = vmul.f32 %v2632, 1.442695
    %v2634 = vpow.pop %v2633
    %v2635 = vadd.f32 %v2634, 1.0
    %v2636 = vrcp.pop %v2635
    %v2637 = vmul.f32 1.0, %v2636
    %v2638 = vmul.f32 %v2630, %v1325
    %v2639 = vmul.f32 %v2624, %v2631
    %v2640 = vadd.f32 %v2638, %v2639
    %v2641 = vtanh.pop %v2640
    %v2642 = vmul.f32 %v2637, %v2641
    %v2643 = vpack.c.bf16 %v2642, %v2642
    %v2644 = vpack.c.bf16 %v2058, %v2058
    %v2646 = vlaneseq
    %v2647 = vshrl.u32 %v2646, 7
    %v2648 = vsub.s32 0, %v2647
    %v2649 = vrot.slane %v2194, %v2648
    %v2650 = vlaneseq
    %v2651 = vshrl.u32 %v2650, 7
    %v2652 = vsub.s32 1, %v2651
    %v2653 = vrot.slane %v2194, %v2652
    %v2654 = vlaneseq
    %v2655 = vshrl.u32 %v2654, 7
    %v2656 = vsub.s32 2, %v2655
    %v2657 = vrot.slane %v2194, %v2656
    %v2658 = vlaneseq
    %v2659 = vshrl.u32 %v2658, 7
    %v2660 = vsub.s32 3, %v2659
    %v2661 = vrot.slane %v2194, %v2660
    %v2730 = vunpack.c.l.b16 %v2128
    %v2731 = vunpack.c.h.b16 %v2128
    %v2732 = vunpack.c.l.b16 %v2129
    %v2733 = vunpack.c.h.b16 %v2129
    %v2734 = vunpack.c.l.b16 %v2130
    %v2735 = vunpack.c.h.b16 %v2130
    %v2736 = vunpack.c.l.b16 %v2131
    %v2737 = vunpack.c.h.b16 %v2131
    %v2738 = vunpack.c.l.b16 %v2132
    %v2739 = vunpack.c.h.b16 %v2132
    %v2740 = vunpack.c.l.b16 %v2133
    %v2741 = vunpack.c.h.b16 %v2133
    %v2742 = vunpack.c.l.b16 %v2134
    %v2743 = vunpack.c.h.b16 %v2134
    %v2744 = vunpack.c.l.b16 %v2135
    %v2745 = vunpack.c.h.b16 %v2135
    %v2746 = vunpack.c.l.b16 %v2136
    %v2747 = vunpack.c.h.b16 %v2136
    %v2748 = vunpack.c.l.b16 %v2137
    %v2749 = vunpack.c.h.b16 %v2137
    %v2750 = vunpack.c.l.b16 %v2138
    %v2751 = vunpack.c.h.b16 %v2138
    %v2752 = vunpack.c.l.b16 %v2139
    %v2753 = vunpack.c.h.b16 %v2139
    %v2754 = vunpack.c.l.b16 %v2140
    %v2755 = vunpack.c.h.b16 %v2140
    %v2756 = vunpack.c.l.b16 %v2141
    %v2757 = vunpack.c.h.b16 %v2141
    %v2758 = vunpack.c.l.b16 %v2142
    %v2759 = vunpack.c.h.b16 %v2142
    %v2760 = vunpack.c.l.b16 %v2143
    %v2761 = vunpack.c.h.b16 %v2143
    %v2762 = vunpack.c.l.b16 %v2144
    %v2763 = vunpack.c.h.b16 %v2144
    %v2764 = vunpack.c.l.b16 %v2145
    %v2765 = vunpack.c.h.b16 %v2145
    %v2766 = vunpack.c.l.b16 %v2146
    %v2767 = vunpack.c.h.b16 %v2146
    %v2768 = vunpack.c.l.b16 %v2147
    %v2769 = vunpack.c.h.b16 %v2147
    %v2770 = vunpack.c.l.b16 %v2148
    %v2771 = vunpack.c.h.b16 %v2148
    %v2772 = vunpack.c.l.b16 %v2149
    %v2773 = vunpack.c.h.b16 %v2149
    %v2774 = vunpack.c.l.b16 %v2150
    %v2775 = vunpack.c.h.b16 %v2150
    %v2776 = vunpack.c.l.b16 %v2151
    %v2777 = vunpack.c.h.b16 %v2151
    %v2778 = vunpack.c.l.b16 %v2152
    %v2779 = vunpack.c.h.b16 %v2152
    %v2780 = vunpack.c.l.b16 %v2153
    %v2781 = vunpack.c.h.b16 %v2153
    %v2782 = vunpack.c.l.b16 %v2154
    %v2783 = vunpack.c.h.b16 %v2154
    %v2784 = vunpack.c.l.b16 %v2155
    %v2785 = vunpack.c.h.b16 %v2155
    %v2786 = vunpack.c.l.b16 %v2156
    %v2787 = vunpack.c.h.b16 %v2156
    %v2788 = vunpack.c.l.b16 %v2157
    %v2789 = vunpack.c.h.b16 %v2157
    %v2790 = vunpack.c.l.b16 %v2158
    %v2791 = vunpack.c.h.b16 %v2158
    %v2792 = vunpack.c.l.b16 %v2159
    %v2793 = vunpack.c.h.b16 %v2159
    %v2794 = vunpack.c.l.b16 %v2160
    %v2795 = vunpack.c.h.b16 %v2160
    %v2796 = vunpack.c.l.b16 %v2161
    %v2797 = vunpack.c.h.b16 %v2161
    %v2798 = vunpack.c.l.b16 %v2162
    %v2799 = vunpack.c.h.b16 %v2162
    %v2800 = vunpack.c.l.b16 %v2163
    %v2801 = vunpack.c.h.b16 %v2163
    %v2802 = vunpack.c.l.b16 %v2164
    %v2803 = vunpack.c.h.b16 %v2164
    %v2804 = vunpack.c.l.b16 %v2165
    %v2805 = vunpack.c.h.b16 %v2165
    %v2806 = vunpack.c.l.b16 %v2166
    %v2807 = vunpack.c.h.b16 %v2166
    %v2808 = vunpack.c.l.b16 %v2167
    %v2809 = vunpack.c.h.b16 %v2167
    %v2810 = vunpack.c.l.b16 %v2168
    %v2811 = vunpack.c.h.b16 %v2168
    %v2812 = vunpack.c.l.b16 %v2169
    %v2813 = vunpack.c.h.b16 %v2169
    %v2814 = vunpack.c.l.b16 %v2170
    %v2815 = vunpack.c.h.b16 %v2170
    %v2816 = vunpack.c.l.b16 %v2171
    %v2817 = vunpack.c.h.b16 %v2171
    %v2818 = vunpack.c.l.b16 %v2172
    %v2819 = vunpack.c.h.b16 %v2172
    %v2820 = vunpack.c.l.b16 %v2173
    %v2821 = vunpack.c.h.b16 %v2173
    %v2822 = vunpack.c.l.b16 %v2174
    %v2823 = vunpack.c.h.b16 %v2174
    %v2824 = vunpack.c.l.b16 %v2175
    %v2825 = vunpack.c.h.b16 %v2175
    %v2826 = vunpack.c.l.b16 %v2176
    %v2827 = vunpack.c.h.b16 %v2176
    %v2828 = vunpack.c.l.b16 %v2177
    %v2829 = vunpack.c.h.b16 %v2177
    %v2830 = vunpack.c.l.b16 %v2178
    %v2831 = vunpack.c.h.b16 %v2178
    %v2832 = vunpack.c.l.b16 %v2179
    %v2833 = vunpack.c.h.b16 %v2179
    %v2834 = vunpack.c.l.b16 %v2180
    %v2835 = vunpack.c.h.b16 %v2180
    %v2836 = vunpack.c.l.b16 %v2181
    %v2837 = vunpack.c.h.b16 %v2181
    %v2838 = vunpack.c.l.b16 %v2182
    %v2839 = vunpack.c.h.b16 %v2182
    %v2840 = vunpack.c.l.b16 %v2183
    %v2841 = vunpack.c.h.b16 %v2183
    %v2842 = vunpack.c.l.b16 %v2184
    %v2843 = vunpack.c.h.b16 %v2184
    %v2844 = vunpack.c.l.b16 %v2185
    %v2845 = vunpack.c.h.b16 %v2185
    %v2846 = vunpack.c.l.b16 %v2186
    %v2847 = vunpack.c.h.b16 %v2186
    %v2848 = vunpack.c.l.b16 %v2187
    %v2849 = vunpack.c.h.b16 %v2187
    %v2850 = vunpack.c.l.b16 %v2188
    %v2851 = vunpack.c.h.b16 %v2188
    %v2852 = vunpack.c.l.b16 %v2189
    %v2853 = vunpack.c.h.b16 %v2189
    %v2854 = vunpack.c.l.b16 %v2190
    %v2855 = vunpack.c.h.b16 %v2190
    %v2856 = vunpack.c.l.b16 %v2191
    %v2857 = vunpack.c.h.b16 %v2191
    %v2858 = vpack.c.b16 %v2734, %v2730
    %v2859 = vpack.c.b16 %v2735, %v2731
    %v2860 = vpack.c.b16 %v2736, %v2732
    %v2861 = vpack.c.b16 %v2737, %v2733
    %v2862 = vpack.c.b16 %v2742, %v2738
    %v2863 = vpack.c.b16 %v2743, %v2739
    %v2864 = vpack.c.b16 %v2744, %v2740
    %v2865 = vpack.c.b16 %v2745, %v2741
    %v2866 = vpack.c.b16 %v2750, %v2746
    %v2867 = vpack.c.b16 %v2751, %v2747
    %v2868 = vpack.c.b16 %v2752, %v2748
    %v2869 = vpack.c.b16 %v2753, %v2749
    %v2870 = vpack.c.b16 %v2758, %v2754
    %v2871 = vpack.c.b16 %v2759, %v2755
    %v2872 = vpack.c.b16 %v2760, %v2756
    %v2873 = vpack.c.b16 %v2761, %v2757
    %v2874 = vpack.c.b16 %v2766, %v2762
    %v2875 = vpack.c.b16 %v2767, %v2763
    %v2876 = vpack.c.b16 %v2768, %v2764
    %v2877 = vpack.c.b16 %v2769, %v2765
    %v2878 = vpack.c.b16 %v2774, %v2770
    %v2879 = vpack.c.b16 %v2775, %v2771
    %v2880 = vpack.c.b16 %v2776, %v2772
    %v2881 = vpack.c.b16 %v2777, %v2773
    %v2882 = vpack.c.b16 %v2782, %v2778
    %v2883 = vpack.c.b16 %v2783, %v2779
    %v2884 = vpack.c.b16 %v2784, %v2780
    %v2885 = vpack.c.b16 %v2785, %v2781
    %v2886 = vpack.c.b16 %v2790, %v2786
    %v2887 = vpack.c.b16 %v2791, %v2787
    %v2888 = vpack.c.b16 %v2792, %v2788
    %v2889 = vpack.c.b16 %v2793, %v2789
    %v2890 = vpack.c.b16 %v2798, %v2794
    %v2891 = vpack.c.b16 %v2799, %v2795
    %v2892 = vpack.c.b16 %v2800, %v2796
    %v2893 = vpack.c.b16 %v2801, %v2797
    %v2894 = vpack.c.b16 %v2806, %v2802
    %v2895 = vpack.c.b16 %v2807, %v2803
    %v2896 = vpack.c.b16 %v2808, %v2804
    %v2897 = vpack.c.b16 %v2809, %v2805
    %v2898 = vpack.c.b16 %v2814, %v2810
    %v2899 = vpack.c.b16 %v2815, %v2811
    %v2900 = vpack.c.b16 %v2816, %v2812
    %v2901 = vpack.c.b16 %v2817, %v2813
    %v2902 = vpack.c.b16 %v2822, %v2818
    %v2903 = vpack.c.b16 %v2823, %v2819
    %v2904 = vpack.c.b16 %v2824, %v2820
    %v2905 = vpack.c.b16 %v2825, %v2821
    %v2906 = vpack.c.b16 %v2830, %v2826
    %v2907 = vpack.c.b16 %v2831, %v2827
    %v2908 = vpack.c.b16 %v2832, %v2828
    %v2909 = vpack.c.b16 %v2833, %v2829
    %v2910 = vpack.c.b16 %v2838, %v2834
    %v2911 = vpack.c.b16 %v2839, %v2835
    %v2912 = vpack.c.b16 %v2840, %v2836
    %v2913 = vpack.c.b16 %v2841, %v2837
    %v2914 = vpack.c.b16 %v2846, %v2842
    %v2915 = vpack.c.b16 %v2847, %v2843
    %v2916 = vpack.c.b16 %v2848, %v2844
    %v2917 = vpack.c.b16 %v2849, %v2845
    %v2918 = vpack.c.b16 %v2854, %v2850
    %v2919 = vpack.c.b16 %v2855, %v2851
    %v2920 = vpack.c.b16 %v2856, %v2852
    %v2921 = vpack.c.b16 %v2857, %v2853
    %2986 = vmatprep.subr.bf16.mxu0 %v2859
    %2987 = vmatpush1.bf16.msra.mxu0 %v2858
    %2988 = vmatprep.subr.bf16.mxu0 %v2863
    %2989 = vmatpush1.bf16.msra.mxu0 %v2862
    %2990 = vmatprep.subr.bf16.mxu0 %v2867
    %2991 = vmatpush1.bf16.msra.mxu0 %v2866
    %2992 = vmatprep.subr.bf16.mxu0 %v2871
    %2993 = vmatpush1.bf16.msra.mxu0 %v2870
    %2994 = vmatprep.subr.bf16.mxu0 %v2875
    %2995 = vmatpush1.bf16.msra.mxu0 %v2874
    %2996 = vmatprep.subr.bf16.mxu0 %v2879
    %2997 = vmatpush1.bf16.msra.mxu0 %v2878
    %2998 = vmatprep.subr.bf16.mxu0 %v2883
    %2999 = vmatpush1.bf16.msra.mxu0 %v2882
    %3000 = vmatprep.subr.bf16.mxu0 %v2887
    %3001 = vmatpush1.bf16.msra.mxu0 %v2886
    %3002 = vmatprep.subr.bf16.mxu0 %v2891
    %3003 = vmatpush1.bf16.msra.mxu0 %v2890
    %3004 = vmatprep.subr.bf16.mxu0 %v2895
    %3005 = vmatpush1.bf16.msra.mxu0 %v2894
    %3006 = vmatprep.subr.bf16.mxu0 %v2899
    %3007 = vmatpush1.bf16.msra.mxu0 %v2898
    %3008 = vmatprep.subr.bf16.mxu0 %v2903
    %3009 = vmatpush1.bf16.msra.mxu0 %v2902
    %3010 = vmatprep.subr.bf16.mxu0 %v2907
    %3011 = vmatpush1.bf16.msra.mxu0 %v2906
    %3012 = vmatprep.subr.bf16.mxu0 %v2911
    %3013 = vmatpush1.bf16.msra.mxu0 %v2910
    %3014 = vmatprep.subr.bf16.mxu0 %v2915
    %3015 = vmatpush1.bf16.msra.mxu0 %v2914
    %3016 = vmatprep.subr.bf16.mxu0 %v2919
    %3017 = vmatpush1.bf16.msra.mxu0 %v2918
    %3018 = vmatprep.mubr.bf16.mxu0 %v2644
    %3019 = vmatmul.mubr.bf16.gmra.mrb[0].mxu0 %v2643
    %v3020 = vpop.f32.mrb[0].mxu0
    %v3021 = vadd.f32 %v2649, %v3020
    %v3022 = vpop.f32.mrb[0].mxu0
    %v3023 = vadd.f32 %v2653, %v3022
    %v3024 = vpop.f32.mrb[0].mxu0
    %v3025 = vpop.f32.mrb[0].mxu0
    %3026 = vdwg.mxu0
    %3027 = vmatprep.subr.bf16.mxu0 %v2861
    %3028 = vmatpush1.bf16.msra.mxu0 %v2860
    %3029 = vmatprep.subr.bf16.mxu0 %v2865
    %3030 = vmatpush1.bf16.msra.mxu0 %v2864
    %3031 = vmatprep.subr.bf16.mxu0 %v2869
    %3032 = vmatpush1.bf16.msra.mxu0 %v2868
    %3033 = vmatprep.subr.bf16.mxu0 %v2873
    %3034 = vmatpush1.bf16.msra.mxu0 %v2872
    %3035 = vmatprep.subr.bf16.mxu0 %v2877
    %3036 = vmatpush1.bf16.msra.mxu0 %v2876
    %3037 = vmatprep.subr.bf16.mxu0 %v2881
    %3038 = vmatpush1.bf16.msra.mxu0 %v2880
    %3039 = vmatprep.subr.bf16.mxu0 %v2885
    %3040 = vmatpush1.bf16.msra.mxu0 %v2884
    %3041 = vmatprep.subr.bf16.mxu0 %v2889
    %3042 = vmatpush1.bf16.msra.mxu0 %v2888
    %3043 = vmatprep.subr.bf16.mxu0 %v2893
    %3044 = vmatpush1.bf16.msra.mxu0 %v2892
    %3045 = vmatprep.subr.bf16.mxu0 %v2897
    %3046 = vmatpush1.bf16.msra.mxu0 %v2896
    %3047 = vmatprep.subr.bf16.mxu0 %v2901
    %3048 = vmatpush1.bf16.msra.mxu0 %v2900
    %3049 = vmatprep.subr.bf16.mxu0 %v2905
    %3050 = vmatpush1.bf16.msra.mxu0 %v2904
    %3051 = vmatprep.subr.bf16.mxu0 %v2909
    %3052 = vmatpush1.bf16.msra.mxu0 %v2908
    %3053 = vmatprep.subr.bf16.mxu0 %v2913
    %3054 = vmatpush1.bf16.msra.mxu0 %v2912
    %3055 = vmatprep.subr.bf16.mxu0 %v2917
    %3056 = vmatpush1.bf16.msra.mxu0 %v2916
    %3057 = vmatprep.subr.bf16.mxu0 %v2921
    %3058 = vmatpush1.bf16.msra.mxu0 %v2920
    %3059 = vmatprep.mubr.bf16.mxu0 %v2644
    %3060 = vmatmul.mubr.bf16.gmra.mrb[0].mxu0 %v2643
    %v3061 = vpop.f32.mrb[0].mxu0
    %v3062 = vadd.f32 %v2657, %v3061
    %v3063 = vpop.f32.mrb[0].mxu0
    %v3064 = vadd.f32 %v2661, %v3063
    %v3065 = vpop.f32.mrb[0].mxu0
    %v3066 = vpop.f32.mrb[0].mxu0
    %3067 = vdwg.mxu0
    %v3068 = vxor.u32 %v3021, 2147483648
    %v3069 = vmul.f32 %v3068, 1.442695
    %v3070 = vpow.pop %v3069
    %v3071 = vadd.f32 %v3070, 1.0
    %v3072 = vrcp.pop %v3071
    %v3073 = vmul.f32 1.0, %v3072
    %v3074 = vxor.u32 %v3023, 2147483648
    %v3075 = vmul.f32 %v3074, 1.442695
    %v3076 = vpow.pop %v3075
    %v3077 = vadd.f32 %v3076, 1.0
    %v3078 = vrcp.pop %v3077
    %v3079 = vmul.f32 1.0, %v3078
    %v3080 = vtanh.pop %v3062
    %v3081 = vxor.u32 %v3064, 2147483648
    %v3082 = vmul.f32 %v3081, 1.442695
    %v3083 = vpow.pop %v3082
    %v3084 = vadd.f32 %v3083, 1.0
    %v3085 = vrcp.pop %v3084
    %v3086 = vmul.f32 1.0, %v3085
    %v3087 = vmul.f32 %v3079, %v1500
    %v3088 = vmul.f32 %v3073, %v3080
    %v3089 = vadd.f32 %v3087, %v3088
    %v3090 = vtanh.pop %v3089
    %v3091 = vmul.f32 %v3086, %v3090
    %3092 = vst [vmem:[%s15] sm:$0x3] %v2642
    %s3093 = scalar_lea.vmem %s15, 2
    %3094 = vst [vmem:[%s3093] sm:$0x3] %v3091
    %3095 = vst [vmem:[#allocation2] sm:$0x3] %v2640
    %s3096 = scalar_lea.vmem [#allocation2], 2
    %3097 = vst [vmem:[%s3096] sm:$0x3] %v3089
    // Predicated region
    $region62: #{forward.6} parent=1 // pred_check
      _
    $region63: #{forward.6} parent=1 // pred_check_branch
      %3099 = sbr.rel (0) target = $region65
    $region64: #{forward.6} parent=1 // pred_region
      _
    $region65: #{forward.6} parent=1 // pred_fallthru
      _
    // Predicated region
    $region66: #{forward.6} parent=1 // pred_check
      _
    $region67: #{forward.6} parent=1 // pred_check_branch
      %3101 = sbr.rel (0) target = $region69
    $region68: #{forward.6} parent=1 // pred_region
      %s3103 = ssub.s32 64, 64
      %3104 = vsyncadd [#allocation3], %s3103
      %s3105 = sshll.u32 [#allocation2], 4
      %s3106 = int_to_ptr.vmem [resolvable:$true] %s3105
      %3111 = dma.vmem_to_hbm [thread:$0]  %s3106, 64, %s16, [#allocation3], 32, 32, 2
    $region69: #{forward.6} parent=1 // pred_fallthru
      _
    // Predicated region
    $region70: #{forward.6} parent=1 // pred_check
      _
    $region71: #{forward.6} parent=1 // pred_check_branch
      %3113 = sbr.rel (0) target = $region73
    $region72: #{forward.6} parent=1 // pred_region
      _
    $region73: #{forward.6} parent=1 // pred_fallthru
      _
    // Predicated region
    $region74: #{forward.6} parent=1 // pred_check
      _
    $region75: #{forward.6} parent=1 // pred_check_branch
      %3115 = sbr.rel (0) target = $region77
    $region76: #{forward.6} parent=1 // pred_region
      %3116 = dma.done [#allocation3], 64
    $region77: #{forward.6} parent=1 // pred_fallthru
      _
    %3117 = vsyncpa [#allocation3], 1

// kernel: forward.7
$region0: #{forward.7}
  #allocation0 [shape = 'u32[]', space=smem, size = 0x4, offset = 0x4, fixed_abs, tag = 'smem constant byte address 0x4 - core index']
  #allocation1 [shape = 'u32[144,128]{1,0:T(1,128)}', space=vmem, size = 0x12000, scoped, tag = 'internal scratch']
  %s0 = inlined_call_operand.vmem [shape: f32[6,2,128], index: 0, kind: input, shape index: {}]
  %s1 = inlined_call_operand.vmem [shape: bf16[6,128,640], index: 1, kind: input, shape index: {}]
  %s2 = inlined_call_operand.vmem [shape: f32[6,1,640], index: 2, kind: input, shape index: {}]
  %s3 = inlined_call_operand.vmem [shape: f32[6,1,640], index: 3, kind: input, shape index: {}]
  %s4 = inlined_call_operand.vmem [shape: f32[6,1,640], index: 4, kind: input, shape index: {}]
  %s5 = inlined_call_operand.vmem [shape: bf16[6,640,640], index: 5, kind: input, shape index: {}]
  %s6 = inlined_call_operand.vmem [shape: f32[6,1,640], index: 6, kind: input, shape index: {}]
  %s7 = inlined_call_operand.hbm [shape: f32[6,2,640], index: 7, kind: output, shape index: {}]
  %s8 = sld [smem:[#allocation0]]
  $region61: #{forward.7} parent=0
    _
  %s10 = ssub.s32 1, %s8
  %s11 = scalar_select 0, %s10, %s8
  $region1: #{forward.7} parent=0
    #allocation2 [shape = 'u8[10240]{0}', space=vmem, size = 0x2800, scoped, tag = 'output window, operand 0']
    #allocation3 [shape = 's32[2]{0}', space=sflag, size = 0x8, scoped, tag = 'scoped memory for forward.7']
    %12 = vsyncpa [#allocation3], 0
    %s13 = scalar_lea.sflag [#allocation3], 1
    %14 = vsyncpa %s13, 0
    loop: start=0, step=1, limit=8
    $region2: #{forward.7} parent=1 // loop_pre_header
      _
    $region3: #{forward.7} parent=1 // loop_header
      %s16 = sphi 0, %s20
      %p17 = scmp.ge.s32.totalorder %s16, 8
      %s26 = sphi 0, %s28
      %s29 = sphi 0, %s26
      %s30 = sphi 0, %s29
      %s46 = sphi 0, %s30
      %s52 = sphi 0, %s54
      %s55 = sphi 0, %s52
      %s56 = sphi 0, %s55
      %s72 = sphi 0, %s56
      %s78 = sphi 0, %s80
      %s81 = sphi 0, %s78
      %s82 = sphi 0, %s81
      %s98 = sphi 0, %s82
      %s104 = sphi 0, %s106
      %s107 = sphi 0, %s104
      %s108 = sphi 0, %s107
      %s124 = sphi 0, %s108
      %s130 = sphi 0, %s132
      %s133 = sphi 0, %s130
      %s134 = sphi 0, %s133
      %s150 = sphi 0, %s134
      %s156 = sphi 0, %s158
      %s159 = sphi 0, %s156
      %s160 = sphi 0, %s159
      %s176 = sphi 0, %s160
      %s182 = sphi 0, %s184
      %s185 = sphi 0, %s182
      %s186 = sphi 0, %s185
      %s202 = sphi 0, %s186
      %s208 = sphi 0, %s210
      %s211 = sphi 0, %s208
      %s212 = sphi 0, %s211
      %s228 = sphi 0, %s212
    $region4: #{forward.7} parent=1 // loop_header_branch
      %19 = sbr.rel (%p17) target = $region8
    $region5: #{forward.7} parent=1 // loop_body
      %s21 = ssub.s32 %s16, 1
      %s22 = ssub.s32 %s16, 2
      %s23 = sadd.s32 %s16, 1
      %s24 = ssub.s32 %s16, %s23
      %p25 = scmp.eq.s32.totalorder %s24, 0
      %s27 = sadd.s32 %s26, 1
      %s28 = scalar_select %p25, %s26, %s27
      %p31 = pneg %p25
      %p32 = scmp.eq.s32.totalorder %s16, 5
      %p33 = por %p31, %p32
      %p34 = scmp.ne.s32.totalorder %s26, %s29
      %p35 = scmp.eq.s32.totalorder %s16, 0
      %p36 = por %p34, %p35
      %p37 = scmp.ne.s32.totalorder %s26, %s29
      %p38 = scmp.eq.s32.totalorder %s21, 5
      %p39 = por %p37, %p38
      %p40 = scmp.ne.s32.totalorder %s29, %s30
      %p41 = scmp.eq.s32.totalorder %s21, 0
      %p42 = por %p40, %p41
      %p43 = scmp.ne.s32.totalorder %s29, %s30
      %p44 = scmp.eq.s32.totalorder %s22, 5
      %p45 = por %p43, %p44
      %p47 = scmp.ne.s32.totalorder %s30, %s46
      %p48 = scmp.eq.s32.totalorder %s22, 0
      %p49 = por %p47, %p48
      %s50 = ssub.s32 %s16, %s23
      %p51 = scmp.eq.s32.totalorder %s50, 0
      %s53 = sadd.s32 %s52, 1
      %s54 = scalar_select %p51, %s52, %s53
      %p57 = pneg %p51
      %p58 = scmp.eq.s32.totalorder %s16, 5
      %p59 = por %p57, %p58
      %p60 = scmp.ne.s32.totalorder %s52, %s55
      %p61 = scmp.eq.s32.totalorder %s16, 0
      %p62 = por %p60, %p61
      %p63 = scmp.ne.s32.totalorder %s52, %s55
      %p64 = scmp.eq.s32.totalorder %s21, 5
      %p65 = por %p63, %p64
      %p66 = scmp.ne.s32.totalorder %s55, %s56
      %p67 = scmp.eq.s32.totalorder %s21, 0
      %p68 = por %p66, %p67
      %p69 = scmp.ne.s32.totalorder %s55, %s56
      %p70 = scmp.eq.s32.totalorder %s22, 5
      %p71 = por %p69, %p70
      %p73 = scmp.ne.s32.totalorder %s56, %s72
      %p74 = scmp.eq.s32.totalorder %s22, 0
      %p75 = por %p73, %p74
      %s76 = ssub.s32 %s16, %s23
      %p77 = scmp.eq.s32.totalorder %s76, 0
      %s79 = sadd.s32 %s78, 1
      %s80 = scalar_select %p77, %s78, %s79
      %p83 = pneg %p77
      %p84 = scmp.eq.s32.totalorder %s16, 5
      %p85 = por %p83, %p84
      %p86 = scmp.ne.s32.totalorder %s78, %s81
      %p87 = scmp.eq.s32.totalorder %s16, 0
      %p88 = por %p86, %p87
      %p89 = scmp.ne.s32.totalorder %s78, %s81
      %p90 = scmp.eq.s32.totalorder %s21, 5
      %p91 = por %p89, %p90
      %p92 = scmp.ne.s32.totalorder %s81, %s82
      %p93 = scmp.eq.s32.totalorder %s21, 0
      %p94 = por %p92, %p93
      %p95 = scmp.ne.s32.totalorder %s81, %s82
      %p96 = scmp.eq.s32.totalorder %s22, 5
      %p97 = por %p95, %p96
      %p99 = scmp.ne.s32.totalorder %s82, %s98
      %p100 = scmp.eq.s32.totalorder %s22, 0
      %p101 = por %p99, %p100
      %s102 = ssub.s32 %s16, %s23
      %p103 = scmp.eq.s32.totalorder %s102, 0
      %s105 = sadd.s32 %s104, 1
      %s106 = scalar_select %p103, %s104, %s105
      %p109 = pneg %p103
      %p110 = scmp.eq.s32.totalorder %s16, 5
      %p111 = por %p109, %p110
      %p112 = scmp.ne.s32.totalorder %s104, %s107
      %p113 = scmp.eq.s32.totalorder %s16, 0
      %p114 = por %p112, %p113
      %p115 = scmp.ne.s32.totalorder %s104, %s107
      %p116 = scmp.eq.s32.totalorder %s21, 5
      %p117 = por %p115, %p116
      %p118 = scmp.ne.s32.totalorder %s107, %s108
      %p119 = scmp.eq.s32.totalorder %s21, 0
      %p120 = por %p118, %p119
      %p121 = scmp.ne.s32.totalorder %s107, %s108
      %p122 = scmp.eq.s32.totalorder %s22, 5
      %p123 = por %p121, %p122
      %p125 = scmp.ne.s32.totalorder %s108, %s124
      %p126 = scmp.eq.s32.totalorder %s22, 0
      %p127 = por %p125, %p126
      %s128 = ssub.s32 %s16, %s23
      %p129 = scmp.eq.s32.totalorder %s128, 0
      %s131 = sadd.s32 %s130, 1
      %s132 = scalar_select %p129, %s130, %s131
      %p135 = pneg %p129
      %p136 = scmp.eq.s32.totalorder %s16, 5
      %p137 = por %p135, %p136
      %p138 = scmp.ne.s32.totalorder %s130, %s133
      %p139 = scmp.eq.s32.totalorder %s16, 0
      %p140 = por %p138, %p139
      %p141 = scmp.ne.s32.totalorder %s130, %s133
      %p142 = scmp.eq.s32.totalorder %s21, 5
      %p143 = por %p141, %p142
      %p144 = scmp.ne.s32.totalorder %s133, %s134
      %p145 = scmp.eq.s32.totalorder %s21, 0
      %p146 = por %p144, %p145
      %p147 = scmp.ne.s32.totalorder %s133, %s134
      %p148 = scmp.eq.s32.totalorder %s22, 5
      %p149 = por %p147, %p148
      %p151 = scmp.ne.s32.totalorder %s134, %s150
      %p152 = scmp.eq.s32.totalorder %s22, 0
      %p153 = por %p151, %p152
      %s154 = ssub.s32 %s16, %s23
      %p155 = scmp.eq.s32.totalorder %s154, 0
      %s157 = sadd.s32 %s156, 1
      %s158 = scalar_select %p155, %s156, %s157
      %p161 = pneg %p155
      %p162 = scmp.eq.s32.totalorder %s16, 5
      %p163 = por %p161, %p162
      %p164 = scmp.ne.s32.totalorder %s156, %s159
      %p165 = scmp.eq.s32.totalorder %s16, 0
      %p166 = por %p164, %p165
      %p167 = scmp.ne.s32.totalorder %s156, %s159
      %p168 = scmp.eq.s32.totalorder %s21, 5
      %p169 = por %p167, %p168
      %p170 = scmp.ne.s32.totalorder %s159, %s160
      %p171 = scmp.eq.s32.totalorder %s21, 0
      %p172 = por %p170, %p171
      %p173 = scmp.ne.s32.totalorder %s159, %s160
      %p174 = scmp.eq.s32.totalorder %s22, 5
      %p175 = por %p173, %p174
      %p177 = scmp.ne.s32.totalorder %s160, %s176
      %p178 = scmp.eq.s32.totalorder %s22, 0
      %p179 = por %p177, %p178
      %s180 = ssub.s32 %s16, %s23
      %p181 = scmp.eq.s32.totalorder %s180, 0
      %s183 = sadd.s32 %s182, 1
      %s184 = scalar_select %p181, %s182, %s183
      %p187 = pneg %p181
      %p188 = scmp.eq.s32.totalorder %s16, 5
      %p189 = por %p187, %p188
      %p190 = scmp.ne.s32.totalorder %s182, %s185
      %p191 = scmp.eq.s32.totalorder %s16, 0
      %p192 = por %p190, %p191
      %p193 = scmp.ne.s32.totalorder %s182, %s185
      %p194 = scmp.eq.s32.totalorder %s21, 5
      %p195 = por %p193, %p194
      %p196 = scmp.ne.s32.totalorder %s185, %s186
      %p197 = scmp.eq.s32.totalorder %s21, 0
      %p198 = por %p196, %p197
      %p199 = scmp.ne.s32.totalorder %s185, %s186
      %p200 = scmp.eq.s32.totalorder %s22, 5
      %p201 = por %p199, %p200
      %p203 = scmp.ne.s32.totalorder %s186, %s202
      %p204 = scmp.eq.s32.totalorder %s22, 0
      %p205 = por %p203, %p204
      %s206 = ssub.s32 %s16, %s23
      %p207 = scmp.eq.s32.totalorder %s206, 0
      %s209 = sadd.s32 %s208, 1
      %s210 = scalar_select %p207, %s208, %s209
      %p213 = pneg %p207
      %p214 = scmp.eq.s32.totalorder %s16, 5
      %p215 = por %p213, %p214
      %p216 = scmp.ne.s32.totalorder %s208, %s211
      %p217 = scmp.eq.s32.totalorder %s16, 0
      %p218 = por %p216, %p217
      %p219 = scmp.ne.s32.totalorder %s208, %s211
      %p220 = scmp.eq.s32.totalorder %s21, 5
      %p221 = por %p219, %p220
      %p222 = scmp.ne.s32.totalorder %s211, %s212
      %p223 = scmp.eq.s32.totalorder %s21, 0
      %p224 = por %p222, %p223
      %p225 = scmp.ne.s32.totalorder %s211, %s212
      %p226 = scmp.eq.s32.totalorder %s22, 5
      %p227 = por %p225, %p226
      %p229 = scmp.ne.s32.totalorder %s212, %s228
      %p230 = scmp.eq.s32.totalorder %s22, 0
      %p231 = por %p229, %p230
      %p232 = scmp.le.s32.totalorder 1, %s16
      %p233 = scmp.lt.s32.totalorder %s16, 7
      %p234 = pnand %p232, %p233
      %p235 = pneg %p234
      // Predicated region
      $region9: #{forward.7} parent=5 // pred_check
        _
      $region10: #{forward.7} parent=5 // pred_check_branch
        %237 = sbr.rel (%p234) target = $region12
      $region11: #{forward.7} parent=5 // pred_region
        %s238 = ssub.s32 %s16, 1
      $region12: #{forward.7} parent=5 // pred_fallthru
        _
      %p239 = scmp.lt.s32.totalorder %s16, 6
      // Predicated region
      $region13: #{forward.7} parent=5 // pred_check
        %p240 = pneg %p239
      $region14: #{forward.7} parent=5 // pred_check_branch
        %242 = sbr.rel (%p240) target = $region16
      $region15: #{forward.7} parent=5 // pred_region
        // Predicated region
        $region17: #{forward.7} parent=15 // pred_check
          %p243 = pneg %p36
        $region18: #{forward.7} parent=15 // pred_check_branch
          %245 = sbr.rel (%p243) target = $region20
        $region19: #{forward.7} parent=15 // pred_region
          %p246 = scmp.lt.s32.totalorder %s16, 5
          %s247 = scalar_select %p246, %s16, 5
          %s248 = smul.addr %s247, 2
          %s249 = scalar_lea.vmem %s0, %s248
        $region20: #{forward.7} parent=15 // pred_fallthru
          _
        // Predicated region
        $region21: #{forward.7} parent=15 // pred_check
          %p250 = pneg %p62
        $region22: #{forward.7} parent=15 // pred_check_branch
          %252 = sbr.rel (%p250) target = $region24
        $region23: #{forward.7} parent=15 // pred_region
          %p253 = scmp.lt.s32.totalorder %s16, 5
          %s254 = scalar_select %p253, %s16, 5
          %s255 = smul.addr %s254, 80
          %s256 = smul.addr %s255, 4
          %s257 = scalar_lea.vmem %s1, %s256
        $region24: #{forward.7} parent=15 // pred_fallthru
          _
        // Predicated region
        $region25: #{forward.7} parent=15 // pred_check
          %p258 = pneg %p88
        $region26: #{forward.7} parent=15 // pred_check_branch
          %260 = sbr.rel (%p258) target = $region28
        $region27: #{forward.7} parent=15 // pred_region
          %p261 = scmp.lt.s32.totalorder %s16, 5
          %s262 = scalar_select %p261, %s16, 5
          %s263 = smul.addr %s262, 5
          %s264 = scalar_lea.vmem %s2, %s263
        $region28: #{forward.7} parent=15 // pred_fallthru
          _
        // Predicated region
        $region29: #{forward.7} parent=15 // pred_check
          %p265 = pneg %p114
        $region30: #{forward.7} parent=15 // pred_check_branch
          %267 = sbr.rel (%p265) target = $region32
        $region31: #{forward.7} parent=15 // pred_region
          %p268 = scmp.lt.s32.totalorder %s16, 5
          %s269 = scalar_select %p268, %s16, 5
          %s270 = smul.addr %s269, 5
          %s271 = scalar_lea.vmem %s3, %s270
        $region32: #{forward.7} parent=15 // pred_fallthru
          _
        // Predicated region
        $region33: #{forward.7} parent=15 // pred_check
          %p272 = pneg %p140
        $region34: #{forward.7} parent=15 // pred_check_branch
          %274 = sbr.rel (%p272) target = $region36
        $region35: #{forward.7} parent=15 // pred_region
          %p275 = scmp.lt.s32.totalorder %s16, 5
          %s276 = scalar_select %p275, %s16, 5
          %s277 = smul.addr %s276, 5
          %s278 = scalar_lea.vmem %s4, %s277
        $region36: #{forward.7} parent=15 // pred_fallthru
          _
        // Predicated region
        $region37: #{forward.7} parent=15 // pred_check
          %p279 = pneg %p166
        $region38: #{forward.7} parent=15 // pred_check_branch
          %281 = sbr.rel (%p279) target = $region40
        $region39: #{forward.7} parent=15 // pred_region
          %p282 = scmp.lt.s32.totalorder %s16, 5
          %s283 = scalar_select %p282, %s16, 5
          %s284 = smul.addr %s283, 400
          %s285 = smul.addr %s284, 4
          %s286 = scalar_lea.vmem %s5, %s285
        $region40: #{forward.7} parent=15 // pred_fallthru
          _
        // Predicated region
        $region41: #{forward.7} parent=15 // pred_check
          %p287 = pneg %p192
        $region42: #{forward.7} parent=15 // pred_check_branch
          %289 = sbr.rel (%p287) target = $region44
        $region43: #{forward.7} parent=15 // pred_region
          %p290 = scmp.lt.s32.totalorder %s16, 5
          %s291 = scalar_select %p290, %s16, 5
          %s292 = smul.addr %s291, 5
          %s293 = scalar_lea.vmem %s6, %s292
        $region44: #{forward.7} parent=15 // pred_fallthru
          _
      $region16: #{forward.7} parent=5 // pred_fallthru
        _
      %p294 = scmp.le.s32.totalorder 1, %s16
      %p295 = scmp.lt.s32.totalorder %s16, 7
      %p296 = pnand %p294, %p295
      %p297 = pneg %p296
      // Predicated region
      $region45: #{forward.7} parent=5 // pred_check
        _
      $region46: #{forward.7} parent=5 // pred_check_branch
        %299 = sbr.rel (%p296) target = $region48
      $region47: #{forward.7} parent=5 // pred_region
        %s300 = ssub.s32 %s16, 1
        %p301 = scmp.lt.s32.totalorder %s21, 5
        %s302 = scalar_select %p301, %s21, 5
        %s303 = smul.addr %s302, 2
        %s304 = scalar_lea.vmem %s0, %s303
        %p305 = pneg %p42
        %p306 = pneg %p39
        %p307 = scmp.lt.s32.totalorder %s21, 5
        %s308 = scalar_select %p307, %s21, 5
        %s309 = smul.addr %s308, 80
        %s310 = smul.addr %s309, 4
        %s311 = scalar_lea.vmem %s1, %s310
        %p312 = pneg %p68
        %p313 = pneg %p65
        %p314 = scmp.lt.s32.totalorder %s21, 5
        %s315 = scalar_select %p314, %s21, 5
        %s316 = smul.addr %s315, 5
        %s317 = scalar_lea.vmem %s2, %s316
        %p318 = pneg %p94
        %p319 = pneg %p91
        %p320 = scmp.lt.s32.totalorder %s21, 5
        %s321 = scalar_select %p320, %s21, 5
        %s322 = smul.addr %s321, 5
        %s323 = scalar_lea.vmem %s3, %s322
        %p324 = pneg %p120
        %p325 = pneg %p117
        %p326 = scmp.lt.s32.totalorder %s21, 5
        %s327 = scalar_select %p326, %s21, 5
        %s328 = smul.addr %s327, 5
        %s329 = scalar_lea.vmem %s4, %s328
        %p330 = pneg %p146
        %p331 = pneg %p143
        %p332 = scmp.lt.s32.totalorder %s21, 5
        %s333 = scalar_select %p332, %s21, 5
        %s334 = smul.addr %s333, 400
        %s335 = smul.addr %s334, 4
        %s336 = scalar_lea.vmem %s5, %s335
        %p337 = pneg %p172
        %p338 = pneg %p169
        %p339 = scmp.lt.s32.totalorder %s21, 5
        %s340 = scalar_select %p339, %s21, 5
        %s341 = smul.addr %s340, 5
        %s342 = scalar_lea.vmem %s6, %s341
        %p343 = pneg %p198
        %p344 = pneg %p195
        %p345 = pneg %p224
        %p346 = pneg %p221
        %s347 = sand.u32 %s211, 1
        %s348 = scalar_lea.sflag [#allocation3], %s347
        %s349 = sand.u32 %s211, 1
        %s350 = smul.addr %s349, 10
        %s351 = scalar_lea.vmem [#allocation2], %s350
        %p352 = scmp.lt.s32.totalorder %s21, 5
        %s353 = scalar_select %p352, %s21, 5
        %s354 = smul.addr %s353, 2
        %s355 = scalar_lea.vmem %s0, %s354
        %p356 = scmp.lt.s32.totalorder %s21, 5
        %s357 = scalar_select %p356, %s21, 5
        %s358 = smul.addr %s357, 80
        %s359 = smul.addr %s358, 4
        %s360 = scalar_lea.vmem %s1, %s359
        %p361 = scmp.lt.s32.totalorder %s21, 5
        %s362 = scalar_select %p361, %s21, 5
        %s363 = smul.addr %s362, 5
        %s364 = scalar_lea.vmem %s2, %s363
        %p365 = scmp.lt.s32.totalorder %s21, 5
        %s366 = scalar_select %p365, %s21, 5
        %s367 = smul.addr %s366, 5
        %s368 = scalar_lea.vmem %s3, %s367
        %p369 = scmp.lt.s32.totalorder %s21, 5
        %s370 = scalar_select %p369, %s21, 5
        %s371 = smul.addr %s370, 5
        %s372 = scalar_lea.vmem %s4, %s371
        %p373 = scmp.lt.s32.totalorder %s21, 5
        %s374 = scalar_select %p373, %s21, 5
        %s375 = smul.addr %s374, 400
        %s376 = smul.addr %s375, 4
        %s377 = scalar_lea.vmem %s5, %s376
        %p378 = scmp.lt.s32.totalorder %s21, 5
        %s379 = scalar_select %p378, %s21, 5
        %s380 = smul.addr %s379, 5
        %s381 = scalar_lea.vmem %s6, %s380
        %v383 = vld [vmem:[%s355] sm:$0x3]
        %v384 = vld [vmem:[%s360] sm:$0xff]
        %v385 = vld [vmem:[%s360 + $0x8] sm:$0xff]
        %v386 = vld [vmem:[%s360 + $0x10] sm:$0xf]
        %v387 = vld [vmem:[%s360 + $0x14] sm:$0xff]
        %v388 = vld [vmem:[%s360 + $0x1c] sm:$0xff]
        %v389 = vld [vmem:[%s360 + $0x24] sm:$0xf]
        %v390 = vld [vmem:[%s360 + $0x28] sm:$0xff]
        %v391 = vld [vmem:[%s360 + $0x30] sm:$0xff]
        %v392 = vld [vmem:[%s360 + $0x38] sm:$0xf]
        %v393 = vld [vmem:[%s360 + $0x3c] sm:$0xff]
        %v394 = vld [vmem:[%s360 + $0x44] sm:$0xff]
        %v395 = vld [vmem:[%s360 + $0x4c] sm:$0xf]
        %v396 = vld [vmem:[%s360 + $0x50] sm:$0xff]
        %v397 = vld [vmem:[%s360 + $0x58] sm:$0xff]
        %v398 = vld [vmem:[%s360 + $0x60] sm:$0xf]
        %v399 = vld [vmem:[%s360 + $0x64] sm:$0xff]
        %v400 = vld [vmem:[%s360 + $0x6c] sm:$0xff]
        %v401 = vld [vmem:[%s360 + $0x74] sm:$0xf]
        %v402 = vld [vmem:[%s360 + $0x78] sm:$0xff]
        %v403 = vld [vmem:[%s360 + $0x80] sm:$0xff]
        %v404 = vld [vmem:[%s360 + $0x88] sm:$0xf]
        %v405 = vld [vmem:[%s360 + $0x8c] sm:$0xff]
        %v406 = vld [vmem:[%s360 + $0x94] sm:$0xff]
        %v407 = vld [vmem:[%s360 + $0x9c] sm:$0xf]
        %v408 = vld [vmem:[%s360 + $0xa0] sm:$0xff]
        %v409 = vld [vmem:[%s360 + $0xa8] sm:$0xff]
        %v410 = vld [vmem:[%s360 + $0xb0] sm:$0xf]
        %v411 = vld [vmem:[%s360 + $0xb4] sm:$0xff]
        %v412 = vld [vmem:[%s360 + $0xbc] sm:$0xff]
        %v413 = vld [vmem:[%s360 + $0xc4] sm:$0xf]
        %v414 = vld [vmem:[%s360 + $0xc8] sm:$0xff]
        %v415 = vld [vmem:[%s360 + $0xd0] sm:$0xff]
        %v416 = vld [vmem:[%s360 + $0xd8] sm:$0xf]
        %v417 = vld [vmem:[%s360 + $0xdc] sm:$0xff]
        %v418 = vld [vmem:[%s360 + $0xe4] sm:$0xff]
        %v419 = vld [vmem:[%s360 + $0xec] sm:$0xf]
        %v420 = vld [vmem:[%s360 + $0xf0] sm:$0xff]
        %v421 = vld [vmem:[%s360 + $0xf8] sm:$0xff]
        %v422 = vld [vmem:[%s360 + $0x100] sm:$0xf]
        %v423 = vld [vmem:[%s360 + $0x104] sm:$0xff]
        %v424 = vld [vmem:[%s360 + $0x10c] sm:$0xff]
        %v425 = vld [vmem:[%s360 + $0x114] sm:$0xf]
        %v426 = vld [vmem:[%s360 + $0x118] sm:$0xff]
        %v427 = vld [vmem:[%s360 + $0x120] sm:$0xff]
        %v428 = vld [vmem:[%s360 + $0x128] sm:$0xf]
        %v429 = vld [vmem:[%s360 + $0x12c] sm:$0xff]
        %v430 = vld [vmem:[%s360 + $0x134] sm:$0xff]
        %v431 = vld [vmem:[%s360 + $0x13c] sm:$0xf]
        %v432 = vld [vmem:[%s364] sm:$0x1f]
        %v433 = vld [vmem:[%s368] sm:$0x1f]
        %v434 = vld [vmem:[%s372] sm:$0x1f]
        %v435 = vld [vmem:[%s377] sm:$0xff]
        %v436 = vld [vmem:[%s377 + $0x8] sm:$0xff]
        %v437 = vld [vmem:[%s377 + $0x10] sm:$0xf]
        %v438 = vld [vmem:[%s377 + $0x14] sm:$0xff]
        %v439 = vld [vmem:[%s377 + $0x1c] sm:$0xff]
        %v440 = vld [vmem:[%s377 + $0x24] sm:$0xf]
        %v441 = vld [vmem:[%s377 + $0x28] sm:$0xff]
        %v442 = vld [vmem:[%s377 + $0x30] sm:$0xff]
        %v443 = vld [vmem:[%s377 + $0x38] sm:$0xf]
        %v444 = vld [vmem:[%s377 + $0x3c] sm:$0xff]
        %v445 = vld [vmem:[%s377 + $0x44] sm:$0xff]
        %v446 = vld [vmem:[%s377 + $0x4c] sm:$0xf]
        %v447 = vld [vmem:[%s377 + $0x50] sm:$0xff]
        %v448 = vld [vmem:[%s377 + $0x58] sm:$0xff]
        %v449 = vld [vmem:[%s377 + $0x60] sm:$0xf]
        %v450 = vld [vmem:[%s377 + $0x64] sm:$0xff]
        %v451 = vld [vmem:[%s377 + $0x6c] sm:$0xff]
        %v452 = vld [vmem:[%s377 + $0x74] sm:$0xf]
        %v453 = vld [vmem:[%s377 + $0x78] sm:$0xff]
        %v454 = vld [vmem:[%s377 + $0x80] sm:$0xff]
        %v455 = vld [vmem:[%s377 + $0x88] sm:$0xf]
        %v456 = vld [vmem:[%s377 + $0x8c] sm:$0xff]
        %v457 = vld [vmem:[%s377 + $0x94] sm:$0xff]
        %v458 = vld [vmem:[%s377 + $0x9c] sm:$0xf]
        %v459 = vld [vmem:[%s377 + $0xa0] sm:$0xff]
        %v460 = vld [vmem:[%s377 + $0xa8] sm:$0xff]
        %v461 = vld [vmem:[%s377 + $0xb0] sm:$0xf]
        %v462 = vld [vmem:[%s377 + $0xb4] sm:$0xff]
        %v463 = vld [vmem:[%s377 + $0xbc] sm:$0xff]
        %v464 = vld [vmem:[%s377 + $0xc4] sm:$0xf]
        %v465 = vld [vmem:[%s377 + $0xc8] sm:$0xff]
        %v466 = vld [vmem:[%s377 + $0xd0] sm:$0xff]
        %v467 = vld [vmem:[%s377 + $0xd8] sm:$0xf]
        %v468 = vld [vmem:[%s377 + $0xdc] sm:$0xff]
        %v469 = vld [vmem:[%s377 + $0xe4] sm:$0xff]
        %v470 = vld [vmem:[%s377 + $0xec] sm:$0xf]
        %v471 = vld [vmem:[%s377 + $0xf0] sm:$0xff]
        %v472 = vld [vmem:[%s377 + $0xf8] sm:$0xff]
        %v473 = vld [vmem:[%s377 + $0x100] sm:$0xf]
        %v474 = vld [vmem:[%s377 + $0x104] sm:$0xff]
        %v475 = vld [vmem:[%s377 + $0x10c] sm:$0xff]
        %v476 = vld [vmem:[%s377 + $0x114] sm:$0xf]
        %v477 = vld [vmem:[%s377 + $0x118] sm:$0xff]
        %v478 = vld [vmem:[%s377 + $0x120] sm:$0xff]
        %v479 = vld [vmem:[%s377 + $0x128] sm:$0xf]
        %v480 = vld [vmem:[%s377 + $0x12c] sm:$0xff]
        %v481 = vld [vmem:[%s377 + $0x134] sm:$0xff]
        %v482 = vld [vmem:[%s377 + $0x13c] sm:$0xf]
        %v483 = vld [vmem:[%s377 + $0x140] sm:$0xff]
        %v484 = vld [vmem:[%s377 + $0x148] sm:$0xff]
        %v485 = vld [vmem:[%s377 + $0x150] sm:$0xf]
        %v486 = vld [vmem:[%s377 + $0x154] sm:$0xff]
        %v487 = vld [vmem:[%s377 + $0x15c] sm:$0xff]
        %v488 = vld [vmem:[%s377 + $0x164] sm:$0xf]
        %v489 = vld [vmem:[%s377 + $0x168] sm:$0xff]
        %v490 = vld [vmem:[%s377 + $0x170] sm:$0xff]
        %v491 = vld [vmem:[%s377 + $0x178] sm:$0xf]
        %v492 = vld [vmem:[%s377 + $0x17c] sm:$0xff]
        %v493 = vld [vmem:[%s377 + $0x184] sm:$0xff]
        %v494 = vld [vmem:[%s377 + $0x18c] sm:$0xf]
        %v495 = vld [vmem:[%s377 + $0x190] sm:$0xff]
        %v496 = vld [vmem:[%s377 + $0x198] sm:$0xff]
        %v497 = vld [vmem:[%s377 + $0x1a0] sm:$0xf]
        %v498 = vld [vmem:[%s377 + $0x1a4] sm:$0xff]
        %v499 = vld [vmem:[%s377 + $0x1ac] sm:$0xff]
        %v500 = vld [vmem:[%s377 + $0x1b4] sm:$0xf]
        %v501 = vld [vmem:[%s377 + $0x1b8] sm:$0xff]
        %v502 = vld [vmem:[%s377 + $0x1c0] sm:$0xff]
        %v503 = vld [vmem:[%s377 + $0x1c8] sm:$0xf]
        %v504 = vld [vmem:[%s377 + $0x1cc] sm:$0xff]
        %v505 = vld [vmem:[%s377 + $0x1d4] sm:$0xff]
        %v506 = vld [vmem:[%s377 + $0x1dc] sm:$0xf]
        %v507 = vld [vmem:[%s377 + $0x1e0] sm:$0xff]
        %v508 = vld [vmem:[%s377 + $0x1e8] sm:$0xff]
        %v509 = vld [vmem:[%s377 + $0x1f0] sm:$0xf]
        %v510 = vld [vmem:[%s377 + $0x1f4] sm:$0xff]
        %v511 = vld [vmem:[%s377 + $0x1fc] sm:$0xff]
        %v512 = vld [vmem:[%s377 + $0x204] sm:$0xf]
        %v513 = vld [vmem:[%s377 + $0x208] sm:$0xff]
        %v514 = vld [vmem:[%s377 + $0x210] sm:$0xff]
        %v515 = vld [vmem:[%s377 + $0x218] sm:$0xf]
        %v516 = vld [vmem:[%s377 + $0x21c] sm:$0xff]
        %v517 = vld [vmem:[%s377 + $0x224] sm:$0xff]
        %v518 = vld [vmem:[%s377 + $0x22c] sm:$0xf]
        %v519 = vld [vmem:[%s377 + $0x230] sm:$0xff]
        %v520 = vld [vmem:[%s377 + $0x238] sm:$0xff]
        %v521 = vld [vmem:[%s377 + $0x240] sm:$0xf]
        %v522 = vld [vmem:[%s377 + $0x244] sm:$0xff]
        %v523 = vld [vmem:[%s377 + $0x24c] sm:$0xff]
        %v524 = vld [vmem:[%s377 + $0x254] sm:$0xf]
        %v525 = vld [vmem:[%s377 + $0x258] sm:$0xff]
        %v526 = vld [vmem:[%s377 + $0x260] sm:$0xff]
        %v527 = vld [vmem:[%s377 + $0x268] sm:$0xf]
        %v528 = vld [vmem:[%s377 + $0x26c] sm:$0xff]
        %v529 = vld [vmem:[%s377 + $0x274] sm:$0xff]
        %v530 = vld [vmem:[%s377 + $0x27c] sm:$0xf]
        %v531 = vld [vmem:[%s377 + $0x280] sm:$0xff]
        %v532 = vld [vmem:[%s377 + $0x288] sm:$0xff]
        %v533 = vld [vmem:[%s377 + $0x290] sm:$0xf]
        %v534 = vld [vmem:[%s377 + $0x294] sm:$0xff]
        %v535 = vld [vmem:[%s377 + $0x29c] sm:$0xff]
        %v536 = vld [vmem:[%s377 + $0x2a4] sm:$0xf]
        %v537 = vld [vmem:[%s377 + $0x2a8] sm:$0xff]
        %v538 = vld [vmem:[%s377 + $0x2b0] sm:$0xff]
        %v539 = vld [vmem:[%s377 + $0x2b8] sm:$0xf]
        %v540 = vld [vmem:[%s377 + $0x2bc] sm:$0xff]
        %v541 = vld [vmem:[%s377 + $0x2c4] sm:$0xff]
        %v542 = vld [vmem:[%s377 + $0x2cc] sm:$0xf]
        %v543 = vld [vmem:[%s377 + $0x2d0] sm:$0xff]
        %v544 = vld [vmem:[%s377 + $0x2d8] sm:$0xff]
        %v545 = vld [vmem:[%s377 + $0x2e0] sm:$0xf]
        %v546 = vld [vmem:[%s377 + $0x2e4] sm:$0xff]
        %v547 = vld [vmem:[%s377 + $0x2ec] sm:$0xff]
        %v548 = vld [vmem:[%s377 + $0x2f4] sm:$0xf]
        %v549 = vld [vmem:[%s377 + $0x2f8] sm:$0xff]
        %v550 = vld [vmem:[%s377 + $0x300] sm:$0xff]
        %v551 = vld [vmem:[%s377 + $0x308] sm:$0xf]
        %v552 = vld [vmem:[%s377 + $0x30c] sm:$0xff]
        %v553 = vld [vmem:[%s377 + $0x314] sm:$0xff]
        %v554 = vld [vmem:[%s377 + $0x31c] sm:$0xf]
        %v555 = vld [vmem:[%s377 + $0x320] sm:$0xff]
        %v556 = vld [vmem:[%s377 + $0x328] sm:$0xff]
        %v557 = vld [vmem:[%s377 + $0x330] sm:$0xf]
        %v558 = vld [vmem:[%s377 + $0x334] sm:$0xff]
        %v559 = vld [vmem:[%s377 + $0x33c] sm:$0xff]
        %v560 = vld [vmem:[%s377 + $0x344] sm:$0xf]
        %v561 = vld [vmem:[%s377 + $0x348] sm:$0xff]
        %v562 = vld [vmem:[%s377 + $0x350] sm:$0xff]
        %v563 = vld [vmem:[%s377 + $0x358] sm:$0xf]
        %v564 = vld [vmem:[%s377 + $0x35c] sm:$0xff]
        %v565 = vld [vmem:[%s377 + $0x364] sm:$0xff]
        %v566 = vld [vmem:[%s377 + $0x36c] sm:$0xf]
        %v567 = vld [vmem:[%s377 + $0x370] sm:$0xff]
        %v568 = vld [vmem:[%s377 + $0x378] sm:$0xff]
        %v569 = vld [vmem:[%s377 + $0x380] sm:$0xf]
        %v570 = vld [vmem:[%s377 + $0x384] sm:$0xff]
        %v571 = vld [vmem:[%s377 + $0x38c] sm:$0xff]
        %v572 = vld [vmem:[%s377 + $0x394] sm:$0xf]
        %v573 = vld [vmem:[%s377 + $0x398] sm:$0xff]
        %v574 = vld [vmem:[%s377 + $0x3a0] sm:$0xff]
        %v575 = vld [vmem:[%s377 + $0x3a8] sm:$0xf]
        %v576 = vld [vmem:[%s377 + $0x3ac] sm:$0xff]
        %v577 = vld [vmem:[%s377 + $0x3b4] sm:$0xff]
        %v578 = vld [vmem:[%s377 + $0x3bc] sm:$0xf]
        %v579 = vld [vmem:[%s377 + $0x3c0] sm:$0xff]
        %v580 = vld [vmem:[%s377 + $0x3c8] sm:$0xff]
        %v581 = vld [vmem:[%s377 + $0x3d0] sm:$0xf]
        %v582 = vld [vmem:[%s377 + $0x3d4] sm:$0xff]
        %v583 = vld [vmem:[%s377 + $0x3dc] sm:$0xff]
        %v584 = vld [vmem:[%s377 + $0x3e4] sm:$0xf]
        %v585 = vld [vmem:[%s377 + $0x3e8] sm:$0xff]
        %v586 = vld [vmem:[%s377 + $0x3f0] sm:$0xff]
        %v587 = vld [vmem:[%s377 + $0x3f8] sm:$0xf]
        %v588 = vld [vmem:[%s377 + $0x3fc] sm:$0xff]
        %v589 = vld [vmem:[%s377 + $0x404] sm:$0xff]
        %v590 = vld [vmem:[%s377 + $0x40c] sm:$0xf]
        %v591 = vld [vmem:[%s377 + $0x410] sm:$0xff]
        %v592 = vld [vmem:[%s377 + $0x418] sm:$0xff]
        %v593 = vld [vmem:[%s377 + $0x420] sm:$0xf]
        %v594 = vld [vmem:[%s377 + $0x424] sm:$0xff]
        %v595 = vld [vmem:[%s377 + $0x42c] sm:$0xff]
        %v596 = vld [vmem:[%s377 + $0x434] sm:$0xf]
        %v597 = vld [vmem:[%s377 + $0x438] sm:$0xff]
        %v598 = vld [vmem:[%s377 + $0x440] sm:$0xff]
        %v599 = vld [vmem:[%s377 + $0x448] sm:$0xf]
        %v600 = vld [vmem:[%s377 + $0x44c] sm:$0xff]
        %v601 = vld [vmem:[%s377 + $0x454] sm:$0xff]
        %v602 = vld [vmem:[%s377 + $0x45c] sm:$0xf]
        %v603 = vld [vmem:[%s377 + $0x460] sm:$0xff]
        %v604 = vld [vmem:[%s377 + $0x468] sm:$0xff]
        %v605 = vld [vmem:[%s377 + $0x470] sm:$0xf]
        %v606 = vld [vmem:[%s377 + $0x474] sm:$0xff]
        %v607 = vld [vmem:[%s377 + $0x47c] sm:$0xff]
        %v608 = vld [vmem:[%s377 + $0x484] sm:$0xf]
        %v609 = vld [vmem:[%s377 + $0x488] sm:$0xff]
        %v610 = vld [vmem:[%s377 + $0x490] sm:$0xff]
        %v611 = vld [vmem:[%s377 + $0x498] sm:$0xf]
        %v612 = vld [vmem:[%s377 + $0x49c] sm:$0xff]
        %v613 = vld [vmem:[%s377 + $0x4a4] sm:$0xff]
        %v614 = vld [vmem:[%s377 + $0x4ac] sm:$0xf]
        %v615 = vld [vmem:[%s377 + $0x4b0] sm:$0xff]
        %v616 = vld [vmem:[%s377 + $0x4b8] sm:$0xff]
        %v617 = vld [vmem:[%s377 + $0x4c0] sm:$0xf]
        %v618 = vld [vmem:[%s377 + $0x4c4] sm:$0xff]
        %v619 = vld [vmem:[%s377 + $0x4cc] sm:$0xff]
        %v620 = vld [vmem:[%s377 + $0x4d4] sm:$0xf]
        %v621 = vld [vmem:[%s377 + $0x4d8] sm:$0xff]
        %v622 = vld [vmem:[%s377 + $0x4e0] sm:$0xff]
        %v623 = vld [vmem:[%s377 + $0x4e8] sm:$0xf]
        %v624 = vld [vmem:[%s377 + $0x4ec] sm:$0xff]
        %v625 = vld [vmem:[%s377 + $0x4f4] sm:$0xff]
        %v626 = vld [vmem:[%s377 + $0x4fc] sm:$0xf]
        %v627 = vld [vmem:[%s377 + $0x500] sm:$0xff]
        %v628 = vld [vmem:[%s377 + $0x508] sm:$0xff]
        %v629 = vld [vmem:[%s377 + $0x510] sm:$0xf]
        %v630 = vld [vmem:[%s377 + $0x514] sm:$0xff]
        %v631 = vld [vmem:[%s377 + $0x51c] sm:$0xff]
        %v632 = vld [vmem:[%s377 + $0x524] sm:$0xf]
        %v633 = vld [vmem:[%s377 + $0x528] sm:$0xff]
        %v634 = vld [vmem:[%s377 + $0x530] sm:$0xff]
        %v635 = vld [vmem:[%s377 + $0x538] sm:$0xf]
        %v636 = vld [vmem:[%s377 + $0x53c] sm:$0xff]
        %v637 = vld [vmem:[%s377 + $0x544] sm:$0xff]
        %v638 = vld [vmem:[%s377 + $0x54c] sm:$0xf]
        %v639 = vld [vmem:[%s377 + $0x550] sm:$0xff]
        %v640 = vld [vmem:[%s377 + $0x558] sm:$0xff]
        %v641 = vld [vmem:[%s377 + $0x560] sm:$0xf]
        %v642 = vld [vmem:[%s377 + $0x564] sm:$0xff]
        %v643 = vld [vmem:[%s377 + $0x56c] sm:$0xff]
        %v644 = vld [vmem:[%s377 + $0x574] sm:$0xf]
        %v645 = vld [vmem:[%s377 + $0x578] sm:$0xff]
        %v646 = vld [vmem:[%s377 + $0x580] sm:$0xff]
        %v647 = vld [vmem:[%s377 + $0x588] sm:$0xf]
        %v648 = vld [vmem:[%s377 + $0x58c] sm:$0xff]
        %v649 = vld [vmem:[%s377 + $0x594] sm:$0xff]
        %v650 = vld [vmem:[%s377 + $0x59c] sm:$0xf]
        %v651 = vld [vmem:[%s377 + $0x5a0] sm:$0xff]
        %v652 = vld [vmem:[%s377 + $0x5a8] sm:$0xff]
        %v653 = vld [vmem:[%s377 + $0x5b0] sm:$0xf]
        %v654 = vld [vmem:[%s377 + $0x5b4] sm:$0xff]
        %v655 = vld [vmem:[%s377 + $0x5bc] sm:$0xff]
        %v656 = vld [vmem:[%s377 + $0x5c4] sm:$0xf]
        %v657 = vld [vmem:[%s377 + $0x5c8] sm:$0xff]
        %v658 = vld [vmem:[%s377 + $0x5d0] sm:$0xff]
        %v659 = vld [vmem:[%s377 + $0x5d8] sm:$0xf]
        %v660 = vld [vmem:[%s377 + $0x5dc] sm:$0xff]
        %v661 = vld [vmem:[%s377 + $0x5e4] sm:$0xff]
        %v662 = vld [vmem:[%s377 + $0x5ec] sm:$0xf]
        %v663 = vld [vmem:[%s377 + $0x5f0] sm:$0xff]
        %v664 = vld [vmem:[%s377 + $0x5f8] sm:$0xff]
        %v665 = vld [vmem:[%s377 + $0x600] sm:$0xf]
        %v666 = vld [vmem:[%s377 + $0x604] sm:$0xff]
        %v667 = vld [vmem:[%s377 + $0x60c] sm:$0xff]
        %v668 = vld [vmem:[%s377 + $0x614] sm:$0xf]
        %v669 = vld [vmem:[%s377 + $0x618] sm:$0xff]
        %v670 = vld [vmem:[%s377 + $0x620] sm:$0xff]
        %v671 = vld [vmem:[%s377 + $0x628] sm:$0xf]
        %v672 = vld [vmem:[%s377 + $0x62c] sm:$0xff]
        %v673 = vld [vmem:[%s377 + $0x634] sm:$0xff]
        %v674 = vld [vmem:[%s377 + $0x63c] sm:$0xf]
        %v675 = vld [vmem:[%s381] sm:$0x1f]
        %v676 = vpack.c.bf16 %v383, %v383
        %v678 = vlaneseq
        %v679 = vshrl.u32 %v678, 7
        %v680 = vsub.s32 0, %v679
        %v681 = vrot.slane %v432, %v680
        %v682 = vlaneseq
        %v683 = vshrl.u32 %v682, 7
        %v684 = vsub.s32 1, %v683
        %v685 = vrot.slane %v432, %v684
        %v686 = vlaneseq
        %v687 = vshrl.u32 %v686, 7
        %v688 = vsub.s32 2, %v687
        %v689 = vrot.slane %v432, %v688
        %v690 = vlaneseq
        %v691 = vshrl.u32 %v690, 7
        %v692 = vsub.s32 3, %v691
        %v693 = vrot.slane %v432, %v692
        %v694 = vlaneseq
        %v695 = vshrl.u32 %v694, 7
        %v696 = vsub.s32 4, %v695
        %v697 = vrot.slane %v432, %v696
        %v751 = vunpack.c.l.b16 %v384
        %v752 = vunpack.c.h.b16 %v384
        %v753 = vunpack.c.l.b16 %v385
        %v754 = vunpack.c.h.b16 %v385
        %v755 = vunpack.c.l.b16 %v386
        %v756 = vunpack.c.l.b16 %v387
        %v757 = vunpack.c.h.b16 %v387
        %v758 = vunpack.c.l.b16 %v388
        %v759 = vunpack.c.h.b16 %v388
        %v760 = vunpack.c.l.b16 %v389
        %v761 = vunpack.c.l.b16 %v390
        %v762 = vunpack.c.h.b16 %v390
        %v763 = vunpack.c.l.b16 %v391
        %v764 = vunpack.c.h.b16 %v391
        %v765 = vunpack.c.l.b16 %v392
        %v766 = vunpack.c.l.b16 %v393
        %v767 = vunpack.c.h.b16 %v393
        %v768 = vunpack.c.l.b16 %v394
        %v769 = vunpack.c.h.b16 %v394
        %v770 = vunpack.c.l.b16 %v395
        %v771 = vunpack.c.l.b16 %v396
        %v772 = vunpack.c.h.b16 %v396
        %v773 = vunpack.c.l.b16 %v397
        %v774 = vunpack.c.h.b16 %v397
        %v775 = vunpack.c.l.b16 %v398
        %v776 = vunpack.c.l.b16 %v399
        %v777 = vunpack.c.h.b16 %v399
        %v778 = vunpack.c.l.b16 %v400
        %v779 = vunpack.c.h.b16 %v400
        %v780 = vunpack.c.l.b16 %v401
        %v781 = vunpack.c.l.b16 %v402
        %v782 = vunpack.c.h.b16 %v402
        %v783 = vunpack.c.l.b16 %v403
        %v784 = vunpack.c.h.b16 %v403
        %v785 = vunpack.c.l.b16 %v404
        %v786 = vunpack.c.l.b16 %v405
        %v787 = vunpack.c.h.b16 %v405
        %v788 = vunpack.c.l.b16 %v406
        %v789 = vunpack.c.h.b16 %v406
        %v790 = vunpack.c.l.b16 %v407
        %v791 = vunpack.c.l.b16 %v408
        %v792 = vunpack.c.h.b16 %v408
        %v793 = vunpack.c.l.b16 %v409
        %v794 = vunpack.c.h.b16 %v409
        %v795 = vunpack.c.l.b16 %v410
        %v796 = vunpack.c.l.b16 %v411
        %v797 = vunpack.c.h.b16 %v411
        %v798 = vunpack.c.l.b16 %v412
        %v799 = vunpack.c.h.b16 %v412
        %v800 = vunpack.c.l.b16 %v413
        %v801 = vunpack.c.l.b16 %v414
        %v802 = vunpack.c.h.b16 %v414
        %v803 = vunpack.c.l.b16 %v415
        %v804 = vunpack.c.h.b16 %v415
        %v805 = vunpack.c.l.b16 %v416
        %v806 = vunpack.c.l.b16 %v417
        %v807 = vunpack.c.h.b16 %v417
        %v808 = vunpack.c.l.b16 %v418
        %v809 = vunpack.c.h.b16 %v418
        %v810 = vunpack.c.l.b16 %v419
        %v811 = vunpack.c.l.b16 %v420
        %v812 = vunpack.c.h.b16 %v420
        %v813 = vunpack.c.l.b16 %v421
        %v814 = vunpack.c.h.b16 %v421
        %v815 = vunpack.c.l.b16 %v422
        %v816 = vunpack.c.l.b16 %v423
        %v817 = vunpack.c.h.b16 %v423
        %v818 = vunpack.c.l.b16 %v424
        %v819 = vunpack.c.h.b16 %v424
        %v820 = vunpack.c.l.b16 %v425
        %v821 = vunpack.c.l.b16 %v426
        %v822 = vunpack.c.h.b16 %v426
        %v823 = vunpack.c.l.b16 %v427
        %v824 = vunpack.c.h.b16 %v427
        %v825 = vunpack.c.l.b16 %v428
        %v826 = vunpack.c.l.b16 %v429
        %v827 = vunpack.c.h.b16 %v429
        %v828 = vunpack.c.l.b16 %v430
        %v829 = vunpack.c.h.b16 %v430
        %v830 = vunpack.c.l.b16 %v431
        %v831 = vpack.c.b16 %v756, %v751
        %v832 = vpack.c.b16 %v757, %v752
        %v833 = vpack.c.b16 %v758, %v753
        %v834 = vpack.c.b16 %v759, %v754
        %v835 = vpack.c.b16 %v760, %v755
        %v836 = vpack.c.b16 %v766, %v761
        %v837 = vpack.c.b16 %v767, %v762
        %v838 = vpack.c.b16 %v768, %v763
        %v839 = vpack.c.b16 %v769, %v764
        %v840 = vpack.c.b16 %v770, %v765
        %v841 = vpack.c.b16 %v776, %v771
        %v842 = vpack.c.b16 %v777, %v772
        %v843 = vpack.c.b16 %v778, %v773
        %v844 = vpack.c.b16 %v779, %v774
        %v845 = vpack.c.b16 %v780, %v775
        %v846 = vpack.c.b16 %v786, %v781
        %v847 = vpack.c.b16 %v787, %v782
        %v848 = vpack.c.b16 %v788, %v783
        %v849 = vpack.c.b16 %v789, %v784
        %v850 = vpack.c.b16 %v790, %v785
        %v851 = vpack.c.b16 %v796, %v791
        %v852 = vpack.c.b16 %v797, %v792
        %v853 = vpack.c.b16 %v798, %v793
        %v854 = vpack.c.b16 %v799, %v794
        %v855 = vpack.c.b16 %v800, %v795
        %v856 = vpack.c.b16 %v806, %v801
        %v857 = vpack.c.b16 %v807, %v802
        %v858 = vpack.c.b16 %v808, %v803
        %v859 = vpack.c.b16 %v809, %v804
        %v860 = vpack.c.b16 %v810, %v805
        %v861 = vpack.c.b16 %v816, %v811
        %v862 = vpack.c.b16 %v817, %v812
        %v863 = vpack.c.b16 %v818, %v813
        %v864 = vpack.c.b16 %v819, %v814
        %v865 = vpack.c.b16 %v820, %v815
        %v866 = vpack.c.b16 %v826, %v821
        %v867 = vpack.c.b16 %v827, %v822
        %v868 = vpack.c.b16 %v828, %v823
        %v869 = vpack.c.b16 %v829, %v824
        %v870 = vpack.c.b16 %v830, %v825
        %911 = vmatprep.subr.bf16.mxu0 %v832
        %912 = vmatpush1.bf16.msra.mxu0 %v831
        %913 = vmatprep.subr.bf16.mxu0 %v837
        %914 = vmatpush1.bf16.msra.mxu0 %v836
        %915 = vmatprep.subr.bf16.mxu0 %v842
        %916 = vmatpush1.bf16.msra.mxu0 %v841
        %917 = vmatprep.subr.bf16.mxu0 %v847
        %918 = vmatpush1.bf16.msra.mxu0 %v846
        %919 = vmatprep.subr.bf16.mxu0 %v852
        %920 = vmatpush1.bf16.msra.mxu0 %v851
        %921 = vmatprep.subr.bf16.mxu0 %v857
        %922 = vmatpush1.bf16.msra.mxu0 %v856
        %923 = vmatprep.subr.bf16.mxu0 %v862
        %924 = vmatpush1.bf16.msra.mxu0 %v861
        %925 = vmatprep.subr.bf16.mxu0 %v867
        %926 = vmatpush1.bf16.msra.mxu0 %v866
        %927 = vmatprep.subr.bf16.mxu0 0
        %928 = vmatpush1.bf16.msra.mxu0 0
        %929 = vmatprep.subr.bf16.mxu0 0
        %930 = vmatpush1.bf16.msra.mxu0 0
        %931 = vmatprep.subr.bf16.mxu0 0
        %932 = vmatpush1.bf16.msra.mxu0 0
        %933 = vmatprep.subr.bf16.mxu0 0
        %934 = vmatpush1.bf16.msra.mxu0 0
        %935 = vmatprep.subr.bf16.mxu0 0
        %936 = vmatpush1.bf16.msra.mxu0 0
        %937 = vmatprep.subr.bf16.mxu0 0
        %938 = vmatpush1.bf16.msra.mxu0 0
        %939 = vmatprep.subr.bf16.mxu0 0
        %940 = vmatpush1.bf16.msra.mxu0 0
        %941 = vmatprep.subr.bf16.mxu0 0
        %942 = vmatpush1.bf16.msra.mxu0 0
        %943 = vmatprep.mubr.bf16.mxu0 0
        %944 = vmatmul.mubr.bf16.gmra.mrb[0].mxu0 %v676
        %v945 = vpop.f32.mrb[0].mxu0
        %v946 = vadd.f32 %v681, %v945
        %v947 = vpop.f32.mrb[0].mxu0
        %v948 = vadd.f32 %v685, %v947
        %v949 = vpop.f32.mrb[0].mxu0
        %v950 = vpop.f32.mrb[0].mxu0
        %951 = vdwg.mxu0
        %952 = vmatprep.subr.bf16.mxu0 %v834
        %953 = vmatpush1.bf16.msra.mxu0 %v833
        %954 = vmatprep.subr.bf16.mxu0 %v839
        %955 = vmatpush1.bf16.msra.mxu0 %v838
        %956 = vmatprep.subr.bf16.mxu0 %v844
        %957 = vmatpush1.bf16.msra.mxu0 %v843
        %958 = vmatprep.subr.bf16.mxu0 %v849
        %959 = vmatpush1.bf16.msra.mxu0 %v848
        %960 = vmatprep.subr.bf16.mxu0 %v854
        %961 = vmatpush1.bf16.msra.mxu0 %v853
        %962 = vmatprep.subr.bf16.mxu0 %v859
        %963 = vmatpush1.bf16.msra.mxu0 %v858
        %964 = vmatprep.subr.bf16.mxu0 %v864
        %965 = vmatpush1.bf16.msra.mxu0 %v863
        %966 = vmatprep.subr.bf16.mxu0 %v869
        %967 = vmatpush1.bf16.msra.mxu0 %v868
        %968 = vmatprep.subr.bf16.mxu0 0
        %969 = vmatpush1.bf16.msra.mxu0 0
        %970 = vmatprep.subr.bf16.mxu0 0
        %971 = vmatpush1.bf16.msra.mxu0 0
        %972 = vmatprep.subr.bf16.mxu0 0
        %973 = vmatpush1.bf16.msra.mxu0 0
        %974 = vmatprep.subr.bf16.mxu0 0
        %975 = vmatpush1.bf16.msra.mxu0 0
        %976 = vmatprep.subr.bf16.mxu0 0
        %977 = vmatpush1.bf16.msra.mxu0 0
        %978 = vmatprep.subr.bf16.mxu0 0
        %979 = vmatpush1.bf16.msra.mxu0 0
        %980 = vmatprep.subr.bf16.mxu0 0
        %981 = vmatpush1.bf16.msra.mxu0 0
        %982 = vmatprep.subr.bf16.mxu0 0
        %983 = vmatpush1.bf16.msra.mxu0 0
        %984 = vmatprep.mubr.bf16.mxu0 0
        %985 = vmatmul.mubr.bf16.gmra.mrb[0].mxu0 %v676
        %v986 = vpop.f32.mrb[0].mxu0
        %v987 = vadd.f32 %v689, %v986
        %v988 = vpop.f32.mrb[0].mxu0
        %v989 = vadd.f32 %v693, %v988
        %v990 = vpop.f32.mrb[0].mxu0
        %v991 = vpop.f32.mrb[0].mxu0
        %992 = vdwg.mxu0
        %993 = vmatprep.subr.bf16.mxu0 0
        %994 = vmatpush1.bf16.msra.mxu0 %v835
        %995 = vmatprep.subr.bf16.mxu0 0
        %996 = vmatpush1.bf16.msra.mxu0 %v840
        %997 = vmatprep.subr.bf16.mxu0 0
        %998 = vmatpush1.bf16.msra.mxu0 %v845
        %999 = vmatprep.subr.bf16.mxu0 0
        %1000 = vmatpush1.bf16.msra.mxu0 %v850
        %1001 = vmatprep.subr.bf16.mxu0 0
        %1002 = vmatpush1.bf16.msra.mxu0 %v855
        %1003 = vmatprep.subr.bf16.mxu0 0
        %1004 = vmatpush1.bf16.msra.mxu0 %v860
        %1005 = vmatprep.subr.bf16.mxu0 0
        %1006 = vmatpush1.bf16.msra.mxu0 %v865
        %1007 = vmatprep.subr.bf16.mxu0 0
        %1008 = vmatpush1.bf16.msra.mxu0 %v870
        %1009 = vmatprep.subr.bf16.mxu0 0
        %1010 = vmatpush1.bf16.msra.mxu0 0
        %1011 = vmatprep.subr.bf16.mxu0 0
        %1012 = vmatpush1.bf16.msra.mxu0 0
        %1013 = vmatprep.subr.bf16.mxu0 0
        %1014 = vmatpush1.bf16.msra.mxu0 0
        %1015 = vmatprep.subr.bf16.mxu0 0
        %1016 = vmatpush1.bf16.msra.mxu0 0
        %1017 = vmatprep.subr.bf16.mxu0 0
        %1018 = vmatpush1.bf16.msra.mxu0 0
        %1019 = vmatprep.subr.bf16.mxu0 0
        %1020 = vmatpush1.bf16.msra.mxu0 0
        %1021 = vmatprep.subr.bf16.mxu0 0
        %1022 = vmatpush1.bf16.msra.mxu0 0
        %1023 = vmatprep.subr.bf16.mxu0 0
        %1024 = vmatpush1.bf16.msra.mxu0 0
        %1025 = vmatprep.mubr.bf16.mxu0 0
        %1026 = vmatmul.mubr.bf16.gmra.mrb[0].mxu0 %v676
        %v1027 = vpop.f32.mrb[0].mxu0
        %v1028 = vadd.f32 %v697, %v1027
        %v1029 = vpop.f32.mrb[0].mxu0
        %v1030 = vpop.f32.mrb[0].mxu0
        %v1031 = vpop.f32.mrb[0].mxu0
        %1032 = vdwg.mxu0
        %vm1033 = vcmask 1041408
        %v1034 = vsel %vm1033, %v946, 0.0
        %v1035 = vrot.slane %v1034, 4
        %v1036 = vadd.f32 %v1034, %v1035
        %v1037 = vrot.slane %v1036, 2
        %v1038 = vadd.f32 %v1036, %v1037
        %v1039 = vrot.slane %v1038, 1
        %v1040 = vadd.f32 %v1038, %v1039
        %v1041 = vsel %vm1033, %v948, 0.0
        %v1042 = vrot.slane %v1041, 4
        %v1043 = vadd.f32 %v1041, %v1042
        %v1044 = vrot.slane %v1043, 2
        %v1045 = vadd.f32 %v1043, %v1044
        %v1046 = vrot.slane %v1045, 1
        %v1047 = vadd.f32 %v1045, %v1046
        %v1048 = vsel %vm1033, %v987, 0.0
        %v1049 = vrot.slane %v1048, 4
        %v1050 = vadd.f32 %v1048, %v1049
        %v1051 = vrot.slane %v1050, 2
        %v1052 = vadd.f32 %v1050, %v1051
        %v1053 = vrot.slane %v1052, 1
        %v1054 = vadd.f32 %v1052, %v1053
        %v1055 = vsel %vm1033, %v989, 0.0
        %v1056 = vrot.slane %v1055, 4
        %v1057 = vadd.f32 %v1055, %v1056
        %v1058 = vrot.slane %v1057, 2
        %v1059 = vadd.f32 %v1057, %v1058
        %v1060 = vrot.slane %v1059, 1
        %v1061 = vadd.f32 %v1059, %v1060
        %v1062 = vsel %vm1033, %v1028, 0.0
        %v1063 = vrot.slane %v1062, 4
        %v1064 = vadd.f32 %v1062, %v1063
        %v1065 = vrot.slane %v1064, 2
        %v1066 = vadd.f32 %v1064, %v1065
        %v1067 = vrot.slane %v1066, 1
        %v1068 = vadd.f32 %v1066, %v1067
        %v1069 = vrcp.pop 2.0
        %v1070 = vmul.f32 %v1040, %v1069
        %v1071 = vmul.f32 %v1047, %v1069
        %v1072 = vmul.f32 %v1054, %v1069
        %v1073 = vmul.f32 %v1061, %v1069
        %v1074 = vmul.f32 %v1068, %v1069
        %v1075 = vsub.f32 %v946, %v1070
        %v1076 = vsub.f32 %v948, %v1071
        %v1077 = vsub.f32 %v987, %v1072
        %v1078 = vsub.f32 %v989, %v1073
        %v1079 = vsub.f32 %v1028, %v1074
        %v1080 = vmul.f32 %v1075, %v1075
        %v1081 = vmul.f32 %v1076, %v1076
        %v1082 = vmul.f32 %v1077, %v1077
        %v1083 = vmul.f32 %v1078, %v1078
        %v1084 = vmul.f32 %v1079, %v1079
        %v1085 = vsel %vm1033, %v1080, 0.0
        %v1086 = vrot.slane %v1085, 4
        %v1087 = vadd.f32 %v1085, %v1086
        %v1088 = vrot.slane %v1087, 2
        %v1089 = vadd.f32 %v1087, %v1088
        %v1090 = vrot.slane %v1089, 1
        %v1091 = vadd.f32 %v1089, %v1090
        %v1092 = vsel %vm1033, %v1081, 0.0
        %v1093 = vrot.slane %v1092, 4
        %v1094 = vadd.f32 %v1092, %v1093
        %v1095 = vrot.slane %v1094, 2
        %v1096 = vadd.f32 %v1094, %v1095
        %v1097 = vrot.slane %v1096, 1
        %v1098 = vadd.f32 %v1096, %v1097
        %v1099 = vsel %vm1033, %v1082, 0.0
        %v1100 = vrot.slane %v1099, 4
        %v1101 = vadd.f32 %v1099, %v1100
        %v1102 = vrot.slane %v1101, 2
        %v1103 = vadd.f32 %v1101, %v1102
        %v1104 = vrot.slane %v1103, 1
        %v1105 = vadd.f32 %v1103, %v1104
        %v1106 = vsel %vm1033, %v1083, 0.0
        %v1107 = vrot.slane %v1106, 4
        %v1108 = vadd.f32 %v1106, %v1107
        %v1109 = vrot.slane %v1108, 2
        %v1110 = vadd.f32 %v1108, %v1109
        %v1111 = vrot.slane %v1110, 1
        %v1112 = vadd.f32 %v1110, %v1111
        %v1113 = vsel %vm1033, %v1084, 0.0
        %v1114 = vrot.slane %v1113, 4
        %v1115 = vadd.f32 %v1113, %v1114
        %v1116 = vrot.slane %v1115, 2
        %v1117 = vadd.f32 %v1115, %v1116
        %v1118 = vrot.slane %v1117, 1
        %v1119 = vadd.f32 %v1117, %v1118
        %v1120 = vmul.f32 %v1091, %v1069
        %v1121 = vmul.f32 %v1098, %v1069
        %v1122 = vmul.f32 %v1105, %v1069
        %v1123 = vmul.f32 %v1112, %v1069
        %v1124 = vmul.f32 %v1119, %v1069
        %v1125 = vadd.f32 %v1120, 1e-05
        %v1126 = vadd.f32 %v1121, 1e-05
        %v1127 = vadd.f32 %v1122, 1e-05
        %v1128 = vadd.f32 %v1123, 1e-05
        %v1129 = vadd.f32 %v1124, 1e-05
        %v1130 = vrsqrt.pop %v1125
        %v1131 = vrsqrt.pop %v1126
        %v1132 = vrsqrt.pop %v1127
        %v1133 = vrsqrt.pop %v1128
        %v1134 = vrsqrt.pop %v1129
        %v1135 = vmul.f32 %v1075, %v1130
        %v1136 = vmul.f32 %v1076, %v1131
        %v1137 = vmul.f32 %v1077, %v1132
        %v1138 = vmul.f32 %v1078, %v1133
        %v1139 = vmul.f32 %v1079, %v1134
        %v1141 = vlaneseq
        %v1142 = vshrl.u32 %v1141, 7
        %v1143 = vsub.s32 0, %v1142
        %v1144 = vrot.slane %v433, %v1143
        %v1145 = vlaneseq
        %v1146 = vshrl.u32 %v1145, 7
        %v1147 = vsub.s32 1, %v1146
        %v1148 = vrot.slane %v433, %v1147
        %v1149 = vlaneseq
        %v1150 = vshrl.u32 %v1149, 7
        %v1151 = vsub.s32 2, %v1150
        %v1152 = vrot.slane %v433, %v1151
        %v1153 = vlaneseq
        %v1154 = vshrl.u32 %v1153, 7
        %v1155 = vsub.s32 3, %v1154
        %v1156 = vrot.slane %v433, %v1155
        %v1157 = vlaneseq
        %v1158 = vshrl.u32 %v1157, 7
        %v1159 = vsub.s32 4, %v1158
        %v1160 = vrot.slane %v433, %v1159
        %v1166 = vmul.f32 %v1135, %v1144
        %v1167 = vmul.f32 %v1136, %v1148
        %v1168 = vmul.f32 %v1137, %v1152
        %v1169 = vmul.f32 %v1138, %v1156
        %v1170 = vmul.f32 %v1139, %v1160
        %v1172 = vlaneseq
        %v1173 = vshrl.u32 %v1172, 7
        %v1174 = vsub.s32 0, %v1173
        %v1175 = vrot.slane %v434, %v1174
        %v1176 = vlaneseq
        %v1177 = vshrl.u32 %v1176, 7
        %v1178 = vsub.s32 1, %v1177
        %v1179 = vrot.slane %v434, %v1178
        %v1180 = vlaneseq
        %v1181 = vshrl.u32 %v1180, 7
        %v1182 = vsub.s32 2, %v1181
        %v1183 = vrot.slane %v434, %v1182
        %v1184 = vlaneseq
        %v1185 = vshrl.u32 %v1184, 7
        %v1186 = vsub.s32 3, %v1185
        %v1187 = vrot.slane %v434, %v1186
        %v1188 = vlaneseq
        %v1189 = vshrl.u32 %v1188, 7
        %v1190 = vsub.s32 4, %v1189
        %v1191 = vrot.slane %v434, %v1190
        %v1197 = vadd.f32 %v1166, %v1175
        %v1198 = vadd.f32 %v1167, %v1179
        %v1199 = vadd.f32 %v1168, %v1183
        %v1200 = vadd.f32 %v1169, %v1187
        %v1201 = vadd.f32 %v1170, %v1191
        %v1202 = vmax.f32 %v1197, 0.0
        %v1203 = vmax.f32 %v1198, 0.0
        %v1204 = vmax.f32 %v1199, 0.0
        %v1205 = vmax.f32 %v1200, 0.0
        %v1206 = vmax.f32 %v1201, 0.0
        %v1207 = vpack.c.bf16 %v1202, %v1202
        %v1208 = vpack.c.bf16 %v1203, %v1203
        %v1209 = vpack.c.bf16 %v1204, %v1204
        %v1210 = vpack.c.bf16 %v1205, %v1205
        %v1211 = vpack.c.bf16 %v1206, %v1206
        %v1213 = vlaneseq
        %v1214 = vshrl.u32 %v1213, 7
        %v1215 = vsub.s32 0, %v1214
        %v1216 = vrot.slane %v675, %v1215
        %v1217 = vlaneseq
        %v1218 = vshrl.u32 %v1217, 7
        %v1219 = vsub.s32 1, %v1218
        %v1220 = vrot.slane %v675, %v1219
        %v1221 = vlaneseq
        %v1222 = vshrl.u32 %v1221, 7
        %v1223 = vsub.s32 2, %v1222
        %v1224 = vrot.slane %v675, %v1223
        %v1225 = vlaneseq
        %v1226 = vshrl.u32 %v1225, 7
        %v1227 = vsub.s32 3, %v1226
        %v1228 = vrot.slane %v675, %v1227
        %v1229 = vlaneseq
        %v1230 = vshrl.u32 %v1229, 7
        %v1231 = vsub.s32 4, %v1230
        %v1232 = vrot.slane %v675, %v1231
        %v1478 = vunpack.c.l.b16 %v435
        %v1479 = vunpack.c.h.b16 %v435
        %v1480 = vunpack.c.l.b16 %v436
        %v1481 = vunpack.c.h.b16 %v436
        %v1482 = vunpack.c.l.b16 %v437
        %v1483 = vunpack.c.l.b16 %v438
        %v1484 = vunpack.c.h.b16 %v438
        %v1485 = vunpack.c.l.b16 %v439
        %v1486 = vunpack.c.h.b16 %v439
        %v1487 = vunpack.c.l.b16 %v440
        %v1488 = vunpack.c.l.b16 %v441
        %v1489 = vunpack.c.h.b16 %v441
        %v1490 = vunpack.c.l.b16 %v442
        %v1491 = vunpack.c.h.b16 %v442
        %v1492 = vunpack.c.l.b16 %v443
        %v1493 = vunpack.c.l.b16 %v444
        %v1494 = vunpack.c.h.b16 %v444
        %v1495 = vunpack.c.l.b16 %v445
        %v1496 = vunpack.c.h.b16 %v445
        %v1497 = vunpack.c.l.b16 %v446
        %v1498 = vunpack.c.l.b16 %v447
        %v1499 = vunpack.c.h.b16 %v447
        %v1500 = vunpack.c.l.b16 %v448
        %v1501 = vunpack.c.h.b16 %v448
        %v1502 = vunpack.c.l.b16 %v449
        %v1503 = vunpack.c.l.b16 %v450
        %v1504 = vunpack.c.h.b16 %v450
        %v1505 = vunpack.c.l.b16 %v451
        %v1506 = vunpack.c.h.b16 %v451
        %v1507 = vunpack.c.l.b16 %v452
        %v1508 = vunpack.c.l.b16 %v453
        %v1509 = vunpack.c.h.b16 %v453
        %v1510 = vunpack.c.l.b16 %v454
        %v1511 = vunpack.c.h.b16 %v454
        %v1512 = vunpack.c.l.b16 %v455
        %v1513 = vunpack.c.l.b16 %v456
        %v1514 = vunpack.c.h.b16 %v456
        %v1515 = vunpack.c.l.b16 %v457
        %v1516 = vunpack.c.h.b16 %v457
        %v1517 = vunpack.c.l.b16 %v458
        %v1518 = vunpack.c.l.b16 %v459
        %v1519 = vunpack.c.h.b16 %v459
        %v1520 = vunpack.c.l.b16 %v460
        %v1521 = vunpack.c.h.b16 %v460
        %v1522 = vunpack.c.l.b16 %v461
        %v1523 = vunpack.c.l.b16 %v462
        %v1524 = vunpack.c.h.b16 %v462
        %v1525 = vunpack.c.l.b16 %v463
        %v1526 = vunpack.c.h.b16 %v463
        %v1527 = vunpack.c.l.b16 %v464
        %v1528 = vunpack.c.l.b16 %v465
        %v1529 = vunpack.c.h.b16 %v465
        %v1530 = vunpack.c.l.b16 %v466
        %v1531 = vunpack.c.h.b16 %v466
        %v1532 = vunpack.c.l.b16 %v467
        %v1533 = vunpack.c.l.b16 %v468
        %v1534 = vunpack.c.h.b16 %v468
        %v1535 = vunpack.c.l.b16 %v469
        %v1536 = vunpack.c.h.b16 %v469
        %v1537 = vunpack.c.l.b16 %v470
        %v1538 = vunpack.c.l.b16 %v471
        %v1539 = vunpack.c.h.b16 %v471
        %v1540 = vunpack.c.l.b16 %v472
        %v1541 = vunpack.c.h.b16 %v472
        %v1542 = vunpack.c.l.b16 %v473
        %v1543 = vunpack.c.l.b16 %v474
        %v1544 = vunpack.c.h.b16 %v474
        %v1545 = vunpack.c.l.b16 %v475
        %v1546 = vunpack.c.h.b16 %v475
        %v1547 = vunpack.c.l.b16 %v476
        %v1548 = vunpack.c.l.b16 %v477
        %v1549 = vunpack.c.h.b16 %v477
        %v1550 = vunpack.c.l.b16 %v478
        %v1551 = vunpack.c.h.b16 %v478
        %v1552 = vunpack.c.l.b16 %v479
        %v1553 = vunpack.c.l.b16 %v480
        %v1554 = vunpack.c.h.b16 %v480
        %v1555 = vunpack.c.l.b16 %v481
        %v1556 = vunpack.c.h.b16 %v481
        %v1557 = vunpack.c.l.b16 %v482
        %v1558 = vunpack.c.l.b16 %v483
        %v1559 = vunpack.c.h.b16 %v483
        %v1560 = vunpack.c.l.b16 %v484
        %v1561 = vunpack.c.h.b16 %v484
        %v1562 = vunpack.c.l.b16 %v485
        %v1563 = vunpack.c.l.b16 %v486
        %v1564 = vunpack.c.h.b16 %v486
        %v1565 = vunpack.c.l.b16 %v487
        %v1566 = vunpack.c.h.b16 %v487
        %v1567 = vunpack.c.l.b16 %v488
        %v1568 = vunpack.c.l.b16 %v489
        %v1569 = vunpack.c.h.b16 %v489
        %v1570 = vunpack.c.l.b16 %v490
        %v1571 = vunpack.c.h.b16 %v490
        %v1572 = vunpack.c.l.b16 %v491
        %v1573 = vunpack.c.l.b16 %v492
        %v1574 = vunpack.c.h.b16 %v492
        %v1575 = vunpack.c.l.b16 %v493
        %v1576 = vunpack.c.h.b16 %v493
        %v1577 = vunpack.c.l.b16 %v494
        %v1578 = vunpack.c.l.b16 %v495
        %v1579 = vunpack.c.h.b16 %v495
        %v1580 = vunpack.c.l.b16 %v496
        %v1581 = vunpack.c.h.b16 %v496
        %v1582 = vunpack.c.l.b16 %v497
        %v1583 = vunpack.c.l.b16 %v498
        %v1584 = vunpack.c.h.b16 %v498
        %v1585 = vunpack.c.l.b16 %v499
        %v1586 = vunpack.c.h.b16 %v499
        %v1587 = vunpack.c.l.b16 %v500
        %v1588 = vunpack.c.l.b16 %v501
        %v1589 = vunpack.c.h.b16 %v501
        %v1590 = vunpack.c.l.b16 %v502
        %v1591 = vunpack.c.h.b16 %v502
        %v1592 = vunpack.c.l.b16 %v503
        %v1593 = vunpack.c.l.b16 %v504
        %v1594 = vunpack.c.h.b16 %v504
        %v1595 = vunpack.c.l.b16 %v505
        %v1596 = vunpack.c.h.b16 %v505
        %v1597 = vunpack.c.l.b16 %v506
        %v1598 = vunpack.c.l.b16 %v507
        %v1599 = vunpack.c.h.b16 %v507
        %v1600 = vunpack.c.l.b16 %v508
        %v1601 = vunpack.c.h.b16 %v508
        %v1602 = vunpack.c.l.b16 %v509
        %v1603 = vunpack.c.l.b16 %v510
        %v1604 = vunpack.c.h.b16 %v510
        %v1605 = vunpack.c.l.b16 %v511
        %v1606 = vunpack.c.h.b16 %v511
        %v1607 = vunpack.c.l.b16 %v512
        %v1608 = vunpack.c.l.b16 %v513
        %v1609 = vunpack.c.h.b16 %v513
        %v1610 = vunpack.c.l.b16 %v514
        %v1611 = vunpack.c.h.b16 %v514
        %v1612 = vunpack.c.l.b16 %v515
        %v1613 = vunpack.c.l.b16 %v516
        %v1614 = vunpack.c.h.b16 %v516
        %v1615 = vunpack.c.l.b16 %v517
        %v1616 = vunpack.c.h.b16 %v517
        %v1617 = vunpack.c.l.b16 %v518
        %v1618 = vunpack.c.l.b16 %v519
        %v1619 = vunpack.c.h.b16 %v519
        %v1620 = vunpack.c.l.b16 %v520
        %v1621 = vunpack.c.h.b16 %v520
        %v1622 = vunpack.c.l.b16 %v521
        %v1623 = vunpack.c.l.b16 %v522
        %v1624 = vunpack.c.h.b16 %v522
        %v1625 = vunpack.c.l.b16 %v523
        %v1626 = vunpack.c.h.b16 %v523
        %v1627 = vunpack.c.l.b16 %v524
        %v1628 = vunpack.c.l.b16 %v525
        %v1629 = vunpack.c.h.b16 %v525
        %v1630 = vunpack.c.l.b16 %v526
        %v1631 = vunpack.c.h.b16 %v526
        %v1632 = vunpack.c.l.b16 %v527
        %v1633 = vunpack.c.l.b16 %v528
        %v1634 = vunpack.c.h.b16 %v528
        %v1635 = vunpack.c.l.b16 %v529
        %v1636 = vunpack.c.h.b16 %v529
        %v1637 = vunpack.c.l.b16 %v530
        %v1638 = vunpack.c.l.b16 %v531
        %v1639 = vunpack.c.h.b16 %v531
        %v1640 = vunpack.c.l.b16 %v532
        %v1641 = vunpack.c.h.b16 %v532
        %v1642 = vunpack.c.l.b16 %v533
        %v1643 = vunpack.c.l.b16 %v534
        %v1644 = vunpack.c.h.b16 %v534
        %v1645 = vunpack.c.l.b16 %v535
        %v1646 = vunpack.c.h.b16 %v535
        %v1647 = vunpack.c.l.b16 %v536
        %v1648 = vunpack.c.l.b16 %v537
        %v1649 = vunpack.c.h.b16 %v537
        %v1650 = vunpack.c.l.b16 %v538
        %v1651 = vunpack.c.h.b16 %v538
        %v1652 = vunpack.c.l.b16 %v539
        %v1653 = vunpack.c.l.b16 %v540
        %v1654 = vunpack.c.h.b16 %v540
        %v1655 = vunpack.c.l.b16 %v541
        %v1656 = vunpack.c.h.b16 %v541
        %v1657 = vunpack.c.l.b16 %v542
        %v1658 = vunpack.c.l.b16 %v543
        %v1659 = vunpack.c.h.b16 %v543
        %v1660 = vunpack.c.l.b16 %v544
        %v1661 = vunpack.c.h.b16 %v544
        %v1662 = vunpack.c.l.b16 %v545
        %v1663 = vunpack.c.l.b16 %v546
        %v1664 = vunpack.c.h.b16 %v546
        %v1665 = vunpack.c.l.b16 %v547
        %v1666 = vunpack.c.h.b16 %v547
        %v1667 = vunpack.c.l.b16 %v548
        %v1668 = vunpack.c.l.b16 %v549
        %v1669 = vunpack.c.h.b16 %v549
        %v1670 = vunpack.c.l.b16 %v550
        %v1671 = vunpack.c.h.b16 %v550
        %v1672 = vunpack.c.l.b16 %v551
        %v1673 = vunpack.c.l.b16 %v552
        %v1674 = vunpack.c.h.b16 %v552
        %v1675 = vunpack.c.l.b16 %v553
        %v1676 = vunpack.c.h.b16 %v553
        %v1677 = vunpack.c.l.b16 %v554
        %v1678 = vunpack.c.l.b16 %v555
        %v1679 = vunpack.c.h.b16 %v555
        %v1680 = vunpack.c.l.b16 %v556
        %v1681 = vunpack.c.h.b16 %v556
        %v1682 = vunpack.c.l.b16 %v557
        %v1683 = vunpack.c.l.b16 %v558
        %v1684 = vunpack.c.h.b16 %v558
        %v1685 = vunpack.c.l.b16 %v559
        %v1686 = vunpack.c.h.b16 %v559
        %v1687 = vunpack.c.l.b16 %v560
        %v1688 = vunpack.c.l.b16 %v561
        %v1689 = vunpack.c.h.b16 %v561
        %v1690 = vunpack.c.l.b16 %v562
        %v1691 = vunpack.c.h.b16 %v562
        %v1692 = vunpack.c.l.b16 %v563
        %v1693 = vunpack.c.l.b16 %v564
        %v1694 = vunpack.c.h.b16 %v564
        %v1695 = vunpack.c.l.b16 %v565
        %v1696 = vunpack.c.h.b16 %v565
        %v1697 = vunpack.c.l.b16 %v566
        %v1698 = vunpack.c.l.b16 %v567
        %v1699 = vunpack.c.h.b16 %v567
        %v1700 = vunpack.c.l.b16 %v568
        %v1701 = vunpack.c.h.b16 %v568
        %v1702 = vunpack.c.l.b16 %v569
        %v1703 = vunpack.c.l.b16 %v570
        %v1704 = vunpack.c.h.b16 %v570
        %v1705 = vunpack.c.l.b16 %v571
        %v1706 = vunpack.c.h.b16 %v571
        %v1707 = vunpack.c.l.b16 %v572
        %v1708 = vunpack.c.l.b16 %v573
        %v1709 = vunpack.c.h.b16 %v573
        %v1710 = vunpack.c.l.b16 %v574
        %v1711 = vunpack.c.h.b16 %v574
        %v1712 = vunpack.c.l.b16 %v575
        %v1713 = vunpack.c.l.b16 %v576
        %v1714 = vunpack.c.h.b16 %v576
        %v1715 = vunpack.c.l.b16 %v577
        %v1716 = vunpack.c.h.b16 %v577
        %v1717 = vunpack.c.l.b16 %v578
        %v1718 = vunpack.c.l.b16 %v579
        %v1719 = vunpack.c.h.b16 %v579
        %v1720 = vunpack.c.l.b16 %v580
        %v1721 = vunpack.c.h.b16 %v580
        %v1722 = vunpack.c.l.b16 %v581
        %v1723 = vunpack.c.l.b16 %v582
        %v1724 = vunpack.c.h.b16 %v582
        %v1725 = vunpack.c.l.b16 %v583
        %v1726 = vunpack.c.h.b16 %v583
        %v1727 = vunpack.c.l.b16 %v584
        %v1728 = vunpack.c.l.b16 %v585
        %v1729 = vunpack.c.h.b16 %v585
        %v1730 = vunpack.c.l.b16 %v586
        %v1731 = vunpack.c.h.b16 %v586
        %v1732 = vunpack.c.l.b16 %v587
        %v1733 = vunpack.c.l.b16 %v588
        %v1734 = vunpack.c.h.b16 %v588
        %v1735 = vunpack.c.l.b16 %v589
        %v1736 = vunpack.c.h.b16 %v589
        %v1737 = vunpack.c.l.b16 %v590
        %v1738 = vunpack.c.l.b16 %v591
        %v1739 = vunpack.c.h.b16 %v591
        %v1740 = vunpack.c.l.b16 %v592
        %v1741 = vunpack.c.h.b16 %v592
        %v1742 = vunpack.c.l.b16 %v593
        %v1743 = vunpack.c.l.b16 %v594
        %v1744 = vunpack.c.h.b16 %v594
        %v1745 = vunpack.c.l.b16 %v595
        %v1746 = vunpack.c.h.b16 %v595
        %v1747 = vunpack.c.l.b16 %v596
        %v1748 = vunpack.c.l.b16 %v597
        %v1749 = vunpack.c.h.b16 %v597
        %v1750 = vunpack.c.l.b16 %v598
        %v1751 = vunpack.c.h.b16 %v598
        %v1752 = vunpack.c.l.b16 %v599
        %v1753 = vunpack.c.l.b16 %v600
        %v1754 = vunpack.c.h.b16 %v600
        %v1755 = vunpack.c.l.b16 %v601
        %v1756 = vunpack.c.h.b16 %v601
        %v1757 = vunpack.c.l.b16 %v602
        %v1758 = vunpack.c.l.b16 %v603
        %v1759 = vunpack.c.h.b16 %v603
        %v1760 = vunpack.c.l.b16 %v604
        %v1761 = vunpack.c.h.b16 %v604
        %v1762 = vunpack.c.l.b16 %v605
        %v1763 = vunpack.c.l.b16 %v606
        %v1764 = vunpack.c.h.b16 %v606
        %v1765 = vunpack.c.l.b16 %v607
        %v1766 = vunpack.c.h.b16 %v607
        %v1767 = vunpack.c.l.b16 %v608
        %v1768 = vunpack.c.l.b16 %v609
        %v1769 = vunpack.c.h.b16 %v609
        %v1770 = vunpack.c.l.b16 %v610
        %v1771 = vunpack.c.h.b16 %v610
        %v1772 = vunpack.c.l.b16 %v611
        %v1773 = vunpack.c.l.b16 %v612
        %v1774 = vunpack.c.h.b16 %v612
        %v1775 = vunpack.c.l.b16 %v613
        %v1776 = vunpack.c.h.b16 %v613
        %v1777 = vunpack.c.l.b16 %v614
        %v1778 = vunpack.c.l.b16 %v615
        %v1779 = vunpack.c.h.b16 %v615
        %v1780 = vunpack.c.l.b16 %v616
        %v1781 = vunpack.c.h.b16 %v616
        %v1782 = vunpack.c.l.b16 %v617
        %v1783 = vunpack.c.l.b16 %v618
        %v1784 = vunpack.c.h.b16 %v618
        %v1785 = vunpack.c.l.b16 %v619
        %v1786 = vunpack.c.h.b16 %v619
        %v1787 = vunpack.c.l.b16 %v620
        %v1788 = vunpack.c.l.b16 %v621
        %v1789 = vunpack.c.h.b16 %v621
        %v1790 = vunpack.c.l.b16 %v622
        %v1791 = vunpack.c.h.b16 %v622
        %v1792 = vunpack.c.l.b16 %v623
        %v1793 = vunpack.c.l.b16 %v624
        %v1794 = vunpack.c.h.b16 %v624
        %v1795 = vunpack.c.l.b16 %v625
        %v1796 = vunpack.c.h.b16 %v625
        %v1797 = vunpack.c.l.b16 %v626
        %v1798 = vunpack.c.l.b16 %v627
        %v1799 = vunpack.c.h.b16 %v627
        %v1800 = vunpack.c.l.b16 %v628
        %v1801 = vunpack.c.h.b16 %v628
        %v1802 = vunpack.c.l.b16 %v629
        %v1803 = vunpack.c.l.b16 %v630
        %v1804 = vunpack.c.h.b16 %v630
        %v1805 = vunpack.c.l.b16 %v631
        %v1806 = vunpack.c.h.b16 %v631
        %v1807 = vunpack.c.l.b16 %v632
        %v1808 = vunpack.c.l.b16 %v633
        %v1809 = vunpack.c.h.b16 %v633
        %v1810 = vunpack.c.l.b16 %v634
        %v1811 = vunpack.c.h.b16 %v634
        %v1812 = vunpack.c.l.b16 %v635
        %v1813 = vunpack.c.l.b16 %v636
        %v1814 = vunpack.c.h.b16 %v636
        %v1815 = vunpack.c.l.b16 %v637
        %v1816 = vunpack.c.h.b16 %v637
        %v1817 = vunpack.c.l.b16 %v638
        %v1818 = vunpack.c.l.b16 %v639
        %v1819 = vunpack.c.h.b16 %v639
        %v1820 = vunpack.c.l.b16 %v640
        %v1821 = vunpack.c.h.b16 %v640
        %v1822 = vunpack.c.l.b16 %v641
        %v1823 = vunpack.c.l.b16 %v642
        %v1824 = vunpack.c.h.b16 %v642
        %v1825 = vunpack.c.l.b16 %v643
        %v1826 = vunpack.c.h.b16 %v643
        %v1827 = vunpack.c.l.b16 %v644
        %v1828 = vunpack.c.l.b16 %v645
        %v1829 = vunpack.c.h.b16 %v645
        %v1830 = vunpack.c.l.b16 %v646
        %v1831 = vunpack.c.h.b16 %v646
        %v1832 = vunpack.c.l.b16 %v647
        %v1833 = vunpack.c.l.b16 %v648
        %v1834 = vunpack.c.h.b16 %v648
        %v1835 = vunpack.c.l.b16 %v649
        %v1836 = vunpack.c.h.b16 %v649
        %v1837 = vunpack.c.l.b16 %v650
        %v1838 = vunpack.c.l.b16 %v651
        %v1839 = vunpack.c.h.b16 %v651
        %v1840 = vunpack.c.l.b16 %v652
        %v1841 = vunpack.c.h.b16 %v652
        %v1842 = vunpack.c.l.b16 %v653
        %v1843 = vunpack.c.l.b16 %v654
        %v1844 = vunpack.c.h.b16 %v654
        %v1845 = vunpack.c.l.b16 %v655
        %v1846 = vunpack.c.h.b16 %v655
        %v1847 = vunpack.c.l.b16 %v656
        %v1848 = vunpack.c.l.b16 %v657
        %v1849 = vunpack.c.h.b16 %v657
        %v1850 = vunpack.c.l.b16 %v658
        %v1851 = vunpack.c.h.b16 %v658
        %v1852 = vunpack.c.l.b16 %v659
        %v1853 = vunpack.c.l.b16 %v660
        %v1854 = vunpack.c.h.b16 %v660
        %v1855 = vunpack.c.l.b16 %v661
        %v1856 = vunpack.c.h.b16 %v661
        %v1857 = vunpack.c.l.b16 %v662
        %v1858 = vunpack.c.l.b16 %v663
        %v1859 = vunpack.c.h.b16 %v663
        %v1860 = vunpack.c.l.b16 %v664
        %v1861 = vunpack.c.h.b16 %v664
        %v1862 = vunpack.c.l.b16 %v665
        %v1863 = vunpack.c.l.b16 %v666
        %v1864 = vunpack.c.h.b16 %v666
        %v1865 = vunpack.c.l.b16 %v667
        %v1866 = vunpack.c.h.b16 %v667
        %v1867 = vunpack.c.l.b16 %v668
        %v1868 = vunpack.c.l.b16 %v669
        %v1869 = vunpack.c.h.b16 %v669
        %v1870 = vunpack.c.l.b16 %v670
        %v1871 = vunpack.c.h.b16 %v670
        %v1872 = vunpack.c.l.b16 %v671
        %v1873 = vunpack.c.l.b16 %v672
        %v1874 = vunpack.c.h.b16 %v672
        %v1875 = vunpack.c.l.b16 %v673
        %v1876 = vunpack.c.h.b16 %v673
        %v1877 = vunpack.c.l.b16 %v674
        %v1878 = vpack.c.b16 %v1483, %v1478
        %v1879 = vpack.c.b16 %v1484, %v1479
        %v1880 = vpack.c.b16 %v1485, %v1480
        %v1881 = vpack.c.b16 %v1486, %v1481
        %v1882 = vpack.c.b16 %v1487, %v1482
        %v1883 = vpack.c.b16 %v1493, %v1488
        %v1884 = vpack.c.b16 %v1494, %v1489
        %v1885 = vpack.c.b16 %v1495, %v1490
        %v1886 = vpack.c.b16 %v1496, %v1491
        %v1887 = vpack.c.b16 %v1497, %v1492
        %v1888 = vpack.c.b16 %v1503, %v1498
        %v1889 = vpack.c.b16 %v1504, %v1499
        %v1890 = vpack.c.b16 %v1505, %v1500
        %v1891 = vpack.c.b16 %v1506, %v1501
        %v1892 = vpack.c.b16 %v1507, %v1502
        %v1893 = vpack.c.b16 %v1513, %v1508
        %v1894 = vpack.c.b16 %v1514, %v1509
        %v1895 = vpack.c.b16 %v1515, %v1510
        %v1896 = vpack.c.b16 %v1516, %v1511
        %v1897 = vpack.c.b16 %v1517, %v1512
        %v1898 = vpack.c.b16 %v1523, %v1518
        %v1899 = vpack.c.b16 %v1524, %v1519
        %v1900 = vpack.c.b16 %v1525, %v1520
        %v1901 = vpack.c.b16 %v1526, %v1521
        %v1902 = vpack.c.b16 %v1527, %v1522
        %v1903 = vpack.c.b16 %v1533, %v1528
        %v1904 = vpack.c.b16 %v1534, %v1529
        %v1905 = vpack.c.b16 %v1535, %v1530
        %v1906 = vpack.c.b16 %v1536, %v1531
        %v1907 = vpack.c.b16 %v1537, %v1532
        %v1908 = vpack.c.b16 %v1543, %v1538
        %v1909 = vpack.c.b16 %v1544, %v1539
        %v1910 = vpack.c.b16 %v1545, %v1540
        %v1911 = vpack.c.b16 %v1546, %v1541
        %v1912 = vpack.c.b16 %v1547, %v1542
        %v1913 = vpack.c.b16 %v1553, %v1548
        %v1914 = vpack.c.b16 %v1554, %v1549
        %v1915 = vpack.c.b16 %v1555, %v1550
        %v1916 = vpack.c.b16 %v1556, %v1551
        %v1917 = vpack.c.b16 %v1557, %v1552
        %v1918 = vpack.c.b16 %v1563, %v1558
        %v1919 = vpack.c.b16 %v1564, %v1559
        %v1920 = vpack.c.b16 %v1565, %v1560
        %v1921 = vpack.c.b16 %v1566, %v1561
        %v1922 = vpack.c.b16 %v1567, %v1562
        %v1923 = vpack.c.b16 %v1573, %v1568
        %v1924 = vpack.c.b16 %v1574, %v1569
        %v1925 = vpack.c.b16 %v1575, %v1570
        %v1926 = vpack.c.b16 %v1576, %v1571
        %v1927 = vpack.c.b16 %v1577, %v1572
        %v1928 = vpack.c.b16 %v1583, %v1578
        %v1929 = vpack.c.b16 %v1584, %v1579
        %v1930 = vpack.c.b16 %v1585, %v1580
        %v1931 = vpack.c.b16 %v1586, %v1581
        %v1932 = vpack.c.b16 %v1587, %v1582
        %v1933 = vpack.c.b16 %v1593, %v1588
        %v1934 = vpack.c.b16 %v1594, %v1589
        %v1935 = vpack.c.b16 %v1595, %v1590
        %v1936 = vpack.c.b16 %v1596, %v1591
        %v1937 = vpack.c.b16 %v1597, %v1592
        %v1938 = vpack.c.b16 %v1603, %v1598
        %v1939 = vpack.c.b16 %v1604, %v1599
        %v1940 = vpack.c.b16 %v1605, %v1600
        %v1941 = vpack.c.b16 %v1606, %v1601
        %v1942 = vpack.c.b16 %v1607, %v1602
        %v1943 = vpack.c.b16 %v1613, %v1608
        %v1944 = vpack.c.b16 %v1614, %v1609
        %v1945 = vpack.c.b16 %v1615, %v1610
        %v1946 = vpack.c.b16 %v1616, %v1611
        %v1947 = vpack.c.b16 %v1617, %v1612
        %v1948 = vpack.c.b16 %v1623, %v1618
        %v1949 = vpack.c.b16 %v1624, %v1619
        %v1950 = vpack.c.b16 %v1625, %v1620
        %v1951 = vpack.c.b16 %v1626, %v1621
        %v1952 = vpack.c.b16 %v1627, %v1622
        %v1953 = vpack.c.b16 %v1633, %v1628
        %v1954 = vpack.c.b16 %v1634, %v1629
        %v1955 = vpack.c.b16 %v1635, %v1630
        %v1956 = vpack.c.b16 %v1636, %v1631
        %v1957 = vpack.c.b16 %v1637, %v1632
        %v1958 = vpack.c.b16 %v1643, %v1638
        %v1959 = vpack.c.b16 %v1644, %v1639
        %v1960 = vpack.c.b16 %v1645, %v1640
        %v1961 = vpack.c.b16 %v1646, %v1641
        %v1962 = vpack.c.b16 %v1647, %v1642
        %v1963 = vpack.c.b16 %v1653, %v1648
        %v1964 = vpack.c.b16 %v1654, %v1649
        %v1965 = vpack.c.b16 %v1655, %v1650
        %v1966 = vpack.c.b16 %v1656, %v1651
        %v1967 = vpack.c.b16 %v1657, %v1652
        %v1968 = vpack.c.b16 %v1663, %v1658
        %v1969 = vpack.c.b16 %v1664, %v1659
        %v1970 = vpack.c.b16 %v1665, %v1660
        %v1971 = vpack.c.b16 %v1666, %v1661
        %v1972 = vpack.c.b16 %v1667, %v1662
        %v1973 = vpack.c.b16 %v1673, %v1668
        %v1974 = vpack.c.b16 %v1674, %v1669
        %v1975 = vpack.c.b16 %v1675, %v1670
        %v1976 = vpack.c.b16 %v1676, %v1671
        %v1977 = vpack.c.b16 %v1677, %v1672
        %v1978 = vpack.c.b16 %v1683, %v1678
        %v1979 = vpack.c.b16 %v1684, %v1679
        %v1980 = vpack.c.b16 %v1685, %v1680
        %v1981 = vpack.c.b16 %v1686, %v1681
        %v1982 = vpack.c.b16 %v1687, %v1682
        %v1983 = vpack.c.b16 %v1693, %v1688
        %v1984 = vpack.c.b16 %v1694, %v1689
        %v1985 = vpack.c.b16 %v1695, %v1690
        %v1986 = vpack.c.b16 %v1696, %v1691
        %v1987 = vpack.c.b16 %v1697, %v1692
        %v1988 = vpack.c.b16 %v1703, %v1698
        %v1989 = vpack.c.b16 %v1704, %v1699
        %v1990 = vpack.c.b16 %v1705, %v1700
        %v1991 = vpack.c.b16 %v1706, %v1701
        %v1992 = vpack.c.b16 %v1707, %v1702
        %v1993 = vpack.c.b16 %v1713, %v1708
        %v1994 = vpack.c.b16 %v1714, %v1709
        %v1995 = vpack.c.b16 %v1715, %v1710
        %v1996 = vpack.c.b16 %v1716, %v1711
        %v1997 = vpack.c.b16 %v1717, %v1712
        %v1998 = vpack.c.b16 %v1723, %v1718
        %v1999 = vpack.c.b16 %v1724, %v1719
        %v2000 = vpack.c.b16 %v1725, %v1720
        %v2001 = vpack.c.b16 %v1726, %v1721
        %v2002 = vpack.c.b16 %v1727, %v1722
        %v2003 = vpack.c.b16 %v1733, %v1728
        %v2004 = vpack.c.b16 %v1734, %v1729
        %v2005 = vpack.c.b16 %v1735, %v1730
        %v2006 = vpack.c.b16 %v1736, %v1731
        %v2007 = vpack.c.b16 %v1737, %v1732
        %v2008 = vpack.c.b16 %v1743, %v1738
        %v2009 = vpack.c.b16 %v1744, %v1739
        %v2010 = vpack.c.b16 %v1745, %v1740
        %v2011 = vpack.c.b16 %v1746, %v1741
        %v2012 = vpack.c.b16 %v1747, %v1742
        %v2013 = vpack.c.b16 %v1753, %v1748
        %v2014 = vpack.c.b16 %v1754, %v1749
        %v2015 = vpack.c.b16 %v1755, %v1750
        %v2016 = vpack.c.b16 %v1756, %v1751
        %v2017 = vpack.c.b16 %v1757, %v1752
        %v2018 = vpack.c.b16 %v1763, %v1758
        %v2019 = vpack.c.b16 %v1764, %v1759
        %v2020 = vpack.c.b16 %v1765, %v1760
        %v2021 = vpack.c.b16 %v1766, %v1761
        %v2022 = vpack.c.b16 %v1767, %v1762
        %v2023 = vpack.c.b16 %v1773, %v1768
        %v2024 = vpack.c.b16 %v1774, %v1769
        %v2025 = vpack.c.b16 %v1775, %v1770
        %v2026 = vpack.c.b16 %v1776, %v1771
        %v2027 = vpack.c.b16 %v1777, %v1772
        %v2028 = vpack.c.b16 %v1783, %v1778
        %v2029 = vpack.c.b16 %v1784, %v1779
        %v2030 = vpack.c.b16 %v1785, %v1780
        %v2031 = vpack.c.b16 %v1786, %v1781
        %v2032 = vpack.c.b16 %v1787, %v1782
        %v2033 = vpack.c.b16 %v1793, %v1788
        %v2034 = vpack.c.b16 %v1794, %v1789
        %v2035 = vpack.c.b16 %v1795, %v1790
        %v2036 = vpack.c.b16 %v1796, %v1791
        %v2037 = vpack.c.b16 %v1797, %v1792
        %v2038 = vpack.c.b16 %v1803, %v1798
        %v2039 = vpack.c.b16 %v1804, %v1799
        %v2040 = vpack.c.b16 %v1805, %v1800
        %v2041 = vpack.c.b16 %v1806, %v1801
        %v2042 = vpack.c.b16 %v1807, %v1802
        %v2043 = vpack.c.b16 %v1813, %v1808
        %v2044 = vpack.c.b16 %v1814, %v1809
        %v2045 = vpack.c.b16 %v1815, %v1810
        %v2046 = vpack.c.b16 %v1816, %v1811
        %v2047 = vpack.c.b16 %v1817, %v1812
        %v2048 = vpack.c.b16 %v1823, %v1818
        %v2049 = vpack.c.b16 %v1824, %v1819
        %v2050 = vpack.c.b16 %v1825, %v1820
        %v2051 = vpack.c.b16 %v1826, %v1821
        %v2052 = vpack.c.b16 %v1827, %v1822
        %v2053 = vpack.c.b16 %v1833, %v1828
        %v2054 = vpack.c.b16 %v1834, %v1829
        %v2055 = vpack.c.b16 %v1835, %v1830
        %v2056 = vpack.c.b16 %v1836, %v1831
        %v2057 = vpack.c.b16 %v1837, %v1832
        %v2058 = vpack.c.b16 %v1843, %v1838
        %v2059 = vpack.c.b16 %v1844, %v1839
        %v2060 = vpack.c.b16 %v1845, %v1840
        %v2061 = vpack.c.b16 %v1846, %v1841
        %v2062 = vpack.c.b16 %v1847, %v1842
        %v2063 = vpack.c.b16 %v1853, %v1848
        %v2064 = vpack.c.b16 %v1854, %v1849
        %v2065 = vpack.c.b16 %v1855, %v1850
        %v2066 = vpack.c.b16 %v1856, %v1851
        %v2067 = vpack.c.b16 %v1857, %v1852
        %v2068 = vpack.c.b16 %v1863, %v1858
        %v2069 = vpack.c.b16 %v1864, %v1859
        %v2070 = vpack.c.b16 %v1865, %v1860
        %v2071 = vpack.c.b16 %v1866, %v1861
        %v2072 = vpack.c.b16 %v1867, %v1862
        %v2073 = vpack.c.b16 %v1873, %v1868
        %v2074 = vpack.c.b16 %v1874, %v1869
        %v2075 = vpack.c.b16 %v1875, %v1870
        %v2076 = vpack.c.b16 %v1876, %v1871
        %v2077 = vpack.c.b16 %v1877, %v1872
        %2278 = vmatprep.subr.bf16.mxu0 %v1879
        %2279 = vmatpush1.bf16.msra.mxu0 %v1878
        %2280 = vmatprep.subr.bf16.mxu0 %v1884
        %2281 = vmatpush1.bf16.msra.mxu0 %v1883
        %2282 = vmatprep.subr.bf16.mxu0 %v1889
        %2283 = vmatpush1.bf16.msra.mxu0 %v1888
        %2284 = vmatprep.subr.bf16.mxu0 %v1894
        %2285 = vmatpush1.bf16.msra.mxu0 %v1893
        %2286 = vmatprep.subr.bf16.mxu0 %v1899
        %2287 = vmatpush1.bf16.msra.mxu0 %v1898
        %2288 = vmatprep.subr.bf16.mxu0 %v1904
        %2289 = vmatpush1.bf16.msra.mxu0 %v1903
        %2290 = vmatprep.subr.bf16.mxu0 %v1909
        %2291 = vmatpush1.bf16.msra.mxu0 %v1908
        %2292 = vmatprep.subr.bf16.mxu0 %v1914
        %2293 = vmatpush1.bf16.msra.mxu0 %v1913
        %2294 = vmatprep.subr.bf16.mxu0 %v1919
        %2295 = vmatpush1.bf16.msra.mxu0 %v1918
        %2296 = vmatprep.subr.bf16.mxu0 %v1924
        %2297 = vmatpush1.bf16.msra.mxu0 %v1923
        %2298 = vmatprep.subr.bf16.mxu0 %v1929
        %2299 = vmatpush1.bf16.msra.mxu0 %v1928
        %2300 = vmatprep.subr.bf16.mxu0 %v1934
        %2301 = vmatpush1.bf16.msra.mxu0 %v1933
        %2302 = vmatprep.subr.bf16.mxu0 %v1939
        %2303 = vmatpush1.bf16.msra.mxu0 %v1938
        %2304 = vmatprep.subr.bf16.mxu0 %v1944
        %2305 = vmatpush1.bf16.msra.mxu0 %v1943
        %2306 = vmatprep.subr.bf16.mxu0 %v1949
        %2307 = vmatpush1.bf16.msra.mxu0 %v1948
        %2308 = vmatprep.subr.bf16.mxu0 %v1954
        %2309 = vmatpush1.bf16.msra.mxu0 %v1953
        %2310 = vmatprep.mubr.bf16.mxu0 %v1208
        %2311 = vmatmul.mubr.bf16.gmra.mrb[0].mxu0 %v1207
        %v2312 = vpop.f32.mrb[0].mxu0
        %v2313 = vadd.f32 %v1216, %v2312
        %v2314 = vpop.f32.mrb[0].mxu0
        %v2315 = vadd.f32 %v1220, %v2314
        %v2316 = vpop.f32.mrb[0].mxu0
        %v2317 = vpop.f32.mrb[0].mxu0
        %2318 = vdwg.mxu0
        %2319 = vmatprep.subr.bf16.mxu0 %v1959
        %2320 = vmatpush1.bf16.msra.mxu0 %v1958
        %2321 = vmatprep.subr.bf16.mxu0 %v1964
        %2322 = vmatpush1.bf16.msra.mxu0 %v1963
        %2323 = vmatprep.subr.bf16.mxu0 %v1969
        %2324 = vmatpush1.bf16.msra.mxu0 %v1968
        %2325 = vmatprep.subr.bf16.mxu0 %v1974
        %2326 = vmatpush1.bf16.msra.mxu0 %v1973
        %2327 = vmatprep.subr.bf16.mxu0 %v1979
        %2328 = vmatpush1.bf16.msra.mxu0 %v1978
        %2329 = vmatprep.subr.bf16.mxu0 %v1984
        %2330 = vmatpush1.bf16.msra.mxu0 %v1983
        %2331 = vmatprep.subr.bf16.mxu0 %v1989
        %2332 = vmatpush1.bf16.msra.mxu0 %v1988
        %2333 = vmatprep.subr.bf16.mxu0 %v1994
        %2334 = vmatpush1.bf16.msra.mxu0 %v1993
        %2335 = vmatprep.subr.bf16.mxu0 %v1999
        %2336 = vmatpush1.bf16.msra.mxu0 %v1998
        %2337 = vmatprep.subr.bf16.mxu0 %v2004
        %2338 = vmatpush1.bf16.msra.mxu0 %v2003
        %2339 = vmatprep.subr.bf16.mxu0 %v2009
        %2340 = vmatpush1.bf16.msra.mxu0 %v2008
        %2341 = vmatprep.subr.bf16.mxu0 %v2014
        %2342 = vmatpush1.bf16.msra.mxu0 %v2013
        %2343 = vmatprep.subr.bf16.mxu0 %v2019
        %2344 = vmatpush1.bf16.msra.mxu0 %v2018
        %2345 = vmatprep.subr.bf16.mxu0 %v2024
        %2346 = vmatpush1.bf16.msra.mxu0 %v2023
        %2347 = vmatprep.subr.bf16.mxu0 %v2029
        %2348 = vmatpush1.bf16.msra.mxu0 %v2028
        %2349 = vmatprep.subr.bf16.mxu0 %v2034
        %2350 = vmatpush1.bf16.msra.mxu0 %v2033
        %2351 = vmatprep.mubr.bf16.mxu0 %v1210
        %2352 = vmatmul.mubr.bf16.gmra.mrb[0].mxu0 %v1209
        %v2353 = vpop.f32.mrb[0].mxu0
        %v2354 = vadd.f32 %v2313, %v2353
        %v2355 = vpop.f32.mrb[0].mxu0
        %v2356 = vadd.f32 %v2315, %v2355
        %v2357 = vpop.f32.mrb[0].mxu0
        %v2358 = vpop.f32.mrb[0].mxu0
        %2359 = vdwg.mxu0
        %2360 = vmatprep.subr.bf16.mxu0 %v2039
        %2361 = vmatpush1.bf16.msra.mxu0 %v2038
        %2362 = vmatprep.subr.bf16.mxu0 %v2044
        %2363 = vmatpush1.bf16.msra.mxu0 %v2043
        %2364 = vmatprep.subr.bf16.mxu0 %v2049
        %2365 = vmatpush1.bf16.msra.mxu0 %v2048
        %2366 = vmatprep.subr.bf16.mxu0 %v2054
        %2367 = vmatpush1.bf16.msra.mxu0 %v2053
        %2368 = vmatprep.subr.bf16.mxu0 %v2059
        %2369 = vmatpush1.bf16.msra.mxu0 %v2058
        %2370 = vmatprep.subr.bf16.mxu0 %v2064
        %2371 = vmatpush1.bf16.msra.mxu0 %v2063
        %2372 = vmatprep.subr.bf16.mxu0 %v2069
        %2373 = vmatpush1.bf16.msra.mxu0 %v2068
        %2374 = vmatprep.subr.bf16.mxu0 %v2074
        %2375 = vmatpush1.bf16.msra.mxu0 %v2073
        %2376 = vmatprep.subr.bf16.mxu0 0
        %2377 = vmatpush1.bf16.msra.mxu0 0
        %2378 = vmatprep.subr.bf16.mxu0 0
        %2379 = vmatpush1.bf16.msra.mxu0 0
        %2380 = vmatprep.subr.bf16.mxu0 0
        %2381 = vmatpush1.bf16.msra.mxu0 0
        %2382 = vmatprep.subr.bf16.mxu0 0
        %2383 = vmatpush1.bf16.msra.mxu0 0
        %2384 = vmatprep.subr.bf16.mxu0 0
        %2385 = vmatpush1.bf16.msra.mxu0 0
        %2386 = vmatprep.subr.bf16.mxu0 0
        %2387 = vmatpush1.bf16.msra.mxu0 0
        %2388 = vmatprep.subr.bf16.mxu0 0
        %2389 = vmatpush1.bf16.msra.mxu0 0
        %2390 = vmatprep.subr.bf16.mxu0 0
        %2391 = vmatpush1.bf16.msra.mxu0 0
        %2392 = vmatprep.mubr.bf16.mxu0 0
        %2393 = vmatmul.mubr.bf16.gmra.mrb[0].mxu0 %v1211
        %v2394 = vpop.f32.mrb[0].mxu0
        %v2395 = vadd.f32 %v2354, %v2394
        %v2396 = vpop.f32.mrb[0].mxu0
        %v2397 = vadd.f32 %v2356, %v2396
        %v2398 = vpop.f32.mrb[0].mxu0
        %v2399 = vpop.f32.mrb[0].mxu0
        %2400 = vdwg.mxu0
        %2401 = vmatprep.subr.bf16.mxu0 %v1881
        %2402 = vmatpush1.bf16.msra.mxu0 %v1880
        %2403 = vmatprep.subr.bf16.mxu0 %v1886
        %2404 = vmatpush1.bf16.msra.mxu0 %v1885
        %2405 = vmatprep.subr.bf16.mxu0 %v1891
        %2406 = vmatpush1.bf16.msra.mxu0 %v1890
        %2407 = vmatprep.subr.bf16.mxu0 %v1896
        %2408 = vmatpush1.bf16.msra.mxu0 %v1895
        %2409 = vmatprep.subr.bf16.mxu0 %v1901
        %2410 = vmatpush1.bf16.msra.mxu0 %v1900
        %2411 = vmatprep.subr.bf16.mxu0 %v1906
        %2412 = vmatpush1.bf16.msra.mxu0 %v1905
        %2413 = vmatprep.subr.bf16.mxu0 %v1911
        %2414 = vmatpush1.bf16.msra.mxu0 %v1910
        %2415 = vmatprep.subr.bf16.mxu0 %v1916
        %2416 = vmatpush1.bf16.msra.mxu0 %v1915
        %2417 = vmatprep.subr.bf16.mxu0 %v1921
        %2418 = vmatpush1.bf16.msra.mxu0 %v1920
        %2419 = vmatprep.subr.bf16.mxu0 %v1926
        %2420 = vmatpush1.bf16.msra.mxu0 %v1925
        %2421 = vmatprep.subr.bf16.mxu0 %v1931
        %2422 = vmatpush1.bf16.msra.mxu0 %v1930
        %2423 = vmatprep.subr.bf16.mxu0 %v1936
        %2424 = vmatpush1.bf16.msra.mxu0 %v1935
        %2425 = vmatprep.subr.bf16.mxu0 %v1941
        %2426 = vmatpush1.bf16.msra.mxu0 %v1940
        %2427 = vmatprep.subr.bf16.mxu0 %v1946
        %2428 = vmatpush1.bf16.msra.mxu0 %v1945
        %2429 = vmatprep.subr.bf16.mxu0 %v1951
        %2430 = vmatpush1.bf16.msra.mxu0 %v1950
        %2431 = vmatprep.subr.bf16.mxu0 %v1956
        %2432 = vmatpush1.bf16.msra.mxu0 %v1955
        %2433 = vmatprep.mubr.bf16.mxu0 %v1208
        %2434 = vmatmul.mubr.bf16.gmra.mrb[0].mxu0 %v1207
        %v2435 = vpop.f32.mrb[0].mxu0
        %v2436 = vadd.f32 %v1224, %v2435
        %v2437 = vpop.f32.mrb[0].mxu0
        %v2438 = vadd.f32 %v1228, %v2437
        %v2439 = vpop.f32.mrb[0].mxu0
        %v2440 = vpop.f32.mrb[0].mxu0
        %2441 = vdwg.mxu0
        %2442 = vmatprep.subr.bf16.mxu0 %v1961
        %2443 = vmatpush1.bf16.msra.mxu0 %v1960
        %2444 = vmatprep.subr.bf16.mxu0 %v1966
        %2445 = vmatpush1.bf16.msra.mxu0 %v1965
        %2446 = vmatprep.subr.bf16.mxu0 %v1971
        %2447 = vmatpush1.bf16.msra.mxu0 %v1970
        %2448 = vmatprep.subr.bf16.mxu0 %v1976
        %2449 = vmatpush1.bf16.msra.mxu0 %v1975
        %2450 = vmatprep.subr.bf16.mxu0 %v1981
        %2451 = vmatpush1.bf16.msra.mxu0 %v1980
        %2452 = vmatprep.subr.bf16.mxu0 %v1986
        %2453 = vmatpush1.bf16.msra.mxu0 %v1985
        %2454 = vmatprep.subr.bf16.mxu0 %v1991
        %2455 = vmatpush1.bf16.msra.mxu0 %v1990
        %2456 = vmatprep.subr.bf16.mxu0 %v1996
        %2457 = vmatpush1.bf16.msra.mxu0 %v1995
        %2458 = vmatprep.subr.bf16.mxu0 %v2001
        %2459 = vmatpush1.bf16.msra.mxu0 %v2000
        %2460 = vmatprep.subr.bf16.mxu0 %v2006
        %2461 = vmatpush1.bf16.msra.mxu0 %v2005
        %2462 = vmatprep.subr.bf16.mxu0 %v2011
        %2463 = vmatpush1.bf16.msra.mxu0 %v2010
        %2464 = vmatprep.subr.bf16.mxu0 %v2016
        %2465 = vmatpush1.bf16.msra.mxu0 %v2015
        %2466 = vmatprep.subr.bf16.mxu0 %v2021
        %2467 = vmatpush1.bf16.msra.mxu0 %v2020
        %2468 = vmatprep.subr.bf16.mxu0 %v2026
        %2469 = vmatpush1.bf16.msra.mxu0 %v2025
        %2470 = vmatprep.subr.bf16.mxu0 %v2031
        %2471 = vmatpush1.bf16.msra.mxu0 %v2030
        %2472 = vmatprep.subr.bf16.mxu0 %v2036
        %2473 = vmatpush1.bf16.msra.mxu0 %v2035
        %2474 = vmatprep.mubr.bf16.mxu0 %v1210
        %2475 = vmatmul.mubr.bf16.gmra.mrb[0].mxu0 %v1209
        %v2476 = vpop.f32.mrb[0].mxu0
        %v2477 = vadd.f32 %v2436, %v2476
        %v2478 = vpop.f32.mrb[0].mxu0
        %v2479 = vadd.f32 %v2438, %v2478
        %v2480 = vpop.f32.mrb[0].mxu0
        %v2481 = vpop.f32.mrb[0].mxu0
        %2482 = vdwg.mxu0
        %2483 = vmatprep.subr.bf16.mxu0 %v2041
        %2484 = vmatpush1.bf16.msra.mxu0 %v2040
        %2485 = vmatprep.subr.bf16.mxu0 %v2046
        %2486 = vmatpush1.bf16.msra.mxu0 %v2045
        %2487 = vmatprep.subr.bf16.mxu0 %v2051
        %2488 = vmatpush1.bf16.msra.mxu0 %v2050
        %2489 = vmatprep.subr.bf16.mxu0 %v2056
        %2490 = vmatpush1.bf16.msra.mxu0 %v2055
        %2491 = vmatprep.subr.bf16.mxu0 %v2061
        %2492 = vmatpush1.bf16.msra.mxu0 %v2060
        %2493 = vmatprep.subr.bf16.mxu0 %v2066
        %2494 = vmatpush1.bf16.msra.mxu0 %v2065
        %2495 = vmatprep.subr.bf16.mxu0 %v2071
        %2496 = vmatpush1.bf16.msra.mxu0 %v2070
        %2497 = vmatprep.subr.bf16.mxu0 %v2076
        %2498 = vmatpush1.bf16.msra.mxu0 %v2075
        %2499 = vmatprep.subr.bf16.mxu0 0
        %2500 = vmatpush1.bf16.msra.mxu0 0
        %2501 = vmatprep.subr.bf16.mxu0 0
        %2502 = vmatpush1.bf16.msra.mxu0 0
        %2503 = vmatprep.subr.bf16.mxu0 0
        %2504 = vmatpush1.bf16.msra.mxu0 0
        %2505 = vmatprep.subr.bf16.mxu0 0
        %2506 = vmatpush1.bf16.msra.mxu0 0
        %2507 = vmatprep.subr.bf16.mxu0 0
        %2508 = vmatpush1.bf16.msra.mxu0 0
        %2509 = vmatprep.subr.bf16.mxu0 0
        %2510 = vmatpush1.bf16.msra.mxu0 0
        %2511 = vmatprep.subr.bf16.mxu0 0
        %2512 = vmatpush1.bf16.msra.mxu0 0
        %2513 = vmatprep.subr.bf16.mxu0 0
        %2514 = vmatpush1.bf16.msra.mxu0 0
        %2515 = vmatprep.mubr.bf16.mxu0 0
        %2516 = vmatmul.mubr.bf16.gmra.mrb[0].mxu0 %v1211
        %v2517 = vpop.f32.mrb[0].mxu0
        %v2518 = vadd.f32 %v2477, %v2517
        %v2519 = vpop.f32.mrb[0].mxu0
        %v2520 = vadd.f32 %v2479, %v2519
        %v2521 = vpop.f32.mrb[0].mxu0
        %v2522 = vpop.f32.mrb[0].mxu0
        %2523 = vdwg.mxu0
        %2524 = vmatprep.subr.bf16.mxu0 0
        %2525 = vmatpush1.bf16.msra.mxu0 %v1882
        %2526 = vmatprep.subr.bf16.mxu0 0
        %2527 = vmatpush1.bf16.msra.mxu0 %v1887
        %2528 = vmatprep.subr.bf16.mxu0 0
        %2529 = vmatpush1.bf16.msra.mxu0 %v1892
        %2530 = vmatprep.subr.bf16.mxu0 0
        %2531 = vmatpush1.bf16.msra.mxu0 %v1897
        %2532 = vmatprep.subr.bf16.mxu0 0
        %2533 = vmatpush1.bf16.msra.mxu0 %v1902
        %2534 = vmatprep.subr.bf16.mxu0 0
        %2535 = vmatpush1.bf16.msra.mxu0 %v1907
        %2536 = vmatprep.subr.bf16.mxu0 0
        %2537 = vmatpush1.bf16.msra.mxu0 %v1912
        %2538 = vmatprep.subr.bf16.mxu0 0
        %2539 = vmatpush1.bf16.msra.mxu0 %v1917
        %2540 = vmatprep.subr.bf16.mxu0 0
        %2541 = vmatpush1.bf16.msra.mxu0 %v1922
        %2542 = vmatprep.subr.bf16.mxu0 0
        %2543 = vmatpush1.bf16.msra.mxu0 %v1927
        %2544 = vmatprep.subr.bf16.mxu0 0
        %2545 = vmatpush1.bf16.msra.mxu0 %v1932
        %2546 = vmatprep.subr.bf16.mxu0 0
        %2547 = vmatpush1.bf16.msra.mxu0 %v1937
        %2548 = vmatprep.subr.bf16.mxu0 0
        %2549 = vmatpush1.bf16.msra.mxu0 %v1942
        %2550 = vmatprep.subr.bf16.mxu0 0
        %2551 = vmatpush1.bf16.msra.mxu0 %v1947
        %2552 = vmatprep.subr.bf16.mxu0 0
        %2553 = vmatpush1.bf16.msra.mxu0 %v1952
        %2554 = vmatprep.subr.bf16.mxu0 0
        %2555 = vmatpush1.bf16.msra.mxu0 %v1957
        %2556 = vmatprep.mubr.bf16.mxu0 %v1208
        %2557 = vmatmul.mubr.bf16.gmra.mrb[0].mxu0 %v1207
        %v2558 = vpop.f32.mrb[0].mxu0
        %v2559 = vadd.f32 %v1232, %v2558
        %v2560 = vpop.f32.mrb[0].mxu0
        %v2561 = vpop.f32.mrb[0].mxu0
        %v2562 = vpop.f32.mrb[0].mxu0
        %2563 = vdwg.mxu0
        %2564 = vmatprep.subr.bf16.mxu0 0
        %2565 = vmatpush1.bf16.msra.mxu0 %v1962
        %2566 = vmatprep.subr.bf16.mxu0 0
        %2567 = vmatpush1.bf16.msra.mxu0 %v1967
        %2568 = vmatprep.subr.bf16.mxu0 0
        %2569 = vmatpush1.bf16.msra.mxu0 %v1972
        %2570 = vmatprep.subr.bf16.mxu0 0
        %2571 = vmatpush1.bf16.msra.mxu0 %v1977
        %2572 = vmatprep.subr.bf16.mxu0 0
        %2573 = vmatpush1.bf16.msra.mxu0 %v1982
        %2574 = vmatprep.subr.bf16.mxu0 0
        %2575 = vmatpush1.bf16.msra.mxu0 %v1987
        %2576 = vmatprep.subr.bf16.mxu0 0
        %2577 = vmatpush1.bf16.msra.mxu0 %v1992
        %2578 = vmatprep.subr.bf16.mxu0 0
        %2579 = vmatpush1.bf16.msra.mxu0 %v1997
        %2580 = vmatprep.subr.bf16.mxu0 0
        %2581 = vmatpush1.bf16.msra.mxu0 %v2002
        %2582 = vmatprep.subr.bf16.mxu0 0
        %2583 = vmatpush1.bf16.msra.mxu0 %v2007
        %2584 = vmatprep.subr.bf16.mxu0 0
        %2585 = vmatpush1.bf16.msra.mxu0 %v2012
        %2586 = vmatprep.subr.bf16.mxu0 0
        %2587 = vmatpush1.bf16.msra.mxu0 %v2017
        %2588 = vmatprep.subr.bf16.mxu0 0
        %2589 = vmatpush1.bf16.msra.mxu0 %v2022
        %2590 = vmatprep.subr.bf16.mxu0 0
        %2591 = vmatpush1.bf16.msra.mxu0 %v2027
        %2592 = vmatprep.subr.bf16.mxu0 0
        %2593 = vmatpush1.bf16.msra.mxu0 %v2032
        %2594 = vmatprep.subr.bf16.mxu0 0
        %2595 = vmatpush1.bf16.msra.mxu0 %v2037
        %2596 = vmatprep.mubr.bf16.mxu0 %v1210
        %2597 = vmatmul.mubr.bf16.gmra.mrb[0].mxu0 %v1209
        %v2598 = vpop.f32.mrb[0].mxu0
        %v2599 = vadd.f32 %v2559, %v2598
        %v2600 = vpop.f32.mrb[0].mxu0
        %v2601 = vpop.f32.mrb[0].mxu0
        %v2602 = vpop.f32.mrb[0].mxu0
        %2603 = vdwg.mxu0
        %2604 = vmatprep.subr.bf16.mxu0 0
        %2605 = vmatpush1.bf16.msra.mxu0 %v2042
        %2606 = vmatprep.subr.bf16.mxu0 0
        %2607 = vmatpush1.bf16.msra.mxu0 %v2047
        %2608 = vmatprep.subr.bf16.mxu0 0
        %2609 = vmatpush1.bf16.msra.mxu0 %v2052
        %2610 = vmatprep.subr.bf16.mxu0 0
        %2611 = vmatpush1.bf16.msra.mxu0 %v2057
        %2612 = vmatprep.subr.bf16.mxu0 0
        %2613 = vmatpush1.bf16.msra.mxu0 %v2062
        %2614 = vmatprep.subr.bf16.mxu0 0
        %2615 = vmatpush1.bf16.msra.mxu0 %v2067
        %2616 = vmatprep.subr.bf16.mxu0 0
        %2617 = vmatpush1.bf16.msra.mxu0 %v2072
        %2618 = vmatprep.subr.bf16.mxu0 0
        %2619 = vmatpush1.bf16.msra.mxu0 %v2077
        %2620 = vmatprep.subr.bf16.mxu0 0
        %2621 = vmatpush1.bf16.msra.mxu0 0
        %2622 = vmatprep.subr.bf16.mxu0 0
        %2623 = vmatpush1.bf16.msra.mxu0 0
        %2624 = vmatprep.subr.bf16.mxu0 0
        %2625 = vmatpush1.bf16.msra.mxu0 0
        %2626 = vmatprep.subr.bf16.mxu0 0
        %2627 = vmatpush1.bf16.msra.mxu0 0
        %2628 = vmatprep.subr.bf16.mxu0 0
        %2629 = vmatpush1.bf16.msra.mxu0 0
        %2630 = vmatprep.subr.bf16.mxu0 0
        %2631 = vmatpush1.bf16.msra.mxu0 0
        %2632 = vmatprep.subr.bf16.mxu0 0
        %2633 = vmatpush1.bf16.msra.mxu0 0
        %2634 = vmatprep.subr.bf16.mxu0 0
        %2635 = vmatpush1.bf16.msra.mxu0 0
        %2636 = vmatprep.mubr.bf16.mxu0 0
        %2637 = vmatmul.mubr.bf16.gmra.mrb[0].mxu0 %v1211
        %v2638 = vpop.f32.mrb[0].mxu0
        %v2639 = vadd.f32 %v2599, %v2638
        %v2640 = vpop.f32.mrb[0].mxu0
        %v2641 = vpop.f32.mrb[0].mxu0
        %v2642 = vpop.f32.mrb[0].mxu0
        %2643 = vdwg.mxu0
        %v2649 = vcombine.low %v2395, %v2397
        %v2650 = vcombine.low %v2518, %v2520
        %v2652 = vunpack.c.l.s4 1983009808
        %v2653 = vunpack.c.0.s8 %v2652
        %v2654 = vlaneseq
        %v2655 = vshrl.u32 %v2654, 7
        %v2656 = vsub.s32 %v2653, %v2655
        %v2657 = vrot.slane %v2649, %v2656
        %v2659 = vunpack.c.l.s4 1983009808
        %v2660 = vunpack.c.0.s8 %v2659
        %v2661 = vlaneseq
        %v2662 = vshrl.u32 %v2661, 7
        %v2663 = vsub.s32 %v2660, %v2662
        %v2664 = vrot.slane %v2650, %v2663
        %v2665 = vcombine.low %v2657, %v2664
        %v2667 = vunpack.c.l.s4 1983009808
        %v2668 = vunpack.c.0.s8 %v2667
        %v2669 = vlaneseq
        %v2670 = vshrl.u32 %v2669, 7
        %v2671 = vsub.s32 %v2668, %v2670
        %v2672 = vrot.slane %v2639, %v2671
        %2675 = vst [vmem:[%s351] sm:$0xff] %v2665
        %2676 = vst [vmem:[%s351 + $0x8] sm:$0x3] %v2672
        %s2677 = sand.u32 %s211, 1
        %s2678 = scalar_lea.sflag [#allocation3], %s2677
        %s2679 = sand.u32 %s211, 1
        %s2680 = smul.addr %s2679, 10
        %s2681 = scalar_lea.vmem [#allocation2], %s2680
        // Predicated region
        $region49: #{forward.7} parent=47 // pred_check
          %p2682 = pneg %p221
        $region50: #{forward.7} parent=47 // pred_check_branch
          %2684 = sbr.rel (%p2682) target = $region52
        $region51: #{forward.7} parent=47 // pred_region
          %s2686 = ssub.s32 160, 160
          %2687 = vsyncadd %s2678, %s2686
          %s2688 = smul.addr %s21, 5
          %s2689 = smul.addr %s2688, 32
          %s2690 = scalar_lea.hbm %s7, %s2689
          %s2692 = sshll.u32 %s2681, 4
          %s2693 = int_to_ptr.vmem [resolvable:$true] %s2692
          %2695 = dma.vmem_to_hbm [thread:$0]  %s2693, 160, %s2690, %s2678
        $region52: #{forward.7} parent=47 // pred_fallthru
          _
      $region48: #{forward.7} parent=5 // pred_fallthru
        _
      %p2696 = scmp.le.s32.totalorder 2, %s16
      // Predicated region
      $region53: #{forward.7} parent=5 // pred_check
        %p2697 = pneg %p2696
      $region54: #{forward.7} parent=5 // pred_check_branch
        %2699 = sbr.rel (%p2697) target = $region56
      $region55: #{forward.7} parent=5 // pred_region
        %s2700 = ssub.s32 %s16, 2
        // Predicated region
        $region57: #{forward.7} parent=55 // pred_check
          %p2701 = pneg %p227
        $region58: #{forward.7} parent=55 // pred_check_branch
          %2703 = sbr.rel (%p2701) target = $region60
        $region59: #{forward.7} parent=55 // pred_region
          %s2704 = sand.u32 %s212, 1
          %s2705 = scalar_lea.sflag [#allocation3], %s2704
          %s2706 = sand.u32 %s212, 1
          %s2707 = smul.addr %s2706, 10
          %s2708 = scalar_lea.vmem [#allocation2], %s2707
          %2709 = dma.done %s2705, 160
        $region60: #{forward.7} parent=55 // pred_fallthru
          _
      $region56: #{forward.7} parent=5 // pred_fallthru
        _
    $region6: #{forward.7} parent=1 // loop_footer
      %s20 = sadd.s32 1, %s16
    $region7: #{forward.7} parent=1 // loop_footer_branch
      %15 = sbr.rel target = $region3
    $region8: #{forward.7} parent=1 // loop_exit
      _
    %2710 = vsyncpa [#allocation3], 1
    %s2711 = scalar_lea.sflag [#allocation3], 1
    %2712 = vsyncpa %s2711, 1

</llo_original>
